<compile_context>
chip_gen: v7x
topology: tpu7x:2x2x1
jax: 0.10.0
libtpu: 0.0.40
codegen_flags: <defaults>
</compile_context>

<pallas_src>
import functools

import jax
import jax.numpy as jnp
from jax.experimental import pallas as pl
from jax.experimental.pallas import tpu as pltpu


def _basic_block_kernel(x_ref, w1_ref, b1_ref, w2_ref, b2_ref, o_ref, pad_ref,
                        *, H, W):
    # x_ref  : (H, W, Cin)     f32   one image, NHWC (batch squeezed), unpadded
    # w1_ref : (9, Cin, C)     bf16  conv1 taps (index = 3*dh + dw), BN1 scale folded
    # b1_ref : (1, C)          f32   folded BN1 bias
    # w2_ref : (9, C, C)       bf16  conv2 taps, BN2 scale folded
    # b2_ref : (1, C)          f32   folded BN2 bias
    # o_ref  : (H, W, C)       f32   output block
    # pad_ref: (H+2, W+4, C)   bf16  shared zero-padded slab for BOTH convs.  Padded
    #          image column c lives at slab column c+1, so the real image occupies
    #          [1:H+1, 2:W+2, :] and every store onto the packed bf16 sublane axis
    #          (the W axis) starts/ends at an even offset.
    C = o_ref.shape[-1]
    Cin = x_ref.shape[-1]
    bf16 = jnp.bfloat16

    # ---- zero the 1-px border (cheap: 2 rows + 2 two-wide column strips); only the
    #      interior is overwritten per image, so borders stay zero through the step ----
    pad_ref[0:1, :, :] = jnp.zeros((1, W + 4, C), bf16)
    pad_ref[H + 1:H + 2, :, :] = jnp.zeros((1, W + 4, C), bf16)
    pad_ref[:, 0:2, :] = jnp.zeros((H + 2, 2, C), bf16)
    pad_ref[:, W + 2:W + 4, :] = jnp.zeros((H + 2, 2, C), bf16)

    def _conv_taps(w_ref, k):
        # 9 accumulated MXU matmuls (K = k), no lane-axis concatenate.
        acc = None
        for dw in range(3):
            col = pad_ref[:, dw + 1:dw + 1 + W, :]          # (H+2, W, k) bf16
            for dh in range(3):
                xs = col[dh:dh + H].reshape(H * W, k)       # free: W % 8 == 0
                part = jnp.dot(xs, w_ref[3 * dh + dw],
                               preferred_element_type=jnp.float32)
                acc = part if acc is None else acc + part   # init from first tap
        return acc                                          # (H*W, C) f32

    # ---- conv1 + bn1 (scale folded into weights) + relu ----
    pad_ref[1:H + 1, 2:W + 2, :] = x_ref[...].astype(bf16)  # bf16 MXU operand, cast once
    out1 = jnp.maximum(_conv_taps(w1_ref, Cin) + b1_ref[...], 0.0)

    # ---- re-pad the intermediate (borders already zero) and conv2 + bn2 ----
    pad_ref[1:H + 1, 2:W + 2, :] = out1.reshape(H, W, C).astype(bf16)
    acc2 = _conv_taps(w2_ref, C)

    # ---- residual (exact f32 identity path, like PyTorch) + relu ----
    residual = x_ref[...].reshape(H * W, Cin)
    out2 = jnp.maximum(acc2 + b2_ref[...] + residual, 0.0)
    o_ref[...] = out2.reshape(H, W, C)


def _fold_bn(gamma, beta, mean, var, eps=1e-5):
    scale = gamma / jnp.sqrt(var + eps)
    bias = beta - mean * scale
    return scale.astype(jnp.float32), bias.astype(jnp.float32)


def _round_up(x, m):
    return (x + m - 1) // m * m


def _vmem_bytes(shape, dtype):
    """Approximate (sublane, lane)-tiled VMEM footprint of one buffer."""
    itemsize = jnp.dtype(dtype).itemsize
    sublane = 8 * max(1, 4 // itemsize)          # 8 rows for f32, 16 for bf16
    dims = list(shape)
    if len(dims) >= 1:
        dims[-1] = _round_up(dims[-1], 128)
    if len(dims) >= 2:
        dims[-2] = _round_up(dims[-2], sublane)
    total = itemsize
    for d in dims:
        total *= d
    return total


@jax.jit
def basic_block_forward(x_nchw, params):
    """BasicBlock forward.  x_nchw: (N, Cin, H, W) float32.  Returns NCHW float32."""
    w1, g1, be1, m1, v1, w2, g2, be2, m2, v2 = params
    N, Cin, H, W = x_nchw.shape
    C = w1.shape[0]
    # Module defaults: stride=1, downsample=None  =>  Cin == planes.
    assert Cin == C and w1.shape[1] == Cin and w2.shape[0] == C and w2.shape[1] == C, (
        "BasicBlock with downsample / stride != 1 is not implemented")
    assert W % 8 == 0, (
        "TODO(synk): right-pad W to a multiple of 8 (and mask the extra out1 "
        "columns) for ResNet widths 28/14/7")

    # NCHW -> NHWC; the residual path stays f32 (exact identity add), the conv path
    # is cast to bf16 once inside the kernel.  No jnp.pad pass — padding is done
    # in-kernel into the VMEM slab.
    x_nhwc = jnp.transpose(x_nchw, (0, 2, 3, 1)).astype(jnp.float32)

    s1, b1 = _fold_bn(g1, be1, m1, v1)
    s2, b2 = _fold_bn(g2, be2, m2, v2)

    # Fold BN scales into the conv weights in f32, then cast the MXU operands to
    # bf16.  Tap-major layout: w_t[3*dh + dw] is the (Cin, Cout) tap matrix.
    w1_t = (jnp.transpose(w1, (2, 3, 1, 0)) * s1).reshape(9, Cin, C).astype(jnp.bfloat16)
    w2_t = (jnp.transpose(w2, (2, 3, 1, 0)) * s2).reshape(9, C, C).astype(jnp.bfloat16)
    b1 = b1.reshape(1, C)
    b2 = b2.reshape(1, C)

    # VMEM request derived from the actual tiled footprint (double-buffered blocks +
    # the shared bf16 pad scratch), with headroom, capped well below v7x's 64 MiB.
    footprint = (
        2 * _vmem_bytes((H, W, Cin), jnp.float32)          # x block
        + 2 * _vmem_bytes((H, W, C), jnp.float32)          # output block
        + 2 * _vmem_bytes((9, Cin, C), jnp.bfloat16)       # conv1 weights
        + 2 * _vmem_bytes((9, C, C), jnp.bfloat16)         # conv2 weights
        + 4 * _vmem_bytes((1, C), jnp.float32)             # biases
        + _vmem_bytes((H + 2, W + 4, C), jnp.bfloat16)     # shared pad scratch
    )
    vmem_limit = int(min(48 * 1024 * 1024, max(8 * 1024 * 1024, 2 * footprint)))

    kernel = functools.partial(_basic_block_kernel, H=H, W=W)

    out_nhwc = pl.pallas_call(
        kernel,
        out_shape=jax.ShapeDtypeStruct((N, H, W, C), jnp.float32),
        grid_spec=pltpu.PrefetchScalarGridSpec(
            num_scalar_prefetch=0,
            grid=(N,),
            in_specs=[
                pl.BlockSpec((None, H, W, Cin), lambda n: (n, 0, 0, 0)),
                pl.BlockSpec((9, Cin, C), lambda n: (0, 0, 0)),
                pl.BlockSpec((1, C), lambda n: (0, 0)),
                pl.BlockSpec((9, C, C), lambda n: (0, 0, 0)),
                pl.BlockSpec((1, C), lambda n: (0, 0)),
            ],
            out_specs=pl.BlockSpec((None, H, W, C), lambda n: (n, 0, 0, 0)),
            scratch_shapes=[pltpu.VMEM((H + 2, W + 4, C), jnp.bfloat16)],
        ),
        compiler_params=pltpu.CompilerParams(
            dimension_semantics=("parallel",),
            vmem_limit_bytes=vmem_limit),
    )(x_nhwc, w1_t, b1, w2_t, b2)

    return jnp.transpose(out_nhwc, (0, 3, 1, 2))


def _reference_forward(x_nchw, params):
    """Pure-JAX reference (lax.conv).  Mirrors the kernel's quantisation points:
    conv inputs and the scale-folded weights go through bf16; the BN bias adds,
    the identity/residual path and all other elementwise math stay f32."""
    w1, g1, be1, m1, v1, w2, g2, be2, m2, v2 = params
    eps = 1e-5
    bf = lambda a: a.astype(jnp.bfloat16).astype(jnp.float32)

    def conv3x3(x, w):  # x NCHW, w OIHW
        return jax.lax.conv_general_dilated(
            x, w, window_strides=(1, 1), padding=((1, 1), (1, 1)),
            dimension_numbers=("NCHW", "OIHW", "NCHW"))

    s1 = g1 / jnp.sqrt(v1 + eps)
    bias1 = be1 - m1 * s1
    s2 = g2 / jnp.sqrt(v2 + eps)
    bias2 = be2 - m2 * s2
    w1e = bf(w1 * s1[:, None, None, None])
    w2e = bf(w2 * s2[:, None, None, None])

    out = conv3x3(bf(x_nchw), w1e) + bias1[None, :, None, None]
    out = jax.nn.relu(out)
    out = conv3x3(bf(out), w2e) + bias2[None, :, None, None]
    out = out + x_nchw            # f32 identity path, as in the PyTorch module
    return jax.nn.relu(out)


if __name__ == "__main__":
    key = jax.random.PRNGKey(0)
    N, C, H, W = 2, 4, 16, 16          # inplanes = planes = 4, stride = 1
    ks = jax.random.split(key, 11)

    x = jax.random.normal(ks[0], (N, C, H, W), jnp.float32)

    w1 = jax.random.normal(ks[1], (C, C, 3, 3), jnp.float32) * 0.1
    g1 = jax.random.uniform(ks[2], (C,), jnp.float32, 0.5, 1.5)
    be1 = jax.random.normal(ks[3], (C,), jnp.float32) * 0.1
    m1 = jax.random.normal(ks[4], (C,), jnp.float32) * 0.1
    v1 = jax.random.uniform(ks[5], (C,), jnp.float32, 0.5, 1.5)

    w2 = jax.random.normal(ks[6], (C, C, 3, 3), jnp.float32) * 0.1
    g2 = jax.random.uniform(ks[7], (C,), jnp.float32, 0.5, 1.5)
    be2 = jax.random.normal(ks[8], (C,), jnp.float32) * 0.1
    m2 = jax.random.normal(ks[9], (C,), jnp.float32) * 0.1
    v2 = jax.random.uniform(ks[10], (C,), jnp.float32, 0.5, 1.5)

    params = (w1, g1, be1, m1, v1, w2, g2, be2, m2, v2)

    out = jax.block_until_ready(basic_block_forward(x, params))
    ref = _reference_forward(x, params)

    assert out.shape == (N, C, H, W)
    max_err = jnp.max(jnp.abs(out - ref))
    assert jnp.allclose(out, ref, atol=5e-3, rtol=5e-3), f"max abs err {max_err}"

    print("KERNEL_OK")
</pallas_src>

<mosaic_0001>
module attributes {stable_mosaic.version = 11 : i64} {
  func.func @_basic_block_kernel(%arg0: i32, %arg1: memref<1x16x16x4xf32, #tpu.memory_space<vmem>>, %arg2: memref<9x4x4xbf16, #tpu.memory_space<vmem>>, %arg3: memref<1x4xf32, #tpu.memory_space<vmem>>, %arg4: memref<9x4x4xbf16, #tpu.memory_space<vmem>>, %arg5: memref<1x4xf32, #tpu.memory_space<vmem>>, %arg6: memref<1x16x16x4xf32, #tpu.memory_space<vmem>>, %arg7: memref<18x20x4xbf16, #tpu.memory_space<vmem>>) attributes {dimension_semantics = [#tpu.dimension_semantics<parallel>], iteration_bounds = array<i64: 2>, scalar_prefetch = 0 : i64, scratch_operands = 1 : i64, tpu.core_type = #tpu.core_type<tc>, window_params = [{transform_indices = @transform_0, window_bounds = array<i64: 1, 16, 16, 4>}, {pipeline_mode = #tpu.pipeline_mode<synchronous>, transform_indices = @transform_1, window_bounds = array<i64: 9, 4, 4>}, {pipeline_mode = #tpu.pipeline_mode<synchronous>, transform_indices = @transform_2, window_bounds = array<i64: 1, 4>}, {pipeline_mode = #tpu.pipeline_mode<synchronous>, transform_indices = @transform_3, window_bounds = array<i64: 9, 4, 4>}, {pipeline_mode = #tpu.pipeline_mode<synchronous>, transform_indices = @transform_4, window_bounds = array<i64: 1, 4>}, {transform_indices = @transform_5, window_bounds = array<i64: 1, 16, 16, 4>}]} {
    %cst = arith.constant 0.000000e+00 : bf16
    %0 = vector.broadcast %cst : bf16 to vector<1x20x4xbf16>
    %c0 = arith.constant 0 : index
    %c0_0 = arith.constant 0 : index
    %c0_1 = arith.constant 0 : index
    %1 = vector.load %arg7[%c0, %c0_0, %c0_1] : memref<18x20x4xbf16, #tpu.memory_space<vmem>>, vector<1x20x4xbf16>
    tpu.vector_store %arg7[%c0, %c0_0, %c0_1], %0 {strides = array<i32>} : memref<18x20x4xbf16, #tpu.memory_space<vmem>>, vector<1x20x4xbf16>,
    %cst_2 = arith.constant 0.000000e+00 : bf16
    %2 = vector.broadcast %cst_2 : bf16 to vector<1x20x4xbf16>
    %c17 = arith.constant 17 : index
    %c0_3 = arith.constant 0 : index
    %c0_4 = arith.constant 0 : index
    %3 = vector.load %arg7[%c17, %c0_3, %c0_4] : memref<18x20x4xbf16, #tpu.memory_space<vmem>>, vector<1x20x4xbf16>
    tpu.vector_store %arg7[%c17, %c0_3, %c0_4], %2 {strides = array<i32>} : memref<18x20x4xbf16, #tpu.memory_space<vmem>>, vector<1x20x4xbf16>,
    %cst_5 = arith.constant 0.000000e+00 : bf16
    %4 = vector.broadcast %cst_5 : bf16 to vector<18x2x4xbf16>
    %c0_6 = arith.constant 0 : index
    %c0_7 = arith.constant 0 : index
    %c0_8 = arith.constant 0 : index
    %5 = vector.load %arg7[%c0_6, %c0_7, %c0_8] : memref<18x20x4xbf16, #tpu.memory_space<vmem>>, vector<18x2x4xbf16>
    tpu.vector_store %arg7[%c0_6, %c0_7, %c0_8], %4 {strides = array<i32>} : memref<18x20x4xbf16, #tpu.memory_space<vmem>>, vector<18x2x4xbf16>,
    %cst_9 = arith.constant 0.000000e+00 : bf16
    %6 = vector.broadcast %cst_9 : bf16 to vector<18x2x4xbf16>
    %c0_10 = arith.constant 0 : index
    %c18 = arith.constant 18 : index
    %c0_11 = arith.constant 0 : index
    %7 = vector.load %arg7[%c0_10, %c18, %c0_11] : memref<18x20x4xbf16, #tpu.memory_space<vmem>>, vector<18x2x4xbf16>
    tpu.vector_store %arg7[%c0_10, %c18, %c0_11], %6 {strides = array<i32>} : memref<18x20x4xbf16, #tpu.memory_space<vmem>>, vector<18x2x4xbf16>,
    %c0_12 = arith.constant 0 : index
    %c0_13 = arith.constant 0 : index
    %c0_14 = arith.constant 0 : index
    %c0_15 = arith.constant 0 : index
    %8 = vector.load %arg1[%c0_12, %c0_13, %c0_14, %c0_15] : memref<1x16x16x4xf32, #tpu.memory_space<vmem>>, vector<1x16x16x4xf32>
    %9 = vector.shape_cast %8 : vector<1x16x16x4xf32> to vector<16x16x4xf32>
    %10 = arith.truncf %9 : vector<16x16x4xf32> to vector<16x16x4xbf16>
    %c1 = arith.constant 1 : index
    %c2 = arith.constant 2 : index
    %c0_16 = arith.constant 0 : index
    %11 = vector.load %arg7[%c1, %c2, %c0_16] : memref<18x20x4xbf16, #tpu.memory_space<vmem>>, vector<16x16x4xbf16>
    tpu.vector_store %arg7[%c1, %c2, %c0_16], %10 {strides = array<i32>} : memref<18x20x4xbf16, #tpu.memory_space<vmem>>, vector<16x16x4xbf16>,
    %c0_17 = arith.constant 0 : index
    %c1_18 = arith.constant 1 : index
    %c0_19 = arith.constant 0 : index
    %12 = vector.load %arg7[%c0_17, %c1_18, %c0_19] : memref<18x20x4xbf16, #tpu.memory_space<vmem>>, vector<18x16x4xbf16>
    %13 = vector.extract_strided_slice %12 {offsets = [0, 0, 0], sizes = [16, 16, 4], strides = [1, 1, 1]} : vector<18x16x4xbf16> to vector<16x16x4xbf16>
    %14 = vector.shape_cast %13 : vector<16x16x4xbf16> to vector<256x4xbf16>
    %c0_20 = arith.constant 0 : index
    %c0_21 = arith.constant 0 : index
    %c0_22 = arith.constant 0 : index
    %15 = vector.load %arg2[%c0_20, %c0_21, %c0_22] : memref<9x4x4xbf16, #tpu.memory_space<vmem>>, vector<1x4x4xbf16>
    %16 = vector.shape_cast %15 : vector<1x4x4xbf16> to vector<4x4xbf16>
    %cst_23 = arith.constant dense<0.000000e+00> : vector<256x4xf32>
    %17 = tpu.matmul %14, %16, %cst_23 {dimension_numbers = #tpu.dot_dimension_numbers<[1], [0], [0], [1], [0, 0, 1, 1], [], []>} : vector<256x4xbf16>, vector<4x4xbf16>, vector<256x4xf32> -> vector<256x4xf32>
    %18 = vector.extract_strided_slice %12 {offsets = [1, 0, 0], sizes = [16, 16, 4], strides = [1, 1, 1]} : vector<18x16x4xbf16> to vector<16x16x4xbf16>
    %19 = vector.shape_cast %18 : vector<16x16x4xbf16> to vector<256x4xbf16>
    %c3 = arith.constant 3 : index
    %c0_24 = arith.constant 0 : index
    %c0_25 = arith.constant 0 : index
    %20 = vector.load %arg2[%c3, %c0_24, %c0_25] : memref<9x4x4xbf16, #tpu.memory_space<vmem>>, vector<1x4x4xbf16>
    %21 = vector.shape_cast %20 : vector<1x4x4xbf16> to vector<4x4xbf16>
    %cst_26 = arith.constant dense<0.000000e+00> : vector<256x4xf32>
    %22 = tpu.matmul %19, %21, %cst_26 {dimension_numbers = #tpu.dot_dimension_numbers<[1], [0], [0], [1], [0, 0, 1, 1], [], []>} : vector<256x4xbf16>, vector<4x4xbf16>, vector<256x4xf32> -> vector<256x4xf32>
    %23 = arith.addf %17, %22 : vector<256x4xf32>
    %24 = vector.extract_strided_slice %12 {offsets = [2, 0, 0], sizes = [16, 16, 4], strides = [1, 1, 1]} : vector<18x16x4xbf16> to vector<16x16x4xbf16>
    %25 = vector.shape_cast %24 : vector<16x16x4xbf16> to vector<256x4xbf16>
    %c6 = arith.constant 6 : index
    %c0_27 = arith.constant 0 : index
    %c0_28 = arith.constant 0 : index
    %26 = vector.load %arg2[%c6, %c0_27, %c0_28] : memref<9x4x4xbf16, #tpu.memory_space<vmem>>, vector<1x4x4xbf16>
    %27 = vector.shape_cast %26 : vector<1x4x4xbf16> to vector<4x4xbf16>
    %cst_29 = arith.constant dense<0.000000e+00> : vector<256x4xf32>
    %28 = tpu.matmul %25, %27, %cst_29 {dimension_numbers = #tpu.dot_dimension_numbers<[1], [0], [0], [1], [0, 0, 1, 1], [], []>} : vector<256x4xbf16>, vector<4x4xbf16>, vector<256x4xf32> -> vector<256x4xf32>
    %29 = arith.addf %23, %28 : vector<256x4xf32>
    %c0_30 = arith.constant 0 : index
    %c2_31 = arith.constant 2 : index
    %c0_32 = arith.constant 0 : index
    %30 = vector.load %arg7[%c0_30, %c2_31, %c0_32] : memref<18x20x4xbf16, #tpu.memory_space<vmem>>, vector<18x16x4xbf16>
    %31 = vector.extract_strided_slice %30 {offsets = [0, 0, 0], sizes = [16, 16, 4], strides = [1, 1, 1]} : vector<18x16x4xbf16> to vector<16x16x4xbf16>
    %32 = vector.shape_cast %31 : vector<16x16x4xbf16> to vector<256x4xbf16>
    %c1_33 = arith.constant 1 : index
    %c0_34 = arith.constant 0 : index
    %c0_35 = arith.constant 0 : index
    %33 = vector.load %arg2[%c1_33, %c0_34, %c0_35] : memref<9x4x4xbf16, #tpu.memory_space<vmem>>, vector<1x4x4xbf16>
    %34 = vector.shape_cast %33 : vector<1x4x4xbf16> to vector<4x4xbf16>
    %cst_36 = arith.constant dense<0.000000e+00> : vector<256x4xf32>
    %35 = tpu.matmul %32, %34, %cst_36 {dimension_numbers = #tpu.dot_dimension_numbers<[1], [0], [0], [1], [0, 0, 1, 1], [], []>} : vector<256x4xbf16>, vector<4x4xbf16>, vector<256x4xf32> -> vector<256x4xf32>
    %36 = arith.addf %29, %35 : vector<256x4xf32>
    %37 = vector.extract_strided_slice %30 {offsets = [1, 0, 0], sizes = [16, 16, 4], strides = [1, 1, 1]} : vector<18x16x4xbf16> to vector<16x16x4xbf16>
    %38 = vector.shape_cast %37 : vector<16x16x4xbf16> to vector<256x4xbf16>
    %c4 = arith.constant 4 : index
    %c0_37 = arith.constant 0 : index
    %c0_38 = arith.constant 0 : index
    %39 = vector.load %arg2[%c4, %c0_37, %c0_38] : memref<9x4x4xbf16, #tpu.memory_space<vmem>>, vector<1x4x4xbf16>
    %40 = vector.shape_cast %39 : vector<1x4x4xbf16> to vector<4x4xbf16>
    %cst_39 = arith.constant dense<0.000000e+00> : vector<256x4xf32>
    %41 = tpu.matmul %38, %40, %cst_39 {dimension_numbers = #tpu.dot_dimension_numbers<[1], [0], [0], [1], [0, 0, 1, 1], [], []>} : vector<256x4xbf16>, vector<4x4xbf16>, vector<256x4xf32> -> vector<256x4xf32>
    %42 = arith.addf %36, %41 : vector<256x4xf32>
    %43 = vector.extract_strided_slice %30 {offsets = [2, 0, 0], sizes = [16, 16, 4], strides = [1, 1, 1]} : vector<18x16x4xbf16> to vector<16x16x4xbf16>
    %44 = vector.shape_cast %43 : vector<16x16x4xbf16> to vector<256x4xbf16>
    %c7 = arith.constant 7 : index
    %c0_40 = arith.constant 0 : index
    %c0_41 = arith.constant 0 : index
    %45 = vector.load %arg2[%c7, %c0_40, %c0_41] : memref<9x4x4xbf16, #tpu.memory_space<vmem>>, vector<1x4x4xbf16>
    %46 = vector.shape_cast %45 : vector<1x4x4xbf16> to vector<4x4xbf16>
    %cst_42 = arith.constant dense<0.000000e+00> : vector<256x4xf32>
    %47 = tpu.matmul %44, %46, %cst_42 {dimension_numbers = #tpu.dot_dimension_numbers<[1], [0], [0], [1], [0, 0, 1, 1], [], []>} : vector<256x4xbf16>, vector<4x4xbf16>, vector<256x4xf32> -> vector<256x4xf32>
    %48 = arith.addf %42, %47 : vector<256x4xf32>
    %c0_43 = arith.constant 0 : index
    %c3_44 = arith.constant 3 : index
    %c0_45 = arith.constant 0 : index
    %49 = vector.load %arg7[%c0_43, %c3_44, %c0_45] : memref<18x20x4xbf16, #tpu.memory_space<vmem>>, vector<18x16x4xbf16>
    %50 = vector.extract_strided_slice %49 {offsets = [0, 0, 0], sizes = [16, 16, 4], strides = [1, 1, 1]} : vector<18x16x4xbf16> to vector<16x16x4xbf16>
    %51 = vector.shape_cast %50 : vector<16x16x4xbf16> to vector<256x4xbf16>
    %c2_46 = arith.constant 2 : index
    %c0_47 = arith.constant 0 : index
    %c0_48 = arith.constant 0 : index
    %52 = vector.load %arg2[%c2_46, %c0_47, %c0_48] : memref<9x4x4xbf16, #tpu.memory_space<vmem>>, vector<1x4x4xbf16>
    %53 = vector.shape_cast %52 : vector<1x4x4xbf16> to vector<4x4xbf16>
    %cst_49 = arith.constant dense<0.000000e+00> : vector<256x4xf32>
    %54 = tpu.matmul %51, %53, %cst_49 {dimension_numbers = #tpu.dot_dimension_numbers<[1], [0], [0], [1], [0, 0, 1, 1], [], []>} : vector<256x4xbf16>, vector<4x4xbf16>, vector<256x4xf32> -> vector<256x4xf32>
    %55 = arith.addf %48, %54 : vector<256x4xf32>
    %56 = vector.extract_strided_slice %49 {offsets = [1, 0, 0], sizes = [16, 16, 4], strides = [1, 1, 1]} : vector<18x16x4xbf16> to vector<16x16x4xbf16>
    %57 = vector.shape_cast %56 : vector<16x16x4xbf16> to vector<256x4xbf16>
    %c5 = arith.constant 5 : index
    %c0_50 = arith.constant 0 : index
    %c0_51 = arith.constant 0 : index
    %58 = vector.load %arg2[%c5, %c0_50, %c0_51] : memref<9x4x4xbf16, #tpu.memory_space<vmem>>, vector<1x4x4xbf16>
    %59 = vector.shape_cast %58 : vector<1x4x4xbf16> to vector<4x4xbf16>
    %cst_52 = arith.constant dense<0.000000e+00> : vector<256x4xf32>
    %60 = tpu.matmul %57, %59, %cst_52 {dimension_numbers = #tpu.dot_dimension_numbers<[1], [0], [0], [1], [0, 0, 1, 1], [], []>} : vector<256x4xbf16>, vector<4x4xbf16>, vector<256x4xf32> -> vector<256x4xf32>
    %61 = arith.addf %55, %60 : vector<256x4xf32>
    %62 = vector.extract_strided_slice %49 {offsets = [2, 0, 0], sizes = [16, 16, 4], strides = [1, 1, 1]} : vector<18x16x4xbf16> to vector<16x16x4xbf16>
    %63 = vector.shape_cast %62 : vector<16x16x4xbf16> to vector<256x4xbf16>
    %c8 = arith.constant 8 : index
    %c0_53 = arith.constant 0 : index
    %c0_54 = arith.constant 0 : index
    %64 = vector.load %arg2[%c8, %c0_53, %c0_54] : memref<9x4x4xbf16, #tpu.memory_space<vmem>>, vector<1x4x4xbf16>
    %65 = vector.shape_cast %64 : vector<1x4x4xbf16> to vector<4x4xbf16>
    %cst_55 = arith.constant dense<0.000000e+00> : vector<256x4xf32>
    %66 = tpu.matmul %63, %65, %cst_55 {dimension_numbers = #tpu.dot_dimension_numbers<[1], [0], [0], [1], [0, 0, 1, 1], [], []>} : vector<256x4xbf16>, vector<4x4xbf16>, vector<256x4xf32> -> vector<256x4xf32>
    %67 = arith.addf %61, %66 : vector<256x4xf32>
    %c0_56 = arith.constant 0 : index
    %c0_57 = arith.constant 0 : index
    %68 = vector.load %arg3[%c0_56, %c0_57] : memref<1x4xf32, #tpu.memory_space<vmem>>, vector<1x4xf32>
    %69 = vector.broadcast %68 : vector<1x4xf32> to vector<256x4xf32>
    %70 = arith.addf %67, %69 : vector<256x4xf32>
    %cst_58 = arith.constant 0.000000e+00 : f32
    %71 = vector.broadcast %cst_58 : f32 to vector<256x4xf32>
    %72 = arith.maximumf %70, %71 : vector<256x4xf32>
    %73 = vector.shape_cast %72 : vector<256x4xf32> to vector<16x16x4xf32>
    %74 = arith.truncf %73 : vector<16x16x4xf32> to vector<16x16x4xbf16>
    %c1_59 = arith.constant 1 : index
    %c2_60 = arith.constant 2 : index
    %c0_61 = arith.constant 0 : index
    %75 = vector.load %arg7[%c1_59, %c2_60, %c0_61] : memref<18x20x4xbf16, #tpu.memory_space<vmem>>, vector<16x16x4xbf16>
    tpu.vector_store %arg7[%c1_59, %c2_60, %c0_61], %74 {strides = array<i32>} : memref<18x20x4xbf16, #tpu.memory_space<vmem>>, vector<16x16x4xbf16>,
    %c0_62 = arith.constant 0 : index
    %c1_63 = arith.constant 1 : index
    %c0_64 = arith.constant 0 : index
    %76 = vector.load %arg7[%c0_62, %c1_63, %c0_64] : memref<18x20x4xbf16, #tpu.memory_space<vmem>>, vector<18x16x4xbf16>
    %77 = vector.extract_strided_slice %76 {offsets = [0, 0, 0], sizes = [16, 16, 4], strides = [1, 1, 1]} : vector<18x16x4xbf16> to vector<16x16x4xbf16>
    %78 = vector.shape_cast %77 : vector<16x16x4xbf16> to vector<256x4xbf16>
    %c0_65 = arith.constant 0 : index
    %c0_66 = arith.constant 0 : index
    %c0_67 = arith.constant 0 : index
    %79 = vector.load %arg4[%c0_65, %c0_66, %c0_67] : memref<9x4x4xbf16, #tpu.memory_space<vmem>>, vector<1x4x4xbf16>
    %80 = vector.shape_cast %79 : vector<1x4x4xbf16> to vector<4x4xbf16>
    %cst_68 = arith.constant dense<0.000000e+00> : vector<256x4xf32>
    %81 = tpu.matmul %78, %80, %cst_68 {dimension_numbers = #tpu.dot_dimension_numbers<[1], [0], [0], [1], [0, 0, 1, 1], [], []>} : vector<256x4xbf16>, vector<4x4xbf16>, vector<256x4xf32> -> vector<256x4xf32>
    %82 = vector.extract_strided_slice %76 {offsets = [1, 0, 0], sizes = [16, 16, 4], strides = [1, 1, 1]} : vector<18x16x4xbf16> to vector<16x16x4xbf16>
    %83 = vector.shape_cast %82 : vector<16x16x4xbf16> to vector<256x4xbf16>
    %c3_69 = arith.constant 3 : index
    %c0_70 = arith.constant 0 : index
    %c0_71 = arith.constant 0 : index
    %84 = vector.load %arg4[%c3_69, %c0_70, %c0_71] : memref<9x4x4xbf16, #tpu.memory_space<vmem>>, vector<1x4x4xbf16>
    %85 = vector.shape_cast %84 : vector<1x4x4xbf16> to vector<4x4xbf16>
    %cst_72 = arith.constant dense<0.000000e+00> : vector<256x4xf32>
    %86 = tpu.matmul %83, %85, %cst_72 {dimension_numbers = #tpu.dot_dimension_numbers<[1], [0], [0], [1], [0, 0, 1, 1], [], []>} : vector<256x4xbf16>, vector<4x4xbf16>, vector<256x4xf32> -> vector<256x4xf32>
    %87 = arith.addf %81, %86 : vector<256x4xf32>
    %88 = vector.extract_strided_slice %76 {offsets = [2, 0, 0], sizes = [16, 16, 4], strides = [1, 1, 1]} : vector<18x16x4xbf16> to vector<16x16x4xbf16>
    %89 = vector.shape_cast %88 : vector<16x16x4xbf16> to vector<256x4xbf16>
    %c6_73 = arith.constant 6 : index
    %c0_74 = arith.constant 0 : index
    %c0_75 = arith.constant 0 : index
    %90 = vector.load %arg4[%c6_73, %c0_74, %c0_75] : memref<9x4x4xbf16, #tpu.memory_space<vmem>>, vector<1x4x4xbf16>
    %91 = vector.shape_cast %90 : vector<1x4x4xbf16> to vector<4x4xbf16>
    %cst_76 = arith.constant dense<0.000000e+00> : vector<256x4xf32>
    %92 = tpu.matmul %89, %91, %cst_76 {dimension_numbers = #tpu.dot_dimension_numbers<[1], [0], [0], [1], [0, 0, 1, 1], [], []>} : vector<256x4xbf16>, vector<4x4xbf16>, vector<256x4xf32> -> vector<256x4xf32>
    %93 = arith.addf %87, %92 : vector<256x4xf32>
    %c0_77 = arith.constant 0 : index
    %c2_78 = arith.constant 2 : index
    %c0_79 = arith.constant 0 : index
    %94 = vector.load %arg7[%c0_77, %c2_78, %c0_79] : memref<18x20x4xbf16, #tpu.memory_space<vmem>>, vector<18x16x4xbf16>
    %95 = vector.extract_strided_slice %94 {offsets = [0, 0, 0], sizes = [16, 16, 4], strides = [1, 1, 1]} : vector<18x16x4xbf16> to vector<16x16x4xbf16>
    %96 = vector.shape_cast %95 : vector<16x16x4xbf16> to vector<256x4xbf16>
    %c1_80 = arith.constant 1 : index
    %c0_81 = arith.constant 0 : index
    %c0_82 = arith.constant 0 : index
    %97 = vector.load %arg4[%c1_80, %c0_81, %c0_82] : memref<9x4x4xbf16, #tpu.memory_space<vmem>>, vector<1x4x4xbf16>
    %98 = vector.shape_cast %97 : vector<1x4x4xbf16> to vector<4x4xbf16>
    %cst_83 = arith.constant dense<0.000000e+00> : vector<256x4xf32>
    %99 = tpu.matmul %96, %98, %cst_83 {dimension_numbers = #tpu.dot_dimension_numbers<[1], [0], [0], [1], [0, 0, 1, 1], [], []>} : vector<256x4xbf16>, vector<4x4xbf16>, vector<256x4xf32> -> vector<256x4xf32>
    %100 = arith.addf %93, %99 : vector<256x4xf32>
    %101 = vector.extract_strided_slice %94 {offsets = [1, 0, 0], sizes = [16, 16, 4], strides = [1, 1, 1]} : vector<18x16x4xbf16> to vector<16x16x4xbf16>
    %102 = vector.shape_cast %101 : vector<16x16x4xbf16> to vector<256x4xbf16>
    %c4_84 = arith.constant 4 : index
    %c0_85 = arith.constant 0 : index
    %c0_86 = arith.constant 0 : index
    %103 = vector.load %arg4[%c4_84, %c0_85, %c0_86] : memref<9x4x4xbf16, #tpu.memory_space<vmem>>, vector<1x4x4xbf16>
    %104 = vector.shape_cast %103 : vector<1x4x4xbf16> to vector<4x4xbf16>
    %cst_87 = arith.constant dense<0.000000e+00> : vector<256x4xf32>
    %105 = tpu.matmul %102, %104, %cst_87 {dimension_numbers = #tpu.dot_dimension_numbers<[1], [0], [0], [1], [0, 0, 1, 1], [], []>} : vector<256x4xbf16>, vector<4x4xbf16>, vector<256x4xf32> -> vector<256x4xf32>
    %106 = arith.addf %100, %105 : vector<256x4xf32>
    %107 = vector.extract_strided_slice %94 {offsets = [2, 0, 0], sizes = [16, 16, 4], strides = [1, 1, 1]} : vector<18x16x4xbf16> to vector<16x16x4xbf16>
    %108 = vector.shape_cast %107 : vector<16x16x4xbf16> to vector<256x4xbf16>
    %c7_88 = arith.constant 7 : index
    %c0_89 = arith.constant 0 : index
    %c0_90 = arith.constant 0 : index
    %109 = vector.load %arg4[%c7_88, %c0_89, %c0_90] : memref<9x4x4xbf16, #tpu.memory_space<vmem>>, vector<1x4x4xbf16>
    %110 = vector.shape_cast %109 : vector<1x4x4xbf16> to vector<4x4xbf16>
    %cst_91 = arith.constant dense<0.000000e+00> : vector<256x4xf32>
    %111 = tpu.matmul %108, %110, %cst_91 {dimension_numbers = #tpu.dot_dimension_numbers<[1], [0], [0], [1], [0, 0, 1, 1], [], []>} : vector<256x4xbf16>, vector<4x4xbf16>, vector<256x4xf32> -> vector<256x4xf32>
    %112 = arith.addf %106, %111 : vector<256x4xf32>
    %c0_92 = arith.constant 0 : index
    %c3_93 = arith.constant 3 : index
    %c0_94 = arith.constant 0 : index
    %113 = vector.load %arg7[%c0_92, %c3_93, %c0_94] : memref<18x20x4xbf16, #tpu.memory_space<vmem>>, vector<18x16x4xbf16>
    %114 = vector.extract_strided_slice %113 {offsets = [0, 0, 0], sizes = [16, 16, 4], strides = [1, 1, 1]} : vector<18x16x4xbf16> to vector<16x16x4xbf16>
    %115 = vector.shape_cast %114 : vector<16x16x4xbf16> to vector<256x4xbf16>
    %c2_95 = arith.constant 2 : index
    %c0_96 = arith.constant 0 : index
    %c0_97 = arith.constant 0 : index
    %116 = vector.load %arg4[%c2_95, %c0_96, %c0_97] : memref<9x4x4xbf16, #tpu.memory_space<vmem>>, vector<1x4x4xbf16>
    %117 = vector.shape_cast %116 : vector<1x4x4xbf16> to vector<4x4xbf16>
    %cst_98 = arith.constant dense<0.000000e+00> : vector<256x4xf32>
    %118 = tpu.matmul %115, %117, %cst_98 {dimension_numbers = #tpu.dot_dimension_numbers<[1], [0], [0], [1], [0, 0, 1, 1], [], []>} : vector<256x4xbf16>, vector<4x4xbf16>, vector<256x4xf32> -> vector<256x4xf32>
    %119 = arith.addf %112, %118 : vector<256x4xf32>
    %120 = vector.extract_strided_slice %113 {offsets = [1, 0, 0], sizes = [16, 16, 4], strides = [1, 1, 1]} : vector<18x16x4xbf16> to vector<16x16x4xbf16>
    %121 = vector.shape_cast %120 : vector<16x16x4xbf16> to vector<256x4xbf16>
    %c5_99 = arith.constant 5 : index
    %c0_100 = arith.constant 0 : index
    %c0_101 = arith.constant 0 : index
    %122 = vector.load %arg4[%c5_99, %c0_100, %c0_101] : memref<9x4x4xbf16, #tpu.memory_space<vmem>>, vector<1x4x4xbf16>
    %123 = vector.shape_cast %122 : vector<1x4x4xbf16> to vector<4x4xbf16>
    %cst_102 = arith.constant dense<0.000000e+00> : vector<256x4xf32>
    %124 = tpu.matmul %121, %123, %cst_102 {dimension_numbers = #tpu.dot_dimension_numbers<[1], [0], [0], [1], [0, 0, 1, 1], [], []>} : vector<256x4xbf16>, vector<4x4xbf16>, vector<256x4xf32> -> vector<256x4xf32>
    %125 = arith.addf %119, %124 : vector<256x4xf32>
    %126 = vector.extract_strided_slice %113 {offsets = [2, 0, 0], sizes = [16, 16, 4], strides = [1, 1, 1]} : vector<18x16x4xbf16> to vector<16x16x4xbf16>
    %127 = vector.shape_cast %126 : vector<16x16x4xbf16> to vector<256x4xbf16>
    %c8_103 = arith.constant 8 : index
    %c0_104 = arith.constant 0 : index
    %c0_105 = arith.constant 0 : index
    %128 = vector.load %arg4[%c8_103, %c0_104, %c0_105] : memref<9x4x4xbf16, #tpu.memory_space<vmem>>, vector<1x4x4xbf16>
    %129 = vector.shape_cast %128 : vector<1x4x4xbf16> to vector<4x4xbf16>
    %cst_106 = arith.constant dense<0.000000e+00> : vector<256x4xf32>
    %130 = tpu.matmul %127, %129, %cst_106 {dimension_numbers = #tpu.dot_dimension_numbers<[1], [0], [0], [1], [0, 0, 1, 1], [], []>} : vector<256x4xbf16>, vector<4x4xbf16>, vector<256x4xf32> -> vector<256x4xf32>
    %131 = arith.addf %125, %130 : vector<256x4xf32>
    %c0_107 = arith.constant 0 : index
    %c0_108 = arith.constant 0 : index
    %c0_109 = arith.constant 0 : index
    %c0_110 = arith.constant 0 : index
    %132 = vector.load %arg1[%c0_107, %c0_108, %c0_109, %c0_110] : memref<1x16x16x4xf32, #tpu.memory_space<vmem>>, vector<1x16x16x4xf32>
    %133 = vector.shape_cast %132 : vector<1x16x16x4xf32> to vector<16x16x4xf32>
    %134 = vector.shape_cast %133 : vector<16x16x4xf32> to vector<256x4xf32>
    %c0_111 = arith.constant 0 : index
    %c0_112 = arith.constant 0 : index
    %135 = vector.load %arg5[%c0_111, %c0_112] : memref<1x4xf32, #tpu.memory_space<vmem>>, vector<1x4xf32>
    %136 = vector.broadcast %135 : vector<1x4xf32> to vector<256x4xf32>
    %137 = arith.addf %131, %136 : vector<256x4xf32>
    %138 = arith.addf %137, %134 : vector<256x4xf32>
    %cst_113 = arith.constant 0.000000e+00 : f32
    %139 = vector.broadcast %cst_113 : f32 to vector<256x4xf32>
    %140 = arith.maximumf %138, %139 : vector<256x4xf32>
    %141 = vector.shape_cast %140 : vector<256x4xf32> to vector<16x16x4xf32>
    %c0_114 = arith.constant 0 : index
    %c0_115 = arith.constant 0 : index
    %c0_116 = arith.constant 0 : index
    %c0_117 = arith.constant 0 : index
    %142 = vector.load %arg6[%c0_114, %c0_115, %c0_116, %c0_117] : memref<1x16x16x4xf32, #tpu.memory_space<vmem>>, vector<1x16x16x4xf32>
    %143 = vector.shape_cast %142 : vector<1x16x16x4xf32> to vector<16x16x4xf32>
    %144 = vector.shape_cast %141 : vector<16x16x4xf32> to vector<1x16x16x4xf32>
    tpu.vector_store %arg6[%c0_114, %c0_115, %c0_116, %c0_117], %144 {strides = array<i32>} : memref<1x16x16x4xf32, #tpu.memory_space<vmem>>, vector<1x16x16x4xf32>,
    return
  }
  func.func @transform_0(%arg0: i32) -> (i32, i32, i32, i32) {
    %c0_i32 = arith.constant 0 : i32
    %c0_i32_0 = arith.constant 0 : i32
    %c0_i32_1 = arith.constant 0 : i32
    %c0_i32_2 = arith.constant 0 : i32
    return %arg0, %c0_i32, %c0_i32_0, %c0_i32_1 : i32, i32, i32, i32
  }
  func.func @transform_1(%arg0: i32) -> (i32, i32, i32) {
    %c0_i32 = arith.constant 0 : i32
    %c0_i32_0 = arith.constant 0 : i32
    %c0_i32_1 = arith.constant 0 : i32
    %c0_i32_2 = arith.constant 0 : i32
    return %c0_i32, %c0_i32_0, %c0_i32_1 : i32, i32, i32
  }
  func.func @transform_2(%arg0: i32) -> (i32, i32) {
    %c0_i32 = arith.constant 0 : i32
    %c0_i32_0 = arith.constant 0 : i32
    %c0_i32_1 = arith.constant 0 : i32
    return %c0_i32, %c0_i32_0 : i32, i32
  }
  func.func @transform_3(%arg0: i32) -> (i32, i32, i32) {
    %c0_i32 = arith.constant 0 : i32
    %c0_i32_0 = arith.constant 0 : i32
    %c0_i32_1 = arith.constant 0 : i32
    %c0_i32_2 = arith.constant 0 : i32
    return %c0_i32, %c0_i32_0, %c0_i32_1 : i32, i32, i32
  }
  func.func @transform_4(%arg0: i32) -> (i32, i32) {
    %c0_i32 = arith.constant 0 : i32
    %c0_i32_0 = arith.constant 0 : i32
    %c0_i32_1 = arith.constant 0 : i32
    return %c0_i32, %c0_i32_0 : i32, i32
  }
  func.func @transform_5(%arg0: i32) -> (i32, i32, i32, i32) {
    %c0_i32 = arith.constant 0 : i32
    %c0_i32_0 = arith.constant 0 : i32
    %c0_i32_1 = arith.constant 0 : i32
    %c0_i32_2 = arith.constant 0 : i32
    return %arg0, %c0_i32, %c0_i32_0, %c0_i32_1 : i32, i32, i32, i32
  }
}

</mosaic_0001>

<llo_original>
// kernel: basic_block_forward.1
$region0: #{basic_block_forward.1}
  #allocation0 [shape = 'u32[]', space=smem, size = 0x4, offset = 0x4, fixed_abs, tag = 'smem constant byte address 0x4 - core index']
  #allocation1 [shape = 'u32[144,128]{1,0:T(1,128)}', space=vmem, size = 0x12000, scoped, tag = 'internal scratch']
  #allocation2 [shape = 'bf16[18,20,4]{2,1,0:T(8,128)(2,1)}', space=vmem, size = 0x1b000, scoped, tag = 'scratch operand']
  %s0 = inlined_call_operand.vmem [shape: f32[2,16,16,4], index: 0, kind: input, shape index: {}]
  %s1 = inlined_call_operand.vmem [shape: bf16[9,4,4], index: 1, kind: input, shape index: {}]
  %s2 = inlined_call_operand.vmem [shape: f32[1,4], index: 2, kind: input, shape index: {}]
  %s3 = inlined_call_operand.vmem [shape: bf16[9,4,4], index: 3, kind: input, shape index: {}]
  %s4 = inlined_call_operand.vmem [shape: f32[1,4], index: 4, kind: input, shape index: {}]
  %s5 = inlined_call_operand.vmem [shape: f32[2,16,16,4], index: 5, kind: output, shape index: {}]
  %s6 = sld [smem:[#allocation0]]
  $region53: #{basic_block_forward.1} parent=0
    _
  %s8 = ssub.s32 1, %s6
  %s9 = scalar_select 0, %s8, %s6
  loop: start=0, step=1, limit=4
  $region2: #{basic_block_forward.1} parent=0 // loop_pre_header
    _
  $region3: #{basic_block_forward.1} parent=0 // loop_header
    %s11 = sphi 0, %s15
    %p12 = scmp.ge.s32.totalorder %s11, 4
    %s21 = sphi 0, %s23
    %s24 = sphi 0, %s21
    %s25 = sphi 0, %s24
    %s41 = sphi 0, %s25
    %s45 = sphi 0, %s45
    %s47 = sphi 0, %s45
    %s48 = sphi 0, %s47
    %s62 = sphi 0, %s48
    %s66 = sphi 0, %s66
    %s68 = sphi 0, %s66
    %s69 = sphi 0, %s68
    %s83 = sphi 0, %s69
    %s87 = sphi 0, %s87
    %s89 = sphi 0, %s87
    %s90 = sphi 0, %s89
    %s104 = sphi 0, %s90
    %s108 = sphi 0, %s108
    %s110 = sphi 0, %s108
    %s111 = sphi 0, %s110
    %s125 = sphi 0, %s111
    %s131 = sphi 0, %s133
    %s134 = sphi 0, %s131
    %s135 = sphi 0, %s134
    %s151 = sphi 0, %s135
  $region4: #{basic_block_forward.1} parent=0 // loop_header_branch
    %14 = sbr.rel (%p12) target = $region8
  $region5: #{basic_block_forward.1} parent=0 // loop_body
    %s16 = ssub.s32 %s11, 1
    %s17 = ssub.s32 %s11, 2
    %s18 = sadd.s32 %s11, 1
    %s19 = ssub.s32 %s11, %s18
    %p20 = scmp.eq.s32.totalorder %s19, 0
    %s22 = sadd.s32 %s21, 1
    %s23 = scalar_select %p20, %s21, %s22
    %p26 = pneg %p20
    %p27 = scmp.eq.s32.totalorder %s11, 1
    %p28 = por %p26, %p27
    %p29 = scmp.ne.s32.totalorder %s21, %s24
    %p30 = scmp.eq.s32.totalorder %s11, 0
    %p31 = por %p29, %p30
    %p32 = scmp.ne.s32.totalorder %s21, %s24
    %p33 = scmp.eq.s32.totalorder %s16, 1
    %p34 = por %p32, %p33
    %p35 = scmp.ne.s32.totalorder %s24, %s25
    %p36 = scmp.eq.s32.totalorder %s16, 0
    %p37 = por %p35, %p36
    %p38 = scmp.ne.s32.totalorder %s24, %s25
    %p39 = scmp.eq.s32.totalorder %s17, 1
    %p40 = por %p38, %p39
    %p42 = scmp.ne.s32.totalorder %s25, %s41
    %p43 = scmp.eq.s32.totalorder %s17, 0
    %p44 = por %p42, %p43
    %s46 = sadd.s32 %s45, 1
    %p49 = scmp.eq.s32.totalorder %s11, 1
    %p50 = scmp.ne.s32.totalorder %s45, %s47
    %p51 = scmp.eq.s32.totalorder %s11, 0
    %p52 = por %p50, %p51
    %p53 = scmp.ne.s32.totalorder %s45, %s47
    %p54 = scmp.eq.s32.totalorder %s16, 1
    %p55 = por %p53, %p54
    %p56 = scmp.ne.s32.totalorder %s47, %s48
    %p57 = scmp.eq.s32.totalorder %s16, 0
    %p58 = por %p56, %p57
    %p59 = scmp.ne.s32.totalorder %s47, %s48
    %p60 = scmp.eq.s32.totalorder %s17, 1
    %p61 = por %p59, %p60
    %p63 = scmp.ne.s32.totalorder %s48, %s62
    %p64 = scmp.eq.s32.totalorder %s17, 0
    %p65 = por %p63, %p64
    %s67 = sadd.s32 %s66, 1
    %p70 = scmp.eq.s32.totalorder %s11, 1
    %p71 = scmp.ne.s32.totalorder %s66, %s68
    %p72 = scmp.eq.s32.totalorder %s11, 0
    %p73 = por %p71, %p72
    %p74 = scmp.ne.s32.totalorder %s66, %s68
    %p75 = scmp.eq.s32.totalorder %s16, 1
    %p76 = por %p74, %p75
    %p77 = scmp.ne.s32.totalorder %s68, %s69
    %p78 = scmp.eq.s32.totalorder %s16, 0
    %p79 = por %p77, %p78
    %p80 = scmp.ne.s32.totalorder %s68, %s69
    %p81 = scmp.eq.s32.totalorder %s17, 1
    %p82 = por %p80, %p81
    %p84 = scmp.ne.s32.totalorder %s69, %s83
    %p85 = scmp.eq.s32.totalorder %s17, 0
    %p86 = por %p84, %p85
    %s88 = sadd.s32 %s87, 1
    %p91 = scmp.eq.s32.totalorder %s11, 1
    %p92 = scmp.ne.s32.totalorder %s87, %s89
    %p93 = scmp.eq.s32.totalorder %s11, 0
    %p94 = por %p92, %p93
    %p95 = scmp.ne.s32.totalorder %s87, %s89
    %p96 = scmp.eq.s32.totalorder %s16, 1
    %p97 = por %p95, %p96
    %p98 = scmp.ne.s32.totalorder %s89, %s90
    %p99 = scmp.eq.s32.totalorder %s16, 0
    %p100 = por %p98, %p99
    %p101 = scmp.ne.s32.totalorder %s89, %s90
    %p102 = scmp.eq.s32.totalorder %s17, 1
    %p103 = por %p101, %p102
    %p105 = scmp.ne.s32.totalorder %s90, %s104
    %p106 = scmp.eq.s32.totalorder %s17, 0
    %p107 = por %p105, %p106
    %s109 = sadd.s32 %s108, 1
    %p112 = scmp.eq.s32.totalorder %s11, 1
    %p113 = scmp.ne.s32.totalorder %s108, %s110
    %p114 = scmp.eq.s32.totalorder %s11, 0
    %p115 = por %p113, %p114
    %p116 = scmp.ne.s32.totalorder %s108, %s110
    %p117 = scmp.eq.s32.totalorder %s16, 1
    %p118 = por %p116, %p117
    %p119 = scmp.ne.s32.totalorder %s110, %s111
    %p120 = scmp.eq.s32.totalorder %s16, 0
    %p121 = por %p119, %p120
    %p122 = scmp.ne.s32.totalorder %s110, %s111
    %p123 = scmp.eq.s32.totalorder %s17, 1
    %p124 = por %p122, %p123
    %p126 = scmp.ne.s32.totalorder %s111, %s125
    %p127 = scmp.eq.s32.totalorder %s17, 0
    %p128 = por %p126, %p127
    %s129 = ssub.s32 %s11, %s18
    %p130 = scmp.eq.s32.totalorder %s129, 0
    %s132 = sadd.s32 %s131, 1
    %s133 = scalar_select %p130, %s131, %s132
    %p136 = pneg %p130
    %p137 = scmp.eq.s32.totalorder %s11, 1
    %p138 = por %p136, %p137
    %p139 = scmp.ne.s32.totalorder %s131, %s134
    %p140 = scmp.eq.s32.totalorder %s11, 0
    %p141 = por %p139, %p140
    %p142 = scmp.ne.s32.totalorder %s131, %s134
    %p143 = scmp.eq.s32.totalorder %s16, 1
    %p144 = por %p142, %p143
    %p145 = scmp.ne.s32.totalorder %s134, %s135
    %p146 = scmp.eq.s32.totalorder %s16, 0
    %p147 = por %p145, %p146
    %p148 = scmp.ne.s32.totalorder %s134, %s135
    %p149 = scmp.eq.s32.totalorder %s17, 1
    %p150 = por %p148, %p149
    %p152 = scmp.ne.s32.totalorder %s135, %s151
    %p153 = scmp.eq.s32.totalorder %s17, 0
    %p154 = por %p152, %p153
    %p155 = scmp.le.s32.totalorder 1, %s11
    %p156 = scmp.lt.s32.totalorder %s11, 3
    %p157 = pnand %p155, %p156
    %p158 = pneg %p157
    // Predicated region
    $region9: #{basic_block_forward.1} parent=5 // pred_check
      _
    $region10: #{basic_block_forward.1} parent=5 // pred_check_branch
      %160 = sbr.rel (%p157) target = $region12
    $region11: #{basic_block_forward.1} parent=5 // pred_region
      %s161 = ssub.s32 %s11, 1
      // Predicated region
      $region13: #{basic_block_forward.1} parent=11 // pred_check
        %p162 = pneg %p58
      $region14: #{basic_block_forward.1} parent=11 // pred_check_branch
        %164 = sbr.rel (%p162) target = $region16
      $region15: #{basic_block_forward.1} parent=11 // pred_region
        _
      $region16: #{basic_block_forward.1} parent=11 // pred_fallthru
        _
      // Predicated region
      $region17: #{basic_block_forward.1} parent=11 // pred_check
        %p165 = pneg %p79
      $region18: #{basic_block_forward.1} parent=11 // pred_check_branch
        %167 = sbr.rel (%p165) target = $region20
      $region19: #{basic_block_forward.1} parent=11 // pred_region
        _
      $region20: #{basic_block_forward.1} parent=11 // pred_fallthru
        _
      // Predicated region
      $region21: #{basic_block_forward.1} parent=11 // pred_check
        %p168 = pneg %p100
      $region22: #{basic_block_forward.1} parent=11 // pred_check_branch
        %170 = sbr.rel (%p168) target = $region24
      $region23: #{basic_block_forward.1} parent=11 // pred_region
        _
      $region24: #{basic_block_forward.1} parent=11 // pred_fallthru
        _
      // Predicated region
      $region25: #{basic_block_forward.1} parent=11 // pred_check
        %p171 = pneg %p121
      $region26: #{basic_block_forward.1} parent=11 // pred_check_branch
        %173 = sbr.rel (%p171) target = $region28
      $region27: #{basic_block_forward.1} parent=11 // pred_region
        _
      $region28: #{basic_block_forward.1} parent=11 // pred_fallthru
        _
    $region12: #{basic_block_forward.1} parent=5 // pred_fallthru
      _
    %p174 = scmp.lt.s32.totalorder %s11, 2
    // Predicated region
    $region29: #{basic_block_forward.1} parent=5 // pred_check
      %p175 = pneg %p174
    $region30: #{basic_block_forward.1} parent=5 // pred_check_branch
      %177 = sbr.rel (%p175) target = $region32
    $region31: #{basic_block_forward.1} parent=5 // pred_region
      // Predicated region
      $region33: #{basic_block_forward.1} parent=31 // pred_check
        %p178 = pneg %p31
      $region34: #{basic_block_forward.1} parent=31 // pred_check_branch
        %180 = sbr.rel (%p178) target = $region36
      $region35: #{basic_block_forward.1} parent=31 // pred_region
        %p181 = scmp.lt.s32.totalorder %s11, 1
        %s182 = scalar_select %p181, %s11, 1
        %s183 = smul.addr %s182, 32
        %s184 = smul.addr %s183, 8
        %s185 = scalar_lea.vmem %s0, %s184
      $region36: #{basic_block_forward.1} parent=31 // pred_fallthru
        _
    $region32: #{basic_block_forward.1} parent=5 // pred_fallthru
      _
    %p186 = scmp.le.s32.totalorder 1, %s11
    %p187 = scmp.lt.s32.totalorder %s11, 3
    %p188 = pnand %p186, %p187
    %p189 = pneg %p188
    // Predicated region
    $region37: #{basic_block_forward.1} parent=5 // pred_check
      _
    $region38: #{basic_block_forward.1} parent=5 // pred_check_branch
      %191 = sbr.rel (%p188) target = $region40
    $region39: #{basic_block_forward.1} parent=5 // pred_region
      %s192 = ssub.s32 %s11, 1
      %p193 = scmp.lt.s32.totalorder %s16, 1
      %s194 = scalar_select %p193, %s16, 1
      %s195 = smul.addr %s194, 32
      %s196 = smul.addr %s195, 8
      %s197 = scalar_lea.vmem %s0, %s196
      %p198 = pneg %p37
      %p199 = pneg %p34
      %p200 = pneg %p58
      %p201 = pneg %p55
      %p202 = pneg %p79
      %p203 = pneg %p76
      %p204 = pneg %p100
      %p205 = pneg %p97
      %p206 = pneg %p121
      %p207 = pneg %p118
      %p208 = pneg %p147
      %p209 = pneg %p144
      %p210 = scmp.lt.s32.totalorder %s16, 1
      %s211 = scalar_select %p210, %s16, 1
      %s212 = smul.addr %s211, 32
      %s213 = smul.addr %s212, 8
      %s214 = scalar_lea.vmem %s5, %s213
      %p215 = scmp.lt.s32.totalorder %s16, 1
      %s216 = scalar_select %p215, %s16, 1
      %s217 = smul.addr %s216, 32
      %s218 = smul.addr %s217, 8
      %s219 = scalar_lea.vmem %s0, %s218
      %p220 = scmp.lt.s32.totalorder %s16, 1
      %s221 = scalar_select %p220, %s16, 1
      %s222 = smul.addr %s221, 32
      %s223 = smul.addr %s222, 8
      %s224 = scalar_lea.vmem %s5, %s223
      %vm226 = vcmask 27648
      %227 = vst.msk [vmem:[#allocation2] sm:$0xf] %vm226, 0
      %228 = vst.msk [vmem:[#allocation2 + $0x4] sm:$0xf] %vm226, 0
      %vm229 = vcmask 25600
      %230 = vst.msk [vmem:[#allocation2 + $0x8] sm:$0x3] %vm229, 0
      %s231 = scalar_lea.vmem [#allocation2], 204
      %232 = vst.msk [vmem:[%s231] sm:$0xf] %vm226, 0
      %233 = vst.msk [vmem:[%s231 + $0x4] sm:$0xf] %vm226, 0
      %234 = vst.msk [vmem:[%s231 + $0x8] sm:$0x3] %vm229, 0
      %vm235 = vcmask 24576
      %236 = vst.msk [vmem:[#allocation2] sm:$0x1] %vm235, 0
      %237 = vst.msk [vmem:[#allocation2 + $0xc] sm:$0x1] %vm235, 0
      %238 = vst.msk [vmem:[#allocation2 + $0x18] sm:$0x1] %vm235, 0
      %239 = vst.msk [vmem:[#allocation2 + $0x24] sm:$0x1] %vm235, 0
      %240 = vst.msk [vmem:[#allocation2 + $0x30] sm:$0x1] %vm235, 0
      %241 = vst.msk [vmem:[#allocation2 + $0x3c] sm:$0x1] %vm235, 0
      %242 = vst.msk [vmem:[#allocation2 + $0x48] sm:$0x1] %vm235, 0
      %243 = vst.msk [vmem:[#allocation2 + $0x54] sm:$0x1] %vm235, 0
      %244 = vst.msk [vmem:[#allocation2 + $0x60] sm:$0x1] %vm235, 0
      %245 = vst.msk [vmem:[#allocation2 + $0x6c] sm:$0x1] %vm235, 0
      %246 = vst.msk [vmem:[#allocation2 + $0x78] sm:$0x1] %vm235, 0
      %247 = vst.msk [vmem:[#allocation2 + $0x84] sm:$0x1] %vm235, 0
      %248 = vst.msk [vmem:[#allocation2 + $0x90] sm:$0x1] %vm235, 0
      %249 = vst.msk [vmem:[#allocation2 + $0x9c] sm:$0x1] %vm235, 0
      %250 = vst.msk [vmem:[#allocation2 + $0xa8] sm:$0x1] %vm235, 0
      %251 = vst.msk [vmem:[#allocation2 + $0xb4] sm:$0x1] %vm235, 0
      %252 = vst.msk [vmem:[#allocation2 + $0xc0] sm:$0x1] %vm235, 0
      %253 = vst.msk [vmem:[#allocation2 + $0xcc] sm:$0x1] %vm235, 0
      %vm254 = vcmask 25601
      %255 = vst.msk [vmem:[#allocation2 + $0x8] sm:$0x2] %vm254, 0
      %256 = vst.msk [vmem:[#allocation2 + $0x14] sm:$0x2] %vm254, 0
      %257 = vst.msk [vmem:[#allocation2 + $0x20] sm:$0x2] %vm254, 0
      %258 = vst.msk [vmem:[#allocation2 + $0x2c] sm:$0x2] %vm254, 0
      %259 = vst.msk [vmem:[#allocation2 + $0x38] sm:$0x2] %vm254, 0
      %260 = vst.msk [vmem:[#allocation2 + $0x44] sm:$0x2] %vm254, 0
      %261 = vst.msk [vmem:[#allocation2 + $0x50] sm:$0x2] %vm254, 0
      %262 = vst.msk [vmem:[#allocation2 + $0x5c] sm:$0x2] %vm254, 0
      %263 = vst.msk [vmem:[#allocation2 + $0x68] sm:$0x2] %vm254, 0
      %264 = vst.msk [vmem:[#allocation2 + $0x74] sm:$0x2] %vm254, 0
      %265 = vst.msk [vmem:[#allocation2 + $0x80] sm:$0x2] %vm254, 0
      %266 = vst.msk [vmem:[#allocation2 + $0x8c] sm:$0x2] %vm254, 0
      %267 = vst.msk [vmem:[#allocation2 + $0x98] sm:$0x2] %vm254, 0
      %268 = vst.msk [vmem:[#allocation2 + $0xa4] sm:$0x2] %vm254, 0
      %269 = vst.msk [vmem:[#allocation2 + $0xb0] sm:$0x2] %vm254, 0
      %270 = vst.msk [vmem:[#allocation2 + $0xbc] sm:$0x2] %vm254, 0
      %271 = vst.msk [vmem:[#allocation2 + $0xc8] sm:$0x2] %vm254, 0
      %272 = vst.msk [vmem:[#allocation2 + $0xd4] sm:$0x2] %vm254, 0
      %v273 = vld [vmem:[%s219] sm:$0xff]
      %v274 = vld [vmem:[%s219 + $0x8] sm:$0xff]
      %v275 = vld [vmem:[%s219 + $0x10] sm:$0xff]
      %v276 = vld [vmem:[%s219 + $0x18] sm:$0xff]
      %v277 = vld [vmem:[%s219 + $0x20] sm:$0xff]
      %v278 = vld [vmem:[%s219 + $0x28] sm:$0xff]
      %v279 = vld [vmem:[%s219 + $0x30] sm:$0xff]
      %v280 = vld [vmem:[%s219 + $0x38] sm:$0xff]
      %v281 = vld [vmem:[%s219 + $0x40] sm:$0xff]
      %v282 = vld [vmem:[%s219 + $0x48] sm:$0xff]
      %v283 = vld [vmem:[%s219 + $0x50] sm:$0xff]
      %v284 = vld [vmem:[%s219 + $0x58] sm:$0xff]
      %v285 = vld [vmem:[%s219 + $0x60] sm:$0xff]
      %v286 = vld [vmem:[%s219 + $0x68] sm:$0xff]
      %v287 = vld [vmem:[%s219 + $0x70] sm:$0xff]
      %v288 = vld [vmem:[%s219 + $0x78] sm:$0xff]
      %v289 = vld [vmem:[%s219 + $0x80] sm:$0xff]
      %v290 = vld [vmem:[%s219 + $0x88] sm:$0xff]
      %v291 = vld [vmem:[%s219 + $0x90] sm:$0xff]
      %v292 = vld [vmem:[%s219 + $0x98] sm:$0xff]
      %v293 = vld [vmem:[%s219 + $0xa0] sm:$0xff]
      %v294 = vld [vmem:[%s219 + $0xa8] sm:$0xff]
      %v295 = vld [vmem:[%s219 + $0xb0] sm:$0xff]
      %v296 = vld [vmem:[%s219 + $0xb8] sm:$0xff]
      %v297 = vld [vmem:[%s219 + $0xc0] sm:$0xff]
      %v298 = vld [vmem:[%s219 + $0xc8] sm:$0xff]
      %v299 = vld [vmem:[%s219 + $0xd0] sm:$0xff]
      %v300 = vld [vmem:[%s219 + $0xd8] sm:$0xff]
      %v301 = vld [vmem:[%s219 + $0xe0] sm:$0xff]
      %v302 = vld [vmem:[%s219 + $0xe8] sm:$0xff]
      %v303 = vld [vmem:[%s219 + $0xf0] sm:$0xff]
      %v304 = vld [vmem:[%s219 + $0xf8] sm:$0xff]
      %v305 = vpack.c.bf16 %v274, %v273
      %v306 = vpack.c.bf16 %v276, %v275
      %v307 = vpack.c.bf16 %v278, %v277
      %v308 = vpack.c.bf16 %v280, %v279
      %v309 = vpack.c.bf16 %v282, %v281
      %v310 = vpack.c.bf16 %v284, %v283
      %v311 = vpack.c.bf16 %v286, %v285
      %v312 = vpack.c.bf16 %v288, %v287
      %v313 = vpack.c.bf16 %v290, %v289
      %v314 = vpack.c.bf16 %v292, %v291
      %v315 = vpack.c.bf16 %v294, %v293
      %v316 = vpack.c.bf16 %v296, %v295
      %v317 = vpack.c.bf16 %v298, %v297
      %v318 = vpack.c.bf16 %v300, %v299
      %v319 = vpack.c.bf16 %v302, %v301
      %v320 = vpack.c.bf16 %v304, %v303
      %v337 = vunpack.c.l.b16 %v305
      %v338 = vunpack.c.h.b16 %v305
      %v339 = vunpack.c.l.b16 %v306
      %v340 = vunpack.c.h.b16 %v306
      %v341 = vunpack.c.l.b16 %v307
      %v342 = vunpack.c.h.b16 %v307
      %v343 = vunpack.c.l.b16 %v308
      %v344 = vunpack.c.h.b16 %v308
      %v345 = vunpack.c.l.b16 %v309
      %v346 = vunpack.c.h.b16 %v309
      %v347 = vunpack.c.l.b16 %v310
      %v348 = vunpack.c.h.b16 %v310
      %v349 = vunpack.c.l.b16 %v311
      %v350 = vunpack.c.h.b16 %v311
      %v351 = vunpack.c.l.b16 %v312
      %v352 = vunpack.c.h.b16 %v312
      %v353 = vunpack.c.l.b16 %v313
      %v354 = vunpack.c.h.b16 %v313
      %v355 = vunpack.c.l.b16 %v314
      %v356 = vunpack.c.h.b16 %v314
      %v357 = vunpack.c.l.b16 %v315
      %v358 = vunpack.c.h.b16 %v315
      %v359 = vunpack.c.l.b16 %v316
      %v360 = vunpack.c.h.b16 %v316
      %v361 = vunpack.c.l.b16 %v317
      %v362 = vunpack.c.h.b16 %v317
      %v363 = vunpack.c.l.b16 %v318
      %v364 = vunpack.c.h.b16 %v318
      %v365 = vunpack.c.l.b16 %v319
      %v366 = vunpack.c.h.b16 %v319
      %v367 = vunpack.c.l.b16 %v320
      %v368 = vunpack.c.h.b16 %v320
      %v369 = vpack.c.b16 %v337, %v337
      %v370 = vpack.c.b16 %v338, %v338
      %v371 = vpack.c.b16 %v339, %v339
      %v372 = vpack.c.b16 %v340, %v340
      %v373 = vpack.c.b16 %v341, %v341
      %v374 = vpack.c.b16 %v342, %v342
      %v375 = vpack.c.b16 %v343, %v343
      %v376 = vpack.c.b16 %v344, %v344
      %v377 = vpack.c.b16 %v345, %v345
      %v378 = vpack.c.b16 %v346, %v346
      %v379 = vpack.c.b16 %v347, %v347
      %v380 = vpack.c.b16 %v348, %v348
      %v381 = vpack.c.b16 %v349, %v349
      %v382 = vpack.c.b16 %v350, %v350
      %v383 = vpack.c.b16 %v351, %v351
      %v384 = vpack.c.b16 %v352, %v352
      %v385 = vpack.c.b16 %v353, %v353
      %v386 = vpack.c.b16 %v354, %v354
      %v387 = vpack.c.b16 %v355, %v355
      %v388 = vpack.c.b16 %v356, %v356
      %v389 = vpack.c.b16 %v357, %v357
      %v390 = vpack.c.b16 %v358, %v358
      %v391 = vpack.c.b16 %v359, %v359
      %v392 = vpack.c.b16 %v360, %v360
      %v393 = vpack.c.b16 %v361, %v361
      %v394 = vpack.c.b16 %v362, %v362
      %v395 = vpack.c.b16 %v363, %v363
      %v396 = vpack.c.b16 %v364, %v364
      %v397 = vpack.c.b16 %v365, %v365
      %v398 = vpack.c.b16 %v366, %v366
      %v399 = vpack.c.b16 %v367, %v367
      %v400 = vpack.c.b16 %v368, %v368
      %vm401 = vcmask 1040384
      %vm402 = vcmask 1044484
      %vm403 = vmor %vm401, %vm402
      %v404 = vrot.slane %v369, 7
      %v405 = vrot.slane %v404, 4
      %v406 = vrot.slane %v370, 7
      %v407 = vsel %vm403, %v405, %v406
      %v408 = vrot.slane %v406, 4
      %v409 = vrot.slane %v371, 7
      %v410 = vrot.slane %v409, 4
      %v411 = vrot.slane %v372, 7
      %v412 = vsel %vm403, %v410, %v411
      %v413 = vrot.slane %v411, 4
      %v414 = vrot.slane %v373, 7
      %v415 = vrot.slane %v414, 4
      %v416 = vrot.slane %v374, 7
      %v417 = vsel %vm403, %v415, %v416
      %v418 = vrot.slane %v416, 4
      %v419 = vrot.slane %v375, 7
      %v420 = vrot.slane %v419, 4
      %v421 = vrot.slane %v376, 7
      %v422 = vsel %vm403, %v420, %v421
      %v423 = vrot.slane %v421, 4
      %v424 = vrot.slane %v377, 7
      %v425 = vrot.slane %v424, 4
      %v426 = vrot.slane %v378, 7
      %v427 = vsel %vm403, %v425, %v426
      %v428 = vrot.slane %v426, 4
      %v429 = vrot.slane %v379, 7
      %v430 = vrot.slane %v429, 4
      %v431 = vrot.slane %v380, 7
      %v432 = vsel %vm403, %v430, %v431
      %v433 = vrot.slane %v431, 4
      %v434 = vrot.slane %v381, 7
      %v435 = vrot.slane %v434, 4
      %v436 = vrot.slane %v382, 7
      %v437 = vsel %vm403, %v435, %v436
      %v438 = vrot.slane %v436, 4
      %v439 = vrot.slane %v383, 7
      %v440 = vrot.slane %v439, 4
      %v441 = vrot.slane %v384, 7
      %v442 = vsel %vm403, %v440, %v441
      %v443 = vrot.slane %v441, 4
      %v444 = vrot.slane %v385, 7
      %v445 = vrot.slane %v444, 4
      %v446 = vrot.slane %v386, 7
      %v447 = vsel %vm403, %v445, %v446
      %v448 = vrot.slane %v446, 4
      %v449 = vrot.slane %v387, 7
      %v450 = vrot.slane %v449, 4
      %v451 = vrot.slane %v388, 7
      %v452 = vsel %vm403, %v450, %v451
      %v453 = vrot.slane %v451, 4
      %v454 = vrot.slane %v389, 7
      %v455 = vrot.slane %v454, 4
      %v456 = vrot.slane %v390, 7
      %v457 = vsel %vm403, %v455, %v456
      %v458 = vrot.slane %v456, 4
      %v459 = vrot.slane %v391, 7
      %v460 = vrot.slane %v459, 4
      %v461 = vrot.slane %v392, 7
      %v462 = vsel %vm403, %v460, %v461
      %v463 = vrot.slane %v461, 4
      %v464 = vrot.slane %v393, 7
      %v465 = vrot.slane %v464, 4
      %v466 = vrot.slane %v394, 7
      %v467 = vsel %vm403, %v465, %v466
      %v468 = vrot.slane %v466, 4
      %v469 = vrot.slane %v395, 7
      %v470 = vrot.slane %v469, 4
      %v471 = vrot.slane %v396, 7
      %v472 = vsel %vm403, %v470, %v471
      %v473 = vrot.slane %v471, 4
      %v474 = vrot.slane %v397, 7
      %v475 = vrot.slane %v474, 4
      %v476 = vrot.slane %v398, 7
      %v477 = vsel %vm403, %v475, %v476
      %v478 = vrot.slane %v476, 4
      %v479 = vrot.slane %v399, 7
      %v480 = vrot.slane %v479, 4
      %v481 = vrot.slane %v400, 7
      %v482 = vsel %vm403, %v480, %v481
      %v483 = vrot.slane %v481, 4
      %s532 = scalar_lea.vmem [#allocation2], 12
      %vm533 = vcmask 27649
      %534 = vst.msk [vmem:[%s532] sm:$0xe] %vm533, %v404
      %535 = vst.msk [vmem:[%s532 + $0x4] sm:$0xf] %vm226, %v407
      %536 = vst.msk [vmem:[%s532 + $0x8] sm:$0x1] %vm235, %v408
      %537 = vst.msk [vmem:[%s532 + $0xc] sm:$0xe] %vm533, %v409
      %538 = vst.msk [vmem:[%s532 + $0x10] sm:$0xf] %vm226, %v412
      %539 = vst.msk [vmem:[%s532 + $0x14] sm:$0x1] %vm235, %v413
      %540 = vst.msk [vmem:[%s532 + $0x18] sm:$0xe] %vm533, %v414
      %541 = vst.msk [vmem:[%s532 + $0x1c] sm:$0xf] %vm226, %v417
      %542 = vst.msk [vmem:[%s532 + $0x20] sm:$0x1] %vm235, %v418
      %543 = vst.msk [vmem:[%s532 + $0x24] sm:$0xe] %vm533, %v419
      %544 = vst.msk [vmem:[%s532 + $0x28] sm:$0xf] %vm226, %v422
      %545 = vst.msk [vmem:[%s532 + $0x2c] sm:$0x1] %vm235, %v423
      %546 = vst.msk [vmem:[%s532 + $0x30] sm:$0xe] %vm533, %v424
      %547 = vst.msk [vmem:[%s532 + $0x34] sm:$0xf] %vm226, %v427
      %548 = vst.msk [vmem:[%s532 + $0x38] sm:$0x1] %vm235, %v428
      %549 = vst.msk [vmem:[%s532 + $0x3c] sm:$0xe] %vm533, %v429
      %550 = vst.msk [vmem:[%s532 + $0x40] sm:$0xf] %vm226, %v432
      %551 = vst.msk [vmem:[%s532 + $0x44] sm:$0x1] %vm235, %v433
      %552 = vst.msk [vmem:[%s532 + $0x48] sm:$0xe] %vm533, %v434
      %553 = vst.msk [vmem:[%s532 + $0x4c] sm:$0xf] %vm226, %v437
      %554 = vst.msk [vmem:[%s532 + $0x50] sm:$0x1] %vm235, %v438
      %555 = vst.msk [vmem:[%s532 + $0x54] sm:$0xe] %vm533, %v439
      %556 = vst.msk [vmem:[%s532 + $0x58] sm:$0xf] %vm226, %v442
      %557 = vst.msk [vmem:[%s532 + $0x5c] sm:$0x1] %vm235, %v443
      %558 = vst.msk [vmem:[%s532 + $0x60] sm:$0xe] %vm533, %v444
      %559 = vst.msk [vmem:[%s532 + $0x64] sm:$0xf] %vm226, %v447
      %560 = vst.msk [vmem:[%s532 + $0x68] sm:$0x1] %vm235, %v448
      %561 = vst.msk [vmem:[%s532 + $0x6c] sm:$0xe] %vm533, %v449
      %562 = vst.msk [vmem:[%s532 + $0x70] sm:$0xf] %vm226, %v452
      %563 = vst.msk [vmem:[%s532 + $0x74] sm:$0x1] %vm235, %v453
      %564 = vst.msk [vmem:[%s532 + $0x78] sm:$0xe] %vm533, %v454
      %565 = vst.msk [vmem:[%s532 + $0x7c] sm:$0xf] %vm226, %v457
      %566 = vst.msk [vmem:[%s532 + $0x80] sm:$0x1] %vm235, %v458
      %567 = vst.msk [vmem:[%s532 + $0x84] sm:$0xe] %vm533, %v459
      %568 = vst.msk [vmem:[%s532 + $0x88] sm:$0xf] %vm226, %v462
      %569 = vst.msk [vmem:[%s532 + $0x8c] sm:$0x1] %vm235, %v463
      %570 = vst.msk [vmem:[%s532 + $0x90] sm:$0xe] %vm533, %v464
      %571 = vst.msk [vmem:[%s532 + $0x94] sm:$0xf] %vm226, %v467
      %572 = vst.msk [vmem:[%s532 + $0x98] sm:$0x1] %vm235, %v468
      %573 = vst.msk [vmem:[%s532 + $0x9c] sm:$0xe] %vm533, %v469
      %574 = vst.msk [vmem:[%s532 + $0xa0] sm:$0xf] %vm226, %v472
      %575 = vst.msk [vmem:[%s532 + $0xa4] sm:$0x1] %vm235, %v473
      %576 = vst.msk [vmem:[%s532 + $0xa8] sm:$0xe] %vm533, %v474
      %577 = vst.msk [vmem:[%s532 + $0xac] sm:$0xf] %vm226, %v477
      %578 = vst.msk [vmem:[%s532 + $0xb0] sm:$0x1] %vm235, %v478
      %579 = vst.msk [vmem:[%s532 + $0xb4] sm:$0xe] %vm533, %v479
      %580 = vst.msk [vmem:[%s532 + $0xb8] sm:$0xf] %vm226, %v482
      %581 = vst.msk [vmem:[%s532 + $0xbc] sm:$0x1] %vm235, %v483
      %v582 = vld [vmem:[#allocation2] sm:$0xf]
      %v583 = vld [vmem:[#allocation2 + $0x4] sm:$0xf]
      %v584 = vld [vmem:[#allocation2 + $0x8] sm:$0x1]
      %v585 = vld [vmem:[#allocation2 + $0xc] sm:$0xf]
      %v586 = vld [vmem:[#allocation2 + $0x10] sm:$0xf]
      %v587 = vld [vmem:[#allocation2 + $0x14] sm:$0x1]
      %v588 = vld [vmem:[#allocation2 + $0x18] sm:$0xf]
      %v589 = vld [vmem:[#allocation2 + $0x1c] sm:$0xf]
      %v590 = vld [vmem:[#allocation2 + $0x20] sm:$0x1]
      %v591 = vld [vmem:[#allocation2 + $0x24] sm:$0xf]
      %v592 = vld [vmem:[#allocation2 + $0x28] sm:$0xf]
      %v593 = vld [vmem:[#allocation2 + $0x2c] sm:$0x1]
      %v594 = vld [vmem:[#allocation2 + $0x30] sm:$0xf]
      %v595 = vld [vmem:[#allocation2 + $0x34] sm:$0xf]
      %v596 = vld [vmem:[#allocation2 + $0x38] sm:$0x1]
      %v597 = vld [vmem:[#allocation2 + $0x3c] sm:$0xf]
      %v598 = vld [vmem:[#allocation2 + $0x40] sm:$0xf]
      %v599 = vld [vmem:[#allocation2 + $0x44] sm:$0x1]
      %v600 = vld [vmem:[#allocation2 + $0x48] sm:$0xf]
      %v601 = vld [vmem:[#allocation2 + $0x4c] sm:$0xf]
      %v602 = vld [vmem:[#allocation2 + $0x50] sm:$0x1]
      %v603 = vld [vmem:[#allocation2 + $0x54] sm:$0xf]
      %v604 = vld [vmem:[#allocation2 + $0x58] sm:$0xf]
      %v605 = vld [vmem:[#allocation2 + $0x5c] sm:$0x1]
      %v606 = vld [vmem:[#allocation2 + $0x60] sm:$0xf]
      %v607 = vld [vmem:[#allocation2 + $0x64] sm:$0xf]
      %v608 = vld [vmem:[#allocation2 + $0x68] sm:$0x1]
      %v609 = vld [vmem:[#allocation2 + $0x6c] sm:$0xf]
      %v610 = vld [vmem:[#allocation2 + $0x70] sm:$0xf]
      %v611 = vld [vmem:[#allocation2 + $0x74] sm:$0x1]
      %v612 = vld [vmem:[#allocation2 + $0x78] sm:$0xf]
      %v613 = vld [vmem:[#allocation2 + $0x7c] sm:$0xf]
      %v614 = vld [vmem:[#allocation2 + $0x80] sm:$0x1]
      %v615 = vld [vmem:[#allocation2 + $0x84] sm:$0xf]
      %v616 = vld [vmem:[#allocation2 + $0x88] sm:$0xf]
      %v617 = vld [vmem:[#allocation2 + $0x8c] sm:$0x1]
      %v618 = vld [vmem:[#allocation2 + $0x90] sm:$0xf]
      %v619 = vld [vmem:[#allocation2 + $0x94] sm:$0xf]
      %v620 = vld [vmem:[#allocation2 + $0x98] sm:$0x1]
      %v621 = vld [vmem:[#allocation2 + $0x9c] sm:$0xf]
      %v622 = vld [vmem:[#allocation2 + $0xa0] sm:$0xf]
      %v623 = vld [vmem:[#allocation2 + $0xa4] sm:$0x1]
      %v624 = vld [vmem:[#allocation2 + $0xa8] sm:$0xf]
      %v625 = vld [vmem:[#allocation2 + $0xac] sm:$0xf]
      %v626 = vld [vmem:[#allocation2 + $0xb0] sm:$0x1]
      %v627 = vld [vmem:[#allocation2 + $0xb4] sm:$0xf]
      %v628 = vld [vmem:[#allocation2 + $0xb8] sm:$0xf]
      %v629 = vld [vmem:[#allocation2 + $0xbc] sm:$0x1]
      %v630 = vld [vmem:[#allocation2 + $0xc0] sm:$0xf]
      %v631 = vld [vmem:[#allocation2 + $0xc4] sm:$0xf]
      %v632 = vld [vmem:[#allocation2 + $0xc8] sm:$0x1]
      %v633 = vld [vmem:[#allocation2 + $0xcc] sm:$0xf]
      %v634 = vld [vmem:[#allocation2 + $0xd0] sm:$0xf]
      %v635 = vld [vmem:[#allocation2 + $0xd4] sm:$0x1]
      %vm636 = vsmask.f32 3328
      %vm637 = vsmask.f32 7440
      %vm638 = vmor %vm636, %vm637
      %v640 = vshrl.u32 %v582, 16
      %v642 = vrot.slane %v640, 4
      %v643 = vshll.u32 %v582, 16
      %v645 = vrot.slane %v643, 5
      %v646 = vor.u32 %v642, %v645
      %v647 = vrot.slane %v646, 4
      %v649 = vshll.u32 %v583, 16
      %v651 = vrot.slane %v649, 5
      %v652 = vsel %vm638, %v647, %v651
      %v653 = vshrl.u32 %v583, 16
      %v655 = vrot.slane %v653, 4
      %v656 = vor.u32 %v655, %v651
      %v657 = vrot.slane %v656, 4
      %v659 = vshll.u32 %v584, 16
      %v661 = vrot.slane %v659, 5
      %v662 = vsel %vm638, %v657, %v661
      %v664 = vshrl.u32 %v585, 16
      %v666 = vrot.slane %v664, 4
      %v667 = vshll.u32 %v585, 16
      %v669 = vrot.slane %v667, 5
      %v670 = vor.u32 %v666, %v669
      %v671 = vrot.slane %v670, 4
      %v673 = vshll.u32 %v586, 16
      %v675 = vrot.slane %v673, 5
      %v676 = vsel %vm638, %v671, %v675
      %v677 = vshrl.u32 %v586, 16
      %v679 = vrot.slane %v677, 4
      %v680 = vor.u32 %v679, %v675
      %v681 = vrot.slane %v680, 4
      %v683 = vshll.u32 %v587, 16
      %v685 = vrot.slane %v683, 5
      %v686 = vsel %vm638, %v681, %v685
      %v688 = vshrl.u32 %v588, 16
      %v690 = vrot.slane %v688, 4
      %v691 = vshll.u32 %v588, 16
      %v693 = vrot.slane %v691, 5
      %v694 = vor.u32 %v690, %v693
      %v695 = vrot.slane %v694, 4
      %v697 = vshll.u32 %v589, 16
      %v699 = vrot.slane %v697, 5
      %v700 = vsel %vm638, %v695, %v699
      %v701 = vshrl.u32 %v589, 16
      %v703 = vrot.slane %v701, 4
      %v704 = vor.u32 %v703, %v699
      %v705 = vrot.slane %v704, 4
      %v707 = vshll.u32 %v590, 16
      %v709 = vrot.slane %v707, 5
      %v710 = vsel %vm638, %v705, %v709
      %v712 = vshrl.u32 %v591, 16
      %v714 = vrot.slane %v712, 4
      %v715 = vshll.u32 %v591, 16
      %v717 = vrot.slane %v715, 5
      %v718 = vor.u32 %v714, %v717
      %v719 = vrot.slane %v718, 4
      %v721 = vshll.u32 %v592, 16
      %v723 = vrot.slane %v721, 5
      %v724 = vsel %vm638, %v719, %v723
      %v725 = vshrl.u32 %v592, 16
      %v727 = vrot.slane %v725, 4
      %v728 = vor.u32 %v727, %v723
      %v729 = vrot.slane %v728, 4
      %v731 = vshll.u32 %v593, 16
      %v733 = vrot.slane %v731, 5
      %v734 = vsel %vm638, %v729, %v733
      %v736 = vshrl.u32 %v594, 16
      %v738 = vrot.slane %v736, 4
      %v739 = vshll.u32 %v594, 16
      %v741 = vrot.slane %v739, 5
      %v742 = vor.u32 %v738, %v741
      %v743 = vrot.slane %v742, 4
      %v745 = vshll.u32 %v595, 16
      %v747 = vrot.slane %v745, 5
      %v748 = vsel %vm638, %v743, %v747
      %v749 = vshrl.u32 %v595, 16
      %v751 = vrot.slane %v749, 4
      %v752 = vor.u32 %v751, %v747
      %v753 = vrot.slane %v752, 4
      %v755 = vshll.u32 %v596, 16
      %v757 = vrot.slane %v755, 5
      %v758 = vsel %vm638, %v753, %v757
      %v760 = vshrl.u32 %v597, 16
      %v762 = vrot.slane %v760, 4
      %v763 = vshll.u32 %v597, 16
      %v765 = vrot.slane %v763, 5
      %v766 = vor.u32 %v762, %v765
      %v767 = vrot.slane %v766, 4
      %v769 = vshll.u32 %v598, 16
      %v771 = vrot.slane %v769, 5
      %v772 = vsel %vm638, %v767, %v771
      %v773 = vshrl.u32 %v598, 16
      %v775 = vrot.slane %v773, 4
      %v776 = vor.u32 %v775, %v771
      %v777 = vrot.slane %v776, 4
      %v779 = vshll.u32 %v599, 16
      %v781 = vrot.slane %v779, 5
      %v782 = vsel %vm638, %v777, %v781
      %v784 = vshrl.u32 %v600, 16
      %v786 = vrot.slane %v784, 4
      %v787 = vshll.u32 %v600, 16
      %v789 = vrot.slane %v787, 5
      %v790 = vor.u32 %v786, %v789
      %v791 = vrot.slane %v790, 4
      %v793 = vshll.u32 %v601, 16
      %v795 = vrot.slane %v793, 5
      %v796 = vsel %vm638, %v791, %v795
      %v797 = vshrl.u32 %v601, 16
      %v799 = vrot.slane %v797, 4
      %v800 = vor.u32 %v799, %v795
      %v801 = vrot.slane %v800, 4
      %v803 = vshll.u32 %v602, 16
      %v805 = vrot.slane %v803, 5
      %v806 = vsel %vm638, %v801, %v805
      %v808 = vshrl.u32 %v603, 16
      %v810 = vrot.slane %v808, 4
      %v811 = vshll.u32 %v603, 16
      %v813 = vrot.slane %v811, 5
      %v814 = vor.u32 %v810, %v813
      %v815 = vrot.slane %v814, 4
      %v817 = vshll.u32 %v604, 16
      %v819 = vrot.slane %v817, 5
      %v820 = vsel %vm638, %v815, %v819
      %v821 = vshrl.u32 %v604, 16
      %v823 = vrot.slane %v821, 4
      %v824 = vor.u32 %v823, %v819
      %v825 = vrot.slane %v824, 4
      %v827 = vshll.u32 %v605, 16
      %v829 = vrot.slane %v827, 5
      %v830 = vsel %vm638, %v825, %v829
      %v832 = vshrl.u32 %v606, 16
      %v834 = vrot.slane %v832, 4
      %v835 = vshll.u32 %v606, 16
      %v837 = vrot.slane %v835, 5
      %v838 = vor.u32 %v834, %v837
      %v839 = vrot.slane %v838, 4
      %v841 = vshll.u32 %v607, 16
      %v843 = vrot.slane %v841, 5
      %v844 = vsel %vm638, %v839, %v843
      %v845 = vshrl.u32 %v607, 16
      %v847 = vrot.slane %v845, 4
      %v848 = vor.u32 %v847, %v843
      %v849 = vrot.slane %v848, 4
      %v851 = vshll.u32 %v608, 16
      %v853 = vrot.slane %v851, 5
      %v854 = vsel %vm638, %v849, %v853
      %v856 = vshrl.u32 %v609, 16
      %v858 = vrot.slane %v856, 4
      %v859 = vshll.u32 %v609, 16
      %v861 = vrot.slane %v859, 5
      %v862 = vor.u32 %v858, %v861
      %v863 = vrot.slane %v862, 4
      %v865 = vshll.u32 %v610, 16
      %v867 = vrot.slane %v865, 5
      %v868 = vsel %vm638, %v863, %v867
      %v869 = vshrl.u32 %v610, 16
      %v871 = vrot.slane %v869, 4
      %v872 = vor.u32 %v871, %v867
      %v873 = vrot.slane %v872, 4
      %v875 = vshll.u32 %v611, 16
      %v877 = vrot.slane %v875, 5
      %v878 = vsel %vm638, %v873, %v877
      %v880 = vshrl.u32 %v612, 16
      %v882 = vrot.slane %v880, 4
      %v883 = vshll.u32 %v612, 16
      %v885 = vrot.slane %v883, 5
      %v886 = vor.u32 %v882, %v885
      %v887 = vrot.slane %v886, 4
      %v889 = vshll.u32 %v613, 16
      %v891 = vrot.slane %v889, 5
      %v892 = vsel %vm638, %v887, %v891
      %v893 = vshrl.u32 %v613, 16
      %v895 = vrot.slane %v893, 4
      %v896 = vor.u32 %v895, %v891
      %v897 = vrot.slane %v896, 4
      %v899 = vshll.u32 %v614, 16
      %v901 = vrot.slane %v899, 5
      %v902 = vsel %vm638, %v897, %v901
      %v904 = vshrl.u32 %v615, 16
      %v906 = vrot.slane %v904, 4
      %v907 = vshll.u32 %v615, 16
      %v909 = vrot.slane %v907, 5
      %v910 = vor.u32 %v906, %v909
      %v911 = vrot.slane %v910, 4
      %v913 = vshll.u32 %v616, 16
      %v915 = vrot.slane %v913, 5
      %v916 = vsel %vm638, %v911, %v915
      %v917 = vshrl.u32 %v616, 16
      %v919 = vrot.slane %v917, 4
      %v920 = vor.u32 %v919, %v915
      %v921 = vrot.slane %v920, 4
      %v923 = vshll.u32 %v617, 16
      %v925 = vrot.slane %v923, 5
      %v926 = vsel %vm638, %v921, %v925
      %v928 = vshrl.u32 %v618, 16
      %v930 = vrot.slane %v928, 4
      %v931 = vshll.u32 %v618, 16
      %v933 = vrot.slane %v931, 5
      %v934 = vor.u32 %v930, %v933
      %v935 = vrot.slane %v934, 4
      %v937 = vshll.u32 %v619, 16
      %v939 = vrot.slane %v937, 5
      %v940 = vsel %vm638, %v935, %v939
      %v941 = vshrl.u32 %v619, 16
      %v943 = vrot.slane %v941, 4
      %v944 = vor.u32 %v943, %v939
      %v945 = vrot.slane %v944, 4
      %v947 = vshll.u32 %v620, 16
      %v949 = vrot.slane %v947, 5
      %v950 = vsel %vm638, %v945, %v949
      %v952 = vshrl.u32 %v621, 16
      %v954 = vrot.slane %v952, 4
      %v955 = vshll.u32 %v621, 16
      %v957 = vrot.slane %v955, 5
      %v958 = vor.u32 %v954, %v957
      %v959 = vrot.slane %v958, 4
      %v961 = vshll.u32 %v622, 16
      %v963 = vrot.slane %v961, 5
      %v964 = vsel %vm638, %v959, %v963
      %v965 = vshrl.u32 %v622, 16
      %v967 = vrot.slane %v965, 4
      %v968 = vor.u32 %v967, %v963
      %v969 = vrot.slane %v968, 4
      %v971 = vshll.u32 %v623, 16
      %v973 = vrot.slane %v971, 5
      %v974 = vsel %vm638, %v969, %v973
      %v976 = vshrl.u32 %v624, 16
      %v978 = vrot.slane %v976, 4
      %v979 = vshll.u32 %v624, 16
      %v981 = vrot.slane %v979, 5
      %v982 = vor.u32 %v978, %v981
      %v983 = vrot.slane %v982, 4
      %v985 = vshll.u32 %v625, 16
      %v987 = vrot.slane %v985, 5
      %v988 = vsel %vm638, %v983, %v987
      %v989 = vshrl.u32 %v625, 16
      %v991 = vrot.slane %v989, 4
      %v992 = vor.u32 %v991, %v987
      %v993 = vrot.slane %v992, 4
      %v995 = vshll.u32 %v626, 16
      %v997 = vrot.slane %v995, 5
      %v998 = vsel %vm638, %v993, %v997
      %v1000 = vshrl.u32 %v627, 16
      %v1002 = vrot.slane %v1000, 4
      %v1003 = vshll.u32 %v627, 16
      %v1005 = vrot.slane %v1003, 5
      %v1006 = vor.u32 %v1002, %v1005
      %v1007 = vrot.slane %v1006, 4
      %v1009 = vshll.u32 %v628, 16
      %v1011 = vrot.slane %v1009, 5
      %v1012 = vsel %vm638, %v1007, %v1011
      %v1013 = vshrl.u32 %v628, 16
      %v1015 = vrot.slane %v1013, 4
      %v1016 = vor.u32 %v1015, %v1011
      %v1017 = vrot.slane %v1016, 4
      %v1019 = vshll.u32 %v629, 16
      %v1021 = vrot.slane %v1019, 5
      %v1022 = vsel %vm638, %v1017, %v1021
      %v1023 = vld [vmem:[%s1] sm:$0x3]
      %v1025 = vshrl.u32 %v630, 16
      %v1027 = vrot.slane %v1025, 4
      %v1028 = vshll.u32 %v630, 16
      %v1030 = vrot.slane %v1028, 5
      %v1031 = vor.u32 %v1027, %v1030
      %v1032 = vrot.slane %v1031, 4
      %v1034 = vshll.u32 %v631, 16
      %v1036 = vrot.slane %v1034, 5
      %v1037 = vsel %vm638, %v1032, %v1036
      %v1038 = vshrl.u32 %v631, 16
      %v1040 = vrot.slane %v1038, 4
      %v1041 = vor.u32 %v1040, %v1036
      %v1042 = vrot.slane %v1041, 4
      %v1044 = vshll.u32 %v632, 16
      %v1046 = vrot.slane %v1044, 5
      %v1047 = vsel %vm638, %v1042, %v1046
      %s1048 = scalar_lea.vmem %s1, 6
      %v1049 = vld [vmem:[%s1048] sm:$0x3]
      %v1050 = vunpack.c.l.b16 %v676
      %v1051 = vunpack.c.l.b16 %v686
      %v1052 = vunpack.c.l.b16 %v700
      %v1053 = vunpack.c.l.b16 %v710
      %v1054 = vunpack.c.l.b16 %v724
      %v1055 = vunpack.c.l.b16 %v734
      %v1056 = vunpack.c.l.b16 %v748
      %v1057 = vunpack.c.l.b16 %v758
      %v1058 = vunpack.c.l.b16 %v772
      %v1059 = vunpack.c.l.b16 %v782
      %v1060 = vunpack.c.l.b16 %v796
      %v1061 = vunpack.c.l.b16 %v806
      %v1062 = vunpack.c.l.b16 %v820
      %v1063 = vunpack.c.l.b16 %v830
      %v1064 = vunpack.c.l.b16 %v844
      %v1065 = vunpack.c.l.b16 %v854
      %v1066 = vunpack.c.l.b16 %v868
      %v1067 = vunpack.c.l.b16 %v878
      %v1068 = vunpack.c.l.b16 %v892
      %v1069 = vunpack.c.l.b16 %v902
      %v1070 = vunpack.c.l.b16 %v916
      %v1071 = vunpack.c.l.b16 %v926
      %v1072 = vunpack.c.l.b16 %v940
      %v1073 = vunpack.c.l.b16 %v950
      %v1074 = vunpack.c.l.b16 %v964
      %v1075 = vunpack.c.l.b16 %v974
      %v1076 = vunpack.c.l.b16 %v988
      %v1077 = vunpack.c.l.b16 %v998
      %v1078 = vunpack.c.l.b16 %v1012
      %v1079 = vunpack.c.l.b16 %v1022
      %v1080 = vunpack.c.l.b16 %v1037
      %v1081 = vunpack.c.l.b16 %v1047
      %v1082 = vpack.c.b16 %v1051, %v1050
      %v1083 = vpack.c.b16 %v1053, %v1052
      %v1084 = vpack.c.b16 %v1055, %v1054
      %v1085 = vpack.c.b16 %v1057, %v1056
      %v1086 = vpack.c.b16 %v1059, %v1058
      %v1087 = vpack.c.b16 %v1061, %v1060
      %v1088 = vpack.c.b16 %v1063, %v1062
      %v1089 = vpack.c.b16 %v1065, %v1064
      %v1090 = vpack.c.b16 %v1067, %v1066
      %v1091 = vpack.c.b16 %v1069, %v1068
      %v1092 = vpack.c.b16 %v1071, %v1070
      %v1093 = vpack.c.b16 %v1073, %v1072
      %v1094 = vpack.c.b16 %v1075, %v1074
      %v1095 = vpack.c.b16 %v1077, %v1076
      %v1096 = vpack.c.b16 %v1079, %v1078
      %v1097 = vpack.c.b16 %v1081, %v1080
      %vm1098 = vcmask 31744
      %v1100 = vsel %vm1098, %v1082, 0
      %v1103 = vsel %vm1098, %v1083, 0
      %v1106 = vsel %vm1098, %v1084, 0
      %v1109 = vsel %vm1098, %v1085, 0
      %v1112 = vsel %vm1098, %v1086, 0
      %v1115 = vsel %vm1098, %v1087, 0
      %v1118 = vsel %vm1098, %v1088, 0
      %v1121 = vsel %vm1098, %v1089, 0
      %v1124 = vsel %vm1098, %v1090, 0
      %v1127 = vsel %vm1098, %v1091, 0
      %v1130 = vsel %vm1098, %v1092, 0
      %v1133 = vsel %vm1098, %v1093, 0
      %v1136 = vsel %vm1098, %v1094, 0
      %v1139 = vsel %vm1098, %v1095, 0
      %v1142 = vsel %vm1098, %v1096, 0
      %v1145 = vsel %vm1098, %v1097, 0
      %vm1147 = vcmask 1041408
      %v1149 = vsel %vm1147, %v1049, 0
      %1151 = vmatprep.subr.bf16.mxu0 0
      %1152 = vmatpush1.bf16.msra.mxu0 %v1149
      %1153 = vmatprep.subr.bf16.mxu0 0
      %1154 = vmatpush1.bf16.msra.mxu0 0
      %1155 = vmatprep.subr.bf16.mxu0 0
      %1156 = vmatpush1.bf16.msra.mxu0 0
      %1157 = vmatprep.subr.bf16.mxu0 0
      %1158 = vmatpush1.bf16.msra.mxu0 0
      %1159 = vmatprep.subr.bf16.mxu0 0
      %1160 = vmatpush1.bf16.msra.mxu0 0
      %1161 = vmatprep.subr.bf16.mxu0 0
      %1162 = vmatpush1.bf16.msra.mxu0 0
      %1163 = vmatprep.subr.bf16.mxu0 0
      %1164 = vmatpush1.bf16.msra.mxu0 0
      %1165 = vmatprep.subr.bf16.mxu0 0
      %1166 = vmatpush1.bf16.msra.mxu0 0
      %1167 = vmatprep.subr.bf16.mxu0 0
      %1168 = vmatpush1.bf16.msra.mxu0 0
      %1169 = vmatprep.subr.bf16.mxu0 0
      %1170 = vmatpush1.bf16.msra.mxu0 0
      %1171 = vmatprep.subr.bf16.mxu0 0
      %1172 = vmatpush1.bf16.msra.mxu0 0
      %1173 = vmatprep.subr.bf16.mxu0 0
      %1174 = vmatpush1.bf16.msra.mxu0 0
      %1175 = vmatprep.subr.bf16.mxu0 0
      %1176 = vmatpush1.bf16.msra.mxu0 0
      %1177 = vmatprep.subr.bf16.mxu0 0
      %1178 = vmatpush1.bf16.msra.mxu0 0
      %1179 = vmatprep.subr.bf16.mxu0 0
      %1180 = vmatpush1.bf16.msra.mxu0 0
      %1181 = vmatprep.subr.bf16.mxu0 0
      %1182 = vmatpush1.bf16.msra.mxu0 0
      %1183 = vmatprep.mubr.bf16.mxu0 0
      %1184 = vmatmul.mubr.bf16.gmra.mrb[0].mxu0 %v1100
      %v1185 = vpop.f32.mrb[0].mxu0
      %v1186 = vadd.f32 0.0, %v1185
      %v1187 = vpop.f32.mrb[0].mxu0
      %v1188 = vpop.f32.mrb[0].mxu0
      %v1189 = vadd.f32 0.0, %v1188
      %v1190 = vpop.f32.mrb[0].mxu0
      %1191 = vmatprep.mubr.bf16.mxu0 0
      %1192 = vmatmul.mubr.bf16.gmra.mrb[0].mxu0 %v1103
      %v1193 = vpop.f32.mrb[0].mxu0
      %v1194 = vadd.f32 0.0, %v1193
      %v1195 = vpop.f32.mrb[0].mxu0
      %v1196 = vpop.f32.mrb[0].mxu0
      %v1197 = vadd.f32 0.0, %v1196
      %v1198 = vpop.f32.mrb[0].mxu0
      %1199 = vmatprep.mubr.bf16.mxu0 0
      %1200 = vmatmul.mubr.bf16.gmra.mrb[0].mxu0 %v1106
      %v1201 = vpop.f32.mrb[0].mxu0
      %v1202 = vadd.f32 0.0, %v1201
      %v1203 = vpop.f32.mrb[0].mxu0
      %v1204 = vpop.f32.mrb[0].mxu0
      %v1205 = vadd.f32 0.0, %v1204
      %v1206 = vpop.f32.mrb[0].mxu0
      %1207 = vmatprep.mubr.bf16.mxu0 0
      %1208 = vmatmul.mubr.bf16.gmra.mrb[0].mxu0 %v1109
      %v1209 = vpop.f32.mrb[0].mxu0
      %v1210 = vadd.f32 0.0, %v1209
      %v1211 = vpop.f32.mrb[0].mxu0
      %v1212 = vpop.f32.mrb[0].mxu0
      %v1213 = vadd.f32 0.0, %v1212
      %v1214 = vpop.f32.mrb[0].mxu0
      %1215 = vmatprep.mubr.bf16.mxu0 0
      %1216 = vmatmul.mubr.bf16.gmra.mrb[0].mxu0 %v1112
      %v1217 = vpop.f32.mrb[0].mxu0
      %v1218 = vadd.f32 0.0, %v1217
      %v1219 = vpop.f32.mrb[0].mxu0
      %v1220 = vpop.f32.mrb[0].mxu0
      %v1221 = vadd.f32 0.0, %v1220
      %v1222 = vpop.f32.mrb[0].mxu0
      %1223 = vmatprep.mubr.bf16.mxu0 0
      %1224 = vmatmul.mubr.bf16.gmra.mrb[0].mxu0 %v1115
      %v1225 = vpop.f32.mrb[0].mxu0
      %v1226 = vadd.f32 0.0, %v1225
      %v1227 = vpop.f32.mrb[0].mxu0
      %v1228 = vpop.f32.mrb[0].mxu0
      %v1229 = vadd.f32 0.0, %v1228
      %v1230 = vpop.f32.mrb[0].mxu0
      %1231 = vmatprep.mubr.bf16.mxu0 0
      %1232 = vmatmul.mubr.bf16.gmra.mrb[0].mxu0 %v1118
      %v1233 = vpop.f32.mrb[0].mxu0
      %v1234 = vadd.f32 0.0, %v1233
      %v1235 = vpop.f32.mrb[0].mxu0
      %v1236 = vpop.f32.mrb[0].mxu0
      %v1237 = vadd.f32 0.0, %v1236
      %v1238 = vpop.f32.mrb[0].mxu0
      %1239 = vmatprep.mubr.bf16.mxu0 0
      %1240 = vmatmul.mubr.bf16.gmra.mrb[0].mxu0 %v1121
      %v1241 = vpop.f32.mrb[0].mxu0
      %v1242 = vadd.f32 0.0, %v1241
      %v1243 = vpop.f32.mrb[0].mxu0
      %v1244 = vpop.f32.mrb[0].mxu0
      %v1245 = vadd.f32 0.0, %v1244
      %v1246 = vpop.f32.mrb[0].mxu0
      %1247 = vmatprep.mubr.bf16.mxu0 0
      %1248 = vmatmul.mubr.bf16.gmra.mrb[0].mxu0 %v1124
      %v1249 = vpop.f32.mrb[0].mxu0
      %v1250 = vadd.f32 0.0, %v1249
      %v1251 = vpop.f32.mrb[0].mxu0
      %v1252 = vpop.f32.mrb[0].mxu0
      %v1253 = vadd.f32 0.0, %v1252
      %v1254 = vpop.f32.mrb[0].mxu0
      %1255 = vmatprep.mubr.bf16.mxu0 0
      %1256 = vmatmul.mubr.bf16.gmra.mrb[0].mxu0 %v1127
      %v1257 = vpop.f32.mrb[0].mxu0
      %v1258 = vadd.f32 0.0, %v1257
      %v1259 = vpop.f32.mrb[0].mxu0
      %v1260 = vpop.f32.mrb[0].mxu0
      %v1261 = vadd.f32 0.0, %v1260
      %v1262 = vpop.f32.mrb[0].mxu0
      %1263 = vmatprep.mubr.bf16.mxu0 0
      %1264 = vmatmul.mubr.bf16.gmra.mrb[0].mxu0 %v1130
      %v1265 = vpop.f32.mrb[0].mxu0
      %v1266 = vadd.f32 0.0, %v1265
      %v1267 = vpop.f32.mrb[0].mxu0
      %v1268 = vpop.f32.mrb[0].mxu0
      %v1269 = vadd.f32 0.0, %v1268
      %v1270 = vpop.f32.mrb[0].mxu0
      %1271 = vmatprep.mubr.bf16.mxu0 0
      %1272 = vmatmul.mubr.bf16.gmra.mrb[0].mxu0 %v1133
      %v1273 = vpop.f32.mrb[0].mxu0
      %v1274 = vadd.f32 0.0, %v1273
      %v1275 = vpop.f32.mrb[0].mxu0
      %v1276 = vpop.f32.mrb[0].mxu0
      %v1277 = vadd.f32 0.0, %v1276
      %v1278 = vpop.f32.mrb[0].mxu0
      %1279 = vmatprep.mubr.bf16.mxu0 0
      %1280 = vmatmul.mubr.bf16.gmra.mrb[0].mxu0 %v1136
      %v1281 = vpop.f32.mrb[0].mxu0
      %v1282 = vadd.f32 0.0, %v1281
      %v1283 = vpop.f32.mrb[0].mxu0
      %v1284 = vpop.f32.mrb[0].mxu0
      %v1285 = vadd.f32 0.0, %v1284
      %v1286 = vpop.f32.mrb[0].mxu0
      %1287 = vmatprep.mubr.bf16.mxu0 0
      %1288 = vmatmul.mubr.bf16.gmra.mrb[0].mxu0 %v1139
      %v1289 = vpop.f32.mrb[0].mxu0
      %v1290 = vadd.f32 0.0, %v1289
      %v1291 = vpop.f32.mrb[0].mxu0
      %v1292 = vpop.f32.mrb[0].mxu0
      %v1293 = vadd.f32 0.0, %v1292
      %v1294 = vpop.f32.mrb[0].mxu0
      %1295 = vmatprep.mubr.bf16.mxu0 0
      %1296 = vmatmul.mubr.bf16.gmra.mrb[0].mxu0 %v1142
      %v1297 = vpop.f32.mrb[0].mxu0
      %v1298 = vadd.f32 0.0, %v1297
      %v1299 = vpop.f32.mrb[0].mxu0
      %v1300 = vpop.f32.mrb[0].mxu0
      %v1301 = vadd.f32 0.0, %v1300
      %v1302 = vpop.f32.mrb[0].mxu0
      %1303 = vmatprep.mubr.bf16.mxu0 0
      %1304 = vmatmul.mubr.bf16.gmra.mrb[0].mxu0 %v1145
      %v1305 = vpop.f32.mrb[0].mxu0
      %v1306 = vadd.f32 0.0, %v1305
      %v1307 = vpop.f32.mrb[0].mxu0
      %v1308 = vpop.f32.mrb[0].mxu0
      %v1309 = vadd.f32 0.0, %v1308
      %v1310 = vpop.f32.mrb[0].mxu0
      %1311 = vdwg.mxu0
      %v1312 = vunpack.c.l.b16 %v652
      %v1313 = vunpack.c.l.b16 %v662
      %v1314 = vpack.c.b16 %v1313, %v1312
      %v1316 = vsel %vm1098, %v1314, 0
      %v1319 = vsel %vm1147, %v1023, 0
      %1321 = vmatprep.subr.bf16.mxu0 0
      %1322 = vmatpush1.bf16.msra.mxu0 %v1319
      %1323 = vmatprep.subr.bf16.mxu0 0
      %1324 = vmatpush1.bf16.msra.mxu0 0
      %1325 = vmatprep.subr.bf16.mxu0 0
      %1326 = vmatpush1.bf16.msra.mxu0 0
      %1327 = vmatprep.subr.bf16.mxu0 0
      %1328 = vmatpush1.bf16.msra.mxu0 0
      %1329 = vmatprep.subr.bf16.mxu0 0
      %1330 = vmatpush1.bf16.msra.mxu0 0
      %1331 = vmatprep.subr.bf16.mxu0 0
      %1332 = vmatpush1.bf16.msra.mxu0 0
      %1333 = vmatprep.subr.bf16.mxu0 0
      %1334 = vmatpush1.bf16.msra.mxu0 0
      %1335 = vmatprep.subr.bf16.mxu0 0
      %1336 = vmatpush1.bf16.msra.mxu0 0
      %1337 = vmatprep.subr.bf16.mxu0 0
      %1338 = vmatpush1.bf16.msra.mxu0 0
      %1339 = vmatprep.subr.bf16.mxu0 0
      %1340 = vmatpush1.bf16.msra.mxu0 0
      %1341 = vmatprep.subr.bf16.mxu0 0
      %1342 = vmatpush1.bf16.msra.mxu0 0
      %1343 = vmatprep.subr.bf16.mxu0 0
      %1344 = vmatpush1.bf16.msra.mxu0 0
      %1345 = vmatprep.subr.bf16.mxu0 0
      %1346 = vmatpush1.bf16.msra.mxu0 0
      %1347 = vmatprep.subr.bf16.mxu0 0
      %1348 = vmatpush1.bf16.msra.mxu0 0
      %1349 = vmatprep.subr.bf16.mxu0 0
      %1350 = vmatpush1.bf16.msra.mxu0 0
      %1351 = vmatprep.subr.bf16.mxu0 0
      %1352 = vmatpush1.bf16.msra.mxu0 0
      %1353 = vmatprep.mubr.bf16.mxu0 0
      %1354 = vmatmul.mubr.bf16.gmra.mrb[0].mxu0 %v1316
      %v1355 = vpop.f32.mrb[0].mxu0
      %v1356 = vadd.f32 %v1186, %v1355
      %v1357 = vpop.f32.mrb[0].mxu0
      %v1358 = vpop.f32.mrb[0].mxu0
      %v1359 = vadd.f32 %v1189, %v1358
      %v1360 = vpop.f32.mrb[0].mxu0
      %1361 = vmatprep.mubr.bf16.mxu0 0
      %1362 = vmatmul.mubr.bf16.gmra.mrb[0].mxu0 %v1100
      %v1363 = vpop.f32.mrb[0].mxu0
      %v1364 = vadd.f32 %v1194, %v1363
      %v1365 = vpop.f32.mrb[0].mxu0
      %v1366 = vpop.f32.mrb[0].mxu0
      %v1367 = vadd.f32 %v1197, %v1366
      %v1368 = vpop.f32.mrb[0].mxu0
      %1369 = vmatprep.mubr.bf16.mxu0 0
      %1370 = vmatmul.mubr.bf16.gmra.mrb[0].mxu0 %v1103
      %v1371 = vpop.f32.mrb[0].mxu0
      %v1372 = vadd.f32 %v1202, %v1371
      %v1373 = vpop.f32.mrb[0].mxu0
      %v1374 = vpop.f32.mrb[0].mxu0
      %v1375 = vadd.f32 %v1205, %v1374
      %v1376 = vpop.f32.mrb[0].mxu0
      %1377 = vmatprep.mubr.bf16.mxu0 0
      %1378 = vmatmul.mubr.bf16.gmra.mrb[0].mxu0 %v1106
      %v1379 = vpop.f32.mrb[0].mxu0
      %v1380 = vadd.f32 %v1210, %v1379
      %v1381 = vpop.f32.mrb[0].mxu0
      %v1382 = vpop.f32.mrb[0].mxu0
      %v1383 = vadd.f32 %v1213, %v1382
      %v1384 = vpop.f32.mrb[0].mxu0
      %1385 = vmatprep.mubr.bf16.mxu0 0
      %1386 = vmatmul.mubr.bf16.gmra.mrb[0].mxu0 %v1109
      %v1387 = vpop.f32.mrb[0].mxu0
      %v1388 = vadd.f32 %v1218, %v1387
      %v1389 = vpop.f32.mrb[0].mxu0
      %v1390 = vpop.f32.mrb[0].mxu0
      %v1391 = vadd.f32 %v1221, %v1390
      %v1392 = vpop.f32.mrb[0].mxu0
      %1393 = vmatprep.mubr.bf16.mxu0 0
      %1394 = vmatmul.mubr.bf16.gmra.mrb[0].mxu0 %v1112
      %v1395 = vpop.f32.mrb[0].mxu0
      %v1396 = vadd.f32 %v1226, %v1395
      %v1397 = vpop.f32.mrb[0].mxu0
      %v1398 = vpop.f32.mrb[0].mxu0
      %v1399 = vadd.f32 %v1229, %v1398
      %v1400 = vpop.f32.mrb[0].mxu0
      %1401 = vmatprep.mubr.bf16.mxu0 0
      %1402 = vmatmul.mubr.bf16.gmra.mrb[0].mxu0 %v1115
      %v1403 = vpop.f32.mrb[0].mxu0
      %v1404 = vadd.f32 %v1234, %v1403
      %v1405 = vpop.f32.mrb[0].mxu0
      %v1406 = vpop.f32.mrb[0].mxu0
      %v1407 = vadd.f32 %v1237, %v1406
      %v1408 = vpop.f32.mrb[0].mxu0
      %1409 = vmatprep.mubr.bf16.mxu0 0
      %1410 = vmatmul.mubr.bf16.gmra.mrb[0].mxu0 %v1118
      %v1411 = vpop.f32.mrb[0].mxu0
      %v1412 = vadd.f32 %v1242, %v1411
      %v1413 = vpop.f32.mrb[0].mxu0
      %v1414 = vpop.f32.mrb[0].mxu0
      %v1415 = vadd.f32 %v1245, %v1414
      %v1416 = vpop.f32.mrb[0].mxu0
      %1417 = vmatprep.mubr.bf16.mxu0 0
      %1418 = vmatmul.mubr.bf16.gmra.mrb[0].mxu0 %v1121
      %v1419 = vpop.f32.mrb[0].mxu0
      %v1420 = vadd.f32 %v1250, %v1419
      %v1421 = vpop.f32.mrb[0].mxu0
      %v1422 = vpop.f32.mrb[0].mxu0
      %v1423 = vadd.f32 %v1253, %v1422
      %v1424 = vpop.f32.mrb[0].mxu0
      %1425 = vmatprep.mubr.bf16.mxu0 0
      %1426 = vmatmul.mubr.bf16.gmra.mrb[0].mxu0 %v1124
      %v1427 = vpop.f32.mrb[0].mxu0
      %v1428 = vadd.f32 %v1258, %v1427
      %v1429 = vpop.f32.mrb[0].mxu0
      %v1430 = vpop.f32.mrb[0].mxu0
      %v1431 = vadd.f32 %v1261, %v1430
      %v1432 = vpop.f32.mrb[0].mxu0
      %1433 = vmatprep.mubr.bf16.mxu0 0
      %1434 = vmatmul.mubr.bf16.gmra.mrb[0].mxu0 %v1127
      %v1435 = vpop.f32.mrb[0].mxu0
      %v1436 = vadd.f32 %v1266, %v1435
      %v1437 = vpop.f32.mrb[0].mxu0
      %v1438 = vpop.f32.mrb[0].mxu0
      %v1439 = vadd.f32 %v1269, %v1438
      %v1440 = vpop.f32.mrb[0].mxu0
      %1441 = vmatprep.mubr.bf16.mxu0 0
      %1442 = vmatmul.mubr.bf16.gmra.mrb[0].mxu0 %v1130
      %v1443 = vpop.f32.mrb[0].mxu0
      %v1444 = vadd.f32 %v1274, %v1443
      %v1445 = vpop.f32.mrb[0].mxu0
      %v1446 = vpop.f32.mrb[0].mxu0
      %v1447 = vadd.f32 %v1277, %v1446
      %v1448 = vpop.f32.mrb[0].mxu0
      %1449 = vmatprep.mubr.bf16.mxu0 0
      %1450 = vmatmul.mubr.bf16.gmra.mrb[0].mxu0 %v1133
      %v1451 = vpop.f32.mrb[0].mxu0
      %v1452 = vadd.f32 %v1282, %v1451
      %v1453 = vpop.f32.mrb[0].mxu0
      %v1454 = vpop.f32.mrb[0].mxu0
      %v1455 = vadd.f32 %v1285, %v1454
      %v1456 = vpop.f32.mrb[0].mxu0
      %1457 = vmatprep.mubr.bf16.mxu0 0
      %1458 = vmatmul.mubr.bf16.gmra.mrb[0].mxu0 %v1136
      %v1459 = vpop.f32.mrb[0].mxu0
      %v1460 = vadd.f32 %v1290, %v1459
      %v1461 = vpop.f32.mrb[0].mxu0
      %v1462 = vpop.f32.mrb[0].mxu0
      %v1463 = vadd.f32 %v1293, %v1462
      %v1464 = vpop.f32.mrb[0].mxu0
      %1465 = vmatprep.mubr.bf16.mxu0 0
      %1466 = vmatmul.mubr.bf16.gmra.mrb[0].mxu0 %v1139
      %v1467 = vpop.f32.mrb[0].mxu0
      %v1468 = vadd.f32 %v1298, %v1467
      %v1469 = vpop.f32.mrb[0].mxu0
      %v1470 = vpop.f32.mrb[0].mxu0
      %v1471 = vadd.f32 %v1301, %v1470
      %v1472 = vpop.f32.mrb[0].mxu0
      %1473 = vmatprep.mubr.bf16.mxu0 0
      %1474 = vmatmul.mubr.bf16.gmra.mrb[0].mxu0 %v1142
      %v1475 = vpop.f32.mrb[0].mxu0
      %v1476 = vadd.f32 %v1306, %v1475
      %v1477 = vpop.f32.mrb[0].mxu0
      %v1478 = vpop.f32.mrb[0].mxu0
      %v1479 = vadd.f32 %v1309, %v1478
      %v1480 = vpop.f32.mrb[0].mxu0
      %1481 = vdwg.mxu0
      %v1483 = vshrl.u32 %v633, 16
      %v1485 = vrot.slane %v1483, 4
      %v1486 = vshll.u32 %v633, 16
      %v1488 = vrot.slane %v1486, 5
      %v1489 = vor.u32 %v1485, %v1488
      %v1490 = vrot.slane %v1489, 4
      %v1492 = vshll.u32 %v634, 16
      %v1494 = vrot.slane %v1492, 5
      %v1495 = vsel %vm638, %v1490, %v1494
      %v1496 = vshrl.u32 %v634, 16
      %v1498 = vrot.slane %v1496, 4
      %v1499 = vor.u32 %v1498, %v1494
      %v1500 = vrot.slane %v1499, 4
      %v1502 = vshll.u32 %v635, 16
      %v1504 = vrot.slane %v1502, 5
      %v1505 = vsel %vm638, %v1500, %v1504
      %s1506 = scalar_lea.vmem %s1, 12
      %v1507 = vld [vmem:[%s1506] sm:$0x3]
      %v1508 = vunpack.c.l.b16 %v1495
      %v1509 = vunpack.c.l.b16 %v1505
      %v1510 = vpack.c.b16 %v1509, %v1508
      %v1512 = vsel %vm1098, %v1510, 0
      %v1515 = vsel %vm1147, %v1507, 0
      %1517 = vmatprep.subr.bf16.mxu0 0
      %1518 = vmatpush1.bf16.msra.mxu0 %v1515
      %1519 = vmatprep.subr.bf16.mxu0 0
      %1520 = vmatpush1.bf16.msra.mxu0 0
      %1521 = vmatprep.subr.bf16.mxu0 0
      %1522 = vmatpush1.bf16.msra.mxu0 0
      %1523 = vmatprep.subr.bf16.mxu0 0
      %1524 = vmatpush1.bf16.msra.mxu0 0
      %1525 = vmatprep.subr.bf16.mxu0 0
      %1526 = vmatpush1.bf16.msra.mxu0 0
      %1527 = vmatprep.subr.bf16.mxu0 0
      %1528 = vmatpush1.bf16.msra.mxu0 0
      %1529 = vmatprep.subr.bf16.mxu0 0
      %1530 = vmatpush1.bf16.msra.mxu0 0
      %1531 = vmatprep.subr.bf16.mxu0 0
      %1532 = vmatpush1.bf16.msra.mxu0 0
      %1533 = vmatprep.subr.bf16.mxu0 0
      %1534 = vmatpush1.bf16.msra.mxu0 0
      %1535 = vmatprep.subr.bf16.mxu0 0
      %1536 = vmatpush1.bf16.msra.mxu0 0
      %1537 = vmatprep.subr.bf16.mxu0 0
      %1538 = vmatpush1.bf16.msra.mxu0 0
      %1539 = vmatprep.subr.bf16.mxu0 0
      %1540 = vmatpush1.bf16.msra.mxu0 0
      %1541 = vmatprep.subr.bf16.mxu0 0
      %1542 = vmatpush1.bf16.msra.mxu0 0
      %1543 = vmatprep.subr.bf16.mxu0 0
      %1544 = vmatpush1.bf16.msra.mxu0 0
      %1545 = vmatprep.subr.bf16.mxu0 0
      %1546 = vmatpush1.bf16.msra.mxu0 0
      %1547 = vmatprep.subr.bf16.mxu0 0
      %1548 = vmatpush1.bf16.msra.mxu0 0
      %1549 = vmatprep.mubr.bf16.mxu0 0
      %1550 = vmatmul.mubr.bf16.gmra.mrb[0].mxu0 %v1103
      %v1551 = vpop.f32.mrb[0].mxu0
      %v1552 = vadd.f32 0.0, %v1551
      %v1553 = vpop.f32.mrb[0].mxu0
      %v1554 = vpop.f32.mrb[0].mxu0
      %v1555 = vadd.f32 0.0, %v1554
      %v1556 = vpop.f32.mrb[0].mxu0
      %1557 = vmatprep.mubr.bf16.mxu0 0
      %1558 = vmatmul.mubr.bf16.gmra.mrb[0].mxu0 %v1106
      %v1559 = vpop.f32.mrb[0].mxu0
      %v1560 = vadd.f32 0.0, %v1559
      %v1561 = vpop.f32.mrb[0].mxu0
      %v1562 = vpop.f32.mrb[0].mxu0
      %v1563 = vadd.f32 0.0, %v1562
      %v1564 = vpop.f32.mrb[0].mxu0
      %1565 = vmatprep.mubr.bf16.mxu0 0
      %1566 = vmatmul.mubr.bf16.gmra.mrb[0].mxu0 %v1109
      %v1567 = vpop.f32.mrb[0].mxu0
      %v1568 = vadd.f32 0.0, %v1567
      %v1569 = vpop.f32.mrb[0].mxu0
      %v1570 = vpop.f32.mrb[0].mxu0
      %v1571 = vadd.f32 0.0, %v1570
      %v1572 = vpop.f32.mrb[0].mxu0
      %1573 = vmatprep.mubr.bf16.mxu0 0
      %1574 = vmatmul.mubr.bf16.gmra.mrb[0].mxu0 %v1112
      %v1575 = vpop.f32.mrb[0].mxu0
      %v1576 = vadd.f32 0.0, %v1575
      %v1577 = vpop.f32.mrb[0].mxu0
      %v1578 = vpop.f32.mrb[0].mxu0
      %v1579 = vadd.f32 0.0, %v1578
      %v1580 = vpop.f32.mrb[0].mxu0
      %1581 = vmatprep.mubr.bf16.mxu0 0
      %1582 = vmatmul.mubr.bf16.gmra.mrb[0].mxu0 %v1115
      %v1583 = vpop.f32.mrb[0].mxu0
      %v1584 = vadd.f32 0.0, %v1583
      %v1585 = vpop.f32.mrb[0].mxu0
      %v1586 = vpop.f32.mrb[0].mxu0
      %v1587 = vadd.f32 0.0, %v1586
      %v1588 = vpop.f32.mrb[0].mxu0
      %1589 = vmatprep.mubr.bf16.mxu0 0
      %1590 = vmatmul.mubr.bf16.gmra.mrb[0].mxu0 %v1118
      %v1591 = vpop.f32.mrb[0].mxu0
      %v1592 = vadd.f32 0.0, %v1591
      %v1593 = vpop.f32.mrb[0].mxu0
      %v1594 = vpop.f32.mrb[0].mxu0
      %v1595 = vadd.f32 0.0, %v1594
      %v1596 = vpop.f32.mrb[0].mxu0
      %1597 = vmatprep.mubr.bf16.mxu0 0
      %1598 = vmatmul.mubr.bf16.gmra.mrb[0].mxu0 %v1121
      %v1599 = vpop.f32.mrb[0].mxu0
      %v1600 = vadd.f32 0.0, %v1599
      %v1601 = vpop.f32.mrb[0].mxu0
      %v1602 = vpop.f32.mrb[0].mxu0
      %v1603 = vadd.f32 0.0, %v1602
      %v1604 = vpop.f32.mrb[0].mxu0
      %1605 = vmatprep.mubr.bf16.mxu0 0
      %1606 = vmatmul.mubr.bf16.gmra.mrb[0].mxu0 %v1124
      %v1607 = vpop.f32.mrb[0].mxu0
      %v1608 = vadd.f32 0.0, %v1607
      %v1609 = vpop.f32.mrb[0].mxu0
      %v1610 = vpop.f32.mrb[0].mxu0
      %v1611 = vadd.f32 0.0, %v1610
      %v1612 = vpop.f32.mrb[0].mxu0
      %1613 = vmatprep.mubr.bf16.mxu0 0
      %1614 = vmatmul.mubr.bf16.gmra.mrb[0].mxu0 %v1127
      %v1615 = vpop.f32.mrb[0].mxu0
      %v1616 = vadd.f32 0.0, %v1615
      %v1617 = vpop.f32.mrb[0].mxu0
      %v1618 = vpop.f32.mrb[0].mxu0
      %v1619 = vadd.f32 0.0, %v1618
      %v1620 = vpop.f32.mrb[0].mxu0
      %1621 = vmatprep.mubr.bf16.mxu0 0
      %1622 = vmatmul.mubr.bf16.gmra.mrb[0].mxu0 %v1130
      %v1623 = vpop.f32.mrb[0].mxu0
      %v1624 = vadd.f32 0.0, %v1623
      %v1625 = vpop.f32.mrb[0].mxu0
      %v1626 = vpop.f32.mrb[0].mxu0
      %v1627 = vadd.f32 0.0, %v1626
      %v1628 = vpop.f32.mrb[0].mxu0
      %1629 = vmatprep.mubr.bf16.mxu0 0
      %1630 = vmatmul.mubr.bf16.gmra.mrb[0].mxu0 %v1133
      %v1631 = vpop.f32.mrb[0].mxu0
      %v1632 = vadd.f32 0.0, %v1631
      %v1633 = vpop.f32.mrb[0].mxu0
      %v1634 = vpop.f32.mrb[0].mxu0
      %v1635 = vadd.f32 0.0, %v1634
      %v1636 = vpop.f32.mrb[0].mxu0
      %1637 = vmatprep.mubr.bf16.mxu0 0
      %1638 = vmatmul.mubr.bf16.gmra.mrb[0].mxu0 %v1136
      %v1639 = vpop.f32.mrb[0].mxu0
      %v1640 = vadd.f32 0.0, %v1639
      %v1641 = vpop.f32.mrb[0].mxu0
      %v1642 = vpop.f32.mrb[0].mxu0
      %v1643 = vadd.f32 0.0, %v1642
      %v1644 = vpop.f32.mrb[0].mxu0
      %1645 = vmatprep.mubr.bf16.mxu0 0
      %1646 = vmatmul.mubr.bf16.gmra.mrb[0].mxu0 %v1139
      %v1647 = vpop.f32.mrb[0].mxu0
      %v1648 = vadd.f32 0.0, %v1647
      %v1649 = vpop.f32.mrb[0].mxu0
      %v1650 = vpop.f32.mrb[0].mxu0
      %v1651 = vadd.f32 0.0, %v1650
      %v1652 = vpop.f32.mrb[0].mxu0
      %1653 = vmatprep.mubr.bf16.mxu0 0
      %1654 = vmatmul.mubr.bf16.gmra.mrb[0].mxu0 %v1142
      %v1655 = vpop.f32.mrb[0].mxu0
      %v1656 = vadd.f32 0.0, %v1655
      %v1657 = vpop.f32.mrb[0].mxu0
      %v1658 = vpop.f32.mrb[0].mxu0
      %v1659 = vadd.f32 0.0, %v1658
      %v1660 = vpop.f32.mrb[0].mxu0
      %1661 = vmatprep.mubr.bf16.mxu0 0
      %1662 = vmatmul.mubr.bf16.gmra.mrb[0].mxu0 %v1145
      %v1663 = vpop.f32.mrb[0].mxu0
      %v1664 = vadd.f32 0.0, %v1663
      %v1665 = vpop.f32.mrb[0].mxu0
      %v1666 = vpop.f32.mrb[0].mxu0
      %v1667 = vadd.f32 0.0, %v1666
      %v1668 = vpop.f32.mrb[0].mxu0
      %1669 = vmatprep.mubr.bf16.mxu0 0
      %1670 = vmatmul.mubr.bf16.gmra.mrb[0].mxu0 %v1512
      %v1671 = vpop.f32.mrb[0].mxu0
      %v1672 = vadd.f32 0.0, %v1671
      %v1673 = vpop.f32.mrb[0].mxu0
      %v1674 = vpop.f32.mrb[0].mxu0
      %v1675 = vadd.f32 0.0, %v1674
      %v1676 = vpop.f32.mrb[0].mxu0
      %1677 = vdwg.mxu0
      %v1678 = vadd.f32 %v1356, %v1552
      %v1679 = vadd.f32 %v1359, %v1555
      %v1680 = vadd.f32 %v1364, %v1560
      %v1681 = vadd.f32 %v1367, %v1563
      %v1682 = vadd.f32 %v1372, %v1568
      %v1683 = vadd.f32 %v1375, %v1571
      %v1684 = vadd.f32 %v1380, %v1576
      %v1685 = vadd.f32 %v1383, %v1579
      %v1686 = vadd.f32 %v1388, %v1584
      %v1687 = vadd.f32 %v1391, %v1587
      %v1688 = vadd.f32 %v1396, %v1592
      %v1689 = vadd.f32 %v1399, %v1595
      %v1690 = vadd.f32 %v1404, %v1600
      %v1691 = vadd.f32 %v1407, %v1603
      %v1692 = vadd.f32 %v1412, %v1608
      %v1693 = vadd.f32 %v1415, %v1611
      %v1694 = vadd.f32 %v1420, %v1616
      %v1695 = vadd.f32 %v1423, %v1619
      %v1696 = vadd.f32 %v1428, %v1624
      %v1697 = vadd.f32 %v1431, %v1627
      %v1698 = vadd.f32 %v1436, %v1632
      %v1699 = vadd.f32 %v1439, %v1635
      %v1700 = vadd.f32 %v1444, %v1640
      %v1701 = vadd.f32 %v1447, %v1643
      %v1702 = vadd.f32 %v1452, %v1648
      %v1703 = vadd.f32 %v1455, %v1651
      %v1704 = vadd.f32 %v1460, %v1656
      %v1705 = vadd.f32 %v1463, %v1659
      %v1706 = vadd.f32 %v1468, %v1664
      %v1707 = vadd.f32 %v1471, %v1667
      %v1708 = vadd.f32 %v1476, %v1672
      %v1709 = vadd.f32 %v1479, %v1675
      %v1710 = vld [vmem:[#allocation2] sm:$0xe]
      %v1711 = vld [vmem:[#allocation2 + $0xc] sm:$0xe]
      %v1712 = vld [vmem:[#allocation2 + $0x18] sm:$0xe]
      %v1713 = vld [vmem:[#allocation2 + $0x24] sm:$0xe]
      %v1714 = vld [vmem:[#allocation2 + $0x30] sm:$0xe]
      %v1715 = vld [vmem:[#allocation2 + $0x3c] sm:$0xe]
      %v1716 = vld [vmem:[#allocation2 + $0x48] sm:$0xe]
      %v1717 = vld [vmem:[#allocation2 + $0x54] sm:$0xe]
      %v1718 = vld [vmem:[#allocation2 + $0x60] sm:$0xe]
      %v1719 = vld [vmem:[#allocation2 + $0x6c] sm:$0xe]
      %v1720 = vld [vmem:[#allocation2 + $0x78] sm:$0xe]
      %v1721 = vld [vmem:[#allocation2 + $0x84] sm:$0xe]
      %v1722 = vld [vmem:[#allocation2 + $0x90] sm:$0xe]
      %v1723 = vld [vmem:[#allocation2 + $0x9c] sm:$0xe]
      %v1724 = vld [vmem:[#allocation2 + $0xa8] sm:$0xe]
      %v1725 = vld [vmem:[#allocation2 + $0xb4] sm:$0xe]
      %v1726 = vld [vmem:[#allocation2 + $0xc0] sm:$0xe]
      %v1727 = vld [vmem:[#allocation2 + $0xcc] sm:$0xe]
      %vm1776 = vcmask 1042432
      %vm1777 = vcmask 1046532
      %vm1778 = vmor %vm1776, %vm1777
      %v1779 = vrot.slane %v1710, 5
      %v1780 = vrot.slane %v1779, 4
      %v1781 = vrot.slane %v583, 5
      %v1782 = vsel %vm1778, %v1780, %v1781
      %v1783 = vrot.slane %v1781, 4
      %v1784 = vrot.slane %v584, 5
      %v1785 = vsel %vm1778, %v1783, %v1784
      %v1786 = vrot.slane %v1711, 5
      %v1787 = vrot.slane %v1786, 4
      %v1788 = vrot.slane %v586, 5
      %v1789 = vsel %vm1778, %v1787, %v1788
      %v1790 = vrot.slane %v1788, 4
      %v1791 = vrot.slane %v587, 5
      %v1792 = vsel %vm1778, %v1790, %v1791
      %v1793 = vrot.slane %v1712, 5
      %v1794 = vrot.slane %v1793, 4
      %v1795 = vrot.slane %v589, 5
      %v1796 = vsel %vm1778, %v1794, %v1795
      %v1797 = vrot.slane %v1795, 4
      %v1798 = vrot.slane %v590, 5
      %v1799 = vsel %vm1778, %v1797, %v1798
      %v1800 = vrot.slane %v1713, 5
      %v1801 = vrot.slane %v1800, 4
      %v1802 = vrot.slane %v592, 5
      %v1803 = vsel %vm1778, %v1801, %v1802
      %v1804 = vrot.slane %v1802, 4
      %v1805 = vrot.slane %v593, 5
      %v1806 = vsel %vm1778, %v1804, %v1805
      %v1807 = vrot.slane %v1714, 5
      %v1808 = vrot.slane %v1807, 4
      %v1809 = vrot.slane %v595, 5
      %v1810 = vsel %vm1778, %v1808, %v1809
      %v1811 = vrot.slane %v1809, 4
      %v1812 = vrot.slane %v596, 5
      %v1813 = vsel %vm1778, %v1811, %v1812
      %v1814 = vrot.slane %v1715, 5
      %v1815 = vrot.slane %v1814, 4
      %v1816 = vrot.slane %v598, 5
      %v1817 = vsel %vm1778, %v1815, %v1816
      %v1818 = vrot.slane %v1816, 4
      %v1819 = vrot.slane %v599, 5
      %v1820 = vsel %vm1778, %v1818, %v1819
      %v1821 = vrot.slane %v1716, 5
      %v1822 = vrot.slane %v1821, 4
      %v1823 = vrot.slane %v601, 5
      %v1824 = vsel %vm1778, %v1822, %v1823
      %v1825 = vrot.slane %v1823, 4
      %v1826 = vrot.slane %v602, 5
      %v1827 = vsel %vm1778, %v1825, %v1826
      %v1828 = vrot.slane %v1717, 5
      %v1829 = vrot.slane %v1828, 4
      %v1830 = vrot.slane %v604, 5
      %v1831 = vsel %vm1778, %v1829, %v1830
      %v1832 = vrot.slane %v1830, 4
      %v1833 = vrot.slane %v605, 5
      %v1834 = vsel %vm1778, %v1832, %v1833
      %v1835 = vrot.slane %v1718, 5
      %v1836 = vrot.slane %v1835, 4
      %v1837 = vrot.slane %v607, 5
      %v1838 = vsel %vm1778, %v1836, %v1837
      %v1839 = vrot.slane %v1837, 4
      %v1840 = vrot.slane %v608, 5
      %v1841 = vsel %vm1778, %v1839, %v1840
      %v1842 = vrot.slane %v1719, 5
      %v1843 = vrot.slane %v1842, 4
      %v1844 = vrot.slane %v610, 5
      %v1845 = vsel %vm1778, %v1843, %v1844
      %v1846 = vrot.slane %v1844, 4
      %v1847 = vrot.slane %v611, 5
      %v1848 = vsel %vm1778, %v1846, %v1847
      %v1849 = vrot.slane %v1720, 5
      %v1850 = vrot.slane %v1849, 4
      %v1851 = vrot.slane %v613, 5
      %v1852 = vsel %vm1778, %v1850, %v1851
      %v1853 = vrot.slane %v1851, 4
      %v1854 = vrot.slane %v614, 5
      %v1855 = vsel %vm1778, %v1853, %v1854
      %v1856 = vrot.slane %v1721, 5
      %v1857 = vrot.slane %v1856, 4
      %v1858 = vrot.slane %v616, 5
      %v1859 = vsel %vm1778, %v1857, %v1858
      %v1860 = vrot.slane %v1858, 4
      %v1861 = vrot.slane %v617, 5
      %v1862 = vsel %vm1778, %v1860, %v1861
      %v1863 = vrot.slane %v1722, 5
      %v1864 = vrot.slane %v1863, 4
      %v1865 = vrot.slane %v619, 5
      %v1866 = vsel %vm1778, %v1864, %v1865
      %v1867 = vrot.slane %v1865, 4
      %v1868 = vrot.slane %v620, 5
      %v1869 = vsel %vm1778, %v1867, %v1868
      %v1870 = vrot.slane %v1723, 5
      %v1871 = vrot.slane %v1870, 4
      %v1872 = vrot.slane %v622, 5
      %v1873 = vsel %vm1778, %v1871, %v1872
      %v1874 = vrot.slane %v1872, 4
      %v1875 = vrot.slane %v623, 5
      %v1876 = vsel %vm1778, %v1874, %v1875
      %v1877 = vrot.slane %v1724, 5
      %v1878 = vrot.slane %v1877, 4
      %v1879 = vrot.slane %v625, 5
      %v1880 = vsel %vm1778, %v1878, %v1879
      %v1881 = vrot.slane %v1879, 4
      %v1882 = vrot.slane %v626, 5
      %v1883 = vsel %vm1778, %v1881, %v1882
      %v1884 = vrot.slane %v1725, 5
      %v1885 = vrot.slane %v1884, 4
      %v1886 = vrot.slane %v628, 5
      %v1887 = vsel %vm1778, %v1885, %v1886
      %v1888 = vrot.slane %v1886, 4
      %v1889 = vrot.slane %v629, 5
      %v1890 = vsel %vm1778, %v1888, %v1889
      %s1891 = scalar_lea.vmem %s1, 2
      %v1892 = vld [vmem:[%s1891] sm:$0x3]
      %v1893 = vunpack.c.l.b16 %v1782
      %v1894 = vunpack.c.l.b16 %v1785
      %v1895 = vunpack.c.l.b16 %v1789
      %v1896 = vunpack.c.l.b16 %v1792
      %v1897 = vunpack.c.l.b16 %v1796
      %v1898 = vunpack.c.l.b16 %v1799
      %v1899 = vunpack.c.l.b16 %v1803
      %v1900 = vunpack.c.l.b16 %v1806
      %v1901 = vunpack.c.l.b16 %v1810
      %v1902 = vunpack.c.l.b16 %v1813
      %v1903 = vunpack.c.l.b16 %v1817
      %v1904 = vunpack.c.l.b16 %v1820
      %v1905 = vunpack.c.l.b16 %v1824
      %v1906 = vunpack.c.l.b16 %v1827
      %v1907 = vunpack.c.l.b16 %v1831
      %v1908 = vunpack.c.l.b16 %v1834
      %v1909 = vunpack.c.l.b16 %v1838
      %v1910 = vunpack.c.l.b16 %v1841
      %v1911 = vunpack.c.l.b16 %v1845
      %v1912 = vunpack.c.l.b16 %v1848
      %v1913 = vunpack.c.l.b16 %v1852
      %v1914 = vunpack.c.l.b16 %v1855
      %v1915 = vunpack.c.l.b16 %v1859
      %v1916 = vunpack.c.l.b16 %v1862
      %v1917 = vunpack.c.l.b16 %v1866
      %v1918 = vunpack.c.l.b16 %v1869
      %v1919 = vunpack.c.l.b16 %v1873
      %v1920 = vunpack.c.l.b16 %v1876
      %v1921 = vunpack.c.l.b16 %v1880
      %v1922 = vunpack.c.l.b16 %v1883
      %v1923 = vunpack.c.l.b16 %v1887
      %v1924 = vunpack.c.l.b16 %v1890
      %v1925 = vpack.c.b16 %v1894, %v1893
      %v1926 = vpack.c.b16 %v1896, %v1895
      %v1927 = vpack.c.b16 %v1898, %v1897
      %v1928 = vpack.c.b16 %v1900, %v1899
      %v1929 = vpack.c.b16 %v1902, %v1901
      %v1930 = vpack.c.b16 %v1904, %v1903
      %v1931 = vpack.c.b16 %v1906, %v1905
      %v1932 = vpack.c.b16 %v1908, %v1907
      %v1933 = vpack.c.b16 %v1910, %v1909
      %v1934 = vpack.c.b16 %v1912, %v1911
      %v1935 = vpack.c.b16 %v1914, %v1913
      %v1936 = vpack.c.b16 %v1916, %v1915
      %v1937 = vpack.c.b16 %v1918, %v1917
      %v1938 = vpack.c.b16 %v1920, %v1919
      %v1939 = vpack.c.b16 %v1922, %v1921
      %v1940 = vpack.c.b16 %v1924, %v1923
      %v1942 = vsel %vm1098, %v1925, 0
      %v1945 = vsel %vm1098, %v1926, 0
      %v1948 = vsel %vm1098, %v1927, 0
      %v1951 = vsel %vm1098, %v1928, 0
      %v1954 = vsel %vm1098, %v1929, 0
      %v1957 = vsel %vm1098, %v1930, 0
      %v1960 = vsel %vm1098, %v1931, 0
      %v1963 = vsel %vm1098, %v1932, 0
      %v1966 = vsel %vm1098, %v1933, 0
      %v1969 = vsel %vm1098, %v1934, 0
      %v1972 = vsel %vm1098, %v1935, 0
      %v1975 = vsel %vm1098, %v1936, 0
      %v1978 = vsel %vm1098, %v1937, 0
      %v1981 = vsel %vm1098, %v1938, 0
      %v1984 = vsel %vm1098, %v1939, 0
      %v1987 = vsel %vm1098, %v1940, 0
      %v1990 = vsel %vm1147, %v1892, 0
      %1992 = vmatprep.subr.bf16.mxu0 0
      %1993 = vmatpush1.bf16.msra.mxu0 %v1990
      %1994 = vmatprep.subr.bf16.mxu0 0
      %1995 = vmatpush1.bf16.msra.mxu0 0
      %1996 = vmatprep.subr.bf16.mxu0 0
      %1997 = vmatpush1.bf16.msra.mxu0 0
      %1998 = vmatprep.subr.bf16.mxu0 0
      %1999 = vmatpush1.bf16.msra.mxu0 0
      %2000 = vmatprep.subr.bf16.mxu0 0
      %2001 = vmatpush1.bf16.msra.mxu0 0
      %2002 = vmatprep.subr.bf16.mxu0 0
      %2003 = vmatpush1.bf16.msra.mxu0 0
      %2004 = vmatprep.subr.bf16.mxu0 0
      %2005 = vmatpush1.bf16.msra.mxu0 0
      %2006 = vmatprep.subr.bf16.mxu0 0
      %2007 = vmatpush1.bf16.msra.mxu0 0
      %2008 = vmatprep.subr.bf16.mxu0 0
      %2009 = vmatpush1.bf16.msra.mxu0 0
      %2010 = vmatprep.subr.bf16.mxu0 0
      %2011 = vmatpush1.bf16.msra.mxu0 0
      %2012 = vmatprep.subr.bf16.mxu0 0
      %2013 = vmatpush1.bf16.msra.mxu0 0
      %2014 = vmatprep.subr.bf16.mxu0 0
      %2015 = vmatpush1.bf16.msra.mxu0 0
      %2016 = vmatprep.subr.bf16.mxu0 0
      %2017 = vmatpush1.bf16.msra.mxu0 0
      %2018 = vmatprep.subr.bf16.mxu0 0
      %2019 = vmatpush1.bf16.msra.mxu0 0
      %2020 = vmatprep.subr.bf16.mxu0 0
      %2021 = vmatpush1.bf16.msra.mxu0 0
      %2022 = vmatprep.subr.bf16.mxu0 0
      %2023 = vmatpush1.bf16.msra.mxu0 0
      %2024 = vmatprep.mubr.bf16.mxu0 0
      %2025 = vmatmul.mubr.bf16.gmra.mrb[0].mxu0 %v1942
      %v2026 = vpop.f32.mrb[0].mxu0
      %v2027 = vadd.f32 0.0, %v2026
      %v2028 = vpop.f32.mrb[0].mxu0
      %v2029 = vpop.f32.mrb[0].mxu0
      %v2030 = vadd.f32 0.0, %v2029
      %v2031 = vpop.f32.mrb[0].mxu0
      %2032 = vmatprep.mubr.bf16.mxu0 0
      %2033 = vmatmul.mubr.bf16.gmra.mrb[0].mxu0 %v1945
      %v2034 = vpop.f32.mrb[0].mxu0
      %v2035 = vadd.f32 0.0, %v2034
      %v2036 = vpop.f32.mrb[0].mxu0
      %v2037 = vpop.f32.mrb[0].mxu0
      %v2038 = vadd.f32 0.0, %v2037
      %v2039 = vpop.f32.mrb[0].mxu0
      %2040 = vmatprep.mubr.bf16.mxu0 0
      %2041 = vmatmul.mubr.bf16.gmra.mrb[0].mxu0 %v1948
      %v2042 = vpop.f32.mrb[0].mxu0
      %v2043 = vadd.f32 0.0, %v2042
      %v2044 = vpop.f32.mrb[0].mxu0
      %v2045 = vpop.f32.mrb[0].mxu0
      %v2046 = vadd.f32 0.0, %v2045
      %v2047 = vpop.f32.mrb[0].mxu0
      %2048 = vmatprep.mubr.bf16.mxu0 0
      %2049 = vmatmul.mubr.bf16.gmra.mrb[0].mxu0 %v1951
      %v2050 = vpop.f32.mrb[0].mxu0
      %v2051 = vadd.f32 0.0, %v2050
      %v2052 = vpop.f32.mrb[0].mxu0
      %v2053 = vpop.f32.mrb[0].mxu0
      %v2054 = vadd.f32 0.0, %v2053
      %v2055 = vpop.f32.mrb[0].mxu0
      %2056 = vmatprep.mubr.bf16.mxu0 0
      %2057 = vmatmul.mubr.bf16.gmra.mrb[0].mxu0 %v1954
      %v2058 = vpop.f32.mrb[0].mxu0
      %v2059 = vadd.f32 0.0, %v2058
      %v2060 = vpop.f32.mrb[0].mxu0
      %v2061 = vpop.f32.mrb[0].mxu0
      %v2062 = vadd.f32 0.0, %v2061
      %v2063 = vpop.f32.mrb[0].mxu0
      %2064 = vmatprep.mubr.bf16.mxu0 0
      %2065 = vmatmul.mubr.bf16.gmra.mrb[0].mxu0 %v1957
      %v2066 = vpop.f32.mrb[0].mxu0
      %v2067 = vadd.f32 0.0, %v2066
      %v2068 = vpop.f32.mrb[0].mxu0
      %v2069 = vpop.f32.mrb[0].mxu0
      %v2070 = vadd.f32 0.0, %v2069
      %v2071 = vpop.f32.mrb[0].mxu0
      %2072 = vmatprep.mubr.bf16.mxu0 0
      %2073 = vmatmul.mubr.bf16.gmra.mrb[0].mxu0 %v1960
      %v2074 = vpop.f32.mrb[0].mxu0
      %v2075 = vadd.f32 0.0, %v2074
      %v2076 = vpop.f32.mrb[0].mxu0
      %v2077 = vpop.f32.mrb[0].mxu0
      %v2078 = vadd.f32 0.0, %v2077
      %v2079 = vpop.f32.mrb[0].mxu0
      %2080 = vmatprep.mubr.bf16.mxu0 0
      %2081 = vmatmul.mubr.bf16.gmra.mrb[0].mxu0 %v1963
      %v2082 = vpop.f32.mrb[0].mxu0
      %v2083 = vadd.f32 0.0, %v2082
      %v2084 = vpop.f32.mrb[0].mxu0
      %v2085 = vpop.f32.mrb[0].mxu0
      %v2086 = vadd.f32 0.0, %v2085
      %v2087 = vpop.f32.mrb[0].mxu0
      %2088 = vmatprep.mubr.bf16.mxu0 0
      %2089 = vmatmul.mubr.bf16.gmra.mrb[0].mxu0 %v1966
      %v2090 = vpop.f32.mrb[0].mxu0
      %v2091 = vadd.f32 0.0, %v2090
      %v2092 = vpop.f32.mrb[0].mxu0
      %v2093 = vpop.f32.mrb[0].mxu0
      %v2094 = vadd.f32 0.0, %v2093
      %v2095 = vpop.f32.mrb[0].mxu0
      %2096 = vmatprep.mubr.bf16.mxu0 0
      %2097 = vmatmul.mubr.bf16.gmra.mrb[0].mxu0 %v1969
      %v2098 = vpop.f32.mrb[0].mxu0
      %v2099 = vadd.f32 0.0, %v2098
      %v2100 = vpop.f32.mrb[0].mxu0
      %v2101 = vpop.f32.mrb[0].mxu0
      %v2102 = vadd.f32 0.0, %v2101
      %v2103 = vpop.f32.mrb[0].mxu0
      %2104 = vmatprep.mubr.bf16.mxu0 0
      %2105 = vmatmul.mubr.bf16.gmra.mrb[0].mxu0 %v1972
      %v2106 = vpop.f32.mrb[0].mxu0
      %v2107 = vadd.f32 0.0, %v2106
      %v2108 = vpop.f32.mrb[0].mxu0
      %v2109 = vpop.f32.mrb[0].mxu0
      %v2110 = vadd.f32 0.0, %v2109
      %v2111 = vpop.f32.mrb[0].mxu0
      %2112 = vmatprep.mubr.bf16.mxu0 0
      %2113 = vmatmul.mubr.bf16.gmra.mrb[0].mxu0 %v1975
      %v2114 = vpop.f32.mrb[0].mxu0
      %v2115 = vadd.f32 0.0, %v2114
      %v2116 = vpop.f32.mrb[0].mxu0
      %v2117 = vpop.f32.mrb[0].mxu0
      %v2118 = vadd.f32 0.0, %v2117
      %v2119 = vpop.f32.mrb[0].mxu0
      %2120 = vmatprep.mubr.bf16.mxu0 0
      %2121 = vmatmul.mubr.bf16.gmra.mrb[0].mxu0 %v1978
      %v2122 = vpop.f32.mrb[0].mxu0
      %v2123 = vadd.f32 0.0, %v2122
      %v2124 = vpop.f32.mrb[0].mxu0
      %v2125 = vpop.f32.mrb[0].mxu0
      %v2126 = vadd.f32 0.0, %v2125
      %v2127 = vpop.f32.mrb[0].mxu0
      %2128 = vmatprep.mubr.bf16.mxu0 0
      %2129 = vmatmul.mubr.bf16.gmra.mrb[0].mxu0 %v1981
      %v2130 = vpop.f32.mrb[0].mxu0
      %v2131 = vadd.f32 0.0, %v2130
      %v2132 = vpop.f32.mrb[0].mxu0
      %v2133 = vpop.f32.mrb[0].mxu0
      %v2134 = vadd.f32 0.0, %v2133
      %v2135 = vpop.f32.mrb[0].mxu0
      %2136 = vmatprep.mubr.bf16.mxu0 0
      %2137 = vmatmul.mubr.bf16.gmra.mrb[0].mxu0 %v1984
      %v2138 = vpop.f32.mrb[0].mxu0
      %v2139 = vadd.f32 0.0, %v2138
      %v2140 = vpop.f32.mrb[0].mxu0
      %v2141 = vpop.f32.mrb[0].mxu0
      %v2142 = vadd.f32 0.0, %v2141
      %v2143 = vpop.f32.mrb[0].mxu0
      %2144 = vmatprep.mubr.bf16.mxu0 0
      %2145 = vmatmul.mubr.bf16.gmra.mrb[0].mxu0 %v1987
      %v2146 = vpop.f32.mrb[0].mxu0
      %v2147 = vadd.f32 0.0, %v2146
      %v2148 = vpop.f32.mrb[0].mxu0
      %v2149 = vpop.f32.mrb[0].mxu0
      %v2150 = vadd.f32 0.0, %v2149
      %v2151 = vpop.f32.mrb[0].mxu0
      %2152 = vdwg.mxu0
      %v2153 = vadd.f32 %v1678, %v2027
      %v2154 = vadd.f32 %v1679, %v2030
      %v2155 = vadd.f32 %v1680, %v2035
      %v2156 = vadd.f32 %v1681, %v2038
      %v2157 = vadd.f32 %v1682, %v2043
      %v2158 = vadd.f32 %v1683, %v2046
      %v2159 = vadd.f32 %v1684, %v2051
      %v2160 = vadd.f32 %v1685, %v2054
      %v2161 = vadd.f32 %v1686, %v2059
      %v2162 = vadd.f32 %v1687, %v2062
      %v2163 = vadd.f32 %v1688, %v2067
      %v2164 = vadd.f32 %v1689, %v2070
      %v2165 = vadd.f32 %v1690, %v2075
      %v2166 = vadd.f32 %v1691, %v2078
      %v2167 = vadd.f32 %v1692, %v2083
      %v2168 = vadd.f32 %v1693, %v2086
      %v2169 = vadd.f32 %v1694, %v2091
      %v2170 = vadd.f32 %v1695, %v2094
      %v2171 = vadd.f32 %v1696, %v2099
      %v2172 = vadd.f32 %v1697, %v2102
      %v2173 = vadd.f32 %v1698, %v2107
      %v2174 = vadd.f32 %v1699, %v2110
      %v2175 = vadd.f32 %v1700, %v2115
      %v2176 = vadd.f32 %v1701, %v2118
      %v2177 = vadd.f32 %v1702, %v2123
      %v2178 = vadd.f32 %v1703, %v2126
      %v2179 = vadd.f32 %v1704, %v2131
      %v2180 = vadd.f32 %v1705, %v2134
      %v2181 = vadd.f32 %v1706, %v2139
      %v2182 = vadd.f32 %v1707, %v2142
      %v2183 = vadd.f32 %v1708, %v2147
      %v2184 = vadd.f32 %v1709, %v2150
      %v2188 = vrot.slane %v1726, 5
      %v2189 = vrot.slane %v2188, 4
      %v2190 = vrot.slane %v631, 5
      %v2191 = vsel %vm1778, %v2189, %v2190
      %v2192 = vrot.slane %v2190, 4
      %v2193 = vrot.slane %v632, 5
      %v2194 = vsel %vm1778, %v2192, %v2193
      %s2195 = scalar_lea.vmem %s1, 8
      %v2196 = vld [vmem:[%s2195] sm:$0x3]
      %v2197 = vunpack.c.l.b16 %v2191
      %v2198 = vunpack.c.l.b16 %v2194
      %v2199 = vpack.c.b16 %v2198, %v2197
      %v2201 = vsel %vm1098, %v2199, 0
      %v2204 = vsel %vm1147, %v2196, 0
      %2206 = vmatprep.subr.bf16.mxu0 0
      %2207 = vmatpush1.bf16.msra.mxu0 %v2204
      %2208 = vmatprep.subr.bf16.mxu0 0
      %2209 = vmatpush1.bf16.msra.mxu0 0
      %2210 = vmatprep.subr.bf16.mxu0 0
      %2211 = vmatpush1.bf16.msra.mxu0 0
      %2212 = vmatprep.subr.bf16.mxu0 0
      %2213 = vmatpush1.bf16.msra.mxu0 0
      %2214 = vmatprep.subr.bf16.mxu0 0
      %2215 = vmatpush1.bf16.msra.mxu0 0
      %2216 = vmatprep.subr.bf16.mxu0 0
      %2217 = vmatpush1.bf16.msra.mxu0 0
      %2218 = vmatprep.subr.bf16.mxu0 0
      %2219 = vmatpush1.bf16.msra.mxu0 0
      %2220 = vmatprep.subr.bf16.mxu0 0
      %2221 = vmatpush1.bf16.msra.mxu0 0
      %2222 = vmatprep.subr.bf16.mxu0 0
      %2223 = vmatpush1.bf16.msra.mxu0 0
      %2224 = vmatprep.subr.bf16.mxu0 0
      %2225 = vmatpush1.bf16.msra.mxu0 0
      %2226 = vmatprep.subr.bf16.mxu0 0
      %2227 = vmatpush1.bf16.msra.mxu0 0
      %2228 = vmatprep.subr.bf16.mxu0 0
      %2229 = vmatpush1.bf16.msra.mxu0 0
      %2230 = vmatprep.subr.bf16.mxu0 0
      %2231 = vmatpush1.bf16.msra.mxu0 0
      %2232 = vmatprep.subr.bf16.mxu0 0
      %2233 = vmatpush1.bf16.msra.mxu0 0
      %2234 = vmatprep.subr.bf16.mxu0 0
      %2235 = vmatpush1.bf16.msra.mxu0 0
      %2236 = vmatprep.subr.bf16.mxu0 0
      %2237 = vmatpush1.bf16.msra.mxu0 0
      %2238 = vmatprep.mubr.bf16.mxu0 0
      %2239 = vmatmul.mubr.bf16.gmra.mrb[0].mxu0 %v1945
      %v2240 = vpop.f32.mrb[0].mxu0
      %v2241 = vadd.f32 0.0, %v2240
      %v2242 = vpop.f32.mrb[0].mxu0
      %v2243 = vpop.f32.mrb[0].mxu0
      %v2244 = vadd.f32 0.0, %v2243
      %v2245 = vpop.f32.mrb[0].mxu0
      %2246 = vmatprep.mubr.bf16.mxu0 0
      %2247 = vmatmul.mubr.bf16.gmra.mrb[0].mxu0 %v1948
      %v2248 = vpop.f32.mrb[0].mxu0
      %v2249 = vadd.f32 0.0, %v2248
      %v2250 = vpop.f32.mrb[0].mxu0
      %v2251 = vpop.f32.mrb[0].mxu0
      %v2252 = vadd.f32 0.0, %v2251
      %v2253 = vpop.f32.mrb[0].mxu0
      %2254 = vmatprep.mubr.bf16.mxu0 0
      %2255 = vmatmul.mubr.bf16.gmra.mrb[0].mxu0 %v1951
      %v2256 = vpop.f32.mrb[0].mxu0
      %v2257 = vadd.f32 0.0, %v2256
      %v2258 = vpop.f32.mrb[0].mxu0
      %v2259 = vpop.f32.mrb[0].mxu0
      %v2260 = vadd.f32 0.0, %v2259
      %v2261 = vpop.f32.mrb[0].mxu0
      %2262 = vmatprep.mubr.bf16.mxu0 0
      %2263 = vmatmul.mubr.bf16.gmra.mrb[0].mxu0 %v1954
      %v2264 = vpop.f32.mrb[0].mxu0
      %v2265 = vadd.f32 0.0, %v2264
      %v2266 = vpop.f32.mrb[0].mxu0
      %v2267 = vpop.f32.mrb[0].mxu0
      %v2268 = vadd.f32 0.0, %v2267
      %v2269 = vpop.f32.mrb[0].mxu0
      %2270 = vmatprep.mubr.bf16.mxu0 0
      %2271 = vmatmul.mubr.bf16.gmra.mrb[0].mxu0 %v1957
      %v2272 = vpop.f32.mrb[0].mxu0
      %v2273 = vadd.f32 0.0, %v2272
      %v2274 = vpop.f32.mrb[0].mxu0
      %v2275 = vpop.f32.mrb[0].mxu0
      %v2276 = vadd.f32 0.0, %v2275
      %v2277 = vpop.f32.mrb[0].mxu0
      %2278 = vmatprep.mubr.bf16.mxu0 0
      %2279 = vmatmul.mubr.bf16.gmra.mrb[0].mxu0 %v1960
      %v2280 = vpop.f32.mrb[0].mxu0
      %v2281 = vadd.f32 0.0, %v2280
      %v2282 = vpop.f32.mrb[0].mxu0
      %v2283 = vpop.f32.mrb[0].mxu0
      %v2284 = vadd.f32 0.0, %v2283
      %v2285 = vpop.f32.mrb[0].mxu0
      %2286 = vmatprep.mubr.bf16.mxu0 0
      %2287 = vmatmul.mubr.bf16.gmra.mrb[0].mxu0 %v1963
      %v2288 = vpop.f32.mrb[0].mxu0
      %v2289 = vadd.f32 0.0, %v2288
      %v2290 = vpop.f32.mrb[0].mxu0
      %v2291 = vpop.f32.mrb[0].mxu0
      %v2292 = vadd.f32 0.0, %v2291
      %v2293 = vpop.f32.mrb[0].mxu0
      %2294 = vmatprep.mubr.bf16.mxu0 0
      %2295 = vmatmul.mubr.bf16.gmra.mrb[0].mxu0 %v1966
      %v2296 = vpop.f32.mrb[0].mxu0
      %v2297 = vadd.f32 0.0, %v2296
      %v2298 = vpop.f32.mrb[0].mxu0
      %v2299 = vpop.f32.mrb[0].mxu0
      %v2300 = vadd.f32 0.0, %v2299
      %v2301 = vpop.f32.mrb[0].mxu0
      %2302 = vmatprep.mubr.bf16.mxu0 0
      %2303 = vmatmul.mubr.bf16.gmra.mrb[0].mxu0 %v1969
      %v2304 = vpop.f32.mrb[0].mxu0
      %v2305 = vadd.f32 0.0, %v2304
      %v2306 = vpop.f32.mrb[0].mxu0
      %v2307 = vpop.f32.mrb[0].mxu0
      %v2308 = vadd.f32 0.0, %v2307
      %v2309 = vpop.f32.mrb[0].mxu0
      %2310 = vmatprep.mubr.bf16.mxu0 0
      %2311 = vmatmul.mubr.bf16.gmra.mrb[0].mxu0 %v1972
      %v2312 = vpop.f32.mrb[0].mxu0
      %v2313 = vadd.f32 0.0, %v2312
      %v2314 = vpop.f32.mrb[0].mxu0
      %v2315 = vpop.f32.mrb[0].mxu0
      %v2316 = vadd.f32 0.0, %v2315
      %v2317 = vpop.f32.mrb[0].mxu0
      %2318 = vmatprep.mubr.bf16.mxu0 0
      %2319 = vmatmul.mubr.bf16.gmra.mrb[0].mxu0 %v1975
      %v2320 = vpop.f32.mrb[0].mxu0
      %v2321 = vadd.f32 0.0, %v2320
      %v2322 = vpop.f32.mrb[0].mxu0
      %v2323 = vpop.f32.mrb[0].mxu0
      %v2324 = vadd.f32 0.0, %v2323
      %v2325 = vpop.f32.mrb[0].mxu0
      %2326 = vmatprep.mubr.bf16.mxu0 0
      %2327 = vmatmul.mubr.bf16.gmra.mrb[0].mxu0 %v1978
      %v2328 = vpop.f32.mrb[0].mxu0
      %v2329 = vadd.f32 0.0, %v2328
      %v2330 = vpop.f32.mrb[0].mxu0
      %v2331 = vpop.f32.mrb[0].mxu0
      %v2332 = vadd.f32 0.0, %v2331
      %v2333 = vpop.f32.mrb[0].mxu0
      %2334 = vmatprep.mubr.bf16.mxu0 0
      %2335 = vmatmul.mubr.bf16.gmra.mrb[0].mxu0 %v1981
      %v2336 = vpop.f32.mrb[0].mxu0
      %v2337 = vadd.f32 0.0, %v2336
      %v2338 = vpop.f32.mrb[0].mxu0
      %v2339 = vpop.f32.mrb[0].mxu0
      %v2340 = vadd.f32 0.0, %v2339
      %v2341 = vpop.f32.mrb[0].mxu0
      %2342 = vmatprep.mubr.bf16.mxu0 0
      %2343 = vmatmul.mubr.bf16.gmra.mrb[0].mxu0 %v1984
      %v2344 = vpop.f32.mrb[0].mxu0
      %v2345 = vadd.f32 0.0, %v2344
      %v2346 = vpop.f32.mrb[0].mxu0
      %v2347 = vpop.f32.mrb[0].mxu0
      %v2348 = vadd.f32 0.0, %v2347
      %v2349 = vpop.f32.mrb[0].mxu0
      %2350 = vmatprep.mubr.bf16.mxu0 0
      %2351 = vmatmul.mubr.bf16.gmra.mrb[0].mxu0 %v1987
      %v2352 = vpop.f32.mrb[0].mxu0
      %v2353 = vadd.f32 0.0, %v2352
      %v2354 = vpop.f32.mrb[0].mxu0
      %v2355 = vpop.f32.mrb[0].mxu0
      %v2356 = vadd.f32 0.0, %v2355
      %v2357 = vpop.f32.mrb[0].mxu0
      %2358 = vmatprep.mubr.bf16.mxu0 0
      %2359 = vmatmul.mubr.bf16.gmra.mrb[0].mxu0 %v2201
      %v2360 = vpop.f32.mrb[0].mxu0
      %v2361 = vadd.f32 0.0, %v2360
      %v2362 = vpop.f32.mrb[0].mxu0
      %v2363 = vpop.f32.mrb[0].mxu0
      %v2364 = vadd.f32 0.0, %v2363
      %v2365 = vpop.f32.mrb[0].mxu0
      %2366 = vdwg.mxu0
      %v2367 = vadd.f32 %v2153, %v2241
      %v2368 = vadd.f32 %v2154, %v2244
      %v2369 = vadd.f32 %v2155, %v2249
      %v2370 = vadd.f32 %v2156, %v2252
      %v2371 = vadd.f32 %v2157, %v2257
      %v2372 = vadd.f32 %v2158, %v2260
      %v2373 = vadd.f32 %v2159, %v2265
      %v2374 = vadd.f32 %v2160, %v2268
      %v2375 = vadd.f32 %v2161, %v2273
      %v2376 = vadd.f32 %v2162, %v2276
      %v2377 = vadd.f32 %v2163, %v2281
      %v2378 = vadd.f32 %v2164, %v2284
      %v2379 = vadd.f32 %v2165, %v2289
      %v2380 = vadd.f32 %v2166, %v2292
      %v2381 = vadd.f32 %v2167, %v2297
      %v2382 = vadd.f32 %v2168, %v2300
      %v2383 = vadd.f32 %v2169, %v2305
      %v2384 = vadd.f32 %v2170, %v2308
      %v2385 = vadd.f32 %v2171, %v2313
      %v2386 = vadd.f32 %v2172, %v2316
      %v2387 = vadd.f32 %v2173, %v2321
      %v2388 = vadd.f32 %v2174, %v2324
      %v2389 = vadd.f32 %v2175, %v2329
      %v2390 = vadd.f32 %v2176, %v2332
      %v2391 = vadd.f32 %v2177, %v2337
      %v2392 = vadd.f32 %v2178, %v2340
      %v2393 = vadd.f32 %v2179, %v2345
      %v2394 = vadd.f32 %v2180, %v2348
      %v2395 = vadd.f32 %v2181, %v2353
      %v2396 = vadd.f32 %v2182, %v2356
      %v2397 = vadd.f32 %v2183, %v2361
      %v2398 = vadd.f32 %v2184, %v2364
      %v2402 = vrot.slane %v1727, 5
      %v2403 = vrot.slane %v2402, 4
      %v2404 = vrot.slane %v634, 5
      %v2405 = vsel %vm1778, %v2403, %v2404
      %v2406 = vrot.slane %v2404, 4
      %v2407 = vrot.slane %v635, 5
      %v2408 = vsel %vm1778, %v2406, %v2407
      %s2409 = scalar_lea.vmem %s1, 14
      %v2410 = vld [vmem:[%s2409] sm:$0x3]
      %v2411 = vunpack.c.l.b16 %v2405
      %v2412 = vunpack.c.l.b16 %v2408
      %v2413 = vpack.c.b16 %v2412, %v2411
      %v2415 = vsel %vm1098, %v2413, 0
      %v2418 = vsel %vm1147, %v2410, 0
      %2420 = vmatprep.subr.bf16.mxu0 0
      %2421 = vmatpush1.bf16.msra.mxu0 %v2418
      %2422 = vmatprep.subr.bf16.mxu0 0
      %2423 = vmatpush1.bf16.msra.mxu0 0
      %2424 = vmatprep.subr.bf16.mxu0 0
      %2425 = vmatpush1.bf16.msra.mxu0 0
      %2426 = vmatprep.subr.bf16.mxu0 0
      %2427 = vmatpush1.bf16.msra.mxu0 0
      %2428 = vmatprep.subr.bf16.mxu0 0
      %2429 = vmatpush1.bf16.msra.mxu0 0
      %2430 = vmatprep.subr.bf16.mxu0 0
      %2431 = vmatpush1.bf16.msra.mxu0 0
      %2432 = vmatprep.subr.bf16.mxu0 0
      %2433 = vmatpush1.bf16.msra.mxu0 0
      %2434 = vmatprep.subr.bf16.mxu0 0
      %2435 = vmatpush1.bf16.msra.mxu0 0
      %2436 = vmatprep.subr.bf16.mxu0 0
      %2437 = vmatpush1.bf16.msra.mxu0 0
      %2438 = vmatprep.subr.bf16.mxu0 0
      %2439 = vmatpush1.bf16.msra.mxu0 0
      %2440 = vmatprep.subr.bf16.mxu0 0
      %2441 = vmatpush1.bf16.msra.mxu0 0
      %2442 = vmatprep.subr.bf16.mxu0 0
      %2443 = vmatpush1.bf16.msra.mxu0 0
      %2444 = vmatprep.subr.bf16.mxu0 0
      %2445 = vmatpush1.bf16.msra.mxu0 0
      %2446 = vmatprep.subr.bf16.mxu0 0
      %2447 = vmatpush1.bf16.msra.mxu0 0
      %2448 = vmatprep.subr.bf16.mxu0 0
      %2449 = vmatpush1.bf16.msra.mxu0 0
      %2450 = vmatprep.subr.bf16.mxu0 0
      %2451 = vmatpush1.bf16.msra.mxu0 0
      %2452 = vmatprep.mubr.bf16.mxu0 0
      %2453 = vmatmul.mubr.bf16.gmra.mrb[0].mxu0 %v1948
      %v2454 = vpop.f32.mrb[0].mxu0
      %v2455 = vadd.f32 0.0, %v2454
      %v2456 = vpop.f32.mrb[0].mxu0
      %v2457 = vpop.f32.mrb[0].mxu0
      %v2458 = vadd.f32 0.0, %v2457
      %v2459 = vpop.f32.mrb[0].mxu0
      %2460 = vmatprep.mubr.bf16.mxu0 0
      %2461 = vmatmul.mubr.bf16.gmra.mrb[0].mxu0 %v1951
      %v2462 = vpop.f32.mrb[0].mxu0
      %v2463 = vadd.f32 0.0, %v2462
      %v2464 = vpop.f32.mrb[0].mxu0
      %v2465 = vpop.f32.mrb[0].mxu0
      %v2466 = vadd.f32 0.0, %v2465
      %v2467 = vpop.f32.mrb[0].mxu0
      %2468 = vmatprep.mubr.bf16.mxu0 0
      %2469 = vmatmul.mubr.bf16.gmra.mrb[0].mxu0 %v1954
      %v2470 = vpop.f32.mrb[0].mxu0
      %v2471 = vadd.f32 0.0, %v2470
      %v2472 = vpop.f32.mrb[0].mxu0
      %v2473 = vpop.f32.mrb[0].mxu0
      %v2474 = vadd.f32 0.0, %v2473
      %v2475 = vpop.f32.mrb[0].mxu0
      %2476 = vmatprep.mubr.bf16.mxu0 0
      %2477 = vmatmul.mubr.bf16.gmra.mrb[0].mxu0 %v1957
      %v2478 = vpop.f32.mrb[0].mxu0
      %v2479 = vadd.f32 0.0, %v2478
      %v2480 = vpop.f32.mrb[0].mxu0
      %v2481 = vpop.f32.mrb[0].mxu0
      %v2482 = vadd.f32 0.0, %v2481
      %v2483 = vpop.f32.mrb[0].mxu0
      %2484 = vmatprep.mubr.bf16.mxu0 0
      %2485 = vmatmul.mubr.bf16.gmra.mrb[0].mxu0 %v1960
      %v2486 = vpop.f32.mrb[0].mxu0
      %v2487 = vadd.f32 0.0, %v2486
      %v2488 = vpop.f32.mrb[0].mxu0
      %v2489 = vpop.f32.mrb[0].mxu0
      %v2490 = vadd.f32 0.0, %v2489
      %v2491 = vpop.f32.mrb[0].mxu0
      %2492 = vmatprep.mubr.bf16.mxu0 0
      %2493 = vmatmul.mubr.bf16.gmra.mrb[0].mxu0 %v1963
      %v2494 = vpop.f32.mrb[0].mxu0
      %v2495 = vadd.f32 0.0, %v2494
      %v2496 = vpop.f32.mrb[0].mxu0
      %v2497 = vpop.f32.mrb[0].mxu0
      %v2498 = vadd.f32 0.0, %v2497
      %v2499 = vpop.f32.mrb[0].mxu0
      %2500 = vmatprep.mubr.bf16.mxu0 0
      %2501 = vmatmul.mubr.bf16.gmra.mrb[0].mxu0 %v1966
      %v2502 = vpop.f32.mrb[0].mxu0
      %v2503 = vadd.f32 0.0, %v2502
      %v2504 = vpop.f32.mrb[0].mxu0
      %v2505 = vpop.f32.mrb[0].mxu0
      %v2506 = vadd.f32 0.0, %v2505
      %v2507 = vpop.f32.mrb[0].mxu0
      %2508 = vmatprep.mubr.bf16.mxu0 0
      %2509 = vmatmul.mubr.bf16.gmra.mrb[0].mxu0 %v1969
      %v2510 = vpop.f32.mrb[0].mxu0
      %v2511 = vadd.f32 0.0, %v2510
      %v2512 = vpop.f32.mrb[0].mxu0
      %v2513 = vpop.f32.mrb[0].mxu0
      %v2514 = vadd.f32 0.0, %v2513
      %v2515 = vpop.f32.mrb[0].mxu0
      %2516 = vmatprep.mubr.bf16.mxu0 0
      %2517 = vmatmul.mubr.bf16.gmra.mrb[0].mxu0 %v1972
      %v2518 = vpop.f32.mrb[0].mxu0
      %v2519 = vadd.f32 0.0, %v2518
      %v2520 = vpop.f32.mrb[0].mxu0
      %v2521 = vpop.f32.mrb[0].mxu0
      %v2522 = vadd.f32 0.0, %v2521
      %v2523 = vpop.f32.mrb[0].mxu0
      %2524 = vmatprep.mubr.bf16.mxu0 0
      %2525 = vmatmul.mubr.bf16.gmra.mrb[0].mxu0 %v1975
      %v2526 = vpop.f32.mrb[0].mxu0
      %v2527 = vadd.f32 0.0, %v2526
      %v2528 = vpop.f32.mrb[0].mxu0
      %v2529 = vpop.f32.mrb[0].mxu0
      %v2530 = vadd.f32 0.0, %v2529
      %v2531 = vpop.f32.mrb[0].mxu0
      %2532 = vmatprep.mubr.bf16.mxu0 0
      %2533 = vmatmul.mubr.bf16.gmra.mrb[0].mxu0 %v1978
      %v2534 = vpop.f32.mrb[0].mxu0
      %v2535 = vadd.f32 0.0, %v2534
      %v2536 = vpop.f32.mrb[0].mxu0
      %v2537 = vpop.f32.mrb[0].mxu0
      %v2538 = vadd.f32 0.0, %v2537
      %v2539 = vpop.f32.mrb[0].mxu0
      %2540 = vmatprep.mubr.bf16.mxu0 0
      %2541 = vmatmul.mubr.bf16.gmra.mrb[0].mxu0 %v1981
      %v2542 = vpop.f32.mrb[0].mxu0
      %v2543 = vadd.f32 0.0, %v2542
      %v2544 = vpop.f32.mrb[0].mxu0
      %v2545 = vpop.f32.mrb[0].mxu0
      %v2546 = vadd.f32 0.0, %v2545
      %v2547 = vpop.f32.mrb[0].mxu0
      %2548 = vmatprep.mubr.bf16.mxu0 0
      %2549 = vmatmul.mubr.bf16.gmra.mrb[0].mxu0 %v1984
      %v2550 = vpop.f32.mrb[0].mxu0
      %v2551 = vadd.f32 0.0, %v2550
      %v2552 = vpop.f32.mrb[0].mxu0
      %v2553 = vpop.f32.mrb[0].mxu0
      %v2554 = vadd.f32 0.0, %v2553
      %v2555 = vpop.f32.mrb[0].mxu0
      %2556 = vmatprep.mubr.bf16.mxu0 0
      %2557 = vmatmul.mubr.bf16.gmra.mrb[0].mxu0 %v1987
      %v2558 = vpop.f32.mrb[0].mxu0
      %v2559 = vadd.f32 0.0, %v2558
      %v2560 = vpop.f32.mrb[0].mxu0
      %v2561 = vpop.f32.mrb[0].mxu0
      %v2562 = vadd.f32 0.0, %v2561
      %v2563 = vpop.f32.mrb[0].mxu0
      %2564 = vmatprep.mubr.bf16.mxu0 0
      %2565 = vmatmul.mubr.bf16.gmra.mrb[0].mxu0 %v2201
      %v2566 = vpop.f32.mrb[0].mxu0
      %v2567 = vadd.f32 0.0, %v2566
      %v2568 = vpop.f32.mrb[0].mxu0
      %v2569 = vpop.f32.mrb[0].mxu0
      %v2570 = vadd.f32 0.0, %v2569
      %v2571 = vpop.f32.mrb[0].mxu0
      %2572 = vmatprep.mubr.bf16.mxu0 0
      %2573 = vmatmul.mubr.bf16.gmra.mrb[0].mxu0 %v2415
      %v2574 = vpop.f32.mrb[0].mxu0
      %v2575 = vadd.f32 0.0, %v2574
      %v2576 = vpop.f32.mrb[0].mxu0
      %v2577 = vpop.f32.mrb[0].mxu0
      %v2578 = vadd.f32 0.0, %v2577
      %v2579 = vpop.f32.mrb[0].mxu0
      %2580 = vdwg.mxu0
      %v2581 = vadd.f32 %v2367, %v2455
      %v2582 = vadd.f32 %v2368, %v2458
      %v2583 = vadd.f32 %v2369, %v2463
      %v2584 = vadd.f32 %v2370, %v2466
      %v2585 = vadd.f32 %v2371, %v2471
      %v2586 = vadd.f32 %v2372, %v2474
      %v2587 = vadd.f32 %v2373, %v2479
      %v2588 = vadd.f32 %v2374, %v2482
      %v2589 = vadd.f32 %v2375, %v2487
      %v2590 = vadd.f32 %v2376, %v2490
      %v2591 = vadd.f32 %v2377, %v2495
      %v2592 = vadd.f32 %v2378, %v2498
      %v2593 = vadd.f32 %v2379, %v2503
      %v2594 = vadd.f32 %v2380, %v2506
      %v2595 = vadd.f32 %v2381, %v2511
      %v2596 = vadd.f32 %v2382, %v2514
      %v2597 = vadd.f32 %v2383, %v2519
      %v2598 = vadd.f32 %v2384, %v2522
      %v2599 = vadd.f32 %v2385, %v2527
      %v2600 = vadd.f32 %v2386, %v2530
      %v2601 = vadd.f32 %v2387, %v2535
      %v2602 = vadd.f32 %v2388, %v2538
      %v2603 = vadd.f32 %v2389, %v2543
      %v2604 = vadd.f32 %v2390, %v2546
      %v2605 = vadd.f32 %v2391, %v2551
      %v2606 = vadd.f32 %v2392, %v2554
      %v2607 = vadd.f32 %v2393, %v2559
      %v2608 = vadd.f32 %v2394, %v2562
      %v2609 = vadd.f32 %v2395, %v2567
      %v2610 = vadd.f32 %v2396, %v2570
      %v2611 = vadd.f32 %v2397, %v2575
      %v2612 = vadd.f32 %v2398, %v2578
      %v2613 = vld [vmem:[#allocation2 + $0x8] sm:$0x3]
      %v2614 = vld [vmem:[#allocation2 + $0x14] sm:$0x3]
      %v2615 = vld [vmem:[#allocation2 + $0x20] sm:$0x3]
      %v2616 = vld [vmem:[#allocation2 + $0x2c] sm:$0x3]
      %v2617 = vld [vmem:[#allocation2 + $0x38] sm:$0x3]
      %v2618 = vld [vmem:[#allocation2 + $0x44] sm:$0x3]
      %v2619 = vld [vmem:[#allocation2 + $0x50] sm:$0x3]
      %v2620 = vld [vmem:[#allocation2 + $0x5c] sm:$0x3]
      %v2621 = vld [vmem:[#allocation2 + $0x68] sm:$0x3]
      %v2622 = vld [vmem:[#allocation2 + $0x74] sm:$0x3]
      %v2623 = vld [vmem:[#allocation2 + $0x80] sm:$0x3]
      %v2624 = vld [vmem:[#allocation2 + $0x8c] sm:$0x3]
      %v2625 = vld [vmem:[#allocation2 + $0x98] sm:$0x3]
      %v2626 = vld [vmem:[#allocation2 + $0xa4] sm:$0x3]
      %v2627 = vld [vmem:[#allocation2 + $0xb0] sm:$0x3]
      %v2628 = vld [vmem:[#allocation2 + $0xbc] sm:$0x3]
      %v2629 = vld [vmem:[#allocation2 + $0xc8] sm:$0x3]
      %v2630 = vld [vmem:[#allocation2 + $0xd4] sm:$0x3]
      %vm2631 = vsmask.f32 2304
      %vm2632 = vsmask.f32 6416
      %vm2633 = vmor %vm2631, %vm2632
      %v2635 = vshrl.u32 %v1710, 16
      %v2637 = vrot.slane %v2635, 5
      %v2638 = vshll.u32 %v1710, 16
      %v2640 = vrot.slane %v2638, 6
      %v2641 = vor.u32 %v2637, %v2640
      %v2642 = vrot.slane %v2641, 4
      %v2643 = vrot.slane %v653, 5
      %v2644 = vrot.slane %v649, 6
      %v2645 = vor.u32 %v2643, %v2644
      %v2646 = vsel %vm2633, %v2642, %v2645
      %v2647 = vrot.slane %v2645, 4
      %v2649 = vshrl.u32 %v2613, 16
      %v2651 = vrot.slane %v2649, 5
      %v2652 = vshll.u32 %v2613, 16
      %v2654 = vrot.slane %v2652, 6
      %v2655 = vor.u32 %v2651, %v2654
      %v2656 = vsel %vm2633, %v2647, %v2655
      %v2658 = vshrl.u32 %v1711, 16
      %v2660 = vrot.slane %v2658, 5
      %v2661 = vshll.u32 %v1711, 16
      %v2663 = vrot.slane %v2661, 6
      %v2664 = vor.u32 %v2660, %v2663
      %v2665 = vrot.slane %v2664, 4
      %v2666 = vrot.slane %v677, 5
      %v2667 = vrot.slane %v673, 6
      %v2668 = vor.u32 %v2666, %v2667
      %v2669 = vsel %vm2633, %v2665, %v2668
      %v2670 = vrot.slane %v2668, 4
      %v2672 = vshrl.u32 %v2614, 16
      %v2674 = vrot.slane %v2672, 5
      %v2675 = vshll.u32 %v2614, 16
      %v2677 = vrot.slane %v2675, 6
      %v2678 = vor.u32 %v2674, %v2677
      %v2679 = vsel %vm2633, %v2670, %v2678
      %v2681 = vshrl.u32 %v1712, 16
      %v2683 = vrot.slane %v2681, 5
      %v2684 = vshll.u32 %v1712, 16
      %v2686 = vrot.slane %v2684, 6
      %v2687 = vor.u32 %v2683, %v2686
      %v2688 = vrot.slane %v2687, 4
      %v2689 = vrot.slane %v701, 5
      %v2690 = vrot.slane %v697, 6
      %v2691 = vor.u32 %v2689, %v2690
      %v2692 = vsel %vm2633, %v2688, %v2691
      %v2693 = vrot.slane %v2691, 4
      %v2695 = vshrl.u32 %v2615, 16
      %v2697 = vrot.slane %v2695, 5
      %v2698 = vshll.u32 %v2615, 16
      %v2700 = vrot.slane %v2698, 6
      %v2701 = vor.u32 %v2697, %v2700
      %v2702 = vsel %vm2633, %v2693, %v2701
      %v2704 = vshrl.u32 %v1713, 16
      %v2706 = vrot.slane %v2704, 5
      %v2707 = vshll.u32 %v1713, 16
      %v2709 = vrot.slane %v2707, 6
      %v2710 = vor.u32 %v2706, %v2709
      %v2711 = vrot.slane %v2710, 4
      %v2712 = vrot.slane %v725, 5
      %v2713 = vrot.slane %v721, 6
      %v2714 = vor.u32 %v2712, %v2713
      %v2715 = vsel %vm2633, %v2711, %v2714
      %v2716 = vrot.slane %v2714, 4
      %v2718 = vshrl.u32 %v2616, 16
      %v2720 = vrot.slane %v2718, 5
      %v2721 = vshll.u32 %v2616, 16
      %v2723 = vrot.slane %v2721, 6
      %v2724 = vor.u32 %v2720, %v2723
      %v2725 = vsel %vm2633, %v2716, %v2724
      %v2727 = vshrl.u32 %v1714, 16
      %v2729 = vrot.slane %v2727, 5
      %v2730 = vshll.u32 %v1714, 16
      %v2732 = vrot.slane %v2730, 6
      %v2733 = vor.u32 %v2729, %v2732
      %v2734 = vrot.slane %v2733, 4
      %v2735 = vrot.slane %v749, 5
      %v2736 = vrot.slane %v745, 6
      %v2737 = vor.u32 %v2735, %v2736
      %v2738 = vsel %vm2633, %v2734, %v2737
      %v2739 = vrot.slane %v2737, 4
      %v2741 = vshrl.u32 %v2617, 16
      %v2743 = vrot.slane %v2741, 5
      %v2744 = vshll.u32 %v2617, 16
      %v2746 = vrot.slane %v2744, 6
      %v2747 = vor.u32 %v2743, %v2746
      %v2748 = vsel %vm2633, %v2739, %v2747
      %v2750 = vshrl.u32 %v1715, 16
      %v2752 = vrot.slane %v2750, 5
      %v2753 = vshll.u32 %v1715, 16
      %v2755 = vrot.slane %v2753, 6
      %v2756 = vor.u32 %v2752, %v2755
      %v2757 = vrot.slane %v2756, 4
      %v2758 = vrot.slane %v773, 5
      %v2759 = vrot.slane %v769, 6
      %v2760 = vor.u32 %v2758, %v2759
      %v2761 = vsel %vm2633, %v2757, %v2760
      %v2762 = vrot.slane %v2760, 4
      %v2764 = vshrl.u32 %v2618, 16
      %v2766 = vrot.slane %v2764, 5
      %v2767 = vshll.u32 %v2618, 16
      %v2769 = vrot.slane %v2767, 6
      %v2770 = vor.u32 %v2766, %v2769
      %v2771 = vsel %vm2633, %v2762, %v2770
      %v2773 = vshrl.u32 %v1716, 16
      %v2775 = vrot.slane %v2773, 5
      %v2776 = vshll.u32 %v1716, 16
      %v2778 = vrot.slane %v2776, 6
      %v2779 = vor.u32 %v2775, %v2778
      %v2780 = vrot.slane %v2779, 4
      %v2781 = vrot.slane %v797, 5
      %v2782 = vrot.slane %v793, 6
      %v2783 = vor.u32 %v2781, %v2782
      %v2784 = vsel %vm2633, %v2780, %v2783
      %v2785 = vrot.slane %v2783, 4
      %v2787 = vshrl.u32 %v2619, 16
      %v2789 = vrot.slane %v2787, 5
      %v2790 = vshll.u32 %v2619, 16
      %v2792 = vrot.slane %v2790, 6
      %v2793 = vor.u32 %v2789, %v2792
      %v2794 = vsel %vm2633, %v2785, %v2793
      %v2796 = vshrl.u32 %v1717, 16
      %v2798 = vrot.slane %v2796, 5
      %v2799 = vshll.u32 %v1717, 16
      %v2801 = vrot.slane %v2799, 6
      %v2802 = vor.u32 %v2798, %v2801
      %v2803 = vrot.slane %v2802, 4
      %v2804 = vrot.slane %v821, 5
      %v2805 = vrot.slane %v817, 6
      %v2806 = vor.u32 %v2804, %v2805
      %v2807 = vsel %vm2633, %v2803, %v2806
      %v2808 = vrot.slane %v2806, 4
      %v2810 = vshrl.u32 %v2620, 16
      %v2812 = vrot.slane %v2810, 5
      %v2813 = vshll.u32 %v2620, 16
      %v2815 = vrot.slane %v2813, 6
      %v2816 = vor.u32 %v2812, %v2815
      %v2817 = vsel %vm2633, %v2808, %v2816
      %v2819 = vshrl.u32 %v1718, 16
      %v2821 = vrot.slane %v2819, 5
      %v2822 = vshll.u32 %v1718, 16
      %v2824 = vrot.slane %v2822, 6
      %v2825 = vor.u32 %v2821, %v2824
      %v2826 = vrot.slane %v2825, 4
      %v2827 = vrot.slane %v845, 5
      %v2828 = vrot.slane %v841, 6
      %v2829 = vor.u32 %v2827, %v2828
      %v2830 = vsel %vm2633, %v2826, %v2829
      %v2831 = vrot.slane %v2829, 4
      %v2833 = vshrl.u32 %v2621, 16
      %v2835 = vrot.slane %v2833, 5
      %v2836 = vshll.u32 %v2621, 16
      %v2838 = vrot.slane %v2836, 6
      %v2839 = vor.u32 %v2835, %v2838
      %v2840 = vsel %vm2633, %v2831, %v2839
      %v2842 = vshrl.u32 %v1719, 16
      %v2844 = vrot.slane %v2842, 5
      %v2845 = vshll.u32 %v1719, 16
      %v2847 = vrot.slane %v2845, 6
      %v2848 = vor.u32 %v2844, %v2847
      %v2849 = vrot.slane %v2848, 4
      %v2850 = vrot.slane %v869, 5
      %v2851 = vrot.slane %v865, 6
      %v2852 = vor.u32 %v2850, %v2851
      %v2853 = vsel %vm2633, %v2849, %v2852
      %v2854 = vrot.slane %v2852, 4
      %v2856 = vshrl.u32 %v2622, 16
      %v2858 = vrot.slane %v2856, 5
      %v2859 = vshll.u32 %v2622, 16
      %v2861 = vrot.slane %v2859, 6
      %v2862 = vor.u32 %v2858, %v2861
      %v2863 = vsel %vm2633, %v2854, %v2862
      %v2865 = vshrl.u32 %v1720, 16
      %v2867 = vrot.slane %v2865, 5
      %v2868 = vshll.u32 %v1720, 16
      %v2870 = vrot.slane %v2868, 6
      %v2871 = vor.u32 %v2867, %v2870
      %v2872 = vrot.slane %v2871, 4
      %v2873 = vrot.slane %v893, 5
      %v2874 = vrot.slane %v889, 6
      %v2875 = vor.u32 %v2873, %v2874
      %v2876 = vsel %vm2633, %v2872, %v2875
      %v2877 = vrot.slane %v2875, 4
      %v2879 = vshrl.u32 %v2623, 16
      %v2881 = vrot.slane %v2879, 5
      %v2882 = vshll.u32 %v2623, 16
      %v2884 = vrot.slane %v2882, 6
      %v2885 = vor.u32 %v2881, %v2884
      %v2886 = vsel %vm2633, %v2877, %v2885
      %v2888 = vshrl.u32 %v1721, 16
      %v2890 = vrot.slane %v2888, 5
      %v2891 = vshll.u32 %v1721, 16
      %v2893 = vrot.slane %v2891, 6
      %v2894 = vor.u32 %v2890, %v2893
      %v2895 = vrot.slane %v2894, 4
      %v2896 = vrot.slane %v917, 5
      %v2897 = vrot.slane %v913, 6
      %v2898 = vor.u32 %v2896, %v2897
      %v2899 = vsel %vm2633, %v2895, %v2898
      %v2900 = vrot.slane %v2898, 4
      %v2902 = vshrl.u32 %v2624, 16
      %v2904 = vrot.slane %v2902, 5
      %v2905 = vshll.u32 %v2624, 16
      %v2907 = vrot.slane %v2905, 6
      %v2908 = vor.u32 %v2904, %v2907
      %v2909 = vsel %vm2633, %v2900, %v2908
      %v2911 = vshrl.u32 %v1722, 16
      %v2913 = vrot.slane %v2911, 5
      %v2914 = vshll.u32 %v1722, 16
      %v2916 = vrot.slane %v2914, 6
      %v2917 = vor.u32 %v2913, %v2916
      %v2918 = vrot.slane %v2917, 4
      %v2919 = vrot.slane %v941, 5
      %v2920 = vrot.slane %v937, 6
      %v2921 = vor.u32 %v2919, %v2920
      %v2922 = vsel %vm2633, %v2918, %v2921
      %v2923 = vrot.slane %v2921, 4
      %v2925 = vshrl.u32 %v2625, 16
      %v2927 = vrot.slane %v2925, 5
      %v2928 = vshll.u32 %v2625, 16
      %v2930 = vrot.slane %v2928, 6
      %v2931 = vor.u32 %v2927, %v2930
      %v2932 = vsel %vm2633, %v2923, %v2931
      %v2934 = vshrl.u32 %v1723, 16
      %v2936 = vrot.slane %v2934, 5
      %v2937 = vshll.u32 %v1723, 16
      %v2939 = vrot.slane %v2937, 6
      %v2940 = vor.u32 %v2936, %v2939
      %v2941 = vrot.slane %v2940, 4
      %v2942 = vrot.slane %v965, 5
      %v2943 = vrot.slane %v961, 6
      %v2944 = vor.u32 %v2942, %v2943
      %v2945 = vsel %vm2633, %v2941, %v2944
      %v2946 = vrot.slane %v2944, 4
      %v2948 = vshrl.u32 %v2626, 16
      %v2950 = vrot.slane %v2948, 5
      %v2951 = vshll.u32 %v2626, 16
      %v2953 = vrot.slane %v2951, 6
      %v2954 = vor.u32 %v2950, %v2953
      %v2955 = vsel %vm2633, %v2946, %v2954
      %v2957 = vshrl.u32 %v1724, 16
      %v2959 = vrot.slane %v2957, 5
      %v2960 = vshll.u32 %v1724, 16
      %v2962 = vrot.slane %v2960, 6
      %v2963 = vor.u32 %v2959, %v2962
      %v2964 = vrot.slane %v2963, 4
      %v2965 = vrot.slane %v989, 5
      %v2966 = vrot.slane %v985, 6
      %v2967 = vor.u32 %v2965, %v2966
      %v2968 = vsel %vm2633, %v2964, %v2967
      %v2969 = vrot.slane %v2967, 4
      %v2971 = vshrl.u32 %v2627, 16
      %v2973 = vrot.slane %v2971, 5
      %v2974 = vshll.u32 %v2627, 16
      %v2976 = vrot.slane %v2974, 6
      %v2977 = vor.u32 %v2973, %v2976
      %v2978 = vsel %vm2633, %v2969, %v2977
      %v2980 = vshrl.u32 %v1725, 16
      %v2982 = vrot.slane %v2980, 5
      %v2983 = vshll.u32 %v1725, 16
      %v2985 = vrot.slane %v2983, 6
      %v2986 = vor.u32 %v2982, %v2985
      %v2987 = vrot.slane %v2986, 4
      %v2988 = vrot.slane %v1013, 5
      %v2989 = vrot.slane %v1009, 6
      %v2990 = vor.u32 %v2988, %v2989
      %v2991 = vsel %vm2633, %v2987, %v2990
      %v2992 = vrot.slane %v2990, 4
      %v2994 = vshrl.u32 %v2628, 16
      %v2996 = vrot.slane %v2994, 5
      %v2997 = vshll.u32 %v2628, 16
      %v2999 = vrot.slane %v2997, 6
      %v3000 = vor.u32 %v2996, %v2999
      %v3001 = vsel %vm2633, %v2992, %v3000
      %s3002 = scalar_lea.vmem %s1, 4
      %v3003 = vld [vmem:[%s3002] sm:$0x3]
      %v3004 = vunpack.c.l.b16 %v2646
      %v3005 = vunpack.c.l.b16 %v2656
      %v3006 = vunpack.c.l.b16 %v2669
      %v3007 = vunpack.c.l.b16 %v2679
      %v3008 = vunpack.c.l.b16 %v2692
      %v3009 = vunpack.c.l.b16 %v2702
      %v3010 = vunpack.c.l.b16 %v2715
      %v3011 = vunpack.c.l.b16 %v2725
      %v3012 = vunpack.c.l.b16 %v2738
      %v3013 = vunpack.c.l.b16 %v2748
      %v3014 = vunpack.c.l.b16 %v2761
      %v3015 = vunpack.c.l.b16 %v2771
      %v3016 = vunpack.c.l.b16 %v2784
      %v3017 = vunpack.c.l.b16 %v2794
      %v3018 = vunpack.c.l.b16 %v2807
      %v3019 = vunpack.c.l.b16 %v2817
      %v3020 = vunpack.c.l.b16 %v2830
      %v3021 = vunpack.c.l.b16 %v2840
      %v3022 = vunpack.c.l.b16 %v2853
      %v3023 = vunpack.c.l.b16 %v2863
      %v3024 = vunpack.c.l.b16 %v2876
      %v3025 = vunpack.c.l.b16 %v2886
      %v3026 = vunpack.c.l.b16 %v2899
      %v3027 = vunpack.c.l.b16 %v2909
      %v3028 = vunpack.c.l.b16 %v2922
      %v3029 = vunpack.c.l.b16 %v2932
      %v3030 = vunpack.c.l.b16 %v2945
      %v3031 = vunpack.c.l.b16 %v2955
      %v3032 = vunpack.c.l.b16 %v2968
      %v3033 = vunpack.c.l.b16 %v2978
      %v3034 = vunpack.c.l.b16 %v2991
      %v3035 = vunpack.c.l.b16 %v3001
      %v3036 = vpack.c.b16 %v3005, %v3004
      %v3037 = vpack.c.b16 %v3007, %v3006
      %v3038 = vpack.c.b16 %v3009, %v3008
      %v3039 = vpack.c.b16 %v3011, %v3010
      %v3040 = vpack.c.b16 %v3013, %v3012
      %v3041 = vpack.c.b16 %v3015, %v3014
      %v3042 = vpack.c.b16 %v3017, %v3016
      %v3043 = vpack.c.b16 %v3019, %v3018
      %v3044 = vpack.c.b16 %v3021, %v3020
      %v3045 = vpack.c.b16 %v3023, %v3022
      %v3046 = vpack.c.b16 %v3025, %v3024
      %v3047 = vpack.c.b16 %v3027, %v3026
      %v3048 = vpack.c.b16 %v3029, %v3028
      %v3049 = vpack.c.b16 %v3031, %v3030
      %v3050 = vpack.c.b16 %v3033, %v3032
      %v3051 = vpack.c.b16 %v3035, %v3034
      %v3053 = vsel %vm1098, %v3036, 0
      %v3056 = vsel %vm1098, %v3037, 0
      %v3059 = vsel %vm1098, %v3038, 0
      %v3062 = vsel %vm1098, %v3039, 0
      %v3065 = vsel %vm1098, %v3040, 0
      %v3068 = vsel %vm1098, %v3041, 0
      %v3071 = vsel %vm1098, %v3042, 0
      %v3074 = vsel %vm1098, %v3043, 0
      %v3077 = vsel %vm1098, %v3044, 0
      %v3080 = vsel %vm1098, %v3045, 0
      %v3083 = vsel %vm1098, %v3046, 0
      %v3086 = vsel %vm1098, %v3047, 0
      %v3089 = vsel %vm1098, %v3048, 0
      %v3092 = vsel %vm1098, %v3049, 0
      %v3095 = vsel %vm1098, %v3050, 0
      %v3098 = vsel %vm1098, %v3051, 0
      %v3101 = vsel %vm1147, %v3003, 0
      %3103 = vmatprep.subr.bf16.mxu0 0
      %3104 = vmatpush1.bf16.msra.mxu0 %v3101
      %3105 = vmatprep.subr.bf16.mxu0 0
      %3106 = vmatpush1.bf16.msra.mxu0 0
      %3107 = vmatprep.subr.bf16.mxu0 0
      %3108 = vmatpush1.bf16.msra.mxu0 0
      %3109 = vmatprep.subr.bf16.mxu0 0
      %3110 = vmatpush1.bf16.msra.mxu0 0
      %3111 = vmatprep.subr.bf16.mxu0 0
      %3112 = vmatpush1.bf16.msra.mxu0 0
      %3113 = vmatprep.subr.bf16.mxu0 0
      %3114 = vmatpush1.bf16.msra.mxu0 0
      %3115 = vmatprep.subr.bf16.mxu0 0
      %3116 = vmatpush1.bf16.msra.mxu0 0
      %3117 = vmatprep.subr.bf16.mxu0 0
      %3118 = vmatpush1.bf16.msra.mxu0 0
      %3119 = vmatprep.subr.bf16.mxu0 0
      %3120 = vmatpush1.bf16.msra.mxu0 0
      %3121 = vmatprep.subr.bf16.mxu0 0
      %3122 = vmatpush1.bf16.msra.mxu0 0
      %3123 = vmatprep.subr.bf16.mxu0 0
      %3124 = vmatpush1.bf16.msra.mxu0 0
      %3125 = vmatprep.subr.bf16.mxu0 0
      %3126 = vmatpush1.bf16.msra.mxu0 0
      %3127 = vmatprep.subr.bf16.mxu0 0
      %3128 = vmatpush1.bf16.msra.mxu0 0
      %3129 = vmatprep.subr.bf16.mxu0 0
      %3130 = vmatpush1.bf16.msra.mxu0 0
      %3131 = vmatprep.subr.bf16.mxu0 0
      %3132 = vmatpush1.bf16.msra.mxu0 0
      %3133 = vmatprep.subr.bf16.mxu0 0
      %3134 = vmatpush1.bf16.msra.mxu0 0
      %3135 = vmatprep.mubr.bf16.mxu0 0
      %3136 = vmatmul.mubr.bf16.gmra.mrb[0].mxu0 %v3053
      %v3137 = vpop.f32.mrb[0].mxu0
      %v3138 = vadd.f32 0.0, %v3137
      %v3139 = vpop.f32.mrb[0].mxu0
      %v3140 = vpop.f32.mrb[0].mxu0
      %v3141 = vadd.f32 0.0, %v3140
      %v3142 = vpop.f32.mrb[0].mxu0
      %3143 = vmatprep.mubr.bf16.mxu0 0
      %3144 = vmatmul.mubr.bf16.gmra.mrb[0].mxu0 %v3056
      %v3145 = vpop.f32.mrb[0].mxu0
      %v3146 = vadd.f32 0.0, %v3145
      %v3147 = vpop.f32.mrb[0].mxu0
      %v3148 = vpop.f32.mrb[0].mxu0
      %v3149 = vadd.f32 0.0, %v3148
      %v3150 = vpop.f32.mrb[0].mxu0
      %3151 = vmatprep.mubr.bf16.mxu0 0
      %3152 = vmatmul.mubr.bf16.gmra.mrb[0].mxu0 %v3059
      %v3153 = vpop.f32.mrb[0].mxu0
      %v3154 = vadd.f32 0.0, %v3153
      %v3155 = vpop.f32.mrb[0].mxu0
      %v3156 = vpop.f32.mrb[0].mxu0
      %v3157 = vadd.f32 0.0, %v3156
      %v3158 = vpop.f32.mrb[0].mxu0
      %3159 = vmatprep.mubr.bf16.mxu0 0
      %3160 = vmatmul.mubr.bf16.gmra.mrb[0].mxu0 %v3062
      %v3161 = vpop.f32.mrb[0].mxu0
      %v3162 = vadd.f32 0.0, %v3161
      %v3163 = vpop.f32.mrb[0].mxu0
      %v3164 = vpop.f32.mrb[0].mxu0
      %v3165 = vadd.f32 0.0, %v3164
      %v3166 = vpop.f32.mrb[0].mxu0
      %3167 = vmatprep.mubr.bf16.mxu0 0
      %3168 = vmatmul.mubr.bf16.gmra.mrb[0].mxu0 %v3065
      %v3169 = vpop.f32.mrb[0].mxu0
      %v3170 = vadd.f32 0.0, %v3169
      %v3171 = vpop.f32.mrb[0].mxu0
      %v3172 = vpop.f32.mrb[0].mxu0
      %v3173 = vadd.f32 0.0, %v3172
      %v3174 = vpop.f32.mrb[0].mxu0
      %3175 = vmatprep.mubr.bf16.mxu0 0
      %3176 = vmatmul.mubr.bf16.gmra.mrb[0].mxu0 %v3068
      %v3177 = vpop.f32.mrb[0].mxu0
      %v3178 = vadd.f32 0.0, %v3177
      %v3179 = vpop.f32.mrb[0].mxu0
      %v3180 = vpop.f32.mrb[0].mxu0
      %v3181 = vadd.f32 0.0, %v3180
      %v3182 = vpop.f32.mrb[0].mxu0
      %3183 = vmatprep.mubr.bf16.mxu0 0
      %3184 = vmatmul.mubr.bf16.gmra.mrb[0].mxu0 %v3071
      %v3185 = vpop.f32.mrb[0].mxu0
      %v3186 = vadd.f32 0.0, %v3185
      %v3187 = vpop.f32.mrb[0].mxu0
      %v3188 = vpop.f32.mrb[0].mxu0
      %v3189 = vadd.f32 0.0, %v3188
      %v3190 = vpop.f32.mrb[0].mxu0
      %3191 = vmatprep.mubr.bf16.mxu0 0
      %3192 = vmatmul.mubr.bf16.gmra.mrb[0].mxu0 %v3074
      %v3193 = vpop.f32.mrb[0].mxu0
      %v3194 = vadd.f32 0.0, %v3193
      %v3195 = vpop.f32.mrb[0].mxu0
      %v3196 = vpop.f32.mrb[0].mxu0
      %v3197 = vadd.f32 0.0, %v3196
      %v3198 = vpop.f32.mrb[0].mxu0
      %3199 = vmatprep.mubr.bf16.mxu0 0
      %3200 = vmatmul.mubr.bf16.gmra.mrb[0].mxu0 %v3077
      %v3201 = vpop.f32.mrb[0].mxu0
      %v3202 = vadd.f32 0.0, %v3201
      %v3203 = vpop.f32.mrb[0].mxu0
      %v3204 = vpop.f32.mrb[0].mxu0
      %v3205 = vadd.f32 0.0, %v3204
      %v3206 = vpop.f32.mrb[0].mxu0
      %3207 = vmatprep.mubr.bf16.mxu0 0
      %3208 = vmatmul.mubr.bf16.gmra.mrb[0].mxu0 %v3080
      %v3209 = vpop.f32.mrb[0].mxu0
      %v3210 = vadd.f32 0.0, %v3209
      %v3211 = vpop.f32.mrb[0].mxu0
      %v3212 = vpop.f32.mrb[0].mxu0
      %v3213 = vadd.f32 0.0, %v3212
      %v3214 = vpop.f32.mrb[0].mxu0
      %3215 = vmatprep.mubr.bf16.mxu0 0
      %3216 = vmatmul.mubr.bf16.gmra.mrb[0].mxu0 %v3083
      %v3217 = vpop.f32.mrb[0].mxu0
      %v3218 = vadd.f32 0.0, %v3217
      %v3219 = vpop.f32.mrb[0].mxu0
      %v3220 = vpop.f32.mrb[0].mxu0
      %v3221 = vadd.f32 0.0, %v3220
      %v3222 = vpop.f32.mrb[0].mxu0
      %3223 = vmatprep.mubr.bf16.mxu0 0
      %3224 = vmatmul.mubr.bf16.gmra.mrb[0].mxu0 %v3086
      %v3225 = vpop.f32.mrb[0].mxu0
      %v3226 = vadd.f32 0.0, %v3225
      %v3227 = vpop.f32.mrb[0].mxu0
      %v3228 = vpop.f32.mrb[0].mxu0
      %v3229 = vadd.f32 0.0, %v3228
      %v3230 = vpop.f32.mrb[0].mxu0
      %3231 = vmatprep.mubr.bf16.mxu0 0
      %3232 = vmatmul.mubr.bf16.gmra.mrb[0].mxu0 %v3089
      %v3233 = vpop.f32.mrb[0].mxu0
      %v3234 = vadd.f32 0.0, %v3233
      %v3235 = vpop.f32.mrb[0].mxu0
      %v3236 = vpop.f32.mrb[0].mxu0
      %v3237 = vadd.f32 0.0, %v3236
      %v3238 = vpop.f32.mrb[0].mxu0
      %3239 = vmatprep.mubr.bf16.mxu0 0
      %3240 = vmatmul.mubr.bf16.gmra.mrb[0].mxu0 %v3092
      %v3241 = vpop.f32.mrb[0].mxu0
      %v3242 = vadd.f32 0.0, %v3241
      %v3243 = vpop.f32.mrb[0].mxu0
      %v3244 = vpop.f32.mrb[0].mxu0
      %v3245 = vadd.f32 0.0, %v3244
      %v3246 = vpop.f32.mrb[0].mxu0
      %3247 = vmatprep.mubr.bf16.mxu0 0
      %3248 = vmatmul.mubr.bf16.gmra.mrb[0].mxu0 %v3095
      %v3249 = vpop.f32.mrb[0].mxu0
      %v3250 = vadd.f32 0.0, %v3249
      %v3251 = vpop.f32.mrb[0].mxu0
      %v3252 = vpop.f32.mrb[0].mxu0
      %v3253 = vadd.f32 0.0, %v3252
      %v3254 = vpop.f32.mrb[0].mxu0
      %3255 = vmatprep.mubr.bf16.mxu0 0
      %3256 = vmatmul.mubr.bf16.gmra.mrb[0].mxu0 %v3098
      %v3257 = vpop.f32.mrb[0].mxu0
      %v3258 = vadd.f32 0.0, %v3257
      %v3259 = vpop.f32.mrb[0].mxu0
      %v3260 = vpop.f32.mrb[0].mxu0
      %v3261 = vadd.f32 0.0, %v3260
      %v3262 = vpop.f32.mrb[0].mxu0
      %3263 = vdwg.mxu0
      %v3264 = vadd.f32 %v2581, %v3138
      %v3265 = vadd.f32 %v2582, %v3141
      %v3266 = vadd.f32 %v2583, %v3146
      %v3267 = vadd.f32 %v2584, %v3149
      %v3268 = vadd.f32 %v2585, %v3154
      %v3269 = vadd.f32 %v2586, %v3157
      %v3270 = vadd.f32 %v2587, %v3162
      %v3271 = vadd.f32 %v2588, %v3165
      %v3272 = vadd.f32 %v2589, %v3170
      %v3273 = vadd.f32 %v2590, %v3173
      %v3274 = vadd.f32 %v2591, %v3178
      %v3275 = vadd.f32 %v2592, %v3181
      %v3276 = vadd.f32 %v2593, %v3186
      %v3277 = vadd.f32 %v2594, %v3189
      %v3278 = vadd.f32 %v2595, %v3194
      %v3279 = vadd.f32 %v2596, %v3197
      %v3280 = vadd.f32 %v2597, %v3202
      %v3281 = vadd.f32 %v2598, %v3205
      %v3282 = vadd.f32 %v2599, %v3210
      %v3283 = vadd.f32 %v2600, %v3213
      %v3284 = vadd.f32 %v2601, %v3218
      %v3285 = vadd.f32 %v2602, %v3221
      %v3286 = vadd.f32 %v2603, %v3226
      %v3287 = vadd.f32 %v2604, %v3229
      %v3288 = vadd.f32 %v2605, %v3234
      %v3289 = vadd.f32 %v2606, %v3237
      %v3290 = vadd.f32 %v2607, %v3242
      %v3291 = vadd.f32 %v2608, %v3245
      %v3292 = vadd.f32 %v2609, %v3250
      %v3293 = vadd.f32 %v2610, %v3253
      %v3294 = vadd.f32 %v2611, %v3258
      %v3295 = vadd.f32 %v2612, %v3261
      %v3297 = vshrl.u32 %v1726, 16
      %v3299 = vrot.slane %v3297, 5
      %v3300 = vshll.u32 %v1726, 16
      %v3302 = vrot.slane %v3300, 6
      %v3303 = vor.u32 %v3299, %v3302
      %v3304 = vrot.slane %v3303, 4
      %v3305 = vrot.slane %v1038, 5
      %v3306 = vrot.slane %v1034, 6
      %v3307 = vor.u32 %v3305, %v3306
      %v3308 = vsel %vm2633, %v3304, %v3307
      %v3309 = vrot.slane %v3307, 4
      %v3311 = vshrl.u32 %v2629, 16
      %v3313 = vrot.slane %v3311, 5
      %v3314 = vshll.u32 %v2629, 16
      %v3316 = vrot.slane %v3314, 6
      %v3317 = vor.u32 %v3313, %v3316
      %v3318 = vsel %vm2633, %v3309, %v3317
      %s3319 = scalar_lea.vmem %s1, 10
      %v3320 = vld [vmem:[%s3319] sm:$0x3]
      %v3321 = vunpack.c.l.b16 %v3308
      %v3322 = vunpack.c.l.b16 %v3318
      %v3323 = vpack.c.b16 %v3322, %v3321
      %v3325 = vsel %vm1098, %v3323, 0
      %v3328 = vsel %vm1147, %v3320, 0
      %3330 = vmatprep.subr.bf16.mxu0 0
      %3331 = vmatpush1.bf16.msra.mxu0 %v3328
      %3332 = vmatprep.subr.bf16.mxu0 0
      %3333 = vmatpush1.bf16.msra.mxu0 0
      %3334 = vmatprep.subr.bf16.mxu0 0
      %3335 = vmatpush1.bf16.msra.mxu0 0
      %3336 = vmatprep.subr.bf16.mxu0 0
      %3337 = vmatpush1.bf16.msra.mxu0 0
      %3338 = vmatprep.subr.bf16.mxu0 0
      %3339 = vmatpush1.bf16.msra.mxu0 0
      %3340 = vmatprep.subr.bf16.mxu0 0
      %3341 = vmatpush1.bf16.msra.mxu0 0
      %3342 = vmatprep.subr.bf16.mxu0 0
      %3343 = vmatpush1.bf16.msra.mxu0 0
      %3344 = vmatprep.subr.bf16.mxu0 0
      %3345 = vmatpush1.bf16.msra.mxu0 0
      %3346 = vmatprep.subr.bf16.mxu0 0
      %3347 = vmatpush1.bf16.msra.mxu0 0
      %3348 = vmatprep.subr.bf16.mxu0 0
      %3349 = vmatpush1.bf16.msra.mxu0 0
      %3350 = vmatprep.subr.bf16.mxu0 0
      %3351 = vmatpush1.bf16.msra.mxu0 0
      %3352 = vmatprep.subr.bf16.mxu0 0
      %3353 = vmatpush1.bf16.msra.mxu0 0
      %3354 = vmatprep.subr.bf16.mxu0 0
      %3355 = vmatpush1.bf16.msra.mxu0 0
      %3356 = vmatprep.subr.bf16.mxu0 0
      %3357 = vmatpush1.bf16.msra.mxu0 0
      %3358 = vmatprep.subr.bf16.mxu0 0
      %3359 = vmatpush1.bf16.msra.mxu0 0
      %3360 = vmatprep.subr.bf16.mxu0 0
      %3361 = vmatpush1.bf16.msra.mxu0 0
      %3362 = vmatprep.mubr.bf16.mxu0 0
      %3363 = vmatmul.mubr.bf16.gmra.mrb[0].mxu0 %v3056
      %v3364 = vpop.f32.mrb[0].mxu0
      %v3365 = vadd.f32 0.0, %v3364
      %v3366 = vpop.f32.mrb[0].mxu0
      %v3367 = vpop.f32.mrb[0].mxu0
      %v3368 = vadd.f32 0.0, %v3367
      %v3369 = vpop.f32.mrb[0].mxu0
      %3370 = vmatprep.mubr.bf16.mxu0 0
      %3371 = vmatmul.mubr.bf16.gmra.mrb[0].mxu0 %v3059
      %v3372 = vpop.f32.mrb[0].mxu0
      %v3373 = vadd.f32 0.0, %v3372
      %v3374 = vpop.f32.mrb[0].mxu0
      %v3375 = vpop.f32.mrb[0].mxu0
      %v3376 = vadd.f32 0.0, %v3375
      %v3377 = vpop.f32.mrb[0].mxu0
      %3378 = vmatprep.mubr.bf16.mxu0 0
      %3379 = vmatmul.mubr.bf16.gmra.mrb[0].mxu0 %v3062
      %v3380 = vpop.f32.mrb[0].mxu0
      %v3381 = vadd.f32 0.0, %v3380
      %v3382 = vpop.f32.mrb[0].mxu0
      %v3383 = vpop.f32.mrb[0].mxu0
      %v3384 = vadd.f32 0.0, %v3383
      %v3385 = vpop.f32.mrb[0].mxu0
      %3386 = vmatprep.mubr.bf16.mxu0 0
      %3387 = vmatmul.mubr.bf16.gmra.mrb[0].mxu0 %v3065
      %v3388 = vpop.f32.mrb[0].mxu0
      %v3389 = vadd.f32 0.0, %v3388
      %v3390 = vpop.f32.mrb[0].mxu0
      %v3391 = vpop.f32.mrb[0].mxu0
      %v3392 = vadd.f32 0.0, %v3391
      %v3393 = vpop.f32.mrb[0].mxu0
      %3394 = vmatprep.mubr.bf16.mxu0 0
      %3395 = vmatmul.mubr.bf16.gmra.mrb[0].mxu0 %v3068
      %v3396 = vpop.f32.mrb[0].mxu0
      %v3397 = vadd.f32 0.0, %v3396
      %v3398 = vpop.f32.mrb[0].mxu0
      %v3399 = vpop.f32.mrb[0].mxu0
      %v3400 = vadd.f32 0.0, %v3399
      %v3401 = vpop.f32.mrb[0].mxu0
      %3402 = vmatprep.mubr.bf16.mxu0 0
      %3403 = vmatmul.mubr.bf16.gmra.mrb[0].mxu0 %v3071
      %v3404 = vpop.f32.mrb[0].mxu0
      %v3405 = vadd.f32 0.0, %v3404
      %v3406 = vpop.f32.mrb[0].mxu0
      %v3407 = vpop.f32.mrb[0].mxu0
      %v3408 = vadd.f32 0.0, %v3407
      %v3409 = vpop.f32.mrb[0].mxu0
      %3410 = vmatprep.mubr.bf16.mxu0 0
      %3411 = vmatmul.mubr.bf16.gmra.mrb[0].mxu0 %v3074
      %v3412 = vpop.f32.mrb[0].mxu0
      %v3413 = vadd.f32 0.0, %v3412
      %v3414 = vpop.f32.mrb[0].mxu0
      %v3415 = vpop.f32.mrb[0].mxu0
      %v3416 = vadd.f32 0.0, %v3415
      %v3417 = vpop.f32.mrb[0].mxu0
      %3418 = vmatprep.mubr.bf16.mxu0 0
      %3419 = vmatmul.mubr.bf16.gmra.mrb[0].mxu0 %v3077
      %v3420 = vpop.f32.mrb[0].mxu0
      %v3421 = vadd.f32 0.0, %v3420
      %v3422 = vpop.f32.mrb[0].mxu0
      %v3423 = vpop.f32.mrb[0].mxu0
      %v3424 = vadd.f32 0.0, %v3423
      %v3425 = vpop.f32.mrb[0].mxu0
      %3426 = vmatprep.mubr.bf16.mxu0 0
      %3427 = vmatmul.mubr.bf16.gmra.mrb[0].mxu0 %v3080
      %v3428 = vpop.f32.mrb[0].mxu0
      %v3429 = vadd.f32 0.0, %v3428
      %v3430 = vpop.f32.mrb[0].mxu0
      %v3431 = vpop.f32.mrb[0].mxu0
      %v3432 = vadd.f32 0.0, %v3431
      %v3433 = vpop.f32.mrb[0].mxu0
      %3434 = vmatprep.mubr.bf16.mxu0 0
      %3435 = vmatmul.mubr.bf16.gmra.mrb[0].mxu0 %v3083
      %v3436 = vpop.f32.mrb[0].mxu0
      %v3437 = vadd.f32 0.0, %v3436
      %v3438 = vpop.f32.mrb[0].mxu0
      %v3439 = vpop.f32.mrb[0].mxu0
      %v3440 = vadd.f32 0.0, %v3439
      %v3441 = vpop.f32.mrb[0].mxu0
      %3442 = vmatprep.mubr.bf16.mxu0 0
      %3443 = vmatmul.mubr.bf16.gmra.mrb[0].mxu0 %v3086
      %v3444 = vpop.f32.mrb[0].mxu0
      %v3445 = vadd.f32 0.0, %v3444
      %v3446 = vpop.f32.mrb[0].mxu0
      %v3447 = vpop.f32.mrb[0].mxu0
      %v3448 = vadd.f32 0.0, %v3447
      %v3449 = vpop.f32.mrb[0].mxu0
      %3450 = vmatprep.mubr.bf16.mxu0 0
      %3451 = vmatmul.mubr.bf16.gmra.mrb[0].mxu0 %v3089
      %v3452 = vpop.f32.mrb[0].mxu0
      %v3453 = vadd.f32 0.0, %v3452
      %v3454 = vpop.f32.mrb[0].mxu0
      %v3455 = vpop.f32.mrb[0].mxu0
      %v3456 = vadd.f32 0.0, %v3455
      %v3457 = vpop.f32.mrb[0].mxu0
      %3458 = vmatprep.mubr.bf16.mxu0 0
      %3459 = vmatmul.mubr.bf16.gmra.mrb[0].mxu0 %v3092
      %v3460 = vpop.f32.mrb[0].mxu0
      %v3461 = vadd.f32 0.0, %v3460
      %v3462 = vpop.f32.mrb[0].mxu0
      %v3463 = vpop.f32.mrb[0].mxu0
      %v3464 = vadd.f32 0.0, %v3463
      %v3465 = vpop.f32.mrb[0].mxu0
      %3466 = vmatprep.mubr.bf16.mxu0 0
      %3467 = vmatmul.mubr.bf16.gmra.mrb[0].mxu0 %v3095
      %v3468 = vpop.f32.mrb[0].mxu0
      %v3469 = vadd.f32 0.0, %v3468
      %v3470 = vpop.f32.mrb[0].mxu0
      %v3471 = vpop.f32.mrb[0].mxu0
      %v3472 = vadd.f32 0.0, %v3471
      %v3473 = vpop.f32.mrb[0].mxu0
      %3474 = vmatprep.mubr.bf16.mxu0 0
      %3475 = vmatmul.mubr.bf16.gmra.mrb[0].mxu0 %v3098
      %v3476 = vpop.f32.mrb[0].mxu0
      %v3477 = vadd.f32 0.0, %v3476
      %v3478 = vpop.f32.mrb[0].mxu0
      %v3479 = vpop.f32.mrb[0].mxu0
      %v3480 = vadd.f32 0.0, %v3479
      %v3481 = vpop.f32.mrb[0].mxu0
      %3482 = vmatprep.mubr.bf16.mxu0 0
      %3483 = vmatmul.mubr.bf16.gmra.mrb[0].mxu0 %v3325
      %v3484 = vpop.f32.mrb[0].mxu0
      %v3485 = vadd.f32 0.0, %v3484
      %v3486 = vpop.f32.mrb[0].mxu0
      %v3487 = vpop.f32.mrb[0].mxu0
      %v3488 = vadd.f32 0.0, %v3487
      %v3489 = vpop.f32.mrb[0].mxu0
      %3490 = vdwg.mxu0
      %v3491 = vadd.f32 %v3264, %v3365
      %v3492 = vadd.f32 %v3265, %v3368
      %v3493 = vadd.f32 %v3266, %v3373
      %v3494 = vadd.f32 %v3267, %v3376
      %v3495 = vadd.f32 %v3268, %v3381
      %v3496 = vadd.f32 %v3269, %v3384
      %v3497 = vadd.f32 %v3270, %v3389
      %v3498 = vadd.f32 %v3271, %v3392
      %v3499 = vadd.f32 %v3272, %v3397
      %v3500 = vadd.f32 %v3273, %v3400
      %v3501 = vadd.f32 %v3274, %v3405
      %v3502 = vadd.f32 %v3275, %v3408
      %v3503 = vadd.f32 %v3276, %v3413
      %v3504 = vadd.f32 %v3277, %v3416
      %v3505 = vadd.f32 %v3278, %v3421
      %v3506 = vadd.f32 %v3279, %v3424
      %v3507 = vadd.f32 %v3280, %v3429
      %v3508 = vadd.f32 %v3281, %v3432
      %v3509 = vadd.f32 %v3282, %v3437
      %v3510 = vadd.f32 %v3283, %v3440
      %v3511 = vadd.f32 %v3284, %v3445
      %v3512 = vadd.f32 %v3285, %v3448
      %v3513 = vadd.f32 %v3286, %v3453
      %v3514 = vadd.f32 %v3287, %v3456
      %v3515 = vadd.f32 %v3288, %v3461
      %v3516 = vadd.f32 %v3289, %v3464
      %v3517 = vadd.f32 %v3290, %v3469
      %v3518 = vadd.f32 %v3291, %v3472
      %v3519 = vadd.f32 %v3292, %v3477
      %v3520 = vadd.f32 %v3293, %v3480
      %v3521 = vadd.f32 %v3294, %v3485
      %v3522 = vadd.f32 %v3295, %v3488
      %v3524 = vshrl.u32 %v1727, 16
      %v3526 = vrot.slane %v3524, 5
      %v3527 = vshll.u32 %v1727, 16
      %v3529 = vrot.slane %v3527, 6
      %v3530 = vor.u32 %v3526, %v3529
      %v3531 = vrot.slane %v3530, 4
      %v3532 = vrot.slane %v1496, 5
      %v3533 = vrot.slane %v1492, 6
      %v3534 = vor.u32 %v3532, %v3533
      %v3535 = vsel %vm2633, %v3531, %v3534
      %v3536 = vrot.slane %v3534, 4
      %v3538 = vshrl.u32 %v2630, 16
      %v3540 = vrot.slane %v3538, 5
      %v3541 = vshll.u32 %v2630, 16
      %v3543 = vrot.slane %v3541, 6
      %v3544 = vor.u32 %v3540, %v3543
      %v3545 = vsel %vm2633, %v3536, %v3544
      %s3546 = scalar_lea.vmem %s1, 16
      %v3547 = vld [vmem:[%s3546] sm:$0x3]
      %v3548 = vunpack.c.l.b16 %v3535
      %v3549 = vunpack.c.l.b16 %v3545
      %v3550 = vpack.c.b16 %v3549, %v3548
      %v3552 = vsel %vm1098, %v3550, 0
      %v3555 = vsel %vm1147, %v3547, 0
      %3557 = vmatprep.subr.bf16.mxu0 0
      %3558 = vmatpush1.bf16.msra.mxu0 %v3555
      %3559 = vmatprep.subr.bf16.mxu0 0
      %3560 = vmatpush1.bf16.msra.mxu0 0
      %3561 = vmatprep.subr.bf16.mxu0 0
      %3562 = vmatpush1.bf16.msra.mxu0 0
      %3563 = vmatprep.subr.bf16.mxu0 0
      %3564 = vmatpush1.bf16.msra.mxu0 0
      %3565 = vmatprep.subr.bf16.mxu0 0
      %3566 = vmatpush1.bf16.msra.mxu0 0
      %3567 = vmatprep.subr.bf16.mxu0 0
      %3568 = vmatpush1.bf16.msra.mxu0 0
      %3569 = vmatprep.subr.bf16.mxu0 0
      %3570 = vmatpush1.bf16.msra.mxu0 0
      %3571 = vmatprep.subr.bf16.mxu0 0
      %3572 = vmatpush1.bf16.msra.mxu0 0
      %3573 = vmatprep.subr.bf16.mxu0 0
      %3574 = vmatpush1.bf16.msra.mxu0 0
      %3575 = vmatprep.subr.bf16.mxu0 0
      %3576 = vmatpush1.bf16.msra.mxu0 0
      %3577 = vmatprep.subr.bf16.mxu0 0
      %3578 = vmatpush1.bf16.msra.mxu0 0
      %3579 = vmatprep.subr.bf16.mxu0 0
      %3580 = vmatpush1.bf16.msra.mxu0 0
      %3581 = vmatprep.subr.bf16.mxu0 0
      %3582 = vmatpush1.bf16.msra.mxu0 0
      %3583 = vmatprep.subr.bf16.mxu0 0
      %3584 = vmatpush1.bf16.msra.mxu0 0
      %3585 = vmatprep.subr.bf16.mxu0 0
      %3586 = vmatpush1.bf16.msra.mxu0 0
      %3587 = vmatprep.subr.bf16.mxu0 0
      %3588 = vmatpush1.bf16.msra.mxu0 0
      %3589 = vmatprep.mubr.bf16.mxu0 0
      %3590 = vmatmul.mubr.bf16.gmra.mrb[0].mxu0 %v3059
      %v3591 = vpop.f32.mrb[0].mxu0
      %v3592 = vadd.f32 0.0, %v3591
      %v3593 = vpop.f32.mrb[0].mxu0
      %v3594 = vpop.f32.mrb[0].mxu0
      %v3595 = vadd.f32 0.0, %v3594
      %v3596 = vpop.f32.mrb[0].mxu0
      %3597 = vmatprep.mubr.bf16.mxu0 0
      %3598 = vmatmul.mubr.bf16.gmra.mrb[0].mxu0 %v3062
      %v3599 = vpop.f32.mrb[0].mxu0
      %v3600 = vadd.f32 0.0, %v3599
      %v3601 = vpop.f32.mrb[0].mxu0
      %v3602 = vpop.f32.mrb[0].mxu0
      %v3603 = vadd.f32 0.0, %v3602
      %v3604 = vpop.f32.mrb[0].mxu0
      %3605 = vmatprep.mubr.bf16.mxu0 0
      %3606 = vmatmul.mubr.bf16.gmra.mrb[0].mxu0 %v3065
      %v3607 = vpop.f32.mrb[0].mxu0
      %v3608 = vadd.f32 0.0, %v3607
      %v3609 = vpop.f32.mrb[0].mxu0
      %v3610 = vpop.f32.mrb[0].mxu0
      %v3611 = vadd.f32 0.0, %v3610
      %v3612 = vpop.f32.mrb[0].mxu0
      %3613 = vmatprep.mubr.bf16.mxu0 0
      %3614 = vmatmul.mubr.bf16.gmra.mrb[0].mxu0 %v3068
      %v3615 = vpop.f32.mrb[0].mxu0
      %v3616 = vadd.f32 0.0, %v3615
      %v3617 = vpop.f32.mrb[0].mxu0
      %v3618 = vpop.f32.mrb[0].mxu0
      %v3619 = vadd.f32 0.0, %v3618
      %v3620 = vpop.f32.mrb[0].mxu0
      %3621 = vmatprep.mubr.bf16.mxu0 0
      %3622 = vmatmul.mubr.bf16.gmra.mrb[0].mxu0 %v3071
      %v3623 = vpop.f32.mrb[0].mxu0
      %v3624 = vadd.f32 0.0, %v3623
      %v3625 = vpop.f32.mrb[0].mxu0
      %v3626 = vpop.f32.mrb[0].mxu0
      %v3627 = vadd.f32 0.0, %v3626
      %v3628 = vpop.f32.mrb[0].mxu0
      %3629 = vmatprep.mubr.bf16.mxu0 0
      %3630 = vmatmul.mubr.bf16.gmra.mrb[0].mxu0 %v3074
      %v3631 = vpop.f32.mrb[0].mxu0
      %v3632 = vadd.f32 0.0, %v3631
      %v3633 = vpop.f32.mrb[0].mxu0
      %v3634 = vpop.f32.mrb[0].mxu0
      %v3635 = vadd.f32 0.0, %v3634
      %v3636 = vpop.f32.mrb[0].mxu0
      %3637 = vmatprep.mubr.bf16.mxu0 0
      %3638 = vmatmul.mubr.bf16.gmra.mrb[0].mxu0 %v3077
      %v3639 = vpop.f32.mrb[0].mxu0
      %v3640 = vadd.f32 0.0, %v3639
      %v3641 = vpop.f32.mrb[0].mxu0
      %v3642 = vpop.f32.mrb[0].mxu0
      %v3643 = vadd.f32 0.0, %v3642
      %v3644 = vpop.f32.mrb[0].mxu0
      %3645 = vmatprep.mubr.bf16.mxu0 0
      %3646 = vmatmul.mubr.bf16.gmra.mrb[0].mxu0 %v3080
      %v3647 = vpop.f32.mrb[0].mxu0
      %v3648 = vadd.f32 0.0, %v3647
      %v3649 = vpop.f32.mrb[0].mxu0
      %v3650 = vpop.f32.mrb[0].mxu0
      %v3651 = vadd.f32 0.0, %v3650
      %v3652 = vpop.f32.mrb[0].mxu0
      %3653 = vmatprep.mubr.bf16.mxu0 0
      %3654 = vmatmul.mubr.bf16.gmra.mrb[0].mxu0 %v3083
      %v3655 = vpop.f32.mrb[0].mxu0
      %v3656 = vadd.f32 0.0, %v3655
      %v3657 = vpop.f32.mrb[0].mxu0
      %v3658 = vpop.f32.mrb[0].mxu0
      %v3659 = vadd.f32 0.0, %v3658
      %v3660 = vpop.f32.mrb[0].mxu0
      %3661 = vmatprep.mubr.bf16.mxu0 0
      %3662 = vmatmul.mubr.bf16.gmra.mrb[0].mxu0 %v3086
      %v3663 = vpop.f32.mrb[0].mxu0
      %v3664 = vadd.f32 0.0, %v3663
      %v3665 = vpop.f32.mrb[0].mxu0
      %v3666 = vpop.f32.mrb[0].mxu0
      %v3667 = vadd.f32 0.0, %v3666
      %v3668 = vpop.f32.mrb[0].mxu0
      %3669 = vmatprep.mubr.bf16.mxu0 0
      %3670 = vmatmul.mubr.bf16.gmra.mrb[0].mxu0 %v3089
      %v3671 = vpop.f32.mrb[0].mxu0
      %v3672 = vadd.f32 0.0, %v3671
      %v3673 = vpop.f32.mrb[0].mxu0
      %v3674 = vpop.f32.mrb[0].mxu0
      %v3675 = vadd.f32 0.0, %v3674
      %v3676 = vpop.f32.mrb[0].mxu0
      %3677 = vmatprep.mubr.bf16.mxu0 0
      %3678 = vmatmul.mubr.bf16.gmra.mrb[0].mxu0 %v3092
      %v3679 = vpop.f32.mrb[0].mxu0
      %v3680 = vadd.f32 0.0, %v3679
      %v3681 = vpop.f32.mrb[0].mxu0
      %v3682 = vpop.f32.mrb[0].mxu0
      %v3683 = vadd.f32 0.0, %v3682
      %v3684 = vpop.f32.mrb[0].mxu0
      %3685 = vmatprep.mubr.bf16.mxu0 0
      %3686 = vmatmul.mubr.bf16.gmra.mrb[0].mxu0 %v3095
      %v3687 = vpop.f32.mrb[0].mxu0
      %v3688 = vadd.f32 0.0, %v3687
      %v3689 = vpop.f32.mrb[0].mxu0
      %v3690 = vpop.f32.mrb[0].mxu0
      %v3691 = vadd.f32 0.0, %v3690
      %v3692 = vpop.f32.mrb[0].mxu0
      %3693 = vmatprep.mubr.bf16.mxu0 0
      %3694 = vmatmul.mubr.bf16.gmra.mrb[0].mxu0 %v3098
      %v3695 = vpop.f32.mrb[0].mxu0
      %v3696 = vadd.f32 0.0, %v3695
      %v3697 = vpop.f32.mrb[0].mxu0
      %v3698 = vpop.f32.mrb[0].mxu0
      %v3699 = vadd.f32 0.0, %v3698
      %v3700 = vpop.f32.mrb[0].mxu0
      %3701 = vmatprep.mubr.bf16.mxu0 0
      %3702 = vmatmul.mubr.bf16.gmra.mrb[0].mxu0 %v3325
      %v3703 = vpop.f32.mrb[0].mxu0
      %v3704 = vadd.f32 0.0, %v3703
      %v3705 = vpop.f32.mrb[0].mxu0
      %v3706 = vpop.f32.mrb[0].mxu0
      %v3707 = vadd.f32 0.0, %v3706
      %v3708 = vpop.f32.mrb[0].mxu0
      %3709 = vmatprep.mubr.bf16.mxu0 0
      %3710 = vmatmul.mubr.bf16.gmra.mrb[0].mxu0 %v3552
      %v3711 = vpop.f32.mrb[0].mxu0
      %v3712 = vadd.f32 0.0, %v3711
      %v3713 = vpop.f32.mrb[0].mxu0
      %v3714 = vpop.f32.mrb[0].mxu0
      %v3715 = vadd.f32 0.0, %v3714
      %v3716 = vpop.f32.mrb[0].mxu0
      %3717 = vdwg.mxu0
      %v3718 = vadd.f32 %v3491, %v3592
      %v3719 = vadd.f32 %v3492, %v3595
      %v3720 = vadd.f32 %v3493, %v3600
      %v3721 = vadd.f32 %v3494, %v3603
      %v3722 = vadd.f32 %v3495, %v3608
      %v3723 = vadd.f32 %v3496, %v3611
      %v3724 = vadd.f32 %v3497, %v3616
      %v3725 = vadd.f32 %v3498, %v3619
      %v3726 = vadd.f32 %v3499, %v3624
      %v3727 = vadd.f32 %v3500, %v3627
      %v3728 = vadd.f32 %v3501, %v3632
      %v3729 = vadd.f32 %v3502, %v3635
      %v3730 = vadd.f32 %v3503, %v3640
      %v3731 = vadd.f32 %v3504, %v3643
      %v3732 = vadd.f32 %v3505, %v3648
      %v3733 = vadd.f32 %v3506, %v3651
      %v3734 = vadd.f32 %v3507, %v3656
      %v3735 = vadd.f32 %v3508, %v3659
      %v3736 = vadd.f32 %v3509, %v3664
      %v3737 = vadd.f32 %v3510, %v3667
      %v3738 = vadd.f32 %v3511, %v3672
      %v3739 = vadd.f32 %v3512, %v3675
      %v3740 = vadd.f32 %v3513, %v3680
      %v3741 = vadd.f32 %v3514, %v3683
      %v3742 = vadd.f32 %v3515, %v3688
      %v3743 = vadd.f32 %v3516, %v3691
      %v3744 = vadd.f32 %v3517, %v3696
      %v3745 = vadd.f32 %v3518, %v3699
      %v3746 = vadd.f32 %v3519, %v3704
      %v3747 = vadd.f32 %v3520, %v3707
      %v3748 = vadd.f32 %v3521, %v3712
      %v3749 = vadd.f32 %v3522, %v3715
      %v3750 = vld [vmem:[%s2] sm:$0x1]
      %v3752 = vlaneseq
      %v3753 = vshrl.u32 %v3752, 7
      %v3754 = vsub.s32 0, %v3753
      %v3755 = vrot.slane %v3750, %v3754
      %v3757 = vadd.f32 %v3718, %v3755
      %v3758 = vadd.f32 %v3719, %v3755
      %v3759 = vadd.f32 %v3720, %v3755
      %v3760 = vadd.f32 %v3721, %v3755
      %v3761 = vadd.f32 %v3722, %v3755
      %v3762 = vadd.f32 %v3723, %v3755
      %v3763 = vadd.f32 %v3724, %v3755
      %v3764 = vadd.f32 %v3725, %v3755
      %v3765 = vadd.f32 %v3726, %v3755
      %v3766 = vadd.f32 %v3727, %v3755
      %v3767 = vadd.f32 %v3728, %v3755
      %v3768 = vadd.f32 %v3729, %v3755
      %v3769 = vadd.f32 %v3730, %v3755
      %v3770 = vadd.f32 %v3731, %v3755
      %v3771 = vadd.f32 %v3732, %v3755
      %v3772 = vadd.f32 %v3733, %v3755
      %v3773 = vadd.f32 %v3734, %v3755
      %v3774 = vadd.f32 %v3735, %v3755
      %v3775 = vadd.f32 %v3736, %v3755
      %v3776 = vadd.f32 %v3737, %v3755
      %v3777 = vadd.f32 %v3738, %v3755
      %v3778 = vadd.f32 %v3739, %v3755
      %v3779 = vadd.f32 %v3740, %v3755
      %v3780 = vadd.f32 %v3741, %v3755
      %v3781 = vadd.f32 %v3742, %v3755
      %v3782 = vadd.f32 %v3743, %v3755
      %v3783 = vadd.f32 %v3744, %v3755
      %v3784 = vadd.f32 %v3745, %v3755
      %v3785 = vadd.f32 %v3746, %v3755
      %v3786 = vadd.f32 %v3747, %v3755
      %v3787 = vadd.f32 %v3748, %v3755
      %v3788 = vadd.f32 %v3749, %v3755
      %v3789 = vmax.f32 %v3757, 0.0
      %v3790 = vmax.f32 %v3758, 0.0
      %v3791 = vmax.f32 %v3759, 0.0
      %v3792 = vmax.f32 %v3760, 0.0
      %v3793 = vmax.f32 %v3761, 0.0
      %v3794 = vmax.f32 %v3762, 0.0
      %v3795 = vmax.f32 %v3763, 0.0
      %v3796 = vmax.f32 %v3764, 0.0
      %v3797 = vmax.f32 %v3765, 0.0
      %v3798 = vmax.f32 %v3766, 0.0
      %v3799 = vmax.f32 %v3767, 0.0
      %v3800 = vmax.f32 %v3768, 0.0
      %v3801 = vmax.f32 %v3769, 0.0
      %v3802 = vmax.f32 %v3770, 0.0
      %v3803 = vmax.f32 %v3771, 0.0
      %v3804 = vmax.f32 %v3772, 0.0
      %v3805 = vmax.f32 %v3773, 0.0
      %v3806 = vmax.f32 %v3774, 0.0
      %v3807 = vmax.f32 %v3775, 0.0
      %v3808 = vmax.f32 %v3776, 0.0
      %v3809 = vmax.f32 %v3777, 0.0
      %v3810 = vmax.f32 %v3778, 0.0
      %v3811 = vmax.f32 %v3779, 0.0
      %v3812 = vmax.f32 %v3780, 0.0
      %v3813 = vmax.f32 %v3781, 0.0
      %v3814 = vmax.f32 %v3782, 0.0
      %v3815 = vmax.f32 %v3783, 0.0
      %v3816 = vmax.f32 %v3784, 0.0
      %v3817 = vmax.f32 %v3785, 0.0
      %v3818 = vmax.f32 %v3786, 0.0
      %v3819 = vmax.f32 %v3787, 0.0
      %v3820 = vmax.f32 %v3788, 0.0
      %v3821 = vpack.c.bf16 %v3790, %v3789
      %v3822 = vpack.c.bf16 %v3792, %v3791
      %v3823 = vpack.c.bf16 %v3794, %v3793
      %v3824 = vpack.c.bf16 %v3796, %v3795
      %v3825 = vpack.c.bf16 %v3798, %v3797
      %v3826 = vpack.c.bf16 %v3800, %v3799
      %v3827 = vpack.c.bf16 %v3802, %v3801
      %v3828 = vpack.c.bf16 %v3804, %v3803
      %v3829 = vpack.c.bf16 %v3806, %v3805
      %v3830 = vpack.c.bf16 %v3808, %v3807
      %v3831 = vpack.c.bf16 %v3810, %v3809
      %v3832 = vpack.c.bf16 %v3812, %v3811
      %v3833 = vpack.c.bf16 %v3814, %v3813
      %v3834 = vpack.c.bf16 %v3816, %v3815
      %v3835 = vpack.c.bf16 %v3818, %v3817
      %v3836 = vpack.c.bf16 %v3820, %v3819
      %v3853 = vunpack.c.l.b16 %v3821
      %v3854 = vunpack.c.h.b16 %v3821
      %v3855 = vunpack.c.l.b16 %v3822
      %v3856 = vunpack.c.h.b16 %v3822
      %v3857 = vunpack.c.l.b16 %v3823
      %v3858 = vunpack.c.h.b16 %v3823
      %v3859 = vunpack.c.l.b16 %v3824
      %v3860 = vunpack.c.h.b16 %v3824
      %v3861 = vunpack.c.l.b16 %v3825
      %v3862 = vunpack.c.h.b16 %v3825
      %v3863 = vunpack.c.l.b16 %v3826
      %v3864 = vunpack.c.h.b16 %v3826
      %v3865 = vunpack.c.l.b16 %v3827
      %v3866 = vunpack.c.h.b16 %v3827
      %v3867 = vunpack.c.l.b16 %v3828
      %v3868 = vunpack.c.h.b16 %v3828
      %v3869 = vunpack.c.l.b16 %v3829
      %v3870 = vunpack.c.h.b16 %v3829
      %v3871 = vunpack.c.l.b16 %v3830
      %v3872 = vunpack.c.h.b16 %v3830
      %v3873 = vunpack.c.l.b16 %v3831
      %v3874 = vunpack.c.h.b16 %v3831
      %v3875 = vunpack.c.l.b16 %v3832
      %v3876 = vunpack.c.h.b16 %v3832
      %v3877 = vunpack.c.l.b16 %v3833
      %v3878 = vunpack.c.h.b16 %v3833
      %v3879 = vunpack.c.l.b16 %v3834
      %v3880 = vunpack.c.h.b16 %v3834
      %v3881 = vunpack.c.l.b16 %v3835
      %v3882 = vunpack.c.h.b16 %v3835
      %v3883 = vunpack.c.l.b16 %v3836
      %v3884 = vunpack.c.h.b16 %v3836
      %v3885 = vpack.c.b16 %v3853, %v3853
      %v3886 = vpack.c.b16 %v3854, %v3854
      %v3887 = vpack.c.b16 %v3855, %v3855
      %v3888 = vpack.c.b16 %v3856, %v3856
      %v3889 = vpack.c.b16 %v3857, %v3857
      %v3890 = vpack.c.b16 %v3858, %v3858
      %v3891 = vpack.c.b16 %v3859, %v3859
      %v3892 = vpack.c.b16 %v3860, %v3860
      %v3893 = vpack.c.b16 %v3861, %v3861
      %v3894 = vpack.c.b16 %v3862, %v3862
      %v3895 = vpack.c.b16 %v3863, %v3863
      %v3896 = vpack.c.b16 %v3864, %v3864
      %v3897 = vpack.c.b16 %v3865, %v3865
      %v3898 = vpack.c.b16 %v3866, %v3866
      %v3899 = vpack.c.b16 %v3867, %v3867
      %v3900 = vpack.c.b16 %v3868, %v3868
      %v3901 = vpack.c.b16 %v3869, %v3869
      %v3902 = vpack.c.b16 %v3870, %v3870
      %v3903 = vpack.c.b16 %v3871, %v3871
      %v3904 = vpack.c.b16 %v3872, %v3872
      %v3905 = vpack.c.b16 %v3873, %v3873
      %v3906 = vpack.c.b16 %v3874, %v3874
      %v3907 = vpack.c.b16 %v3875, %v3875
      %v3908 = vpack.c.b16 %v3876, %v3876
      %v3909 = vpack.c.b16 %v3877, %v3877
      %v3910 = vpack.c.b16 %v3878, %v3878
      %v3911 = vpack.c.b16 %v3879, %v3879
      %v3912 = vpack.c.b16 %v3880, %v3880
      %v3913 = vpack.c.b16 %v3881, %v3881
      %v3914 = vpack.c.b16 %v3882, %v3882
      %v3915 = vpack.c.b16 %v3883, %v3883
      %v3916 = vpack.c.b16 %v3884, %v3884
      %v3917 = vrot.slane %v3885, 7
      %v3918 = vrot.slane %v3917, 4
      %v3919 = vrot.slane %v3886, 7
      %v3920 = vsel %vm403, %v3918, %v3919
      %v3921 = vrot.slane %v3919, 4
      %v3922 = vrot.slane %v3887, 7
      %v3923 = vrot.slane %v3922, 4
      %v3924 = vrot.slane %v3888, 7
      %v3925 = vsel %vm403, %v3923, %v3924
      %v3926 = vrot.slane %v3924, 4
      %v3927 = vrot.slane %v3889, 7
      %v3928 = vrot.slane %v3927, 4
      %v3929 = vrot.slane %v3890, 7
      %v3930 = vsel %vm403, %v3928, %v3929
      %v3931 = vrot.slane %v3929, 4
      %v3932 = vrot.slane %v3891, 7
      %v3933 = vrot.slane %v3932, 4
      %v3934 = vrot.slane %v3892, 7
      %v3935 = vsel %vm403, %v3933, %v3934
      %v3936 = vrot.slane %v3934, 4
      %v3937 = vrot.slane %v3893, 7
      %v3938 = vrot.slane %v3937, 4
      %v3939 = vrot.slane %v3894, 7
      %v3940 = vsel %vm403, %v3938, %v3939
      %v3941 = vrot.slane %v3939, 4
      %v3942 = vrot.slane %v3895, 7
      %v3943 = vrot.slane %v3942, 4
      %v3944 = vrot.slane %v3896, 7
      %v3945 = vsel %vm403, %v3943, %v3944
      %v3946 = vrot.slane %v3944, 4
      %v3947 = vrot.slane %v3897, 7
      %v3948 = vrot.slane %v3947, 4
      %v3949 = vrot.slane %v3898, 7
      %v3950 = vsel %vm403, %v3948, %v3949
      %v3951 = vrot.slane %v3949, 4
      %v3952 = vrot.slane %v3899, 7
      %v3953 = vrot.slane %v3952, 4
      %v3954 = vrot.slane %v3900, 7
      %v3955 = vsel %vm403, %v3953, %v3954
      %v3956 = vrot.slane %v3954, 4
      %v3957 = vrot.slane %v3901, 7
      %v3958 = vrot.slane %v3957, 4
      %v3959 = vrot.slane %v3902, 7
      %v3960 = vsel %vm403, %v3958, %v3959
      %v3961 = vrot.slane %v3959, 4
      %v3962 = vrot.slane %v3903, 7
      %v3963 = vrot.slane %v3962, 4
      %v3964 = vrot.slane %v3904, 7
      %v3965 = vsel %vm403, %v3963, %v3964
      %v3966 = vrot.slane %v3964, 4
      %v3967 = vrot.slane %v3905, 7
      %v3968 = vrot.slane %v3967, 4
      %v3969 = vrot.slane %v3906, 7
      %v3970 = vsel %vm403, %v3968, %v3969
      %v3971 = vrot.slane %v3969, 4
      %v3972 = vrot.slane %v3907, 7
      %v3973 = vrot.slane %v3972, 4
      %v3974 = vrot.slane %v3908, 7
      %v3975 = vsel %vm403, %v3973, %v3974
      %v3976 = vrot.slane %v3974, 4
      %v3977 = vrot.slane %v3909, 7
      %v3978 = vrot.slane %v3977, 4
      %v3979 = vrot.slane %v3910, 7
      %v3980 = vsel %vm403, %v3978, %v3979
      %v3981 = vrot.slane %v3979, 4
      %v3982 = vrot.slane %v3911, 7
      %v3983 = vrot.slane %v3982, 4
      %v3984 = vrot.slane %v3912, 7
      %v3985 = vsel %vm403, %v3983, %v3984
      %v3986 = vrot.slane %v3984, 4
      %v3987 = vrot.slane %v3913, 7
      %v3988 = vrot.slane %v3987, 4
      %v3989 = vrot.slane %v3914, 7
      %v3990 = vsel %vm403, %v3988, %v3989
      %v3991 = vrot.slane %v3989, 4
      %v3992 = vrot.slane %v3915, 7
      %v3993 = vrot.slane %v3992, 4
      %v3994 = vrot.slane %v3916, 7
      %v3995 = vsel %vm403, %v3993, %v3994
      %v3996 = vrot.slane %v3994, 4
      %4045 = vst.msk [vmem:[%s532] sm:$0xe] %vm533, %v3917
      %4046 = vst.msk [vmem:[%s532 + $0x4] sm:$0xf] %vm226, %v3920
      %4047 = vst.msk [vmem:[%s532 + $0x8] sm:$0x1] %vm235, %v3921
      %4048 = vst.msk [vmem:[%s532 + $0xc] sm:$0xe] %vm533, %v3922
      %4049 = vst.msk [vmem:[%s532 + $0x10] sm:$0xf] %vm226, %v3925
      %4050 = vst.msk [vmem:[%s532 + $0x14] sm:$0x1] %vm235, %v3926
      %4051 = vst.msk [vmem:[%s532 + $0x18] sm:$0xe] %vm533, %v3927
      %4052 = vst.msk [vmem:[%s532 + $0x1c] sm:$0xf] %vm226, %v3930
      %4053 = vst.msk [vmem:[%s532 + $0x20] sm:$0x1] %vm235, %v3931
      %4054 = vst.msk [vmem:[%s532 + $0x24] sm:$0xe] %vm533, %v3932
      %4055 = vst.msk [vmem:[%s532 + $0x28] sm:$0xf] %vm226, %v3935
      %4056 = vst.msk [vmem:[%s532 + $0x2c] sm:$0x1] %vm235, %v3936
      %4057 = vst.msk [vmem:[%s532 + $0x30] sm:$0xe] %vm533, %v3937
      %4058 = vst.msk [vmem:[%s532 + $0x34] sm:$0xf] %vm226, %v3940
      %4059 = vst.msk [vmem:[%s532 + $0x38] sm:$0x1] %vm235, %v3941
      %4060 = vst.msk [vmem:[%s532 + $0x3c] sm:$0xe] %vm533, %v3942
      %4061 = vst.msk [vmem:[%s532 + $0x40] sm:$0xf] %vm226, %v3945
      %4062 = vst.msk [vmem:[%s532 + $0x44] sm:$0x1] %vm235, %v3946
      %4063 = vst.msk [vmem:[%s532 + $0x48] sm:$0xe] %vm533, %v3947
      %4064 = vst.msk [vmem:[%s532 + $0x4c] sm:$0xf] %vm226, %v3950
      %4065 = vst.msk [vmem:[%s532 + $0x50] sm:$0x1] %vm235, %v3951
      %4066 = vst.msk [vmem:[%s532 + $0x54] sm:$0xe] %vm533, %v3952
      %4067 = vst.msk [vmem:[%s532 + $0x58] sm:$0xf] %vm226, %v3955
      %4068 = vst.msk [vmem:[%s532 + $0x5c] sm:$0x1] %vm235, %v3956
      %4069 = vst.msk [vmem:[%s532 + $0x60] sm:$0xe] %vm533, %v3957
      %4070 = vst.msk [vmem:[%s532 + $0x64] sm:$0xf] %vm226, %v3960
      %4071 = vst.msk [vmem:[%s532 + $0x68] sm:$0x1] %vm235, %v3961
      %4072 = vst.msk [vmem:[%s532 + $0x6c] sm:$0xe] %vm533, %v3962
      %4073 = vst.msk [vmem:[%s532 + $0x70] sm:$0xf] %vm226, %v3965
      %4074 = vst.msk [vmem:[%s532 + $0x74] sm:$0x1] %vm235, %v3966
      %4075 = vst.msk [vmem:[%s532 + $0x78] sm:$0xe] %vm533, %v3967
      %4076 = vst.msk [vmem:[%s532 + $0x7c] sm:$0xf] %vm226, %v3970
      %4077 = vst.msk [vmem:[%s532 + $0x80] sm:$0x1] %vm235, %v3971
      %4078 = vst.msk [vmem:[%s532 + $0x84] sm:$0xe] %vm533, %v3972
      %4079 = vst.msk [vmem:[%s532 + $0x88] sm:$0xf] %vm226, %v3975
      %4080 = vst.msk [vmem:[%s532 + $0x8c] sm:$0x1] %vm235, %v3976
      %4081 = vst.msk [vmem:[%s532 + $0x90] sm:$0xe] %vm533, %v3977
      %4082 = vst.msk [vmem:[%s532 + $0x94] sm:$0xf] %vm226, %v3980
      %4083 = vst.msk [vmem:[%s532 + $0x98] sm:$0x1] %vm235, %v3981
      %4084 = vst.msk [vmem:[%s532 + $0x9c] sm:$0xe] %vm533, %v3982
      %4085 = vst.msk [vmem:[%s532 + $0xa0] sm:$0xf] %vm226, %v3985
      %4086 = vst.msk [vmem:[%s532 + $0xa4] sm:$0x1] %vm235, %v3986
      %4087 = vst.msk [vmem:[%s532 + $0xa8] sm:$0xe] %vm533, %v3987
      %4088 = vst.msk [vmem:[%s532 + $0xac] sm:$0xf] %vm226, %v3990
      %4089 = vst.msk [vmem:[%s532 + $0xb0] sm:$0x1] %vm235, %v3991
      %4090 = vst.msk [vmem:[%s532 + $0xb4] sm:$0xe] %vm533, %v3992
      %4091 = vst.msk [vmem:[%s532 + $0xb8] sm:$0xf] %vm226, %v3995
      %4092 = vst.msk [vmem:[%s532 + $0xbc] sm:$0x1] %vm235, %v3996
      %v4093 = vld [vmem:[#allocation2] sm:$0xf]
      %v4094 = vld [vmem:[#allocation2 + $0x4] sm:$0xf]
      %v4095 = vld [vmem:[#allocation2 + $0x8] sm:$0x1]
      %v4096 = vld [vmem:[#allocation2 + $0xc] sm:$0xf]
      %v4097 = vld [vmem:[#allocation2 + $0x10] sm:$0xf]
      %v4098 = vld [vmem:[#allocation2 + $0x14] sm:$0x1]
      %v4099 = vld [vmem:[#allocation2 + $0x18] sm:$0xf]
      %v4100 = vld [vmem:[#allocation2 + $0x1c] sm:$0xf]
      %v4101 = vld [vmem:[#allocation2 + $0x20] sm:$0x1]
      %v4102 = vld [vmem:[#allocation2 + $0x24] sm:$0xf]
      %v4103 = vld [vmem:[#allocation2 + $0x28] sm:$0xf]
      %v4104 = vld [vmem:[#allocation2 + $0x2c] sm:$0x1]
      %v4105 = vld [vmem:[#allocation2 + $0x30] sm:$0xf]
      %v4106 = vld [vmem:[#allocation2 + $0x34] sm:$0xf]
      %v4107 = vld [vmem:[#allocation2 + $0x38] sm:$0x1]
      %v4108 = vld [vmem:[#allocation2 + $0x3c] sm:$0xf]
      %v4109 = vld [vmem:[#allocation2 + $0x40] sm:$0xf]
      %v4110 = vld [vmem:[#allocation2 + $0x44] sm:$0x1]
      %v4111 = vld [vmem:[#allocation2 + $0x48] sm:$0xf]
      %v4112 = vld [vmem:[#allocation2 + $0x4c] sm:$0xf]
      %v4113 = vld [vmem:[#allocation2 + $0x50] sm:$0x1]
      %v4114 = vld [vmem:[#allocation2 + $0x54] sm:$0xf]
      %v4115 = vld [vmem:[#allocation2 + $0x58] sm:$0xf]
      %v4116 = vld [vmem:[#allocation2 + $0x5c] sm:$0x1]
      %v4117 = vld [vmem:[#allocation2 + $0x60] sm:$0xf]
      %v4118 = vld [vmem:[#allocation2 + $0x64] sm:$0xf]
      %v4119 = vld [vmem:[#allocation2 + $0x68] sm:$0x1]
      %v4120 = vld [vmem:[#allocation2 + $0x6c] sm:$0xf]
      %v4121 = vld [vmem:[#allocation2 + $0x70] sm:$0xf]
      %v4122 = vld [vmem:[#allocation2 + $0x74] sm:$0x1]
      %v4123 = vld [vmem:[#allocation2 + $0x78] sm:$0xf]
      %v4124 = vld [vmem:[#allocation2 + $0x7c] sm:$0xf]
      %v4125 = vld [vmem:[#allocation2 + $0x80] sm:$0x1]
      %v4126 = vld [vmem:[#allocation2 + $0x84] sm:$0xf]
      %v4127 = vld [vmem:[#allocation2 + $0x88] sm:$0xf]
      %v4128 = vld [vmem:[#allocation2 + $0x8c] sm:$0x1]
      %v4129 = vld [vmem:[#allocation2 + $0x90] sm:$0xf]
      %v4130 = vld [vmem:[#allocation2 + $0x94] sm:$0xf]
      %v4131 = vld [vmem:[#allocation2 + $0x98] sm:$0x1]
      %v4132 = vld [vmem:[#allocation2 + $0x9c] sm:$0xf]
      %v4133 = vld [vmem:[#allocation2 + $0xa0] sm:$0xf]
      %v4134 = vld [vmem:[#allocation2 + $0xa4] sm:$0x1]
      %v4135 = vld [vmem:[#allocation2 + $0xa8] sm:$0xf]
      %v4136 = vld [vmem:[#allocation2 + $0xac] sm:$0xf]
      %v4137 = vld [vmem:[#allocation2 + $0xb0] sm:$0x1]
      %v4138 = vld [vmem:[#allocation2 + $0xb4] sm:$0xf]
      %v4139 = vld [vmem:[#allocation2 + $0xb8] sm:$0xf]
      %v4140 = vld [vmem:[#allocation2 + $0xbc] sm:$0x1]
      %v4141 = vld [vmem:[#allocation2 + $0xc0] sm:$0xf]
      %v4142 = vld [vmem:[#allocation2 + $0xc4] sm:$0xf]
      %v4143 = vld [vmem:[#allocation2 + $0xc8] sm:$0x1]
      %v4144 = vld [vmem:[#allocation2 + $0xcc] sm:$0xf]
      %v4145 = vld [vmem:[#allocation2 + $0xd0] sm:$0xf]
      %v4146 = vld [vmem:[#allocation2 + $0xd4] sm:$0x1]
      %v4148 = vshrl.u32 %v4093, 16
      %v4150 = vrot.slane %v4148, 4
      %v4151 = vshll.u32 %v4093, 16
      %v4153 = vrot.slane %v4151, 5
      %v4154 = vor.u32 %v4150, %v4153
      %v4155 = vrot.slane %v4154, 4
      %v4157 = vshll.u32 %v4094, 16
      %v4159 = vrot.slane %v4157, 5
      %v4160 = vsel %vm638, %v4155, %v4159
      %v4161 = vshrl.u32 %v4094, 16
      %v4163 = vrot.slane %v4161, 4
      %v4164 = vor.u32 %v4163, %v4159
      %v4165 = vrot.slane %v4164, 4
      %v4167 = vshll.u32 %v4095, 16
      %v4169 = vrot.slane %v4167, 5
      %v4170 = vsel %vm638, %v4165, %v4169
      %v4172 = vshrl.u32 %v4096, 16
      %v4174 = vrot.slane %v4172, 4
      %v4175 = vshll.u32 %v4096, 16
      %v4177 = vrot.slane %v4175, 5
      %v4178 = vor.u32 %v4174, %v4177
      %v4179 = vrot.slane %v4178, 4
      %v4181 = vshll.u32 %v4097, 16
      %v4183 = vrot.slane %v4181, 5
      %v4184 = vsel %vm638, %v4179, %v4183
      %v4185 = vshrl.u32 %v4097, 16
      %v4187 = vrot.slane %v4185, 4
      %v4188 = vor.u32 %v4187, %v4183
      %v4189 = vrot.slane %v4188, 4
      %v4191 = vshll.u32 %v4098, 16
      %v4193 = vrot.slane %v4191, 5
      %v4194 = vsel %vm638, %v4189, %v4193
      %v4196 = vshrl.u32 %v4099, 16
      %v4198 = vrot.slane %v4196, 4
      %v4199 = vshll.u32 %v4099, 16
      %v4201 = vrot.slane %v4199, 5
      %v4202 = vor.u32 %v4198, %v4201
      %v4203 = vrot.slane %v4202, 4
      %v4205 = vshll.u32 %v4100, 16
      %v4207 = vrot.slane %v4205, 5
      %v4208 = vsel %vm638, %v4203, %v4207
      %v4209 = vshrl.u32 %v4100, 16
      %v4211 = vrot.slane %v4209, 4
      %v4212 = vor.u32 %v4211, %v4207
      %v4213 = vrot.slane %v4212, 4
      %v4215 = vshll.u32 %v4101, 16
      %v4217 = vrot.slane %v4215, 5
      %v4218 = vsel %vm638, %v4213, %v4217
      %v4220 = vshrl.u32 %v4102, 16
      %v4222 = vrot.slane %v4220, 4
      %v4223 = vshll.u32 %v4102, 16
      %v4225 = vrot.slane %v4223, 5
      %v4226 = vor.u32 %v4222, %v4225
      %v4227 = vrot.slane %v4226, 4
      %v4229 = vshll.u32 %v4103, 16
      %v4231 = vrot.slane %v4229, 5
      %v4232 = vsel %vm638, %v4227, %v4231
      %v4233 = vshrl.u32 %v4103, 16
      %v4235 = vrot.slane %v4233, 4
      %v4236 = vor.u32 %v4235, %v4231
      %v4237 = vrot.slane %v4236, 4
      %v4239 = vshll.u32 %v4104, 16
      %v4241 = vrot.slane %v4239, 5
      %v4242 = vsel %vm638, %v4237, %v4241
      %v4244 = vshrl.u32 %v4105, 16
      %v4246 = vrot.slane %v4244, 4
      %v4247 = vshll.u32 %v4105, 16
      %v4249 = vrot.slane %v4247, 5
      %v4250 = vor.u32 %v4246, %v4249
      %v4251 = vrot.slane %v4250, 4
      %v4253 = vshll.u32 %v4106, 16
      %v4255 = vrot.slane %v4253, 5
      %v4256 = vsel %vm638, %v4251, %v4255
      %v4257 = vshrl.u32 %v4106, 16
      %v4259 = vrot.slane %v4257, 4
      %v4260 = vor.u32 %v4259, %v4255
      %v4261 = vrot.slane %v4260, 4
      %v4263 = vshll.u32 %v4107, 16
      %v4265 = vrot.slane %v4263, 5
      %v4266 = vsel %vm638, %v4261, %v4265
      %v4268 = vshrl.u32 %v4108, 16
      %v4270 = vrot.slane %v4268, 4
      %v4271 = vshll.u32 %v4108, 16
      %v4273 = vrot.slane %v4271, 5
      %v4274 = vor.u32 %v4270, %v4273
      %v4275 = vrot.slane %v4274, 4
      %v4277 = vshll.u32 %v4109, 16
      %v4279 = vrot.slane %v4277, 5
      %v4280 = vsel %vm638, %v4275, %v4279
      %v4281 = vshrl.u32 %v4109, 16
      %v4283 = vrot.slane %v4281, 4
      %v4284 = vor.u32 %v4283, %v4279
      %v4285 = vrot.slane %v4284, 4
      %v4287 = vshll.u32 %v4110, 16
      %v4289 = vrot.slane %v4287, 5
      %v4290 = vsel %vm638, %v4285, %v4289
      %v4292 = vshrl.u32 %v4111, 16
      %v4294 = vrot.slane %v4292, 4
      %v4295 = vshll.u32 %v4111, 16
      %v4297 = vrot.slane %v4295, 5
      %v4298 = vor.u32 %v4294, %v4297
      %v4299 = vrot.slane %v4298, 4
      %v4301 = vshll.u32 %v4112, 16
      %v4303 = vrot.slane %v4301, 5
      %v4304 = vsel %vm638, %v4299, %v4303
      %v4305 = vshrl.u32 %v4112, 16
      %v4307 = vrot.slane %v4305, 4
      %v4308 = vor.u32 %v4307, %v4303
      %v4309 = vrot.slane %v4308, 4
      %v4311 = vshll.u32 %v4113, 16
      %v4313 = vrot.slane %v4311, 5
      %v4314 = vsel %vm638, %v4309, %v4313
      %v4316 = vshrl.u32 %v4114, 16
      %v4318 = vrot.slane %v4316, 4
      %v4319 = vshll.u32 %v4114, 16
      %v4321 = vrot.slane %v4319, 5
      %v4322 = vor.u32 %v4318, %v4321
      %v4323 = vrot.slane %v4322, 4
      %v4325 = vshll.u32 %v4115, 16
      %v4327 = vrot.slane %v4325, 5
      %v4328 = vsel %vm638, %v4323, %v4327
      %v4329 = vshrl.u32 %v4115, 16
      %v4331 = vrot.slane %v4329, 4
      %v4332 = vor.u32 %v4331, %v4327
      %v4333 = vrot.slane %v4332, 4
      %v4335 = vshll.u32 %v4116, 16
      %v4337 = vrot.slane %v4335, 5
      %v4338 = vsel %vm638, %v4333, %v4337
      %v4340 = vshrl.u32 %v4117, 16
      %v4342 = vrot.slane %v4340, 4
      %v4343 = vshll.u32 %v4117, 16
      %v4345 = vrot.slane %v4343, 5
      %v4346 = vor.u32 %v4342, %v4345
      %v4347 = vrot.slane %v4346, 4
      %v4349 = vshll.u32 %v4118, 16
      %v4351 = vrot.slane %v4349, 5
      %v4352 = vsel %vm638, %v4347, %v4351
      %v4353 = vshrl.u32 %v4118, 16
      %v4355 = vrot.slane %v4353, 4
      %v4356 = vor.u32 %v4355, %v4351
      %v4357 = vrot.slane %v4356, 4
      %v4359 = vshll.u32 %v4119, 16
      %v4361 = vrot.slane %v4359, 5
      %v4362 = vsel %vm638, %v4357, %v4361
      %v4364 = vshrl.u32 %v4120, 16
      %v4366 = vrot.slane %v4364, 4
      %v4367 = vshll.u32 %v4120, 16
      %v4369 = vrot.slane %v4367, 5
      %v4370 = vor.u32 %v4366, %v4369
      %v4371 = vrot.slane %v4370, 4
      %v4373 = vshll.u32 %v4121, 16
      %v4375 = vrot.slane %v4373, 5
      %v4376 = vsel %vm638, %v4371, %v4375
      %v4377 = vshrl.u32 %v4121, 16
      %v4379 = vrot.slane %v4377, 4
      %v4380 = vor.u32 %v4379, %v4375
      %v4381 = vrot.slane %v4380, 4
      %v4383 = vshll.u32 %v4122, 16
      %v4385 = vrot.slane %v4383, 5
      %v4386 = vsel %vm638, %v4381, %v4385
      %v4388 = vshrl.u32 %v4123, 16
      %v4390 = vrot.slane %v4388, 4
      %v4391 = vshll.u32 %v4123, 16
      %v4393 = vrot.slane %v4391, 5
      %v4394 = vor.u32 %v4390, %v4393
      %v4395 = vrot.slane %v4394, 4
      %v4397 = vshll.u32 %v4124, 16
      %v4399 = vrot.slane %v4397, 5
      %v4400 = vsel %vm638, %v4395, %v4399
      %v4401 = vshrl.u32 %v4124, 16
      %v4403 = vrot.slane %v4401, 4
      %v4404 = vor.u32 %v4403, %v4399
      %v4405 = vrot.slane %v4404, 4
      %v4407 = vshll.u32 %v4125, 16
      %v4409 = vrot.slane %v4407, 5
      %v4410 = vsel %vm638, %v4405, %v4409
      %v4412 = vshrl.u32 %v4126, 16
      %v4414 = vrot.slane %v4412, 4
      %v4415 = vshll.u32 %v4126, 16
      %v4417 = vrot.slane %v4415, 5
      %v4418 = vor.u32 %v4414, %v4417
      %v4419 = vrot.slane %v4418, 4
      %v4421 = vshll.u32 %v4127, 16
      %v4423 = vrot.slane %v4421, 5
      %v4424 = vsel %vm638, %v4419, %v4423
      %v4425 = vshrl.u32 %v4127, 16
      %v4427 = vrot.slane %v4425, 4
      %v4428 = vor.u32 %v4427, %v4423
      %v4429 = vrot.slane %v4428, 4
      %v4431 = vshll.u32 %v4128, 16
      %v4433 = vrot.slane %v4431, 5
      %v4434 = vsel %vm638, %v4429, %v4433
      %v4436 = vshrl.u32 %v4129, 16
      %v4438 = vrot.slane %v4436, 4
      %v4439 = vshll.u32 %v4129, 16
      %v4441 = vrot.slane %v4439, 5
      %v4442 = vor.u32 %v4438, %v4441
      %v4443 = vrot.slane %v4442, 4
      %v4445 = vshll.u32 %v4130, 16
      %v4447 = vrot.slane %v4445, 5
      %v4448 = vsel %vm638, %v4443, %v4447
      %v4449 = vshrl.u32 %v4130, 16
      %v4451 = vrot.slane %v4449, 4
      %v4452 = vor.u32 %v4451, %v4447
      %v4453 = vrot.slane %v4452, 4
      %v4455 = vshll.u32 %v4131, 16
      %v4457 = vrot.slane %v4455, 5
      %v4458 = vsel %vm638, %v4453, %v4457
      %v4460 = vshrl.u32 %v4132, 16
      %v4462 = vrot.slane %v4460, 4
      %v4463 = vshll.u32 %v4132, 16
      %v4465 = vrot.slane %v4463, 5
      %v4466 = vor.u32 %v4462, %v4465
      %v4467 = vrot.slane %v4466, 4
      %v4469 = vshll.u32 %v4133, 16
      %v4471 = vrot.slane %v4469, 5
      %v4472 = vsel %vm638, %v4467, %v4471
      %v4473 = vshrl.u32 %v4133, 16
      %v4475 = vrot.slane %v4473, 4
      %v4476 = vor.u32 %v4475, %v4471
      %v4477 = vrot.slane %v4476, 4
      %v4479 = vshll.u32 %v4134, 16
      %v4481 = vrot.slane %v4479, 5
      %v4482 = vsel %vm638, %v4477, %v4481
      %v4484 = vshrl.u32 %v4135, 16
      %v4486 = vrot.slane %v4484, 4
      %v4487 = vshll.u32 %v4135, 16
      %v4489 = vrot.slane %v4487, 5
      %v4490 = vor.u32 %v4486, %v4489
      %v4491 = vrot.slane %v4490, 4
      %v4493 = vshll.u32 %v4136, 16
      %v4495 = vrot.slane %v4493, 5
      %v4496 = vsel %vm638, %v4491, %v4495
      %v4497 = vshrl.u32 %v4136, 16
      %v4499 = vrot.slane %v4497, 4
      %v4500 = vor.u32 %v4499, %v4495
      %v4501 = vrot.slane %v4500, 4
      %v4503 = vshll.u32 %v4137, 16
      %v4505 = vrot.slane %v4503, 5
      %v4506 = vsel %vm638, %v4501, %v4505
      %v4508 = vshrl.u32 %v4138, 16
      %v4510 = vrot.slane %v4508, 4
      %v4511 = vshll.u32 %v4138, 16
      %v4513 = vrot.slane %v4511, 5
      %v4514 = vor.u32 %v4510, %v4513
      %v4515 = vrot.slane %v4514, 4
      %v4517 = vshll.u32 %v4139, 16
      %v4519 = vrot.slane %v4517, 5
      %v4520 = vsel %vm638, %v4515, %v4519
      %v4521 = vshrl.u32 %v4139, 16
      %v4523 = vrot.slane %v4521, 4
      %v4524 = vor.u32 %v4523, %v4519
      %v4525 = vrot.slane %v4524, 4
      %v4527 = vshll.u32 %v4140, 16
      %v4529 = vrot.slane %v4527, 5
      %v4530 = vsel %vm638, %v4525, %v4529
      %v4531 = vld [vmem:[%s3] sm:$0x3]
      %v4533 = vshrl.u32 %v4141, 16
      %v4535 = vrot.slane %v4533, 4
      %v4536 = vshll.u32 %v4141, 16
      %v4538 = vrot.slane %v4536, 5
      %v4539 = vor.u32 %v4535, %v4538
      %v4540 = vrot.slane %v4539, 4
      %v4542 = vshll.u32 %v4142, 16
      %v4544 = vrot.slane %v4542, 5
      %v4545 = vsel %vm638, %v4540, %v4544
      %v4546 = vshrl.u32 %v4142, 16
      %v4548 = vrot.slane %v4546, 4
      %v4549 = vor.u32 %v4548, %v4544
      %v4550 = vrot.slane %v4549, 4
      %v4552 = vshll.u32 %v4143, 16
      %v4554 = vrot.slane %v4552, 5
      %v4555 = vsel %vm638, %v4550, %v4554
      %s4556 = scalar_lea.vmem %s3, 6
      %v4557 = vld [vmem:[%s4556] sm:$0x3]
      %v4558 = vunpack.c.l.b16 %v4184
      %v4559 = vunpack.c.l.b16 %v4194
      %v4560 = vunpack.c.l.b16 %v4208
      %v4561 = vunpack.c.l.b16 %v4218
      %v4562 = vunpack.c.l.b16 %v4232
      %v4563 = vunpack.c.l.b16 %v4242
      %v4564 = vunpack.c.l.b16 %v4256
      %v4565 = vunpack.c.l.b16 %v4266
      %v4566 = vunpack.c.l.b16 %v4280
      %v4567 = vunpack.c.l.b16 %v4290
      %v4568 = vunpack.c.l.b16 %v4304
      %v4569 = vunpack.c.l.b16 %v4314
      %v4570 = vunpack.c.l.b16 %v4328
      %v4571 = vunpack.c.l.b16 %v4338
      %v4572 = vunpack.c.l.b16 %v4352
      %v4573 = vunpack.c.l.b16 %v4362
      %v4574 = vunpack.c.l.b16 %v4376
      %v4575 = vunpack.c.l.b16 %v4386
      %v4576 = vunpack.c.l.b16 %v4400
      %v4577 = vunpack.c.l.b16 %v4410
      %v4578 = vunpack.c.l.b16 %v4424
      %v4579 = vunpack.c.l.b16 %v4434
      %v4580 = vunpack.c.l.b16 %v4448
      %v4581 = vunpack.c.l.b16 %v4458
      %v4582 = vunpack.c.l.b16 %v4472
      %v4583 = vunpack.c.l.b16 %v4482
      %v4584 = vunpack.c.l.b16 %v4496
      %v4585 = vunpack.c.l.b16 %v4506
      %v4586 = vunpack.c.l.b16 %v4520
      %v4587 = vunpack.c.l.b16 %v4530
      %v4588 = vunpack.c.l.b16 %v4545
      %v4589 = vunpack.c.l.b16 %v4555
      %v4590 = vpack.c.b16 %v4559, %v4558
      %v4591 = vpack.c.b16 %v4561, %v4560
      %v4592 = vpack.c.b16 %v4563, %v4562
      %v4593 = vpack.c.b16 %v4565, %v4564
      %v4594 = vpack.c.b16 %v4567, %v4566
      %v4595 = vpack.c.b16 %v4569, %v4568
      %v4596 = vpack.c.b16 %v4571, %v4570
      %v4597 = vpack.c.b16 %v4573, %v4572
      %v4598 = vpack.c.b16 %v4575, %v4574
      %v4599 = vpack.c.b16 %v4577, %v4576
      %v4600 = vpack.c.b16 %v4579, %v4578
      %v4601 = vpack.c.b16 %v4581, %v4580
      %v4602 = vpack.c.b16 %v4583, %v4582
      %v4603 = vpack.c.b16 %v4585, %v4584
      %v4604 = vpack.c.b16 %v4587, %v4586
      %v4605 = vpack.c.b16 %v4589, %v4588
      %v4607 = vsel %vm1098, %v4590, 0
      %v4610 = vsel %vm1098, %v4591, 0
      %v4613 = vsel %vm1098, %v4592, 0
      %v4616 = vsel %vm1098, %v4593, 0
      %v4619 = vsel %vm1098, %v4594, 0
      %v4622 = vsel %vm1098, %v4595, 0
      %v4625 = vsel %vm1098, %v4596, 0
      %v4628 = vsel %vm1098, %v4597, 0
      %v4631 = vsel %vm1098, %v4598, 0
      %v4634 = vsel %vm1098, %v4599, 0
      %v4637 = vsel %vm1098, %v4600, 0
      %v4640 = vsel %vm1098, %v4601, 0
      %v4643 = vsel %vm1098, %v4602, 0
      %v4646 = vsel %vm1098, %v4603, 0
      %v4649 = vsel %vm1098, %v4604, 0
      %v4652 = vsel %vm1098, %v4605, 0
      %v4655 = vsel %vm1147, %v4557, 0
      %4657 = vmatprep.subr.bf16.mxu0 0
      %4658 = vmatpush1.bf16.msra.mxu0 %v4655
      %4659 = vmatprep.subr.bf16.mxu0 0
      %4660 = vmatpush1.bf16.msra.mxu0 0
      %4661 = vmatprep.subr.bf16.mxu0 0
      %4662 = vmatpush1.bf16.msra.mxu0 0
      %4663 = vmatprep.subr.bf16.mxu0 0
      %4664 = vmatpush1.bf16.msra.mxu0 0
      %4665 = vmatprep.subr.bf16.mxu0 0
      %4666 = vmatpush1.bf16.msra.mxu0 0
      %4667 = vmatprep.subr.bf16.mxu0 0
      %4668 = vmatpush1.bf16.msra.mxu0 0
      %4669 = vmatprep.subr.bf16.mxu0 0
      %4670 = vmatpush1.bf16.msra.mxu0 0
      %4671 = vmatprep.subr.bf16.mxu0 0
      %4672 = vmatpush1.bf16.msra.mxu0 0
      %4673 = vmatprep.subr.bf16.mxu0 0
      %4674 = vmatpush1.bf16.msra.mxu0 0
      %4675 = vmatprep.subr.bf16.mxu0 0
      %4676 = vmatpush1.bf16.msra.mxu0 0
      %4677 = vmatprep.subr.bf16.mxu0 0
      %4678 = vmatpush1.bf16.msra.mxu0 0
      %4679 = vmatprep.subr.bf16.mxu0 0
      %4680 = vmatpush1.bf16.msra.mxu0 0
      %4681 = vmatprep.subr.bf16.mxu0 0
      %4682 = vmatpush1.bf16.msra.mxu0 0
      %4683 = vmatprep.subr.bf16.mxu0 0
      %4684 = vmatpush1.bf16.msra.mxu0 0
      %4685 = vmatprep.subr.bf16.mxu0 0
      %4686 = vmatpush1.bf16.msra.mxu0 0
      %4687 = vmatprep.subr.bf16.mxu0 0
      %4688 = vmatpush1.bf16.msra.mxu0 0
      %4689 = vmatprep.mubr.bf16.mxu0 0
      %4690 = vmatmul.mubr.bf16.gmra.mrb[0].mxu0 %v4607
      %v4691 = vpop.f32.mrb[0].mxu0
      %v4692 = vadd.f32 0.0, %v4691
      %v4693 = vpop.f32.mrb[0].mxu0
      %v4694 = vpop.f32.mrb[0].mxu0
      %v4695 = vadd.f32 0.0, %v4694
      %v4696 = vpop.f32.mrb[0].mxu0
      %4697 = vmatprep.mubr.bf16.mxu0 0
      %4698 = vmatmul.mubr.bf16.gmra.mrb[0].mxu0 %v4610
      %v4699 = vpop.f32.mrb[0].mxu0
      %v4700 = vadd.f32 0.0, %v4699
      %v4701 = vpop.f32.mrb[0].mxu0
      %v4702 = vpop.f32.mrb[0].mxu0
      %v4703 = vadd.f32 0.0, %v4702
      %v4704 = vpop.f32.mrb[0].mxu0
      %4705 = vmatprep.mubr.bf16.mxu0 0
      %4706 = vmatmul.mubr.bf16.gmra.mrb[0].mxu0 %v4613
      %v4707 = vpop.f32.mrb[0].mxu0
      %v4708 = vadd.f32 0.0, %v4707
      %v4709 = vpop.f32.mrb[0].mxu0
      %v4710 = vpop.f32.mrb[0].mxu0
      %v4711 = vadd.f32 0.0, %v4710
      %v4712 = vpop.f32.mrb[0].mxu0
      %4713 = vmatprep.mubr.bf16.mxu0 0
      %4714 = vmatmul.mubr.bf16.gmra.mrb[0].mxu0 %v4616
      %v4715 = vpop.f32.mrb[0].mxu0
      %v4716 = vadd.f32 0.0, %v4715
      %v4717 = vpop.f32.mrb[0].mxu0
      %v4718 = vpop.f32.mrb[0].mxu0
      %v4719 = vadd.f32 0.0, %v4718
      %v4720 = vpop.f32.mrb[0].mxu0
      %4721 = vmatprep.mubr.bf16.mxu0 0
      %4722 = vmatmul.mubr.bf16.gmra.mrb[0].mxu0 %v4619
      %v4723 = vpop.f32.mrb[0].mxu0
      %v4724 = vadd.f32 0.0, %v4723
      %v4725 = vpop.f32.mrb[0].mxu0
      %v4726 = vpop.f32.mrb[0].mxu0
      %v4727 = vadd.f32 0.0, %v4726
      %v4728 = vpop.f32.mrb[0].mxu0
      %4729 = vmatprep.mubr.bf16.mxu0 0
      %4730 = vmatmul.mubr.bf16.gmra.mrb[0].mxu0 %v4622
      %v4731 = vpop.f32.mrb[0].mxu0
      %v4732 = vadd.f32 0.0, %v4731
      %v4733 = vpop.f32.mrb[0].mxu0
      %v4734 = vpop.f32.mrb[0].mxu0
      %v4735 = vadd.f32 0.0, %v4734
      %v4736 = vpop.f32.mrb[0].mxu0
      %4737 = vmatprep.mubr.bf16.mxu0 0
      %4738 = vmatmul.mubr.bf16.gmra.mrb[0].mxu0 %v4625
      %v4739 = vpop.f32.mrb[0].mxu0
      %v4740 = vadd.f32 0.0, %v4739
      %v4741 = vpop.f32.mrb[0].mxu0
      %v4742 = vpop.f32.mrb[0].mxu0
      %v4743 = vadd.f32 0.0, %v4742
      %v4744 = vpop.f32.mrb[0].mxu0
      %4745 = vmatprep.mubr.bf16.mxu0 0
      %4746 = vmatmul.mubr.bf16.gmra.mrb[0].mxu0 %v4628
      %v4747 = vpop.f32.mrb[0].mxu0
      %v4748 = vadd.f32 0.0, %v4747
      %v4749 = vpop.f32.mrb[0].mxu0
      %v4750 = vpop.f32.mrb[0].mxu0
      %v4751 = vadd.f32 0.0, %v4750
      %v4752 = vpop.f32.mrb[0].mxu0
      %4753 = vmatprep.mubr.bf16.mxu0 0
      %4754 = vmatmul.mubr.bf16.gmra.mrb[0].mxu0 %v4631
      %v4755 = vpop.f32.mrb[0].mxu0
      %v4756 = vadd.f32 0.0, %v4755
      %v4757 = vpop.f32.mrb[0].mxu0
      %v4758 = vpop.f32.mrb[0].mxu0
      %v4759 = vadd.f32 0.0, %v4758
      %v4760 = vpop.f32.mrb[0].mxu0
      %4761 = vmatprep.mubr.bf16.mxu0 0
      %4762 = vmatmul.mubr.bf16.gmra.mrb[0].mxu0 %v4634
      %v4763 = vpop.f32.mrb[0].mxu0
      %v4764 = vadd.f32 0.0, %v4763
      %v4765 = vpop.f32.mrb[0].mxu0
      %v4766 = vpop.f32.mrb[0].mxu0
      %v4767 = vadd.f32 0.0, %v4766
      %v4768 = vpop.f32.mrb[0].mxu0
      %4769 = vmatprep.mubr.bf16.mxu0 0
      %4770 = vmatmul.mubr.bf16.gmra.mrb[0].mxu0 %v4637
      %v4771 = vpop.f32.mrb[0].mxu0
      %v4772 = vadd.f32 0.0, %v4771
      %v4773 = vpop.f32.mrb[0].mxu0
      %v4774 = vpop.f32.mrb[0].mxu0
      %v4775 = vadd.f32 0.0, %v4774
      %v4776 = vpop.f32.mrb[0].mxu0
      %4777 = vmatprep.mubr.bf16.mxu0 0
      %4778 = vmatmul.mubr.bf16.gmra.mrb[0].mxu0 %v4640
      %v4779 = vpop.f32.mrb[0].mxu0
      %v4780 = vadd.f32 0.0, %v4779
      %v4781 = vpop.f32.mrb[0].mxu0
      %v4782 = vpop.f32.mrb[0].mxu0
      %v4783 = vadd.f32 0.0, %v4782
      %v4784 = vpop.f32.mrb[0].mxu0
      %4785 = vmatprep.mubr.bf16.mxu0 0
      %4786 = vmatmul.mubr.bf16.gmra.mrb[0].mxu0 %v4643
      %v4787 = vpop.f32.mrb[0].mxu0
      %v4788 = vadd.f32 0.0, %v4787
      %v4789 = vpop.f32.mrb[0].mxu0
      %v4790 = vpop.f32.mrb[0].mxu0
      %v4791 = vadd.f32 0.0, %v4790
      %v4792 = vpop.f32.mrb[0].mxu0
      %4793 = vmatprep.mubr.bf16.mxu0 0
      %4794 = vmatmul.mubr.bf16.gmra.mrb[0].mxu0 %v4646
      %v4795 = vpop.f32.mrb[0].mxu0
      %v4796 = vadd.f32 0.0, %v4795
      %v4797 = vpop.f32.mrb[0].mxu0
      %v4798 = vpop.f32.mrb[0].mxu0
      %v4799 = vadd.f32 0.0, %v4798
      %v4800 = vpop.f32.mrb[0].mxu0
      %4801 = vmatprep.mubr.bf16.mxu0 0
      %4802 = vmatmul.mubr.bf16.gmra.mrb[0].mxu0 %v4649
      %v4803 = vpop.f32.mrb[0].mxu0
      %v4804 = vadd.f32 0.0, %v4803
      %v4805 = vpop.f32.mrb[0].mxu0
      %v4806 = vpop.f32.mrb[0].mxu0
      %v4807 = vadd.f32 0.0, %v4806
      %v4808 = vpop.f32.mrb[0].mxu0
      %4809 = vmatprep.mubr.bf16.mxu0 0
      %4810 = vmatmul.mubr.bf16.gmra.mrb[0].mxu0 %v4652
      %v4811 = vpop.f32.mrb[0].mxu0
      %v4812 = vadd.f32 0.0, %v4811
      %v4813 = vpop.f32.mrb[0].mxu0
      %v4814 = vpop.f32.mrb[0].mxu0
      %v4815 = vadd.f32 0.0, %v4814
      %v4816 = vpop.f32.mrb[0].mxu0
      %4817 = vdwg.mxu0
      %v4818 = vunpack.c.l.b16 %v4160
      %v4819 = vunpack.c.l.b16 %v4170
      %v4820 = vpack.c.b16 %v4819, %v4818
      %v4822 = vsel %vm1098, %v4820, 0
      %v4825 = vsel %vm1147, %v4531, 0
      %4827 = vmatprep.subr.bf16.mxu0 0
      %4828 = vmatpush1.bf16.msra.mxu0 %v4825
      %4829 = vmatprep.subr.bf16.mxu0 0
      %4830 = vmatpush1.bf16.msra.mxu0 0
      %4831 = vmatprep.subr.bf16.mxu0 0
      %4832 = vmatpush1.bf16.msra.mxu0 0
      %4833 = vmatprep.subr.bf16.mxu0 0
      %4834 = vmatpush1.bf16.msra.mxu0 0
      %4835 = vmatprep.subr.bf16.mxu0 0
      %4836 = vmatpush1.bf16.msra.mxu0 0
      %4837 = vmatprep.subr.bf16.mxu0 0
      %4838 = vmatpush1.bf16.msra.mxu0 0
      %4839 = vmatprep.subr.bf16.mxu0 0
      %4840 = vmatpush1.bf16.msra.mxu0 0
      %4841 = vmatprep.subr.bf16.mxu0 0
      %4842 = vmatpush1.bf16.msra.mxu0 0
      %4843 = vmatprep.subr.bf16.mxu0 0
      %4844 = vmatpush1.bf16.msra.mxu0 0
      %4845 = vmatprep.subr.bf16.mxu0 0
      %4846 = vmatpush1.bf16.msra.mxu0 0
      %4847 = vmatprep.subr.bf16.mxu0 0
      %4848 = vmatpush1.bf16.msra.mxu0 0
      %4849 = vmatprep.subr.bf16.mxu0 0
      %4850 = vmatpush1.bf16.msra.mxu0 0
      %4851 = vmatprep.subr.bf16.mxu0 0
      %4852 = vmatpush1.bf16.msra.mxu0 0
      %4853 = vmatprep.subr.bf16.mxu0 0
      %4854 = vmatpush1.bf16.msra.mxu0 0
      %4855 = vmatprep.subr.bf16.mxu0 0
      %4856 = vmatpush1.bf16.msra.mxu0 0
      %4857 = vmatprep.subr.bf16.mxu0 0
      %4858 = vmatpush1.bf16.msra.mxu0 0
      %4859 = vmatprep.mubr.bf16.mxu0 0
      %4860 = vmatmul.mubr.bf16.gmra.mrb[0].mxu0 %v4822
      %v4861 = vpop.f32.mrb[0].mxu0
      %v4862 = vadd.f32 %v4692, %v4861
      %v4863 = vpop.f32.mrb[0].mxu0
      %v4864 = vpop.f32.mrb[0].mxu0
      %v4865 = vadd.f32 %v4695, %v4864
      %v4866 = vpop.f32.mrb[0].mxu0
      %4867 = vmatprep.mubr.bf16.mxu0 0
      %4868 = vmatmul.mubr.bf16.gmra.mrb[0].mxu0 %v4607
      %v4869 = vpop.f32.mrb[0].mxu0
      %v4870 = vadd.f32 %v4700, %v4869
      %v4871 = vpop.f32.mrb[0].mxu0
      %v4872 = vpop.f32.mrb[0].mxu0
      %v4873 = vadd.f32 %v4703, %v4872
      %v4874 = vpop.f32.mrb[0].mxu0
      %4875 = vmatprep.mubr.bf16.mxu0 0
      %4876 = vmatmul.mubr.bf16.gmra.mrb[0].mxu0 %v4610
      %v4877 = vpop.f32.mrb[0].mxu0
      %v4878 = vadd.f32 %v4708, %v4877
      %v4879 = vpop.f32.mrb[0].mxu0
      %v4880 = vpop.f32.mrb[0].mxu0
      %v4881 = vadd.f32 %v4711, %v4880
      %v4882 = vpop.f32.mrb[0].mxu0
      %4883 = vmatprep.mubr.bf16.mxu0 0
      %4884 = vmatmul.mubr.bf16.gmra.mrb[0].mxu0 %v4613
      %v4885 = vpop.f32.mrb[0].mxu0
      %v4886 = vadd.f32 %v4716, %v4885
      %v4887 = vpop.f32.mrb[0].mxu0
      %v4888 = vpop.f32.mrb[0].mxu0
      %v4889 = vadd.f32 %v4719, %v4888
      %v4890 = vpop.f32.mrb[0].mxu0
      %4891 = vmatprep.mubr.bf16.mxu0 0
      %4892 = vmatmul.mubr.bf16.gmra.mrb[0].mxu0 %v4616
      %v4893 = vpop.f32.mrb[0].mxu0
      %v4894 = vadd.f32 %v4724, %v4893
      %v4895 = vpop.f32.mrb[0].mxu0
      %v4896 = vpop.f32.mrb[0].mxu0
      %v4897 = vadd.f32 %v4727, %v4896
      %v4898 = vpop.f32.mrb[0].mxu0
      %4899 = vmatprep.mubr.bf16.mxu0 0
      %4900 = vmatmul.mubr.bf16.gmra.mrb[0].mxu0 %v4619
      %v4901 = vpop.f32.mrb[0].mxu0
      %v4902 = vadd.f32 %v4732, %v4901
      %v4903 = vpop.f32.mrb[0].mxu0
      %v4904 = vpop.f32.mrb[0].mxu0
      %v4905 = vadd.f32 %v4735, %v4904
      %v4906 = vpop.f32.mrb[0].mxu0
      %4907 = vmatprep.mubr.bf16.mxu0 0
      %4908 = vmatmul.mubr.bf16.gmra.mrb[0].mxu0 %v4622
      %v4909 = vpop.f32.mrb[0].mxu0
      %v4910 = vadd.f32 %v4740, %v4909
      %v4911 = vpop.f32.mrb[0].mxu0
      %v4912 = vpop.f32.mrb[0].mxu0
      %v4913 = vadd.f32 %v4743, %v4912
      %v4914 = vpop.f32.mrb[0].mxu0
      %4915 = vmatprep.mubr.bf16.mxu0 0
      %4916 = vmatmul.mubr.bf16.gmra.mrb[0].mxu0 %v4625
      %v4917 = vpop.f32.mrb[0].mxu0
      %v4918 = vadd.f32 %v4748, %v4917
      %v4919 = vpop.f32.mrb[0].mxu0
      %v4920 = vpop.f32.mrb[0].mxu0
      %v4921 = vadd.f32 %v4751, %v4920
      %v4922 = vpop.f32.mrb[0].mxu0
      %4923 = vmatprep.mubr.bf16.mxu0 0
      %4924 = vmatmul.mubr.bf16.gmra.mrb[0].mxu0 %v4628
      %v4925 = vpop.f32.mrb[0].mxu0
      %v4926 = vadd.f32 %v4756, %v4925
      %v4927 = vpop.f32.mrb[0].mxu0
      %v4928 = vpop.f32.mrb[0].mxu0
      %v4929 = vadd.f32 %v4759, %v4928
      %v4930 = vpop.f32.mrb[0].mxu0
      %4931 = vmatprep.mubr.bf16.mxu0 0
      %4932 = vmatmul.mubr.bf16.gmra.mrb[0].mxu0 %v4631
      %v4933 = vpop.f32.mrb[0].mxu0
      %v4934 = vadd.f32 %v4764, %v4933
      %v4935 = vpop.f32.mrb[0].mxu0
      %v4936 = vpop.f32.mrb[0].mxu0
      %v4937 = vadd.f32 %v4767, %v4936
      %v4938 = vpop.f32.mrb[0].mxu0
      %4939 = vmatprep.mubr.bf16.mxu0 0
      %4940 = vmatmul.mubr.bf16.gmra.mrb[0].mxu0 %v4634
      %v4941 = vpop.f32.mrb[0].mxu0
      %v4942 = vadd.f32 %v4772, %v4941
      %v4943 = vpop.f32.mrb[0].mxu0
      %v4944 = vpop.f32.mrb[0].mxu0
      %v4945 = vadd.f32 %v4775, %v4944
      %v4946 = vpop.f32.mrb[0].mxu0
      %4947 = vmatprep.mubr.bf16.mxu0 0
      %4948 = vmatmul.mubr.bf16.gmra.mrb[0].mxu0 %v4637
      %v4949 = vpop.f32.mrb[0].mxu0
      %v4950 = vadd.f32 %v4780, %v4949
      %v4951 = vpop.f32.mrb[0].mxu0
      %v4952 = vpop.f32.mrb[0].mxu0
      %v4953 = vadd.f32 %v4783, %v4952
      %v4954 = vpop.f32.mrb[0].mxu0
      %4955 = vmatprep.mubr.bf16.mxu0 0
      %4956 = vmatmul.mubr.bf16.gmra.mrb[0].mxu0 %v4640
      %v4957 = vpop.f32.mrb[0].mxu0
      %v4958 = vadd.f32 %v4788, %v4957
      %v4959 = vpop.f32.mrb[0].mxu0
      %v4960 = vpop.f32.mrb[0].mxu0
      %v4961 = vadd.f32 %v4791, %v4960
      %v4962 = vpop.f32.mrb[0].mxu0
      %4963 = vmatprep.mubr.bf16.mxu0 0
      %4964 = vmatmul.mubr.bf16.gmra.mrb[0].mxu0 %v4643
      %v4965 = vpop.f32.mrb[0].mxu0
      %v4966 = vadd.f32 %v4796, %v4965
      %v4967 = vpop.f32.mrb[0].mxu0
      %v4968 = vpop.f32.mrb[0].mxu0
      %v4969 = vadd.f32 %v4799, %v4968
      %v4970 = vpop.f32.mrb[0].mxu0
      %4971 = vmatprep.mubr.bf16.mxu0 0
      %4972 = vmatmul.mubr.bf16.gmra.mrb[0].mxu0 %v4646
      %v4973 = vpop.f32.mrb[0].mxu0
      %v4974 = vadd.f32 %v4804, %v4973
      %v4975 = vpop.f32.mrb[0].mxu0
      %v4976 = vpop.f32.mrb[0].mxu0
      %v4977 = vadd.f32 %v4807, %v4976
      %v4978 = vpop.f32.mrb[0].mxu0
      %4979 = vmatprep.mubr.bf16.mxu0 0
      %4980 = vmatmul.mubr.bf16.gmra.mrb[0].mxu0 %v4649
      %v4981 = vpop.f32.mrb[0].mxu0
      %v4982 = vadd.f32 %v4812, %v4981
      %v4983 = vpop.f32.mrb[0].mxu0
      %v4984 = vpop.f32.mrb[0].mxu0
      %v4985 = vadd.f32 %v4815, %v4984
      %v4986 = vpop.f32.mrb[0].mxu0
      %4987 = vdwg.mxu0
      %v4989 = vshrl.u32 %v4144, 16
      %v4991 = vrot.slane %v4989, 4
      %v4992 = vshll.u32 %v4144, 16
      %v4994 = vrot.slane %v4992, 5
      %v4995 = vor.u32 %v4991, %v4994
      %v4996 = vrot.slane %v4995, 4
      %v4998 = vshll.u32 %v4145, 16
      %v5000 = vrot.slane %v4998, 5
      %v5001 = vsel %vm638, %v4996, %v5000
      %v5002 = vshrl.u32 %v4145, 16
      %v5004 = vrot.slane %v5002, 4
      %v5005 = vor.u32 %v5004, %v5000
      %v5006 = vrot.slane %v5005, 4
      %v5008 = vshll.u32 %v4146, 16
      %v5010 = vrot.slane %v5008, 5
      %v5011 = vsel %vm638, %v5006, %v5010
      %s5012 = scalar_lea.vmem %s3, 12
      %v5013 = vld [vmem:[%s5012] sm:$0x3]
      %v5014 = vunpack.c.l.b16 %v5001
      %v5015 = vunpack.c.l.b16 %v5011
      %v5016 = vpack.c.b16 %v5015, %v5014
      %v5018 = vsel %vm1098, %v5016, 0
      %v5021 = vsel %vm1147, %v5013, 0
      %5023 = vmatprep.subr.bf16.mxu0 0
      %5024 = vmatpush1.bf16.msra.mxu0 %v5021
      %5025 = vmatprep.subr.bf16.mxu0 0
      %5026 = vmatpush1.bf16.msra.mxu0 0
      %5027 = vmatprep.subr.bf16.mxu0 0
      %5028 = vmatpush1.bf16.msra.mxu0 0
      %5029 = vmatprep.subr.bf16.mxu0 0
      %5030 = vmatpush1.bf16.msra.mxu0 0
      %5031 = vmatprep.subr.bf16.mxu0 0
      %5032 = vmatpush1.bf16.msra.mxu0 0
      %5033 = vmatprep.subr.bf16.mxu0 0
      %5034 = vmatpush1.bf16.msra.mxu0 0
      %5035 = vmatprep.subr.bf16.mxu0 0
      %5036 = vmatpush1.bf16.msra.mxu0 0
      %5037 = vmatprep.subr.bf16.mxu0 0
      %5038 = vmatpush1.bf16.msra.mxu0 0
      %5039 = vmatprep.subr.bf16.mxu0 0
      %5040 = vmatpush1.bf16.msra.mxu0 0
      %5041 = vmatprep.subr.bf16.mxu0 0
      %5042 = vmatpush1.bf16.msra.mxu0 0
      %5043 = vmatprep.subr.bf16.mxu0 0
      %5044 = vmatpush1.bf16.msra.mxu0 0
      %5045 = vmatprep.subr.bf16.mxu0 0
      %5046 = vmatpush1.bf16.msra.mxu0 0
      %5047 = vmatprep.subr.bf16.mxu0 0
      %5048 = vmatpush1.bf16.msra.mxu0 0
      %5049 = vmatprep.subr.bf16.mxu0 0
      %5050 = vmatpush1.bf16.msra.mxu0 0
      %5051 = vmatprep.subr.bf16.mxu0 0
      %5052 = vmatpush1.bf16.msra.mxu0 0
      %5053 = vmatprep.subr.bf16.mxu0 0
      %5054 = vmatpush1.bf16.msra.mxu0 0
      %5055 = vmatprep.mubr.bf16.mxu0 0
      %5056 = vmatmul.mubr.bf16.gmra.mrb[0].mxu0 %v4610
      %v5057 = vpop.f32.mrb[0].mxu0
      %v5058 = vadd.f32 0.0, %v5057
      %v5059 = vpop.f32.mrb[0].mxu0
      %v5060 = vpop.f32.mrb[0].mxu0
      %v5061 = vadd.f32 0.0, %v5060
      %v5062 = vpop.f32.mrb[0].mxu0
      %5063 = vmatprep.mubr.bf16.mxu0 0
      %5064 = vmatmul.mubr.bf16.gmra.mrb[0].mxu0 %v4613
      %v5065 = vpop.f32.mrb[0].mxu0
      %v5066 = vadd.f32 0.0, %v5065
      %v5067 = vpop.f32.mrb[0].mxu0
      %v5068 = vpop.f32.mrb[0].mxu0
      %v5069 = vadd.f32 0.0, %v5068
      %v5070 = vpop.f32.mrb[0].mxu0
      %5071 = vmatprep.mubr.bf16.mxu0 0
      %5072 = vmatmul.mubr.bf16.gmra.mrb[0].mxu0 %v4616
      %v5073 = vpop.f32.mrb[0].mxu0
      %v5074 = vadd.f32 0.0, %v5073
      %v5075 = vpop.f32.mrb[0].mxu0
      %v5076 = vpop.f32.mrb[0].mxu0
      %v5077 = vadd.f32 0.0, %v5076
      %v5078 = vpop.f32.mrb[0].mxu0
      %5079 = vmatprep.mubr.bf16.mxu0 0
      %5080 = vmatmul.mubr.bf16.gmra.mrb[0].mxu0 %v4619
      %v5081 = vpop.f32.mrb[0].mxu0
      %v5082 = vadd.f32 0.0, %v5081
      %v5083 = vpop.f32.mrb[0].mxu0
      %v5084 = vpop.f32.mrb[0].mxu0
      %v5085 = vadd.f32 0.0, %v5084
      %v5086 = vpop.f32.mrb[0].mxu0
      %5087 = vmatprep.mubr.bf16.mxu0 0
      %5088 = vmatmul.mubr.bf16.gmra.mrb[0].mxu0 %v4622
      %v5089 = vpop.f32.mrb[0].mxu0
      %v5090 = vadd.f32 0.0, %v5089
      %v5091 = vpop.f32.mrb[0].mxu0
      %v5092 = vpop.f32.mrb[0].mxu0
      %v5093 = vadd.f32 0.0, %v5092
      %v5094 = vpop.f32.mrb[0].mxu0
      %5095 = vmatprep.mubr.bf16.mxu0 0
      %5096 = vmatmul.mubr.bf16.gmra.mrb[0].mxu0 %v4625
      %v5097 = vpop.f32.mrb[0].mxu0
      %v5098 = vadd.f32 0.0, %v5097
      %v5099 = vpop.f32.mrb[0].mxu0
      %v5100 = vpop.f32.mrb[0].mxu0
      %v5101 = vadd.f32 0.0, %v5100
      %v5102 = vpop.f32.mrb[0].mxu0
      %5103 = vmatprep.mubr.bf16.mxu0 0
      %5104 = vmatmul.mubr.bf16.gmra.mrb[0].mxu0 %v4628
      %v5105 = vpop.f32.mrb[0].mxu0
      %v5106 = vadd.f32 0.0, %v5105
      %v5107 = vpop.f32.mrb[0].mxu0
      %v5108 = vpop.f32.mrb[0].mxu0
      %v5109 = vadd.f32 0.0, %v5108
      %v5110 = vpop.f32.mrb[0].mxu0
      %5111 = vmatprep.mubr.bf16.mxu0 0
      %5112 = vmatmul.mubr.bf16.gmra.mrb[0].mxu0 %v4631
      %v5113 = vpop.f32.mrb[0].mxu0
      %v5114 = vadd.f32 0.0, %v5113
      %v5115 = vpop.f32.mrb[0].mxu0
      %v5116 = vpop.f32.mrb[0].mxu0
      %v5117 = vadd.f32 0.0, %v5116
      %v5118 = vpop.f32.mrb[0].mxu0
      %5119 = vmatprep.mubr.bf16.mxu0 0
      %5120 = vmatmul.mubr.bf16.gmra.mrb[0].mxu0 %v4634
      %v5121 = vpop.f32.mrb[0].mxu0
      %v5122 = vadd.f32 0.0, %v5121
      %v5123 = vpop.f32.mrb[0].mxu0
      %v5124 = vpop.f32.mrb[0].mxu0
      %v5125 = vadd.f32 0.0, %v5124
      %v5126 = vpop.f32.mrb[0].mxu0
      %5127 = vmatprep.mubr.bf16.mxu0 0
      %5128 = vmatmul.mubr.bf16.gmra.mrb[0].mxu0 %v4637
      %v5129 = vpop.f32.mrb[0].mxu0
      %v5130 = vadd.f32 0.0, %v5129
      %v5131 = vpop.f32.mrb[0].mxu0
      %v5132 = vpop.f32.mrb[0].mxu0
      %v5133 = vadd.f32 0.0, %v5132
      %v5134 = vpop.f32.mrb[0].mxu0
      %5135 = vmatprep.mubr.bf16.mxu0 0
      %5136 = vmatmul.mubr.bf16.gmra.mrb[0].mxu0 %v4640
      %v5137 = vpop.f32.mrb[0].mxu0
      %v5138 = vadd.f32 0.0, %v5137
      %v5139 = vpop.f32.mrb[0].mxu0
      %v5140 = vpop.f32.mrb[0].mxu0
      %v5141 = vadd.f32 0.0, %v5140
      %v5142 = vpop.f32.mrb[0].mxu0
      %5143 = vmatprep.mubr.bf16.mxu0 0
      %5144 = vmatmul.mubr.bf16.gmra.mrb[0].mxu0 %v4643
      %v5145 = vpop.f32.mrb[0].mxu0
      %v5146 = vadd.f32 0.0, %v5145
      %v5147 = vpop.f32.mrb[0].mxu0
      %v5148 = vpop.f32.mrb[0].mxu0
      %v5149 = vadd.f32 0.0, %v5148
      %v5150 = vpop.f32.mrb[0].mxu0
      %5151 = vmatprep.mubr.bf16.mxu0 0
      %5152 = vmatmul.mubr.bf16.gmra.mrb[0].mxu0 %v4646
      %v5153 = vpop.f32.mrb[0].mxu0
      %v5154 = vadd.f32 0.0, %v5153
      %v5155 = vpop.f32.mrb[0].mxu0
      %v5156 = vpop.f32.mrb[0].mxu0
      %v5157 = vadd.f32 0.0, %v5156
      %v5158 = vpop.f32.mrb[0].mxu0
      %5159 = vmatprep.mubr.bf16.mxu0 0
      %5160 = vmatmul.mubr.bf16.gmra.mrb[0].mxu0 %v4649
      %v5161 = vpop.f32.mrb[0].mxu0
      %v5162 = vadd.f32 0.0, %v5161
      %v5163 = vpop.f32.mrb[0].mxu0
      %v5164 = vpop.f32.mrb[0].mxu0
      %v5165 = vadd.f32 0.0, %v5164
      %v5166 = vpop.f32.mrb[0].mxu0
      %5167 = vmatprep.mubr.bf16.mxu0 0
      %5168 = vmatmul.mubr.bf16.gmra.mrb[0].mxu0 %v4652
      %v5169 = vpop.f32.mrb[0].mxu0
      %v5170 = vadd.f32 0.0, %v5169
      %v5171 = vpop.f32.mrb[0].mxu0
      %v5172 = vpop.f32.mrb[0].mxu0
      %v5173 = vadd.f32 0.0, %v5172
      %v5174 = vpop.f32.mrb[0].mxu0
      %5175 = vmatprep.mubr.bf16.mxu0 0
      %5176 = vmatmul.mubr.bf16.gmra.mrb[0].mxu0 %v5018
      %v5177 = vpop.f32.mrb[0].mxu0
      %v5178 = vadd.f32 0.0, %v5177
      %v5179 = vpop.f32.mrb[0].mxu0
      %v5180 = vpop.f32.mrb[0].mxu0
      %v5181 = vadd.f32 0.0, %v5180
      %v5182 = vpop.f32.mrb[0].mxu0
      %5183 = vdwg.mxu0
      %v5184 = vadd.f32 %v4862, %v5058
      %v5185 = vadd.f32 %v4865, %v5061
      %v5186 = vadd.f32 %v4870, %v5066
      %v5187 = vadd.f32 %v4873, %v5069
      %v5188 = vadd.f32 %v4878, %v5074
      %v5189 = vadd.f32 %v4881, %v5077
      %v5190 = vadd.f32 %v4886, %v5082
      %v5191 = vadd.f32 %v4889, %v5085
      %v5192 = vadd.f32 %v4894, %v5090
      %v5193 = vadd.f32 %v4897, %v5093
      %v5194 = vadd.f32 %v4902, %v5098
      %v5195 = vadd.f32 %v4905, %v5101
      %v5196 = vadd.f32 %v4910, %v5106
      %v5197 = vadd.f32 %v4913, %v5109
      %v5198 = vadd.f32 %v4918, %v5114
      %v5199 = vadd.f32 %v4921, %v5117
      %v5200 = vadd.f32 %v4926, %v5122
      %v5201 = vadd.f32 %v4929, %v5125
      %v5202 = vadd.f32 %v4934, %v5130
      %v5203 = vadd.f32 %v4937, %v5133
      %v5204 = vadd.f32 %v4942, %v5138
      %v5205 = vadd.f32 %v4945, %v5141
      %v5206 = vadd.f32 %v4950, %v5146
      %v5207 = vadd.f32 %v4953, %v5149
      %v5208 = vadd.f32 %v4958, %v5154
      %v5209 = vadd.f32 %v4961, %v5157
      %v5210 = vadd.f32 %v4966, %v5162
      %v5211 = vadd.f32 %v4969, %v5165
      %v5212 = vadd.f32 %v4974, %v5170
      %v5213 = vadd.f32 %v4977, %v5173
      %v5214 = vadd.f32 %v4982, %v5178
      %v5215 = vadd.f32 %v4985, %v5181
      %v5216 = vld [vmem:[#allocation2] sm:$0xe]
      %v5217 = vld [vmem:[#allocation2 + $0xc] sm:$0xe]
      %v5218 = vld [vmem:[#allocation2 + $0x18] sm:$0xe]
      %v5219 = vld [vmem:[#allocation2 + $0x24] sm:$0xe]
      %v5220 = vld [vmem:[#allocation2 + $0x30] sm:$0xe]
      %v5221 = vld [vmem:[#allocation2 + $0x3c] sm:$0xe]
      %v5222 = vld [vmem:[#allocation2 + $0x48] sm:$0xe]
      %v5223 = vld [vmem:[#allocation2 + $0x54] sm:$0xe]
      %v5224 = vld [vmem:[#allocation2 + $0x60] sm:$0xe]
      %v5225 = vld [vmem:[#allocation2 + $0x6c] sm:$0xe]
      %v5226 = vld [vmem:[#allocation2 + $0x78] sm:$0xe]
      %v5227 = vld [vmem:[#allocation2 + $0x84] sm:$0xe]
      %v5228 = vld [vmem:[#allocation2 + $0x90] sm:$0xe]
      %v5229 = vld [vmem:[#allocation2 + $0x9c] sm:$0xe]
      %v5230 = vld [vmem:[#allocation2 + $0xa8] sm:$0xe]
      %v5231 = vld [vmem:[#allocation2 + $0xb4] sm:$0xe]
      %v5232 = vld [vmem:[#allocation2 + $0xc0] sm:$0xe]
      %v5233 = vld [vmem:[#allocation2 + $0xcc] sm:$0xe]
      %v5282 = vrot.slane %v5216, 5
      %v5283 = vrot.slane %v5282, 4
      %v5284 = vrot.slane %v4094, 5
      %v5285 = vsel %vm1778, %v5283, %v5284
      %v5286 = vrot.slane %v5284, 4
      %v5287 = vrot.slane %v4095, 5
      %v5288 = vsel %vm1778, %v5286, %v5287
      %v5289 = vrot.slane %v5217, 5
      %v5290 = vrot.slane %v5289, 4
      %v5291 = vrot.slane %v4097, 5
      %v5292 = vsel %vm1778, %v5290, %v5291
      %v5293 = vrot.slane %v5291, 4
      %v5294 = vrot.slane %v4098, 5
      %v5295 = vsel %vm1778, %v5293, %v5294
      %v5296 = vrot.slane %v5218, 5
      %v5297 = vrot.slane %v5296, 4
      %v5298 = vrot.slane %v4100, 5
      %v5299 = vsel %vm1778, %v5297, %v5298
      %v5300 = vrot.slane %v5298, 4
      %v5301 = vrot.slane %v4101, 5
      %v5302 = vsel %vm1778, %v5300, %v5301
      %v5303 = vrot.slane %v5219, 5
      %v5304 = vrot.slane %v5303, 4
      %v5305 = vrot.slane %v4103, 5
      %v5306 = vsel %vm1778, %v5304, %v5305
      %v5307 = vrot.slane %v5305, 4
      %v5308 = vrot.slane %v4104, 5
      %v5309 = vsel %vm1778, %v5307, %v5308
      %v5310 = vrot.slane %v5220, 5
      %v5311 = vrot.slane %v5310, 4
      %v5312 = vrot.slane %v4106, 5
      %v5313 = vsel %vm1778, %v5311, %v5312
      %v5314 = vrot.slane %v5312, 4
      %v5315 = vrot.slane %v4107, 5
      %v5316 = vsel %vm1778, %v5314, %v5315
      %v5317 = vrot.slane %v5221, 5
      %v5318 = vrot.slane %v5317, 4
      %v5319 = vrot.slane %v4109, 5
      %v5320 = vsel %vm1778, %v5318, %v5319
      %v5321 = vrot.slane %v5319, 4
      %v5322 = vrot.slane %v4110, 5
      %v5323 = vsel %vm1778, %v5321, %v5322
      %v5324 = vrot.slane %v5222, 5
      %v5325 = vrot.slane %v5324, 4
      %v5326 = vrot.slane %v4112, 5
      %v5327 = vsel %vm1778, %v5325, %v5326
      %v5328 = vrot.slane %v5326, 4
      %v5329 = vrot.slane %v4113, 5
      %v5330 = vsel %vm1778, %v5328, %v5329
      %v5331 = vrot.slane %v5223, 5
      %v5332 = vrot.slane %v5331, 4
      %v5333 = vrot.slane %v4115, 5
      %v5334 = vsel %vm1778, %v5332, %v5333
      %v5335 = vrot.slane %v5333, 4
      %v5336 = vrot.slane %v4116, 5
      %v5337 = vsel %vm1778, %v5335, %v5336
      %v5338 = vrot.slane %v5224, 5
      %v5339 = vrot.slane %v5338, 4
      %v5340 = vrot.slane %v4118, 5
      %v5341 = vsel %vm1778, %v5339, %v5340
      %v5342 = vrot.slane %v5340, 4
      %v5343 = vrot.slane %v4119, 5
      %v5344 = vsel %vm1778, %v5342, %v5343
      %v5345 = vrot.slane %v5225, 5
      %v5346 = vrot.slane %v5345, 4
      %v5347 = vrot.slane %v4121, 5
      %v5348 = vsel %vm1778, %v5346, %v5347
      %v5349 = vrot.slane %v5347, 4
      %v5350 = vrot.slane %v4122, 5
      %v5351 = vsel %vm1778, %v5349, %v5350
      %v5352 = vrot.slane %v5226, 5
      %v5353 = vrot.slane %v5352, 4
      %v5354 = vrot.slane %v4124, 5
      %v5355 = vsel %vm1778, %v5353, %v5354
      %v5356 = vrot.slane %v5354, 4
      %v5357 = vrot.slane %v4125, 5
      %v5358 = vsel %vm1778, %v5356, %v5357
      %v5359 = vrot.slane %v5227, 5
      %v5360 = vrot.slane %v5359, 4
      %v5361 = vrot.slane %v4127, 5
      %v5362 = vsel %vm1778, %v5360, %v5361
      %v5363 = vrot.slane %v5361, 4
      %v5364 = vrot.slane %v4128, 5
      %v5365 = vsel %vm1778, %v5363, %v5364
      %v5366 = vrot.slane %v5228, 5
      %v5367 = vrot.slane %v5366, 4
      %v5368 = vrot.slane %v4130, 5
      %v5369 = vsel %vm1778, %v5367, %v5368
      %v5370 = vrot.slane %v5368, 4
      %v5371 = vrot.slane %v4131, 5
      %v5372 = vsel %vm1778, %v5370, %v5371
      %v5373 = vrot.slane %v5229, 5
      %v5374 = vrot.slane %v5373, 4
      %v5375 = vrot.slane %v4133, 5
      %v5376 = vsel %vm1778, %v5374, %v5375
      %v5377 = vrot.slane %v5375, 4
      %v5378 = vrot.slane %v4134, 5
      %v5379 = vsel %vm1778, %v5377, %v5378
      %v5380 = vrot.slane %v5230, 5
      %v5381 = vrot.slane %v5380, 4
      %v5382 = vrot.slane %v4136, 5
      %v5383 = vsel %vm1778, %v5381, %v5382
      %v5384 = vrot.slane %v5382, 4
      %v5385 = vrot.slane %v4137, 5
      %v5386 = vsel %vm1778, %v5384, %v5385
      %v5387 = vrot.slane %v5231, 5
      %v5388 = vrot.slane %v5387, 4
      %v5389 = vrot.slane %v4139, 5
      %v5390 = vsel %vm1778, %v5388, %v5389
      %v5391 = vrot.slane %v5389, 4
      %v5392 = vrot.slane %v4140, 5
      %v5393 = vsel %vm1778, %v5391, %v5392
      %s5394 = scalar_lea.vmem %s3, 2
      %v5395 = vld [vmem:[%s5394] sm:$0x3]
      %v5396 = vunpack.c.l.b16 %v5285
      %v5397 = vunpack.c.l.b16 %v5288
      %v5398 = vunpack.c.l.b16 %v5292
      %v5399 = vunpack.c.l.b16 %v5295
      %v5400 = vunpack.c.l.b16 %v5299
      %v5401 = vunpack.c.l.b16 %v5302
      %v5402 = vunpack.c.l.b16 %v5306
      %v5403 = vunpack.c.l.b16 %v5309
      %v5404 = vunpack.c.l.b16 %v5313
      %v5405 = vunpack.c.l.b16 %v5316
      %v5406 = vunpack.c.l.b16 %v5320
      %v5407 = vunpack.c.l.b16 %v5323
      %v5408 = vunpack.c.l.b16 %v5327
      %v5409 = vunpack.c.l.b16 %v5330
      %v5410 = vunpack.c.l.b16 %v5334
      %v5411 = vunpack.c.l.b16 %v5337
      %v5412 = vunpack.c.l.b16 %v5341
      %v5413 = vunpack.c.l.b16 %v5344
      %v5414 = vunpack.c.l.b16 %v5348
      %v5415 = vunpack.c.l.b16 %v5351
      %v5416 = vunpack.c.l.b16 %v5355
      %v5417 = vunpack.c.l.b16 %v5358
      %v5418 = vunpack.c.l.b16 %v5362
      %v5419 = vunpack.c.l.b16 %v5365
      %v5420 = vunpack.c.l.b16 %v5369
      %v5421 = vunpack.c.l.b16 %v5372
      %v5422 = vunpack.c.l.b16 %v5376
      %v5423 = vunpack.c.l.b16 %v5379
      %v5424 = vunpack.c.l.b16 %v5383
      %v5425 = vunpack.c.l.b16 %v5386
      %v5426 = vunpack.c.l.b16 %v5390
      %v5427 = vunpack.c.l.b16 %v5393
      %v5428 = vpack.c.b16 %v5397, %v5396
      %v5429 = vpack.c.b16 %v5399, %v5398
      %v5430 = vpack.c.b16 %v5401, %v5400
      %v5431 = vpack.c.b16 %v5403, %v5402
      %v5432 = vpack.c.b16 %v5405, %v5404
      %v5433 = vpack.c.b16 %v5407, %v5406
      %v5434 = vpack.c.b16 %v5409, %v5408
      %v5435 = vpack.c.b16 %v5411, %v5410
      %v5436 = vpack.c.b16 %v5413, %v5412
      %v5437 = vpack.c.b16 %v5415, %v5414
      %v5438 = vpack.c.b16 %v5417, %v5416
      %v5439 = vpack.c.b16 %v5419, %v5418
      %v5440 = vpack.c.b16 %v5421, %v5420
      %v5441 = vpack.c.b16 %v5423, %v5422
      %v5442 = vpack.c.b16 %v5425, %v5424
      %v5443 = vpack.c.b16 %v5427, %v5426
      %v5445 = vsel %vm1098, %v5428, 0
      %v5448 = vsel %vm1098, %v5429, 0
      %v5451 = vsel %vm1098, %v5430, 0
      %v5454 = vsel %vm1098, %v5431, 0
      %v5457 = vsel %vm1098, %v5432, 0
      %v5460 = vsel %vm1098, %v5433, 0
      %v5463 = vsel %vm1098, %v5434, 0
      %v5466 = vsel %vm1098, %v5435, 0
      %v5469 = vsel %vm1098, %v5436, 0
      %v5472 = vsel %vm1098, %v5437, 0
      %v5475 = vsel %vm1098, %v5438, 0
      %v5478 = vsel %vm1098, %v5439, 0
      %v5481 = vsel %vm1098, %v5440, 0
      %v5484 = vsel %vm1098, %v5441, 0
      %v5487 = vsel %vm1098, %v5442, 0
      %v5490 = vsel %vm1098, %v5443, 0
      %v5493 = vsel %vm1147, %v5395, 0
      %5495 = vmatprep.subr.bf16.mxu0 0
      %5496 = vmatpush1.bf16.msra.mxu0 %v5493
      %5497 = vmatprep.subr.bf16.mxu0 0
      %5498 = vmatpush1.bf16.msra.mxu0 0
      %5499 = vmatprep.subr.bf16.mxu0 0
      %5500 = vmatpush1.bf16.msra.mxu0 0
      %5501 = vmatprep.subr.bf16.mxu0 0
      %5502 = vmatpush1.bf16.msra.mxu0 0
      %5503 = vmatprep.subr.bf16.mxu0 0
      %5504 = vmatpush1.bf16.msra.mxu0 0
      %5505 = vmatprep.subr.bf16.mxu0 0
      %5506 = vmatpush1.bf16.msra.mxu0 0
      %5507 = vmatprep.subr.bf16.mxu0 0
      %5508 = vmatpush1.bf16.msra.mxu0 0
      %5509 = vmatprep.subr.bf16.mxu0 0
      %5510 = vmatpush1.bf16.msra.mxu0 0
      %5511 = vmatprep.subr.bf16.mxu0 0
      %5512 = vmatpush1.bf16.msra.mxu0 0
      %5513 = vmatprep.subr.bf16.mxu0 0
      %5514 = vmatpush1.bf16.msra.mxu0 0
      %5515 = vmatprep.subr.bf16.mxu0 0
      %5516 = vmatpush1.bf16.msra.mxu0 0
      %5517 = vmatprep.subr.bf16.mxu0 0
      %5518 = vmatpush1.bf16.msra.mxu0 0
      %5519 = vmatprep.subr.bf16.mxu0 0
      %5520 = vmatpush1.bf16.msra.mxu0 0
      %5521 = vmatprep.subr.bf16.mxu0 0
      %5522 = vmatpush1.bf16.msra.mxu0 0
      %5523 = vmatprep.subr.bf16.mxu0 0
      %5524 = vmatpush1.bf16.msra.mxu0 0
      %5525 = vmatprep.subr.bf16.mxu0 0
      %5526 = vmatpush1.bf16.msra.mxu0 0
      %5527 = vmatprep.mubr.bf16.mxu0 0
      %5528 = vmatmul.mubr.bf16.gmra.mrb[0].mxu0 %v5445
      %v5529 = vpop.f32.mrb[0].mxu0
      %v5530 = vadd.f32 0.0, %v5529
      %v5531 = vpop.f32.mrb[0].mxu0
      %v5532 = vpop.f32.mrb[0].mxu0
      %v5533 = vadd.f32 0.0, %v5532
      %v5534 = vpop.f32.mrb[0].mxu0
      %5535 = vmatprep.mubr.bf16.mxu0 0
      %5536 = vmatmul.mubr.bf16.gmra.mrb[0].mxu0 %v5448
      %v5537 = vpop.f32.mrb[0].mxu0
      %v5538 = vadd.f32 0.0, %v5537
      %v5539 = vpop.f32.mrb[0].mxu0
      %v5540 = vpop.f32.mrb[0].mxu0
      %v5541 = vadd.f32 0.0, %v5540
      %v5542 = vpop.f32.mrb[0].mxu0
      %5543 = vmatprep.mubr.bf16.mxu0 0
      %5544 = vmatmul.mubr.bf16.gmra.mrb[0].mxu0 %v5451
      %v5545 = vpop.f32.mrb[0].mxu0
      %v5546 = vadd.f32 0.0, %v5545
      %v5547 = vpop.f32.mrb[0].mxu0
      %v5548 = vpop.f32.mrb[0].mxu0
      %v5549 = vadd.f32 0.0, %v5548
      %v5550 = vpop.f32.mrb[0].mxu0
      %5551 = vmatprep.mubr.bf16.mxu0 0
      %5552 = vmatmul.mubr.bf16.gmra.mrb[0].mxu0 %v5454
      %v5553 = vpop.f32.mrb[0].mxu0
      %v5554 = vadd.f32 0.0, %v5553
      %v5555 = vpop.f32.mrb[0].mxu0
      %v5556 = vpop.f32.mrb[0].mxu0
      %v5557 = vadd.f32 0.0, %v5556
      %v5558 = vpop.f32.mrb[0].mxu0
      %5559 = vmatprep.mubr.bf16.mxu0 0
      %5560 = vmatmul.mubr.bf16.gmra.mrb[0].mxu0 %v5457
      %v5561 = vpop.f32.mrb[0].mxu0
      %v5562 = vadd.f32 0.0, %v5561
      %v5563 = vpop.f32.mrb[0].mxu0
      %v5564 = vpop.f32.mrb[0].mxu0
      %v5565 = vadd.f32 0.0, %v5564
      %v5566 = vpop.f32.mrb[0].mxu0
      %5567 = vmatprep.mubr.bf16.mxu0 0
      %5568 = vmatmul.mubr.bf16.gmra.mrb[0].mxu0 %v5460
      %v5569 = vpop.f32.mrb[0].mxu0
      %v5570 = vadd.f32 0.0, %v5569
      %v5571 = vpop.f32.mrb[0].mxu0
      %v5572 = vpop.f32.mrb[0].mxu0
      %v5573 = vadd.f32 0.0, %v5572
      %v5574 = vpop.f32.mrb[0].mxu0
      %5575 = vmatprep.mubr.bf16.mxu0 0
      %5576 = vmatmul.mubr.bf16.gmra.mrb[0].mxu0 %v5463
      %v5577 = vpop.f32.mrb[0].mxu0
      %v5578 = vadd.f32 0.0, %v5577
      %v5579 = vpop.f32.mrb[0].mxu0
      %v5580 = vpop.f32.mrb[0].mxu0
      %v5581 = vadd.f32 0.0, %v5580
      %v5582 = vpop.f32.mrb[0].mxu0
      %5583 = vmatprep.mubr.bf16.mxu0 0
      %5584 = vmatmul.mubr.bf16.gmra.mrb[0].mxu0 %v5466
      %v5585 = vpop.f32.mrb[0].mxu0
      %v5586 = vadd.f32 0.0, %v5585
      %v5587 = vpop.f32.mrb[0].mxu0
      %v5588 = vpop.f32.mrb[0].mxu0
      %v5589 = vadd.f32 0.0, %v5588
      %v5590 = vpop.f32.mrb[0].mxu0
      %5591 = vmatprep.mubr.bf16.mxu0 0
      %5592 = vmatmul.mubr.bf16.gmra.mrb[0].mxu0 %v5469
      %v5593 = vpop.f32.mrb[0].mxu0
      %v5594 = vadd.f32 0.0, %v5593
      %v5595 = vpop.f32.mrb[0].mxu0
      %v5596 = vpop.f32.mrb[0].mxu0
      %v5597 = vadd.f32 0.0, %v5596
      %v5598 = vpop.f32.mrb[0].mxu0
      %5599 = vmatprep.mubr.bf16.mxu0 0
      %5600 = vmatmul.mubr.bf16.gmra.mrb[0].mxu0 %v5472
      %v5601 = vpop.f32.mrb[0].mxu0
      %v5602 = vadd.f32 0.0, %v5601
      %v5603 = vpop.f32.mrb[0].mxu0
      %v5604 = vpop.f32.mrb[0].mxu0
      %v5605 = vadd.f32 0.0, %v5604
      %v5606 = vpop.f32.mrb[0].mxu0
      %5607 = vmatprep.mubr.bf16.mxu0 0
      %5608 = vmatmul.mubr.bf16.gmra.mrb[0].mxu0 %v5475
      %v5609 = vpop.f32.mrb[0].mxu0
      %v5610 = vadd.f32 0.0, %v5609
      %v5611 = vpop.f32.mrb[0].mxu0
      %v5612 = vpop.f32.mrb[0].mxu0
      %v5613 = vadd.f32 0.0, %v5612
      %v5614 = vpop.f32.mrb[0].mxu0
      %5615 = vmatprep.mubr.bf16.mxu0 0
      %5616 = vmatmul.mubr.bf16.gmra.mrb[0].mxu0 %v5478
      %v5617 = vpop.f32.mrb[0].mxu0
      %v5618 = vadd.f32 0.0, %v5617
      %v5619 = vpop.f32.mrb[0].mxu0
      %v5620 = vpop.f32.mrb[0].mxu0
      %v5621 = vadd.f32 0.0, %v5620
      %v5622 = vpop.f32.mrb[0].mxu0
      %5623 = vmatprep.mubr.bf16.mxu0 0
      %5624 = vmatmul.mubr.bf16.gmra.mrb[0].mxu0 %v5481
      %v5625 = vpop.f32.mrb[0].mxu0
      %v5626 = vadd.f32 0.0, %v5625
      %v5627 = vpop.f32.mrb[0].mxu0
      %v5628 = vpop.f32.mrb[0].mxu0
      %v5629 = vadd.f32 0.0, %v5628
      %v5630 = vpop.f32.mrb[0].mxu0
      %5631 = vmatprep.mubr.bf16.mxu0 0
      %5632 = vmatmul.mubr.bf16.gmra.mrb[0].mxu0 %v5484
      %v5633 = vpop.f32.mrb[0].mxu0
      %v5634 = vadd.f32 0.0, %v5633
      %v5635 = vpop.f32.mrb[0].mxu0
      %v5636 = vpop.f32.mrb[0].mxu0
      %v5637 = vadd.f32 0.0, %v5636
      %v5638 = vpop.f32.mrb[0].mxu0
      %5639 = vmatprep.mubr.bf16.mxu0 0
      %5640 = vmatmul.mubr.bf16.gmra.mrb[0].mxu0 %v5487
      %v5641 = vpop.f32.mrb[0].mxu0
      %v5642 = vadd.f32 0.0, %v5641
      %v5643 = vpop.f32.mrb[0].mxu0
      %v5644 = vpop.f32.mrb[0].mxu0
      %v5645 = vadd.f32 0.0, %v5644
      %v5646 = vpop.f32.mrb[0].mxu0
      %5647 = vmatprep.mubr.bf16.mxu0 0
      %5648 = vmatmul.mubr.bf16.gmra.mrb[0].mxu0 %v5490
      %v5649 = vpop.f32.mrb[0].mxu0
      %v5650 = vadd.f32 0.0, %v5649
      %v5651 = vpop.f32.mrb[0].mxu0
      %v5652 = vpop.f32.mrb[0].mxu0
      %v5653 = vadd.f32 0.0, %v5652
      %v5654 = vpop.f32.mrb[0].mxu0
      %5655 = vdwg.mxu0
      %v5656 = vadd.f32 %v5184, %v5530
      %v5657 = vadd.f32 %v5185, %v5533
      %v5658 = vadd.f32 %v5186, %v5538
      %v5659 = vadd.f32 %v5187, %v5541
      %v5660 = vadd.f32 %v5188, %v5546
      %v5661 = vadd.f32 %v5189, %v5549
      %v5662 = vadd.f32 %v5190, %v5554
      %v5663 = vadd.f32 %v5191, %v5557
      %v5664 = vadd.f32 %v5192, %v5562
      %v5665 = vadd.f32 %v5193, %v5565
      %v5666 = vadd.f32 %v5194, %v5570
      %v5667 = vadd.f32 %v5195, %v5573
      %v5668 = vadd.f32 %v5196, %v5578
      %v5669 = vadd.f32 %v5197, %v5581
      %v5670 = vadd.f32 %v5198, %v5586
      %v5671 = vadd.f32 %v5199, %v5589
      %v5672 = vadd.f32 %v5200, %v5594
      %v5673 = vadd.f32 %v5201, %v5597
      %v5674 = vadd.f32 %v5202, %v5602
      %v5675 = vadd.f32 %v5203, %v5605
      %v5676 = vadd.f32 %v5204, %v5610
      %v5677 = vadd.f32 %v5205, %v5613
      %v5678 = vadd.f32 %v5206, %v5618
      %v5679 = vadd.f32 %v5207, %v5621
      %v5680 = vadd.f32 %v5208, %v5626
      %v5681 = vadd.f32 %v5209, %v5629
      %v5682 = vadd.f32 %v5210, %v5634
      %v5683 = vadd.f32 %v5211, %v5637
      %v5684 = vadd.f32 %v5212, %v5642
      %v5685 = vadd.f32 %v5213, %v5645
      %v5686 = vadd.f32 %v5214, %v5650
      %v5687 = vadd.f32 %v5215, %v5653
      %v5691 = vrot.slane %v5232, 5
      %v5692 = vrot.slane %v5691, 4
      %v5693 = vrot.slane %v4142, 5
      %v5694 = vsel %vm1778, %v5692, %v5693
      %v5695 = vrot.slane %v5693, 4
      %v5696 = vrot.slane %v4143, 5
      %v5697 = vsel %vm1778, %v5695, %v5696
      %s5698 = scalar_lea.vmem %s3, 8
      %v5699 = vld [vmem:[%s5698] sm:$0x3]
      %v5700 = vunpack.c.l.b16 %v5694
      %v5701 = vunpack.c.l.b16 %v5697
      %v5702 = vpack.c.b16 %v5701, %v5700
      %v5704 = vsel %vm1098, %v5702, 0
      %v5707 = vsel %vm1147, %v5699, 0
      %5709 = vmatprep.subr.bf16.mxu0 0
      %5710 = vmatpush1.bf16.msra.mxu0 %v5707
      %5711 = vmatprep.subr.bf16.mxu0 0
      %5712 = vmatpush1.bf16.msra.mxu0 0
      %5713 = vmatprep.subr.bf16.mxu0 0
      %5714 = vmatpush1.bf16.msra.mxu0 0
      %5715 = vmatprep.subr.bf16.mxu0 0
      %5716 = vmatpush1.bf16.msra.mxu0 0
      %5717 = vmatprep.subr.bf16.mxu0 0
      %5718 = vmatpush1.bf16.msra.mxu0 0
      %5719 = vmatprep.subr.bf16.mxu0 0
      %5720 = vmatpush1.bf16.msra.mxu0 0
      %5721 = vmatprep.subr.bf16.mxu0 0
      %5722 = vmatpush1.bf16.msra.mxu0 0
      %5723 = vmatprep.subr.bf16.mxu0 0
      %5724 = vmatpush1.bf16.msra.mxu0 0
      %5725 = vmatprep.subr.bf16.mxu0 0
      %5726 = vmatpush1.bf16.msra.mxu0 0
      %5727 = vmatprep.subr.bf16.mxu0 0
      %5728 = vmatpush1.bf16.msra.mxu0 0
      %5729 = vmatprep.subr.bf16.mxu0 0
      %5730 = vmatpush1.bf16.msra.mxu0 0
      %5731 = vmatprep.subr.bf16.mxu0 0
      %5732 = vmatpush1.bf16.msra.mxu0 0
      %5733 = vmatprep.subr.bf16.mxu0 0
      %5734 = vmatpush1.bf16.msra.mxu0 0
      %5735 = vmatprep.subr.bf16.mxu0 0
      %5736 = vmatpush1.bf16.msra.mxu0 0
      %5737 = vmatprep.subr.bf16.mxu0 0
      %5738 = vmatpush1.bf16.msra.mxu0 0
      %5739 = vmatprep.subr.bf16.mxu0 0
      %5740 = vmatpush1.bf16.msra.mxu0 0
      %5741 = vmatprep.mubr.bf16.mxu0 0
      %5742 = vmatmul.mubr.bf16.gmra.mrb[0].mxu0 %v5448
      %v5743 = vpop.f32.mrb[0].mxu0
      %v5744 = vadd.f32 0.0, %v5743
      %v5745 = vpop.f32.mrb[0].mxu0
      %v5746 = vpop.f32.mrb[0].mxu0
      %v5747 = vadd.f32 0.0, %v5746
      %v5748 = vpop.f32.mrb[0].mxu0
      %5749 = vmatprep.mubr.bf16.mxu0 0
      %5750 = vmatmul.mubr.bf16.gmra.mrb[0].mxu0 %v5451
      %v5751 = vpop.f32.mrb[0].mxu0
      %v5752 = vadd.f32 0.0, %v5751
      %v5753 = vpop.f32.mrb[0].mxu0
      %v5754 = vpop.f32.mrb[0].mxu0
      %v5755 = vadd.f32 0.0, %v5754
      %v5756 = vpop.f32.mrb[0].mxu0
      %5757 = vmatprep.mubr.bf16.mxu0 0
      %5758 = vmatmul.mubr.bf16.gmra.mrb[0].mxu0 %v5454
      %v5759 = vpop.f32.mrb[0].mxu0
      %v5760 = vadd.f32 0.0, %v5759
      %v5761 = vpop.f32.mrb[0].mxu0
      %v5762 = vpop.f32.mrb[0].mxu0
      %v5763 = vadd.f32 0.0, %v5762
      %v5764 = vpop.f32.mrb[0].mxu0
      %5765 = vmatprep.mubr.bf16.mxu0 0
      %5766 = vmatmul.mubr.bf16.gmra.mrb[0].mxu0 %v5457
      %v5767 = vpop.f32.mrb[0].mxu0
      %v5768 = vadd.f32 0.0, %v5767
      %v5769 = vpop.f32.mrb[0].mxu0
      %v5770 = vpop.f32.mrb[0].mxu0
      %v5771 = vadd.f32 0.0, %v5770
      %v5772 = vpop.f32.mrb[0].mxu0
      %5773 = vmatprep.mubr.bf16.mxu0 0
      %5774 = vmatmul.mubr.bf16.gmra.mrb[0].mxu0 %v5460
      %v5775 = vpop.f32.mrb[0].mxu0
      %v5776 = vadd.f32 0.0, %v5775
      %v5777 = vpop.f32.mrb[0].mxu0
      %v5778 = vpop.f32.mrb[0].mxu0
      %v5779 = vadd.f32 0.0, %v5778
      %v5780 = vpop.f32.mrb[0].mxu0
      %5781 = vmatprep.mubr.bf16.mxu0 0
      %5782 = vmatmul.mubr.bf16.gmra.mrb[0].mxu0 %v5463
      %v5783 = vpop.f32.mrb[0].mxu0
      %v5784 = vadd.f32 0.0, %v5783
      %v5785 = vpop.f32.mrb[0].mxu0
      %v5786 = vpop.f32.mrb[0].mxu0
      %v5787 = vadd.f32 0.0, %v5786
      %v5788 = vpop.f32.mrb[0].mxu0
      %5789 = vmatprep.mubr.bf16.mxu0 0
      %5790 = vmatmul.mubr.bf16.gmra.mrb[0].mxu0 %v5466
      %v5791 = vpop.f32.mrb[0].mxu0
      %v5792 = vadd.f32 0.0, %v5791
      %v5793 = vpop.f32.mrb[0].mxu0
      %v5794 = vpop.f32.mrb[0].mxu0
      %v5795 = vadd.f32 0.0, %v5794
      %v5796 = vpop.f32.mrb[0].mxu0
      %5797 = vmatprep.mubr.bf16.mxu0 0
      %5798 = vmatmul.mubr.bf16.gmra.mrb[0].mxu0 %v5469
      %v5799 = vpop.f32.mrb[0].mxu0
      %v5800 = vadd.f32 0.0, %v5799
      %v5801 = vpop.f32.mrb[0].mxu0
      %v5802 = vpop.f32.mrb[0].mxu0
      %v5803 = vadd.f32 0.0, %v5802
      %v5804 = vpop.f32.mrb[0].mxu0
      %5805 = vmatprep.mubr.bf16.mxu0 0
      %5806 = vmatmul.mubr.bf16.gmra.mrb[0].mxu0 %v5472
      %v5807 = vpop.f32.mrb[0].mxu0
      %v5808 = vadd.f32 0.0, %v5807
      %v5809 = vpop.f32.mrb[0].mxu0
      %v5810 = vpop.f32.mrb[0].mxu0
      %v5811 = vadd.f32 0.0, %v5810
      %v5812 = vpop.f32.mrb[0].mxu0
      %5813 = vmatprep.mubr.bf16.mxu0 0
      %5814 = vmatmul.mubr.bf16.gmra.mrb[0].mxu0 %v5475
      %v5815 = vpop.f32.mrb[0].mxu0
      %v5816 = vadd.f32 0.0, %v5815
      %v5817 = vpop.f32.mrb[0].mxu0
      %v5818 = vpop.f32.mrb[0].mxu0
      %v5819 = vadd.f32 0.0, %v5818
      %v5820 = vpop.f32.mrb[0].mxu0
      %5821 = vmatprep.mubr.bf16.mxu0 0
      %5822 = vmatmul.mubr.bf16.gmra.mrb[0].mxu0 %v5478
      %v5823 = vpop.f32.mrb[0].mxu0
      %v5824 = vadd.f32 0.0, %v5823
      %v5825 = vpop.f32.mrb[0].mxu0
      %v5826 = vpop.f32.mrb[0].mxu0
      %v5827 = vadd.f32 0.0, %v5826
      %v5828 = vpop.f32.mrb[0].mxu0
      %5829 = vmatprep.mubr.bf16.mxu0 0
      %5830 = vmatmul.mubr.bf16.gmra.mrb[0].mxu0 %v5481
      %v5831 = vpop.f32.mrb[0].mxu0
      %v5832 = vadd.f32 0.0, %v5831
      %v5833 = vpop.f32.mrb[0].mxu0
      %v5834 = vpop.f32.mrb[0].mxu0
      %v5835 = vadd.f32 0.0, %v5834
      %v5836 = vpop.f32.mrb[0].mxu0
      %5837 = vmatprep.mubr.bf16.mxu0 0
      %5838 = vmatmul.mubr.bf16.gmra.mrb[0].mxu0 %v5484
      %v5839 = vpop.f32.mrb[0].mxu0
      %v5840 = vadd.f32 0.0, %v5839
      %v5841 = vpop.f32.mrb[0].mxu0
      %v5842 = vpop.f32.mrb[0].mxu0
      %v5843 = vadd.f32 0.0, %v5842
      %v5844 = vpop.f32.mrb[0].mxu0
      %5845 = vmatprep.mubr.bf16.mxu0 0
      %5846 = vmatmul.mubr.bf16.gmra.mrb[0].mxu0 %v5487
      %v5847 = vpop.f32.mrb[0].mxu0
      %v5848 = vadd.f32 0.0, %v5847
      %v5849 = vpop.f32.mrb[0].mxu0
      %v5850 = vpop.f32.mrb[0].mxu0
      %v5851 = vadd.f32 0.0, %v5850
      %v5852 = vpop.f32.mrb[0].mxu0
      %5853 = vmatprep.mubr.bf16.mxu0 0
      %5854 = vmatmul.mubr.bf16.gmra.mrb[0].mxu0 %v5490
      %v5855 = vpop.f32.mrb[0].mxu0
      %v5856 = vadd.f32 0.0, %v5855
      %v5857 = vpop.f32.mrb[0].mxu0
      %v5858 = vpop.f32.mrb[0].mxu0
      %v5859 = vadd.f32 0.0, %v5858
      %v5860 = vpop.f32.mrb[0].mxu0
      %5861 = vmatprep.mubr.bf16.mxu0 0
      %5862 = vmatmul.mubr.bf16.gmra.mrb[0].mxu0 %v5704
      %v5863 = vpop.f32.mrb[0].mxu0
      %v5864 = vadd.f32 0.0, %v5863
      %v5865 = vpop.f32.mrb[0].mxu0
      %v5866 = vpop.f32.mrb[0].mxu0
      %v5867 = vadd.f32 0.0, %v5866
      %v5868 = vpop.f32.mrb[0].mxu0
      %5869 = vdwg.mxu0
      %v5870 = vadd.f32 %v5656, %v5744
      %v5871 = vadd.f32 %v5657, %v5747
      %v5872 = vadd.f32 %v5658, %v5752
      %v5873 = vadd.f32 %v5659, %v5755
      %v5874 = vadd.f32 %v5660, %v5760
      %v5875 = vadd.f32 %v5661, %v5763
      %v5876 = vadd.f32 %v5662, %v5768
      %v5877 = vadd.f32 %v5663, %v5771
      %v5878 = vadd.f32 %v5664, %v5776
      %v5879 = vadd.f32 %v5665, %v5779
      %v5880 = vadd.f32 %v5666, %v5784
      %v5881 = vadd.f32 %v5667, %v5787
      %v5882 = vadd.f32 %v5668, %v5792
      %v5883 = vadd.f32 %v5669, %v5795
      %v5884 = vadd.f32 %v5670, %v5800
      %v5885 = vadd.f32 %v5671, %v5803
      %v5886 = vadd.f32 %v5672, %v5808
      %v5887 = vadd.f32 %v5673, %v5811
      %v5888 = vadd.f32 %v5674, %v5816
      %v5889 = vadd.f32 %v5675, %v5819
      %v5890 = vadd.f32 %v5676, %v5824
      %v5891 = vadd.f32 %v5677, %v5827
      %v5892 = vadd.f32 %v5678, %v5832
      %v5893 = vadd.f32 %v5679, %v5835
      %v5894 = vadd.f32 %v5680, %v5840
      %v5895 = vadd.f32 %v5681, %v5843
      %v5896 = vadd.f32 %v5682, %v5848
      %v5897 = vadd.f32 %v5683, %v5851
      %v5898 = vadd.f32 %v5684, %v5856
      %v5899 = vadd.f32 %v5685, %v5859
      %v5900 = vadd.f32 %v5686, %v5864
      %v5901 = vadd.f32 %v5687, %v5867
      %v5905 = vrot.slane %v5233, 5
      %v5906 = vrot.slane %v5905, 4
      %v5907 = vrot.slane %v4145, 5
      %v5908 = vsel %vm1778, %v5906, %v5907
      %v5909 = vrot.slane %v5907, 4
      %v5910 = vrot.slane %v4146, 5
      %v5911 = vsel %vm1778, %v5909, %v5910
      %s5912 = scalar_lea.vmem %s3, 14
      %v5913 = vld [vmem:[%s5912] sm:$0x3]
      %v5914 = vunpack.c.l.b16 %v5908
      %v5915 = vunpack.c.l.b16 %v5911
      %v5916 = vpack.c.b16 %v5915, %v5914
      %v5918 = vsel %vm1098, %v5916, 0
      %v5921 = vsel %vm1147, %v5913, 0
      %5923 = vmatprep.subr.bf16.mxu0 0
      %5924 = vmatpush1.bf16.msra.mxu0 %v5921
      %5925 = vmatprep.subr.bf16.mxu0 0
      %5926 = vmatpush1.bf16.msra.mxu0 0
      %5927 = vmatprep.subr.bf16.mxu0 0
      %5928 = vmatpush1.bf16.msra.mxu0 0
      %5929 = vmatprep.subr.bf16.mxu0 0
      %5930 = vmatpush1.bf16.msra.mxu0 0
      %5931 = vmatprep.subr.bf16.mxu0 0
      %5932 = vmatpush1.bf16.msra.mxu0 0
      %5933 = vmatprep.subr.bf16.mxu0 0
      %5934 = vmatpush1.bf16.msra.mxu0 0
      %5935 = vmatprep.subr.bf16.mxu0 0
      %5936 = vmatpush1.bf16.msra.mxu0 0
      %5937 = vmatprep.subr.bf16.mxu0 0
      %5938 = vmatpush1.bf16.msra.mxu0 0
      %5939 = vmatprep.subr.bf16.mxu0 0
      %5940 = vmatpush1.bf16.msra.mxu0 0
      %5941 = vmatprep.subr.bf16.mxu0 0
      %5942 = vmatpush1.bf16.msra.mxu0 0
      %5943 = vmatprep.subr.bf16.mxu0 0
      %5944 = vmatpush1.bf16.msra.mxu0 0
      %5945 = vmatprep.subr.bf16.mxu0 0
      %5946 = vmatpush1.bf16.msra.mxu0 0
      %5947 = vmatprep.subr.bf16.mxu0 0
      %5948 = vmatpush1.bf16.msra.mxu0 0
      %5949 = vmatprep.subr.bf16.mxu0 0
      %5950 = vmatpush1.bf16.msra.mxu0 0
      %5951 = vmatprep.subr.bf16.mxu0 0
      %5952 = vmatpush1.bf16.msra.mxu0 0
      %5953 = vmatprep.subr.bf16.mxu0 0
      %5954 = vmatpush1.bf16.msra.mxu0 0
      %5955 = vmatprep.mubr.bf16.mxu0 0
      %5956 = vmatmul.mubr.bf16.gmra.mrb[0].mxu0 %v5451
      %v5957 = vpop.f32.mrb[0].mxu0
      %v5958 = vadd.f32 0.0, %v5957
      %v5959 = vpop.f32.mrb[0].mxu0
      %v5960 = vpop.f32.mrb[0].mxu0
      %v5961 = vadd.f32 0.0, %v5960
      %v5962 = vpop.f32.mrb[0].mxu0
      %5963 = vmatprep.mubr.bf16.mxu0 0
      %5964 = vmatmul.mubr.bf16.gmra.mrb[0].mxu0 %v5454
      %v5965 = vpop.f32.mrb[0].mxu0
      %v5966 = vadd.f32 0.0, %v5965
      %v5967 = vpop.f32.mrb[0].mxu0
      %v5968 = vpop.f32.mrb[0].mxu0
      %v5969 = vadd.f32 0.0, %v5968
      %v5970 = vpop.f32.mrb[0].mxu0
      %5971 = vmatprep.mubr.bf16.mxu0 0
      %5972 = vmatmul.mubr.bf16.gmra.mrb[0].mxu0 %v5457
      %v5973 = vpop.f32.mrb[0].mxu0
      %v5974 = vadd.f32 0.0, %v5973
      %v5975 = vpop.f32.mrb[0].mxu0
      %v5976 = vpop.f32.mrb[0].mxu0
      %v5977 = vadd.f32 0.0, %v5976
      %v5978 = vpop.f32.mrb[0].mxu0
      %5979 = vmatprep.mubr.bf16.mxu0 0
      %5980 = vmatmul.mubr.bf16.gmra.mrb[0].mxu0 %v5460
      %v5981 = vpop.f32.mrb[0].mxu0
      %v5982 = vadd.f32 0.0, %v5981
      %v5983 = vpop.f32.mrb[0].mxu0
      %v5984 = vpop.f32.mrb[0].mxu0
      %v5985 = vadd.f32 0.0, %v5984
      %v5986 = vpop.f32.mrb[0].mxu0
      %5987 = vmatprep.mubr.bf16.mxu0 0
      %5988 = vmatmul.mubr.bf16.gmra.mrb[0].mxu0 %v5463
      %v5989 = vpop.f32.mrb[0].mxu0
      %v5990 = vadd.f32 0.0, %v5989
      %v5991 = vpop.f32.mrb[0].mxu0
      %v5992 = vpop.f32.mrb[0].mxu0
      %v5993 = vadd.f32 0.0, %v5992
      %v5994 = vpop.f32.mrb[0].mxu0
      %5995 = vmatprep.mubr.bf16.mxu0 0
      %5996 = vmatmul.mubr.bf16.gmra.mrb[0].mxu0 %v5466
      %v5997 = vpop.f32.mrb[0].mxu0
      %v5998 = vadd.f32 0.0, %v5997
      %v5999 = vpop.f32.mrb[0].mxu0
      %v6000 = vpop.f32.mrb[0].mxu0
      %v6001 = vadd.f32 0.0, %v6000
      %v6002 = vpop.f32.mrb[0].mxu0
      %6003 = vmatprep.mubr.bf16.mxu0 0
      %6004 = vmatmul.mubr.bf16.gmra.mrb[0].mxu0 %v5469
      %v6005 = vpop.f32.mrb[0].mxu0
      %v6006 = vadd.f32 0.0, %v6005
      %v6007 = vpop.f32.mrb[0].mxu0
      %v6008 = vpop.f32.mrb[0].mxu0
      %v6009 = vadd.f32 0.0, %v6008
      %v6010 = vpop.f32.mrb[0].mxu0
      %6011 = vmatprep.mubr.bf16.mxu0 0
      %6012 = vmatmul.mubr.bf16.gmra.mrb[0].mxu0 %v5472
      %v6013 = vpop.f32.mrb[0].mxu0
      %v6014 = vadd.f32 0.0, %v6013
      %v6015 = vpop.f32.mrb[0].mxu0
      %v6016 = vpop.f32.mrb[0].mxu0
      %v6017 = vadd.f32 0.0, %v6016
      %v6018 = vpop.f32.mrb[0].mxu0
      %6019 = vmatprep.mubr.bf16.mxu0 0
      %6020 = vmatmul.mubr.bf16.gmra.mrb[0].mxu0 %v5475
      %v6021 = vpop.f32.mrb[0].mxu0
      %v6022 = vadd.f32 0.0, %v6021
      %v6023 = vpop.f32.mrb[0].mxu0
      %v6024 = vpop.f32.mrb[0].mxu0
      %v6025 = vadd.f32 0.0, %v6024
      %v6026 = vpop.f32.mrb[0].mxu0
      %6027 = vmatprep.mubr.bf16.mxu0 0
      %6028 = vmatmul.mubr.bf16.gmra.mrb[0].mxu0 %v5478
      %v6029 = vpop.f32.mrb[0].mxu0
      %v6030 = vadd.f32 0.0, %v6029
      %v6031 = vpop.f32.mrb[0].mxu0
      %v6032 = vpop.f32.mrb[0].mxu0
      %v6033 = vadd.f32 0.0, %v6032
      %v6034 = vpop.f32.mrb[0].mxu0
      %6035 = vmatprep.mubr.bf16.mxu0 0
      %6036 = vmatmul.mubr.bf16.gmra.mrb[0].mxu0 %v5481
      %v6037 = vpop.f32.mrb[0].mxu0
      %v6038 = vadd.f32 0.0, %v6037
      %v6039 = vpop.f32.mrb[0].mxu0
      %v6040 = vpop.f32.mrb[0].mxu0
      %v6041 = vadd.f32 0.0, %v6040
      %v6042 = vpop.f32.mrb[0].mxu0
      %6043 = vmatprep.mubr.bf16.mxu0 0
      %6044 = vmatmul.mubr.bf16.gmra.mrb[0].mxu0 %v5484
      %v6045 = vpop.f32.mrb[0].mxu0
      %v6046 = vadd.f32 0.0, %v6045
      %v6047 = vpop.f32.mrb[0].mxu0
      %v6048 = vpop.f32.mrb[0].mxu0
      %v6049 = vadd.f32 0.0, %v6048
      %v6050 = vpop.f32.mrb[0].mxu0
      %6051 = vmatprep.mubr.bf16.mxu0 0
      %6052 = vmatmul.mubr.bf16.gmra.mrb[0].mxu0 %v5487
      %v6053 = vpop.f32.mrb[0].mxu0
      %v6054 = vadd.f32 0.0, %v6053
      %v6055 = vpop.f32.mrb[0].mxu0
      %v6056 = vpop.f32.mrb[0].mxu0
      %v6057 = vadd.f32 0.0, %v6056
      %v6058 = vpop.f32.mrb[0].mxu0
      %6059 = vmatprep.mubr.bf16.mxu0 0
      %6060 = vmatmul.mubr.bf16.gmra.mrb[0].mxu0 %v5490
      %v6061 = vpop.f32.mrb[0].mxu0
      %v6062 = vadd.f32 0.0, %v6061
      %v6063 = vpop.f32.mrb[0].mxu0
      %v6064 = vpop.f32.mrb[0].mxu0
      %v6065 = vadd.f32 0.0, %v6064
      %v6066 = vpop.f32.mrb[0].mxu0
      %6067 = vmatprep.mubr.bf16.mxu0 0
      %6068 = vmatmul.mubr.bf16.gmra.mrb[0].mxu0 %v5704
      %v6069 = vpop.f32.mrb[0].mxu0
      %v6070 = vadd.f32 0.0, %v6069
      %v6071 = vpop.f32.mrb[0].mxu0
      %v6072 = vpop.f32.mrb[0].mxu0
      %v6073 = vadd.f32 0.0, %v6072
      %v6074 = vpop.f32.mrb[0].mxu0
      %6075 = vmatprep.mubr.bf16.mxu0 0
      %6076 = vmatmul.mubr.bf16.gmra.mrb[0].mxu0 %v5918
      %v6077 = vpop.f32.mrb[0].mxu0
      %v6078 = vadd.f32 0.0, %v6077
      %v6079 = vpop.f32.mrb[0].mxu0
      %v6080 = vpop.f32.mrb[0].mxu0
      %v6081 = vadd.f32 0.0, %v6080
      %v6082 = vpop.f32.mrb[0].mxu0
      %6083 = vdwg.mxu0
      %v6084 = vadd.f32 %v5870, %v5958
      %v6085 = vadd.f32 %v5871, %v5961
      %v6086 = vadd.f32 %v5872, %v5966
      %v6087 = vadd.f32 %v5873, %v5969
      %v6088 = vadd.f32 %v5874, %v5974
      %v6089 = vadd.f32 %v5875, %v5977
      %v6090 = vadd.f32 %v5876, %v5982
      %v6091 = vadd.f32 %v5877, %v5985
      %v6092 = vadd.f32 %v5878, %v5990
      %v6093 = vadd.f32 %v5879, %v5993
      %v6094 = vadd.f32 %v5880, %v5998
      %v6095 = vadd.f32 %v5881, %v6001
      %v6096 = vadd.f32 %v5882, %v6006
      %v6097 = vadd.f32 %v5883, %v6009
      %v6098 = vadd.f32 %v5884, %v6014
      %v6099 = vadd.f32 %v5885, %v6017
      %v6100 = vadd.f32 %v5886, %v6022
      %v6101 = vadd.f32 %v5887, %v6025
      %v6102 = vadd.f32 %v5888, %v6030
      %v6103 = vadd.f32 %v5889, %v6033
      %v6104 = vadd.f32 %v5890, %v6038
      %v6105 = vadd.f32 %v5891, %v6041
      %v6106 = vadd.f32 %v5892, %v6046
      %v6107 = vadd.f32 %v5893, %v6049
      %v6108 = vadd.f32 %v5894, %v6054
      %v6109 = vadd.f32 %v5895, %v6057
      %v6110 = vadd.f32 %v5896, %v6062
      %v6111 = vadd.f32 %v5897, %v6065
      %v6112 = vadd.f32 %v5898, %v6070
      %v6113 = vadd.f32 %v5899, %v6073
      %v6114 = vadd.f32 %v5900, %v6078
      %v6115 = vadd.f32 %v5901, %v6081
      %v6116 = vld [vmem:[#allocation2 + $0x8] sm:$0x3]
      %v6117 = vld [vmem:[#allocation2 + $0x14] sm:$0x3]
      %v6118 = vld [vmem:[#allocation2 + $0x20] sm:$0x3]
      %v6119 = vld [vmem:[#allocation2 + $0x2c] sm:$0x3]
      %v6120 = vld [vmem:[#allocation2 + $0x38] sm:$0x3]
      %v6121 = vld [vmem:[#allocation2 + $0x44] sm:$0x3]
      %v6122 = vld [vmem:[#allocation2 + $0x50] sm:$0x3]
      %v6123 = vld [vmem:[#allocation2 + $0x5c] sm:$0x3]
      %v6124 = vld [vmem:[#allocation2 + $0x68] sm:$0x3]
      %v6125 = vld [vmem:[#allocation2 + $0x74] sm:$0x3]
      %v6126 = vld [vmem:[#allocation2 + $0x80] sm:$0x3]
      %v6127 = vld [vmem:[#allocation2 + $0x8c] sm:$0x3]
      %v6128 = vld [vmem:[#allocation2 + $0x98] sm:$0x3]
      %v6129 = vld [vmem:[#allocation2 + $0xa4] sm:$0x3]
      %v6130 = vld [vmem:[#allocation2 + $0xb0] sm:$0x3]
      %v6131 = vld [vmem:[#allocation2 + $0xbc] sm:$0x3]
      %v6132 = vld [vmem:[#allocation2 + $0xc8] sm:$0x3]
      %v6133 = vld [vmem:[#allocation2 + $0xd4] sm:$0x3]
      %v6135 = vshrl.u32 %v5216, 16
      %v6137 = vrot.slane %v6135, 5
      %v6138 = vshll.u32 %v5216, 16
      %v6140 = vrot.slane %v6138, 6
      %v6141 = vor.u32 %v6137, %v6140
      %v6142 = vrot.slane %v6141, 4
      %v6143 = vrot.slane %v4161, 5
      %v6144 = vrot.slane %v4157, 6
      %v6145 = vor.u32 %v6143, %v6144
      %v6146 = vsel %vm2633, %v6142, %v6145
      %v6147 = vrot.slane %v6145, 4
      %v6149 = vshrl.u32 %v6116, 16
      %v6151 = vrot.slane %v6149, 5
      %v6152 = vshll.u32 %v6116, 16
      %v6154 = vrot.slane %v6152, 6
      %v6155 = vor.u32 %v6151, %v6154
      %v6156 = vsel %vm2633, %v6147, %v6155
      %v6158 = vshrl.u32 %v5217, 16
      %v6160 = vrot.slane %v6158, 5
      %v6161 = vshll.u32 %v5217, 16
      %v6163 = vrot.slane %v6161, 6
      %v6164 = vor.u32 %v6160, %v6163
      %v6165 = vrot.slane %v6164, 4
      %v6166 = vrot.slane %v4185, 5
      %v6167 = vrot.slane %v4181, 6
      %v6168 = vor.u32 %v6166, %v6167
      %v6169 = vsel %vm2633, %v6165, %v6168
      %v6170 = vrot.slane %v6168, 4
      %v6172 = vshrl.u32 %v6117, 16
      %v6174 = vrot.slane %v6172, 5
      %v6175 = vshll.u32 %v6117, 16
      %v6177 = vrot.slane %v6175, 6
      %v6178 = vor.u32 %v6174, %v6177
      %v6179 = vsel %vm2633, %v6170, %v6178
      %v6181 = vshrl.u32 %v5218, 16
      %v6183 = vrot.slane %v6181, 5
      %v6184 = vshll.u32 %v5218, 16
      %v6186 = vrot.slane %v6184, 6
      %v6187 = vor.u32 %v6183, %v6186
      %v6188 = vrot.slane %v6187, 4
      %v6189 = vrot.slane %v4209, 5
      %v6190 = vrot.slane %v4205, 6
      %v6191 = vor.u32 %v6189, %v6190
      %v6192 = vsel %vm2633, %v6188, %v6191
      %v6193 = vrot.slane %v6191, 4
      %v6195 = vshrl.u32 %v6118, 16
      %v6197 = vrot.slane %v6195, 5
      %v6198 = vshll.u32 %v6118, 16
      %v6200 = vrot.slane %v6198, 6
      %v6201 = vor.u32 %v6197, %v6200
      %v6202 = vsel %vm2633, %v6193, %v6201
      %v6204 = vshrl.u32 %v5219, 16
      %v6206 = vrot.slane %v6204, 5
      %v6207 = vshll.u32 %v5219, 16
      %v6209 = vrot.slane %v6207, 6
      %v6210 = vor.u32 %v6206, %v6209
      %v6211 = vrot.slane %v6210, 4
      %v6212 = vrot.slane %v4233, 5
      %v6213 = vrot.slane %v4229, 6
      %v6214 = vor.u32 %v6212, %v6213
      %v6215 = vsel %vm2633, %v6211, %v6214
      %v6216 = vrot.slane %v6214, 4
      %v6218 = vshrl.u32 %v6119, 16
      %v6220 = vrot.slane %v6218, 5
      %v6221 = vshll.u32 %v6119, 16
      %v6223 = vrot.slane %v6221, 6
      %v6224 = vor.u32 %v6220, %v6223
      %v6225 = vsel %vm2633, %v6216, %v6224
      %v6227 = vshrl.u32 %v5220, 16
      %v6229 = vrot.slane %v6227, 5
      %v6230 = vshll.u32 %v5220, 16
      %v6232 = vrot.slane %v6230, 6
      %v6233 = vor.u32 %v6229, %v6232
      %v6234 = vrot.slane %v6233, 4
      %v6235 = vrot.slane %v4257, 5
      %v6236 = vrot.slane %v4253, 6
      %v6237 = vor.u32 %v6235, %v6236
      %v6238 = vsel %vm2633, %v6234, %v6237
      %v6239 = vrot.slane %v6237, 4
      %v6241 = vshrl.u32 %v6120, 16
      %v6243 = vrot.slane %v6241, 5
      %v6244 = vshll.u32 %v6120, 16
      %v6246 = vrot.slane %v6244, 6
      %v6247 = vor.u32 %v6243, %v6246
      %v6248 = vsel %vm2633, %v6239, %v6247
      %v6250 = vshrl.u32 %v5221, 16
      %v6252 = vrot.slane %v6250, 5
      %v6253 = vshll.u32 %v5221, 16
      %v6255 = vrot.slane %v6253, 6
      %v6256 = vor.u32 %v6252, %v6255
      %v6257 = vrot.slane %v6256, 4
      %v6258 = vrot.slane %v4281, 5
      %v6259 = vrot.slane %v4277, 6
      %v6260 = vor.u32 %v6258, %v6259
      %v6261 = vsel %vm2633, %v6257, %v6260
      %v6262 = vrot.slane %v6260, 4
      %v6264 = vshrl.u32 %v6121, 16
      %v6266 = vrot.slane %v6264, 5
      %v6267 = vshll.u32 %v6121, 16
      %v6269 = vrot.slane %v6267, 6
      %v6270 = vor.u32 %v6266, %v6269
      %v6271 = vsel %vm2633, %v6262, %v6270
      %v6273 = vshrl.u32 %v5222, 16
      %v6275 = vrot.slane %v6273, 5
      %v6276 = vshll.u32 %v5222, 16
      %v6278 = vrot.slane %v6276, 6
      %v6279 = vor.u32 %v6275, %v6278
      %v6280 = vrot.slane %v6279, 4
      %v6281 = vrot.slane %v4305, 5
      %v6282 = vrot.slane %v4301, 6
      %v6283 = vor.u32 %v6281, %v6282
      %v6284 = vsel %vm2633, %v6280, %v6283
      %v6285 = vrot.slane %v6283, 4
      %v6287 = vshrl.u32 %v6122, 16
      %v6289 = vrot.slane %v6287, 5
      %v6290 = vshll.u32 %v6122, 16
      %v6292 = vrot.slane %v6290, 6
      %v6293 = vor.u32 %v6289, %v6292
      %v6294 = vsel %vm2633, %v6285, %v6293
      %v6296 = vshrl.u32 %v5223, 16
      %v6298 = vrot.slane %v6296, 5
      %v6299 = vshll.u32 %v5223, 16
      %v6301 = vrot.slane %v6299, 6
      %v6302 = vor.u32 %v6298, %v6301
      %v6303 = vrot.slane %v6302, 4
      %v6304 = vrot.slane %v4329, 5
      %v6305 = vrot.slane %v4325, 6
      %v6306 = vor.u32 %v6304, %v6305
      %v6307 = vsel %vm2633, %v6303, %v6306
      %v6308 = vrot.slane %v6306, 4
      %v6310 = vshrl.u32 %v6123, 16
      %v6312 = vrot.slane %v6310, 5
      %v6313 = vshll.u32 %v6123, 16
      %v6315 = vrot.slane %v6313, 6
      %v6316 = vor.u32 %v6312, %v6315
      %v6317 = vsel %vm2633, %v6308, %v6316
      %v6319 = vshrl.u32 %v5224, 16
      %v6321 = vrot.slane %v6319, 5
      %v6322 = vshll.u32 %v5224, 16
      %v6324 = vrot.slane %v6322, 6
      %v6325 = vor.u32 %v6321, %v6324
      %v6326 = vrot.slane %v6325, 4
      %v6327 = vrot.slane %v4353, 5
      %v6328 = vrot.slane %v4349, 6
      %v6329 = vor.u32 %v6327, %v6328
      %v6330 = vsel %vm2633, %v6326, %v6329
      %v6331 = vrot.slane %v6329, 4
      %v6333 = vshrl.u32 %v6124, 16
      %v6335 = vrot.slane %v6333, 5
      %v6336 = vshll.u32 %v6124, 16
      %v6338 = vrot.slane %v6336, 6
      %v6339 = vor.u32 %v6335, %v6338
      %v6340 = vsel %vm2633, %v6331, %v6339
      %v6342 = vshrl.u32 %v5225, 16
      %v6344 = vrot.slane %v6342, 5
      %v6345 = vshll.u32 %v5225, 16
      %v6347 = vrot.slane %v6345, 6
      %v6348 = vor.u32 %v6344, %v6347
      %v6349 = vrot.slane %v6348, 4
      %v6350 = vrot.slane %v4377, 5
      %v6351 = vrot.slane %v4373, 6
      %v6352 = vor.u32 %v6350, %v6351
      %v6353 = vsel %vm2633, %v6349, %v6352
      %v6354 = vrot.slane %v6352, 4
      %v6356 = vshrl.u32 %v6125, 16
      %v6358 = vrot.slane %v6356, 5
      %v6359 = vshll.u32 %v6125, 16
      %v6361 = vrot.slane %v6359, 6
      %v6362 = vor.u32 %v6358, %v6361
      %v6363 = vsel %vm2633, %v6354, %v6362
      %v6365 = vshrl.u32 %v5226, 16
      %v6367 = vrot.slane %v6365, 5
      %v6368 = vshll.u32 %v5226, 16
      %v6370 = vrot.slane %v6368, 6
      %v6371 = vor.u32 %v6367, %v6370
      %v6372 = vrot.slane %v6371, 4
      %v6373 = vrot.slane %v4401, 5
      %v6374 = vrot.slane %v4397, 6
      %v6375 = vor.u32 %v6373, %v6374
      %v6376 = vsel %vm2633, %v6372, %v6375
      %v6377 = vrot.slane %v6375, 4
      %v6379 = vshrl.u32 %v6126, 16
      %v6381 = vrot.slane %v6379, 5
      %v6382 = vshll.u32 %v6126, 16
      %v6384 = vrot.slane %v6382, 6
      %v6385 = vor.u32 %v6381, %v6384
      %v6386 = vsel %vm2633, %v6377, %v6385
      %v6388 = vshrl.u32 %v5227, 16
      %v6390 = vrot.slane %v6388, 5
      %v6391 = vshll.u32 %v5227, 16
      %v6393 = vrot.slane %v6391, 6
      %v6394 = vor.u32 %v6390, %v6393
      %v6395 = vrot.slane %v6394, 4
      %v6396 = vrot.slane %v4425, 5
      %v6397 = vrot.slane %v4421, 6
      %v6398 = vor.u32 %v6396, %v6397
      %v6399 = vsel %vm2633, %v6395, %v6398
      %v6400 = vrot.slane %v6398, 4
      %v6402 = vshrl.u32 %v6127, 16
      %v6404 = vrot.slane %v6402, 5
      %v6405 = vshll.u32 %v6127, 16
      %v6407 = vrot.slane %v6405, 6
      %v6408 = vor.u32 %v6404, %v6407
      %v6409 = vsel %vm2633, %v6400, %v6408
      %v6411 = vshrl.u32 %v5228, 16
      %v6413 = vrot.slane %v6411, 5
      %v6414 = vshll.u32 %v5228, 16
      %v6416 = vrot.slane %v6414, 6
      %v6417 = vor.u32 %v6413, %v6416
      %v6418 = vrot.slane %v6417, 4
      %v6419 = vrot.slane %v4449, 5
      %v6420 = vrot.slane %v4445, 6
      %v6421 = vor.u32 %v6419, %v6420
      %v6422 = vsel %vm2633, %v6418, %v6421
      %v6423 = vrot.slane %v6421, 4
      %v6425 = vshrl.u32 %v6128, 16
      %v6427 = vrot.slane %v6425, 5
      %v6428 = vshll.u32 %v6128, 16
      %v6430 = vrot.slane %v6428, 6
      %v6431 = vor.u32 %v6427, %v6430
      %v6432 = vsel %vm2633, %v6423, %v6431
      %v6434 = vshrl.u32 %v5229, 16
      %v6436 = vrot.slane %v6434, 5
      %v6437 = vshll.u32 %v5229, 16
      %v6439 = vrot.slane %v6437, 6
      %v6440 = vor.u32 %v6436, %v6439
      %v6441 = vrot.slane %v6440, 4
      %v6442 = vrot.slane %v4473, 5
      %v6443 = vrot.slane %v4469, 6
      %v6444 = vor.u32 %v6442, %v6443
      %v6445 = vsel %vm2633, %v6441, %v6444
      %v6446 = vrot.slane %v6444, 4
      %v6448 = vshrl.u32 %v6129, 16
      %v6450 = vrot.slane %v6448, 5
      %v6451 = vshll.u32 %v6129, 16
      %v6453 = vrot.slane %v6451, 6
      %v6454 = vor.u32 %v6450, %v6453
      %v6455 = vsel %vm2633, %v6446, %v6454
      %v6457 = vshrl.u32 %v5230, 16
      %v6459 = vrot.slane %v6457, 5
      %v6460 = vshll.u32 %v5230, 16
      %v6462 = vrot.slane %v6460, 6
      %v6463 = vor.u32 %v6459, %v6462
      %v6464 = vrot.slane %v6463, 4
      %v6465 = vrot.slane %v4497, 5
      %v6466 = vrot.slane %v4493, 6
      %v6467 = vor.u32 %v6465, %v6466
      %v6468 = vsel %vm2633, %v6464, %v6467
      %v6469 = vrot.slane %v6467, 4
      %v6471 = vshrl.u32 %v6130, 16
      %v6473 = vrot.slane %v6471, 5
      %v6474 = vshll.u32 %v6130, 16
      %v6476 = vrot.slane %v6474, 6
      %v6477 = vor.u32 %v6473, %v6476
      %v6478 = vsel %vm2633, %v6469, %v6477
      %v6480 = vshrl.u32 %v5231, 16
      %v6482 = vrot.slane %v6480, 5
      %v6483 = vshll.u32 %v5231, 16
      %v6485 = vrot.slane %v6483, 6
      %v6486 = vor.u32 %v6482, %v6485
      %v6487 = vrot.slane %v6486, 4
      %v6488 = vrot.slane %v4521, 5
      %v6489 = vrot.slane %v4517, 6
      %v6490 = vor.u32 %v6488, %v6489
      %v6491 = vsel %vm2633, %v6487, %v6490
      %v6492 = vrot.slane %v6490, 4
      %v6494 = vshrl.u32 %v6131, 16
      %v6496 = vrot.slane %v6494, 5
      %v6497 = vshll.u32 %v6131, 16
      %v6499 = vrot.slane %v6497, 6
      %v6500 = vor.u32 %v6496, %v6499
      %v6501 = vsel %vm2633, %v6492, %v6500
      %s6502 = scalar_lea.vmem %s3, 4
      %v6503 = vld [vmem:[%s6502] sm:$0x3]
      %v6504 = vunpack.c.l.b16 %v6146
      %v6505 = vunpack.c.l.b16 %v6156
      %v6506 = vunpack.c.l.b16 %v6169
      %v6507 = vunpack.c.l.b16 %v6179
      %v6508 = vunpack.c.l.b16 %v6192
      %v6509 = vunpack.c.l.b16 %v6202
      %v6510 = vunpack.c.l.b16 %v6215
      %v6511 = vunpack.c.l.b16 %v6225
      %v6512 = vunpack.c.l.b16 %v6238
      %v6513 = vunpack.c.l.b16 %v6248
      %v6514 = vunpack.c.l.b16 %v6261
      %v6515 = vunpack.c.l.b16 %v6271
      %v6516 = vunpack.c.l.b16 %v6284
      %v6517 = vunpack.c.l.b16 %v6294
      %v6518 = vunpack.c.l.b16 %v6307
      %v6519 = vunpack.c.l.b16 %v6317
      %v6520 = vunpack.c.l.b16 %v6330
      %v6521 = vunpack.c.l.b16 %v6340
      %v6522 = vunpack.c.l.b16 %v6353
      %v6523 = vunpack.c.l.b16 %v6363
      %v6524 = vunpack.c.l.b16 %v6376
      %v6525 = vunpack.c.l.b16 %v6386
      %v6526 = vunpack.c.l.b16 %v6399
      %v6527 = vunpack.c.l.b16 %v6409
      %v6528 = vunpack.c.l.b16 %v6422
      %v6529 = vunpack.c.l.b16 %v6432
      %v6530 = vunpack.c.l.b16 %v6445
      %v6531 = vunpack.c.l.b16 %v6455
      %v6532 = vunpack.c.l.b16 %v6468
      %v6533 = vunpack.c.l.b16 %v6478
      %v6534 = vunpack.c.l.b16 %v6491
      %v6535 = vunpack.c.l.b16 %v6501
      %v6536 = vpack.c.b16 %v6505, %v6504
      %v6537 = vpack.c.b16 %v6507, %v6506
      %v6538 = vpack.c.b16 %v6509, %v6508
      %v6539 = vpack.c.b16 %v6511, %v6510
      %v6540 = vpack.c.b16 %v6513, %v6512
      %v6541 = vpack.c.b16 %v6515, %v6514
      %v6542 = vpack.c.b16 %v6517, %v6516
      %v6543 = vpack.c.b16 %v6519, %v6518
      %v6544 = vpack.c.b16 %v6521, %v6520
      %v6545 = vpack.c.b16 %v6523, %v6522
      %v6546 = vpack.c.b16 %v6525, %v6524
      %v6547 = vpack.c.b16 %v6527, %v6526
      %v6548 = vpack.c.b16 %v6529, %v6528
      %v6549 = vpack.c.b16 %v6531, %v6530
      %v6550 = vpack.c.b16 %v6533, %v6532
      %v6551 = vpack.c.b16 %v6535, %v6534
      %v6553 = vsel %vm1098, %v6536, 0
      %v6556 = vsel %vm1098, %v6537, 0
      %v6559 = vsel %vm1098, %v6538, 0
      %v6562 = vsel %vm1098, %v6539, 0
      %v6565 = vsel %vm1098, %v6540, 0
      %v6568 = vsel %vm1098, %v6541, 0
      %v6571 = vsel %vm1098, %v6542, 0
      %v6574 = vsel %vm1098, %v6543, 0
      %v6577 = vsel %vm1098, %v6544, 0
      %v6580 = vsel %vm1098, %v6545, 0
      %v6583 = vsel %vm1098, %v6546, 0
      %v6586 = vsel %vm1098, %v6547, 0
      %v6589 = vsel %vm1098, %v6548, 0
      %v6592 = vsel %vm1098, %v6549, 0
      %v6595 = vsel %vm1098, %v6550, 0
      %v6598 = vsel %vm1098, %v6551, 0
      %v6601 = vsel %vm1147, %v6503, 0
      %6603 = vmatprep.subr.bf16.mxu0 0
      %6604 = vmatpush1.bf16.msra.mxu0 %v6601
      %6605 = vmatprep.subr.bf16.mxu0 0
      %6606 = vmatpush1.bf16.msra.mxu0 0
      %6607 = vmatprep.subr.bf16.mxu0 0
      %6608 = vmatpush1.bf16.msra.mxu0 0
      %6609 = vmatprep.subr.bf16.mxu0 0
      %6610 = vmatpush1.bf16.msra.mxu0 0
      %6611 = vmatprep.subr.bf16.mxu0 0
      %6612 = vmatpush1.bf16.msra.mxu0 0
      %6613 = vmatprep.subr.bf16.mxu0 0
      %6614 = vmatpush1.bf16.msra.mxu0 0
      %6615 = vmatprep.subr.bf16.mxu0 0
      %6616 = vmatpush1.bf16.msra.mxu0 0
      %6617 = vmatprep.subr.bf16.mxu0 0
      %6618 = vmatpush1.bf16.msra.mxu0 0
      %6619 = vmatprep.subr.bf16.mxu0 0
      %6620 = vmatpush1.bf16.msra.mxu0 0
      %6621 = vmatprep.subr.bf16.mxu0 0
      %6622 = vmatpush1.bf16.msra.mxu0 0
      %6623 = vmatprep.subr.bf16.mxu0 0
      %6624 = vmatpush1.bf16.msra.mxu0 0
      %6625 = vmatprep.subr.bf16.mxu0 0
      %6626 = vmatpush1.bf16.msra.mxu0 0
      %6627 = vmatprep.subr.bf16.mxu0 0
      %6628 = vmatpush1.bf16.msra.mxu0 0
      %6629 = vmatprep.subr.bf16.mxu0 0
      %6630 = vmatpush1.bf16.msra.mxu0 0
      %6631 = vmatprep.subr.bf16.mxu0 0
      %6632 = vmatpush1.bf16.msra.mxu0 0
      %6633 = vmatprep.subr.bf16.mxu0 0
      %6634 = vmatpush1.bf16.msra.mxu0 0
      %6635 = vmatprep.mubr.bf16.mxu0 0
      %6636 = vmatmul.mubr.bf16.gmra.mrb[0].mxu0 %v6553
      %v6637 = vpop.f32.mrb[0].mxu0
      %v6638 = vadd.f32 0.0, %v6637
      %v6639 = vpop.f32.mrb[0].mxu0
      %v6640 = vpop.f32.mrb[0].mxu0
      %v6641 = vadd.f32 0.0, %v6640
      %v6642 = vpop.f32.mrb[0].mxu0
      %6643 = vmatprep.mubr.bf16.mxu0 0
      %6644 = vmatmul.mubr.bf16.gmra.mrb[0].mxu0 %v6556
      %v6645 = vpop.f32.mrb[0].mxu0
      %v6646 = vadd.f32 0.0, %v6645
      %v6647 = vpop.f32.mrb[0].mxu0
      %v6648 = vpop.f32.mrb[0].mxu0
      %v6649 = vadd.f32 0.0, %v6648
      %v6650 = vpop.f32.mrb[0].mxu0
      %6651 = vmatprep.mubr.bf16.mxu0 0
      %6652 = vmatmul.mubr.bf16.gmra.mrb[0].mxu0 %v6559
      %v6653 = vpop.f32.mrb[0].mxu0
      %v6654 = vadd.f32 0.0, %v6653
      %v6655 = vpop.f32.mrb[0].mxu0
      %v6656 = vpop.f32.mrb[0].mxu0
      %v6657 = vadd.f32 0.0, %v6656
      %v6658 = vpop.f32.mrb[0].mxu0
      %6659 = vmatprep.mubr.bf16.mxu0 0
      %6660 = vmatmul.mubr.bf16.gmra.mrb[0].mxu0 %v6562
      %v6661 = vpop.f32.mrb[0].mxu0
      %v6662 = vadd.f32 0.0, %v6661
      %v6663 = vpop.f32.mrb[0].mxu0
      %v6664 = vpop.f32.mrb[0].mxu0
      %v6665 = vadd.f32 0.0, %v6664
      %v6666 = vpop.f32.mrb[0].mxu0
      %6667 = vmatprep.mubr.bf16.mxu0 0
      %6668 = vmatmul.mubr.bf16.gmra.mrb[0].mxu0 %v6565
      %v6669 = vpop.f32.mrb[0].mxu0
      %v6670 = vadd.f32 0.0, %v6669
      %v6671 = vpop.f32.mrb[0].mxu0
      %v6672 = vpop.f32.mrb[0].mxu0
      %v6673 = vadd.f32 0.0, %v6672
      %v6674 = vpop.f32.mrb[0].mxu0
      %6675 = vmatprep.mubr.bf16.mxu0 0
      %6676 = vmatmul.mubr.bf16.gmra.mrb[0].mxu0 %v6568
      %v6677 = vpop.f32.mrb[0].mxu0
      %v6678 = vadd.f32 0.0, %v6677
      %v6679 = vpop.f32.mrb[0].mxu0
      %v6680 = vpop.f32.mrb[0].mxu0
      %v6681 = vadd.f32 0.0, %v6680
      %v6682 = vpop.f32.mrb[0].mxu0
      %6683 = vmatprep.mubr.bf16.mxu0 0
      %6684 = vmatmul.mubr.bf16.gmra.mrb[0].mxu0 %v6571
      %v6685 = vpop.f32.mrb[0].mxu0
      %v6686 = vadd.f32 0.0, %v6685
      %v6687 = vpop.f32.mrb[0].mxu0
      %v6688 = vpop.f32.mrb[0].mxu0
      %v6689 = vadd.f32 0.0, %v6688
      %v6690 = vpop.f32.mrb[0].mxu0
      %6691 = vmatprep.mubr.bf16.mxu0 0
      %6692 = vmatmul.mubr.bf16.gmra.mrb[0].mxu0 %v6574
      %v6693 = vpop.f32.mrb[0].mxu0
      %v6694 = vadd.f32 0.0, %v6693
      %v6695 = vpop.f32.mrb[0].mxu0
      %v6696 = vpop.f32.mrb[0].mxu0
      %v6697 = vadd.f32 0.0, %v6696
      %v6698 = vpop.f32.mrb[0].mxu0
      %6699 = vmatprep.mubr.bf16.mxu0 0
      %6700 = vmatmul.mubr.bf16.gmra.mrb[0].mxu0 %v6577
      %v6701 = vpop.f32.mrb[0].mxu0
      %v6702 = vadd.f32 0.0, %v6701
      %v6703 = vpop.f32.mrb[0].mxu0
      %v6704 = vpop.f32.mrb[0].mxu0
      %v6705 = vadd.f32 0.0, %v6704
      %v6706 = vpop.f32.mrb[0].mxu0
      %6707 = vmatprep.mubr.bf16.mxu0 0
      %6708 = vmatmul.mubr.bf16.gmra.mrb[0].mxu0 %v6580
      %v6709 = vpop.f32.mrb[0].mxu0
      %v6710 = vadd.f32 0.0, %v6709
      %v6711 = vpop.f32.mrb[0].mxu0
      %v6712 = vpop.f32.mrb[0].mxu0
      %v6713 = vadd.f32 0.0, %v6712
      %v6714 = vpop.f32.mrb[0].mxu0
      %6715 = vmatprep.mubr.bf16.mxu0 0
      %6716 = vmatmul.mubr.bf16.gmra.mrb[0].mxu0 %v6583
      %v6717 = vpop.f32.mrb[0].mxu0
      %v6718 = vadd.f32 0.0, %v6717
      %v6719 = vpop.f32.mrb[0].mxu0
      %v6720 = vpop.f32.mrb[0].mxu0
      %v6721 = vadd.f32 0.0, %v6720
      %v6722 = vpop.f32.mrb[0].mxu0
      %6723 = vmatprep.mubr.bf16.mxu0 0
      %6724 = vmatmul.mubr.bf16.gmra.mrb[0].mxu0 %v6586
      %v6725 = vpop.f32.mrb[0].mxu0
      %v6726 = vadd.f32 0.0, %v6725
      %v6727 = vpop.f32.mrb[0].mxu0
      %v6728 = vpop.f32.mrb[0].mxu0
      %v6729 = vadd.f32 0.0, %v6728
      %v6730 = vpop.f32.mrb[0].mxu0
      %6731 = vmatprep.mubr.bf16.mxu0 0
      %6732 = vmatmul.mubr.bf16.gmra.mrb[0].mxu0 %v6589
      %v6733 = vpop.f32.mrb[0].mxu0
      %v6734 = vadd.f32 0.0, %v6733
      %v6735 = vpop.f32.mrb[0].mxu0
      %v6736 = vpop.f32.mrb[0].mxu0
      %v6737 = vadd.f32 0.0, %v6736
      %v6738 = vpop.f32.mrb[0].mxu0
      %6739 = vmatprep.mubr.bf16.mxu0 0
      %6740 = vmatmul.mubr.bf16.gmra.mrb[0].mxu0 %v6592
      %v6741 = vpop.f32.mrb[0].mxu0
      %v6742 = vadd.f32 0.0, %v6741
      %v6743 = vpop.f32.mrb[0].mxu0
      %v6744 = vpop.f32.mrb[0].mxu0
      %v6745 = vadd.f32 0.0, %v6744
      %v6746 = vpop.f32.mrb[0].mxu0
      %6747 = vmatprep.mubr.bf16.mxu0 0
      %6748 = vmatmul.mubr.bf16.gmra.mrb[0].mxu0 %v6595
      %v6749 = vpop.f32.mrb[0].mxu0
      %v6750 = vadd.f32 0.0, %v6749
      %v6751 = vpop.f32.mrb[0].mxu0
      %v6752 = vpop.f32.mrb[0].mxu0
      %v6753 = vadd.f32 0.0, %v6752
      %v6754 = vpop.f32.mrb[0].mxu0
      %6755 = vmatprep.mubr.bf16.mxu0 0
      %6756 = vmatmul.mubr.bf16.gmra.mrb[0].mxu0 %v6598
      %v6757 = vpop.f32.mrb[0].mxu0
      %v6758 = vadd.f32 0.0, %v6757
      %v6759 = vpop.f32.mrb[0].mxu0
      %v6760 = vpop.f32.mrb[0].mxu0
      %v6761 = vadd.f32 0.0, %v6760
      %v6762 = vpop.f32.mrb[0].mxu0
      %6763 = vdwg.mxu0
      %v6764 = vadd.f32 %v6084, %v6638
      %v6765 = vadd.f32 %v6085, %v6641
      %v6766 = vadd.f32 %v6086, %v6646
      %v6767 = vadd.f32 %v6087, %v6649
      %v6768 = vadd.f32 %v6088, %v6654
      %v6769 = vadd.f32 %v6089, %v6657
      %v6770 = vadd.f32 %v6090, %v6662
      %v6771 = vadd.f32 %v6091, %v6665
      %v6772 = vadd.f32 %v6092, %v6670
      %v6773 = vadd.f32 %v6093, %v6673
      %v6774 = vadd.f32 %v6094, %v6678
      %v6775 = vadd.f32 %v6095, %v6681
      %v6776 = vadd.f32 %v6096, %v6686
      %v6777 = vadd.f32 %v6097, %v6689
      %v6778 = vadd.f32 %v6098, %v6694
      %v6779 = vadd.f32 %v6099, %v6697
      %v6780 = vadd.f32 %v6100, %v6702
      %v6781 = vadd.f32 %v6101, %v6705
      %v6782 = vadd.f32 %v6102, %v6710
      %v6783 = vadd.f32 %v6103, %v6713
      %v6784 = vadd.f32 %v6104, %v6718
      %v6785 = vadd.f32 %v6105, %v6721
      %v6786 = vadd.f32 %v6106, %v6726
      %v6787 = vadd.f32 %v6107, %v6729
      %v6788 = vadd.f32 %v6108, %v6734
      %v6789 = vadd.f32 %v6109, %v6737
      %v6790 = vadd.f32 %v6110, %v6742
      %v6791 = vadd.f32 %v6111, %v6745
      %v6792 = vadd.f32 %v6112, %v6750
      %v6793 = vadd.f32 %v6113, %v6753
      %v6794 = vadd.f32 %v6114, %v6758
      %v6795 = vadd.f32 %v6115, %v6761
      %v6797 = vshrl.u32 %v5232, 16
      %v6799 = vrot.slane %v6797, 5
      %v6800 = vshll.u32 %v5232, 16
      %v6802 = vrot.slane %v6800, 6
      %v6803 = vor.u32 %v6799, %v6802
      %v6804 = vrot.slane %v6803, 4
      %v6805 = vrot.slane %v4546, 5
      %v6806 = vrot.slane %v4542, 6
      %v6807 = vor.u32 %v6805, %v6806
      %v6808 = vsel %vm2633, %v6804, %v6807
      %v6809 = vrot.slane %v6807, 4
      %v6811 = vshrl.u32 %v6132, 16
      %v6813 = vrot.slane %v6811, 5
      %v6814 = vshll.u32 %v6132, 16
      %v6816 = vrot.slane %v6814, 6
      %v6817 = vor.u32 %v6813, %v6816
      %v6818 = vsel %vm2633, %v6809, %v6817
      %s6819 = scalar_lea.vmem %s3, 10
      %v6820 = vld [vmem:[%s6819] sm:$0x3]
      %v6821 = vunpack.c.l.b16 %v6808
      %v6822 = vunpack.c.l.b16 %v6818
      %v6823 = vpack.c.b16 %v6822, %v6821
      %v6825 = vsel %vm1098, %v6823, 0
      %v6828 = vsel %vm1147, %v6820, 0
      %6830 = vmatprep.subr.bf16.mxu0 0
      %6831 = vmatpush1.bf16.msra.mxu0 %v6828
      %6832 = vmatprep.subr.bf16.mxu0 0
      %6833 = vmatpush1.bf16.msra.mxu0 0
      %6834 = vmatprep.subr.bf16.mxu0 0
      %6835 = vmatpush1.bf16.msra.mxu0 0
      %6836 = vmatprep.subr.bf16.mxu0 0
      %6837 = vmatpush1.bf16.msra.mxu0 0
      %6838 = vmatprep.subr.bf16.mxu0 0
      %6839 = vmatpush1.bf16.msra.mxu0 0
      %6840 = vmatprep.subr.bf16.mxu0 0
      %6841 = vmatpush1.bf16.msra.mxu0 0
      %6842 = vmatprep.subr.bf16.mxu0 0
      %6843 = vmatpush1.bf16.msra.mxu0 0
      %6844 = vmatprep.subr.bf16.mxu0 0
      %6845 = vmatpush1.bf16.msra.mxu0 0
      %6846 = vmatprep.subr.bf16.mxu0 0
      %6847 = vmatpush1.bf16.msra.mxu0 0
      %6848 = vmatprep.subr.bf16.mxu0 0
      %6849 = vmatpush1.bf16.msra.mxu0 0
      %6850 = vmatprep.subr.bf16.mxu0 0
      %6851 = vmatpush1.bf16.msra.mxu0 0
      %6852 = vmatprep.subr.bf16.mxu0 0
      %6853 = vmatpush1.bf16.msra.mxu0 0
      %6854 = vmatprep.subr.bf16.mxu0 0
      %6855 = vmatpush1.bf16.msra.mxu0 0
      %6856 = vmatprep.subr.bf16.mxu0 0
      %6857 = vmatpush1.bf16.msra.mxu0 0
      %6858 = vmatprep.subr.bf16.mxu0 0
      %6859 = vmatpush1.bf16.msra.mxu0 0
      %6860 = vmatprep.subr.bf16.mxu0 0
      %6861 = vmatpush1.bf16.msra.mxu0 0
      %6862 = vmatprep.mubr.bf16.mxu0 0
      %6863 = vmatmul.mubr.bf16.gmra.mrb[0].mxu0 %v6556
      %v6864 = vpop.f32.mrb[0].mxu0
      %v6865 = vadd.f32 0.0, %v6864
      %v6866 = vpop.f32.mrb[0].mxu0
      %v6867 = vpop.f32.mrb[0].mxu0
      %v6868 = vadd.f32 0.0, %v6867
      %v6869 = vpop.f32.mrb[0].mxu0
      %6870 = vmatprep.mubr.bf16.mxu0 0
      %6871 = vmatmul.mubr.bf16.gmra.mrb[0].mxu0 %v6559
      %v6872 = vpop.f32.mrb[0].mxu0
      %v6873 = vadd.f32 0.0, %v6872
      %v6874 = vpop.f32.mrb[0].mxu0
      %v6875 = vpop.f32.mrb[0].mxu0
      %v6876 = vadd.f32 0.0, %v6875
      %v6877 = vpop.f32.mrb[0].mxu0
      %6878 = vmatprep.mubr.bf16.mxu0 0
      %6879 = vmatmul.mubr.bf16.gmra.mrb[0].mxu0 %v6562
      %v6880 = vpop.f32.mrb[0].mxu0
      %v6881 = vadd.f32 0.0, %v6880
      %v6882 = vpop.f32.mrb[0].mxu0
      %v6883 = vpop.f32.mrb[0].mxu0
      %v6884 = vadd.f32 0.0, %v6883
      %v6885 = vpop.f32.mrb[0].mxu0
      %6886 = vmatprep.mubr.bf16.mxu0 0
      %6887 = vmatmul.mubr.bf16.gmra.mrb[0].mxu0 %v6565
      %v6888 = vpop.f32.mrb[0].mxu0
      %v6889 = vadd.f32 0.0, %v6888
      %v6890 = vpop.f32.mrb[0].mxu0
      %v6891 = vpop.f32.mrb[0].mxu0
      %v6892 = vadd.f32 0.0, %v6891
      %v6893 = vpop.f32.mrb[0].mxu0
      %6894 = vmatprep.mubr.bf16.mxu0 0
      %6895 = vmatmul.mubr.bf16.gmra.mrb[0].mxu0 %v6568
      %v6896 = vpop.f32.mrb[0].mxu0
      %v6897 = vadd.f32 0.0, %v6896
      %v6898 = vpop.f32.mrb[0].mxu0
      %v6899 = vpop.f32.mrb[0].mxu0
      %v6900 = vadd.f32 0.0, %v6899
      %v6901 = vpop.f32.mrb[0].mxu0
      %6902 = vmatprep.mubr.bf16.mxu0 0
      %6903 = vmatmul.mubr.bf16.gmra.mrb[0].mxu0 %v6571
      %v6904 = vpop.f32.mrb[0].mxu0
      %v6905 = vadd.f32 0.0, %v6904
      %v6906 = vpop.f32.mrb[0].mxu0
      %v6907 = vpop.f32.mrb[0].mxu0
      %v6908 = vadd.f32 0.0, %v6907
      %v6909 = vpop.f32.mrb[0].mxu0
      %6910 = vmatprep.mubr.bf16.mxu0 0
      %6911 = vmatmul.mubr.bf16.gmra.mrb[0].mxu0 %v6574
      %v6912 = vpop.f32.mrb[0].mxu0
      %v6913 = vadd.f32 0.0, %v6912
      %v6914 = vpop.f32.mrb[0].mxu0
      %v6915 = vpop.f32.mrb[0].mxu0
      %v6916 = vadd.f32 0.0, %v6915
      %v6917 = vpop.f32.mrb[0].mxu0
      %6918 = vmatprep.mubr.bf16.mxu0 0
      %6919 = vmatmul.mubr.bf16.gmra.mrb[0].mxu0 %v6577
      %v6920 = vpop.f32.mrb[0].mxu0
      %v6921 = vadd.f32 0.0, %v6920
      %v6922 = vpop.f32.mrb[0].mxu0
      %v6923 = vpop.f32.mrb[0].mxu0
      %v6924 = vadd.f32 0.0, %v6923
      %v6925 = vpop.f32.mrb[0].mxu0
      %6926 = vmatprep.mubr.bf16.mxu0 0
      %6927 = vmatmul.mubr.bf16.gmra.mrb[0].mxu0 %v6580
      %v6928 = vpop.f32.mrb[0].mxu0
      %v6929 = vadd.f32 0.0, %v6928
      %v6930 = vpop.f32.mrb[0].mxu0
      %v6931 = vpop.f32.mrb[0].mxu0
      %v6932 = vadd.f32 0.0, %v6931
      %v6933 = vpop.f32.mrb[0].mxu0
      %6934 = vmatprep.mubr.bf16.mxu0 0
      %6935 = vmatmul.mubr.bf16.gmra.mrb[0].mxu0 %v6583
      %v6936 = vpop.f32.mrb[0].mxu0
      %v6937 = vadd.f32 0.0, %v6936
      %v6938 = vpop.f32.mrb[0].mxu0
      %v6939 = vpop.f32.mrb[0].mxu0
      %v6940 = vadd.f32 0.0, %v6939
      %v6941 = vpop.f32.mrb[0].mxu0
      %6942 = vmatprep.mubr.bf16.mxu0 0
      %6943 = vmatmul.mubr.bf16.gmra.mrb[0].mxu0 %v6586
      %v6944 = vpop.f32.mrb[0].mxu0
      %v6945 = vadd.f32 0.0, %v6944
      %v6946 = vpop.f32.mrb[0].mxu0
      %v6947 = vpop.f32.mrb[0].mxu0
      %v6948 = vadd.f32 0.0, %v6947
      %v6949 = vpop.f32.mrb[0].mxu0
      %6950 = vmatprep.mubr.bf16.mxu0 0
      %6951 = vmatmul.mubr.bf16.gmra.mrb[0].mxu0 %v6589
      %v6952 = vpop.f32.mrb[0].mxu0
      %v6953 = vadd.f32 0.0, %v6952
      %v6954 = vpop.f32.mrb[0].mxu0
      %v6955 = vpop.f32.mrb[0].mxu0
      %v6956 = vadd.f32 0.0, %v6955
      %v6957 = vpop.f32.mrb[0].mxu0
      %6958 = vmatprep.mubr.bf16.mxu0 0
      %6959 = vmatmul.mubr.bf16.gmra.mrb[0].mxu0 %v6592
      %v6960 = vpop.f32.mrb[0].mxu0
      %v6961 = vadd.f32 0.0, %v6960
      %v6962 = vpop.f32.mrb[0].mxu0
      %v6963 = vpop.f32.mrb[0].mxu0
      %v6964 = vadd.f32 0.0, %v6963
      %v6965 = vpop.f32.mrb[0].mxu0
      %6966 = vmatprep.mubr.bf16.mxu0 0
      %6967 = vmatmul.mubr.bf16.gmra.mrb[0].mxu0 %v6595
      %v6968 = vpop.f32.mrb[0].mxu0
      %v6969 = vadd.f32 0.0, %v6968
      %v6970 = vpop.f32.mrb[0].mxu0
      %v6971 = vpop.f32.mrb[0].mxu0
      %v6972 = vadd.f32 0.0, %v6971
      %v6973 = vpop.f32.mrb[0].mxu0
      %6974 = vmatprep.mubr.bf16.mxu0 0
      %6975 = vmatmul.mubr.bf16.gmra.mrb[0].mxu0 %v6598
      %v6976 = vpop.f32.mrb[0].mxu0
      %v6977 = vadd.f32 0.0, %v6976
      %v6978 = vpop.f32.mrb[0].mxu0
      %v6979 = vpop.f32.mrb[0].mxu0
      %v6980 = vadd.f32 0.0, %v6979
      %v6981 = vpop.f32.mrb[0].mxu0
      %6982 = vmatprep.mubr.bf16.mxu0 0
      %6983 = vmatmul.mubr.bf16.gmra.mrb[0].mxu0 %v6825
      %v6984 = vpop.f32.mrb[0].mxu0
      %v6985 = vadd.f32 0.0, %v6984
      %v6986 = vpop.f32.mrb[0].mxu0
      %v6987 = vpop.f32.mrb[0].mxu0
      %v6988 = vadd.f32 0.0, %v6987
      %v6989 = vpop.f32.mrb[0].mxu0
      %6990 = vdwg.mxu0
      %v6991 = vadd.f32 %v6764, %v6865
      %v6992 = vadd.f32 %v6765, %v6868
      %v6993 = vadd.f32 %v6766, %v6873
      %v6994 = vadd.f32 %v6767, %v6876
      %v6995 = vadd.f32 %v6768, %v6881
      %v6996 = vadd.f32 %v6769, %v6884
      %v6997 = vadd.f32 %v6770, %v6889
      %v6998 = vadd.f32 %v6771, %v6892
      %v6999 = vadd.f32 %v6772, %v6897
      %v7000 = vadd.f32 %v6773, %v6900
      %v7001 = vadd.f32 %v6774, %v6905
      %v7002 = vadd.f32 %v6775, %v6908
      %v7003 = vadd.f32 %v6776, %v6913
      %v7004 = vadd.f32 %v6777, %v6916
      %v7005 = vadd.f32 %v6778, %v6921
      %v7006 = vadd.f32 %v6779, %v6924
      %v7007 = vadd.f32 %v6780, %v6929
      %v7008 = vadd.f32 %v6781, %v6932
      %v7009 = vadd.f32 %v6782, %v6937
      %v7010 = vadd.f32 %v6783, %v6940
      %v7011 = vadd.f32 %v6784, %v6945
      %v7012 = vadd.f32 %v6785, %v6948
      %v7013 = vadd.f32 %v6786, %v6953
      %v7014 = vadd.f32 %v6787, %v6956
      %v7015 = vadd.f32 %v6788, %v6961
      %v7016 = vadd.f32 %v6789, %v6964
      %v7017 = vadd.f32 %v6790, %v6969
      %v7018 = vadd.f32 %v6791, %v6972
      %v7019 = vadd.f32 %v6792, %v6977
      %v7020 = vadd.f32 %v6793, %v6980
      %v7021 = vadd.f32 %v6794, %v6985
      %v7022 = vadd.f32 %v6795, %v6988
      %v7024 = vshrl.u32 %v5233, 16
      %v7026 = vrot.slane %v7024, 5
      %v7027 = vshll.u32 %v5233, 16
      %v7029 = vrot.slane %v7027, 6
      %v7030 = vor.u32 %v7026, %v7029
      %v7031 = vrot.slane %v7030, 4
      %v7032 = vrot.slane %v5002, 5
      %v7033 = vrot.slane %v4998, 6
      %v7034 = vor.u32 %v7032, %v7033
      %v7035 = vsel %vm2633, %v7031, %v7034
      %v7036 = vrot.slane %v7034, 4
      %v7038 = vshrl.u32 %v6133, 16
      %v7040 = vrot.slane %v7038, 5
      %v7041 = vshll.u32 %v6133, 16
      %v7043 = vrot.slane %v7041, 6
      %v7044 = vor.u32 %v7040, %v7043
      %v7045 = vsel %vm2633, %v7036, %v7044
      %s7046 = scalar_lea.vmem %s3, 16
      %v7047 = vld [vmem:[%s7046] sm:$0x3]
      %v7048 = vunpack.c.l.b16 %v7035
      %v7049 = vunpack.c.l.b16 %v7045
      %v7050 = vpack.c.b16 %v7049, %v7048
      %v7052 = vsel %vm1098, %v7050, 0
      %v7055 = vsel %vm1147, %v7047, 0
      %7057 = vmatprep.subr.bf16.mxu0 0
      %7058 = vmatpush1.bf16.msra.mxu0 %v7055
      %7059 = vmatprep.subr.bf16.mxu0 0
      %7060 = vmatpush1.bf16.msra.mxu0 0
      %7061 = vmatprep.subr.bf16.mxu0 0
      %7062 = vmatpush1.bf16.msra.mxu0 0
      %7063 = vmatprep.subr.bf16.mxu0 0
      %7064 = vmatpush1.bf16.msra.mxu0 0
      %7065 = vmatprep.subr.bf16.mxu0 0
      %7066 = vmatpush1.bf16.msra.mxu0 0
      %7067 = vmatprep.subr.bf16.mxu0 0
      %7068 = vmatpush1.bf16.msra.mxu0 0
      %7069 = vmatprep.subr.bf16.mxu0 0
      %7070 = vmatpush1.bf16.msra.mxu0 0
      %7071 = vmatprep.subr.bf16.mxu0 0
      %7072 = vmatpush1.bf16.msra.mxu0 0
      %7073 = vmatprep.subr.bf16.mxu0 0
      %7074 = vmatpush1.bf16.msra.mxu0 0
      %7075 = vmatprep.subr.bf16.mxu0 0
      %7076 = vmatpush1.bf16.msra.mxu0 0
      %7077 = vmatprep.subr.bf16.mxu0 0
      %7078 = vmatpush1.bf16.msra.mxu0 0
      %7079 = vmatprep.subr.bf16.mxu0 0
      %7080 = vmatpush1.bf16.msra.mxu0 0
      %7081 = vmatprep.subr.bf16.mxu0 0
      %7082 = vmatpush1.bf16.msra.mxu0 0
      %7083 = vmatprep.subr.bf16.mxu0 0
      %7084 = vmatpush1.bf16.msra.mxu0 0
      %7085 = vmatprep.subr.bf16.mxu0 0
      %7086 = vmatpush1.bf16.msra.mxu0 0
      %7087 = vmatprep.subr.bf16.mxu0 0
      %7088 = vmatpush1.bf16.msra.mxu0 0
      %7089 = vmatprep.mubr.bf16.mxu0 0
      %7090 = vmatmul.mubr.bf16.gmra.mrb[0].mxu0 %v6559
      %v7091 = vpop.f32.mrb[0].mxu0
      %v7092 = vadd.f32 0.0, %v7091
      %v7093 = vpop.f32.mrb[0].mxu0
      %v7094 = vpop.f32.mrb[0].mxu0
      %v7095 = vadd.f32 0.0, %v7094
      %v7096 = vpop.f32.mrb[0].mxu0
      %7097 = vmatprep.mubr.bf16.mxu0 0
      %7098 = vmatmul.mubr.bf16.gmra.mrb[0].mxu0 %v6562
      %v7099 = vpop.f32.mrb[0].mxu0
      %v7100 = vadd.f32 0.0, %v7099
      %v7101 = vpop.f32.mrb[0].mxu0
      %v7102 = vpop.f32.mrb[0].mxu0
      %v7103 = vadd.f32 0.0, %v7102
      %v7104 = vpop.f32.mrb[0].mxu0
      %7105 = vmatprep.mubr.bf16.mxu0 0
      %7106 = vmatmul.mubr.bf16.gmra.mrb[0].mxu0 %v6565
      %v7107 = vpop.f32.mrb[0].mxu0
      %v7108 = vadd.f32 0.0, %v7107
      %v7109 = vpop.f32.mrb[0].mxu0
      %v7110 = vpop.f32.mrb[0].mxu0
      %v7111 = vadd.f32 0.0, %v7110
      %v7112 = vpop.f32.mrb[0].mxu0
      %7113 = vmatprep.mubr.bf16.mxu0 0
      %7114 = vmatmul.mubr.bf16.gmra.mrb[0].mxu0 %v6568
      %v7115 = vpop.f32.mrb[0].mxu0
      %v7116 = vadd.f32 0.0, %v7115
      %v7117 = vpop.f32.mrb[0].mxu0
      %v7118 = vpop.f32.mrb[0].mxu0
      %v7119 = vadd.f32 0.0, %v7118
      %v7120 = vpop.f32.mrb[0].mxu0
      %7121 = vmatprep.mubr.bf16.mxu0 0
      %7122 = vmatmul.mubr.bf16.gmra.mrb[0].mxu0 %v6571
      %v7123 = vpop.f32.mrb[0].mxu0
      %v7124 = vadd.f32 0.0, %v7123
      %v7125 = vpop.f32.mrb[0].mxu0
      %v7126 = vpop.f32.mrb[0].mxu0
      %v7127 = vadd.f32 0.0, %v7126
      %v7128 = vpop.f32.mrb[0].mxu0
      %7129 = vmatprep.mubr.bf16.mxu0 0
      %7130 = vmatmul.mubr.bf16.gmra.mrb[0].mxu0 %v6574
      %v7131 = vpop.f32.mrb[0].mxu0
      %v7132 = vadd.f32 0.0, %v7131
      %v7133 = vpop.f32.mrb[0].mxu0
      %v7134 = vpop.f32.mrb[0].mxu0
      %v7135 = vadd.f32 0.0, %v7134
      %v7136 = vpop.f32.mrb[0].mxu0
      %7137 = vmatprep.mubr.bf16.mxu0 0
      %7138 = vmatmul.mubr.bf16.gmra.mrb[0].mxu0 %v6577
      %v7139 = vpop.f32.mrb[0].mxu0
      %v7140 = vadd.f32 0.0, %v7139
      %v7141 = vpop.f32.mrb[0].mxu0
      %v7142 = vpop.f32.mrb[0].mxu0
      %v7143 = vadd.f32 0.0, %v7142
      %v7144 = vpop.f32.mrb[0].mxu0
      %7145 = vmatprep.mubr.bf16.mxu0 0
      %7146 = vmatmul.mubr.bf16.gmra.mrb[0].mxu0 %v6580
      %v7147 = vpop.f32.mrb[0].mxu0
      %v7148 = vadd.f32 0.0, %v7147
      %v7149 = vpop.f32.mrb[0].mxu0
      %v7150 = vpop.f32.mrb[0].mxu0
      %v7151 = vadd.f32 0.0, %v7150
      %v7152 = vpop.f32.mrb[0].mxu0
      %7153 = vmatprep.mubr.bf16.mxu0 0
      %7154 = vmatmul.mubr.bf16.gmra.mrb[0].mxu0 %v6583
      %v7155 = vpop.f32.mrb[0].mxu0
      %v7156 = vadd.f32 0.0, %v7155
      %v7157 = vpop.f32.mrb[0].mxu0
      %v7158 = vpop.f32.mrb[0].mxu0
      %v7159 = vadd.f32 0.0, %v7158
      %v7160 = vpop.f32.mrb[0].mxu0
      %7161 = vmatprep.mubr.bf16.mxu0 0
      %7162 = vmatmul.mubr.bf16.gmra.mrb[0].mxu0 %v6586
      %v7163 = vpop.f32.mrb[0].mxu0
      %v7164 = vadd.f32 0.0, %v7163
      %v7165 = vpop.f32.mrb[0].mxu0
      %v7166 = vpop.f32.mrb[0].mxu0
      %v7167 = vadd.f32 0.0, %v7166
      %v7168 = vpop.f32.mrb[0].mxu0
      %7169 = vmatprep.mubr.bf16.mxu0 0
      %7170 = vmatmul.mubr.bf16.gmra.mrb[0].mxu0 %v6589
      %v7171 = vpop.f32.mrb[0].mxu0
      %v7172 = vadd.f32 0.0, %v7171
      %v7173 = vpop.f32.mrb[0].mxu0
      %v7174 = vpop.f32.mrb[0].mxu0
      %v7175 = vadd.f32 0.0, %v7174
      %v7176 = vpop.f32.mrb[0].mxu0
      %7177 = vmatprep.mubr.bf16.mxu0 0
      %7178 = vmatmul.mubr.bf16.gmra.mrb[0].mxu0 %v6592
      %v7179 = vpop.f32.mrb[0].mxu0
      %v7180 = vadd.f32 0.0, %v7179
      %v7181 = vpop.f32.mrb[0].mxu0
      %v7182 = vpop.f32.mrb[0].mxu0
      %v7183 = vadd.f32 0.0, %v7182
      %v7184 = vpop.f32.mrb[0].mxu0
      %7185 = vmatprep.mubr.bf16.mxu0 0
      %7186 = vmatmul.mubr.bf16.gmra.mrb[0].mxu0 %v6595
      %v7187 = vpop.f32.mrb[0].mxu0
      %v7188 = vadd.f32 0.0, %v7187
      %v7189 = vpop.f32.mrb[0].mxu0
      %v7190 = vpop.f32.mrb[0].mxu0
      %v7191 = vadd.f32 0.0, %v7190
      %v7192 = vpop.f32.mrb[0].mxu0
      %7193 = vmatprep.mubr.bf16.mxu0 0
      %7194 = vmatmul.mubr.bf16.gmra.mrb[0].mxu0 %v6598
      %v7195 = vpop.f32.mrb[0].mxu0
      %v7196 = vadd.f32 0.0, %v7195
      %v7197 = vpop.f32.mrb[0].mxu0
      %v7198 = vpop.f32.mrb[0].mxu0
      %v7199 = vadd.f32 0.0, %v7198
      %v7200 = vpop.f32.mrb[0].mxu0
      %7201 = vmatprep.mubr.bf16.mxu0 0
      %7202 = vmatmul.mubr.bf16.gmra.mrb[0].mxu0 %v6825
      %v7203 = vpop.f32.mrb[0].mxu0
      %v7204 = vadd.f32 0.0, %v7203
      %v7205 = vpop.f32.mrb[0].mxu0
      %v7206 = vpop.f32.mrb[0].mxu0
      %v7207 = vadd.f32 0.0, %v7206
      %v7208 = vpop.f32.mrb[0].mxu0
      %7209 = vmatprep.mubr.bf16.mxu0 0
      %7210 = vmatmul.mubr.bf16.gmra.mrb[0].mxu0 %v7052
      %v7211 = vpop.f32.mrb[0].mxu0
      %v7212 = vadd.f32 0.0, %v7211
      %v7213 = vpop.f32.mrb[0].mxu0
      %v7214 = vpop.f32.mrb[0].mxu0
      %v7215 = vadd.f32 0.0, %v7214
      %v7216 = vpop.f32.mrb[0].mxu0
      %7217 = vdwg.mxu0
      %v7218 = vadd.f32 %v6991, %v7092
      %v7219 = vadd.f32 %v6992, %v7095
      %v7220 = vadd.f32 %v6993, %v7100
      %v7221 = vadd.f32 %v6994, %v7103
      %v7222 = vadd.f32 %v6995, %v7108
      %v7223 = vadd.f32 %v6996, %v7111
      %v7224 = vadd.f32 %v6997, %v7116
      %v7225 = vadd.f32 %v6998, %v7119
      %v7226 = vadd.f32 %v6999, %v7124
      %v7227 = vadd.f32 %v7000, %v7127
      %v7228 = vadd.f32 %v7001, %v7132
      %v7229 = vadd.f32 %v7002, %v7135
      %v7230 = vadd.f32 %v7003, %v7140
      %v7231 = vadd.f32 %v7004, %v7143
      %v7232 = vadd.f32 %v7005, %v7148
      %v7233 = vadd.f32 %v7006, %v7151
      %v7234 = vadd.f32 %v7007, %v7156
      %v7235 = vadd.f32 %v7008, %v7159
      %v7236 = vadd.f32 %v7009, %v7164
      %v7237 = vadd.f32 %v7010, %v7167
      %v7238 = vadd.f32 %v7011, %v7172
      %v7239 = vadd.f32 %v7012, %v7175
      %v7240 = vadd.f32 %v7013, %v7180
      %v7241 = vadd.f32 %v7014, %v7183
      %v7242 = vadd.f32 %v7015, %v7188
      %v7243 = vadd.f32 %v7016, %v7191
      %v7244 = vadd.f32 %v7017, %v7196
      %v7245 = vadd.f32 %v7018, %v7199
      %v7246 = vadd.f32 %v7019, %v7204
      %v7247 = vadd.f32 %v7020, %v7207
      %v7248 = vadd.f32 %v7021, %v7212
      %v7249 = vadd.f32 %v7022, %v7215
      %v7250 = vld [vmem:[%s219] sm:$0xff]
      %v7251 = vld [vmem:[%s219 + $0x8] sm:$0xff]
      %v7252 = vld [vmem:[%s219 + $0x10] sm:$0xff]
      %v7253 = vld [vmem:[%s219 + $0x18] sm:$0xff]
      %v7254 = vld [vmem:[%s219 + $0x20] sm:$0xff]
      %v7255 = vld [vmem:[%s219 + $0x28] sm:$0xff]
      %v7256 = vld [vmem:[%s219 + $0x30] sm:$0xff]
      %v7257 = vld [vmem:[%s219 + $0x38] sm:$0xff]
      %v7258 = vld [vmem:[%s219 + $0x40] sm:$0xff]
      %v7259 = vld [vmem:[%s219 + $0x48] sm:$0xff]
      %v7260 = vld [vmem:[%s219 + $0x50] sm:$0xff]
      %v7261 = vld [vmem:[%s219 + $0x58] sm:$0xff]
      %v7262 = vld [vmem:[%s219 + $0x60] sm:$0xff]
      %v7263 = vld [vmem:[%s219 + $0x68] sm:$0xff]
      %v7264 = vld [vmem:[%s219 + $0x70] sm:$0xff]
      %v7265 = vld [vmem:[%s219 + $0x78] sm:$0xff]
      %v7266 = vld [vmem:[%s219 + $0x80] sm:$0xff]
      %v7267 = vld [vmem:[%s219 + $0x88] sm:$0xff]
      %v7268 = vld [vmem:[%s219 + $0x90] sm:$0xff]
      %v7269 = vld [vmem:[%s219 + $0x98] sm:$0xff]
      %v7270 = vld [vmem:[%s219 + $0xa0] sm:$0xff]
      %v7271 = vld [vmem:[%s219 + $0xa8] sm:$0xff]
      %v7272 = vld [vmem:[%s219 + $0xb0] sm:$0xff]
      %v7273 = vld [vmem:[%s219 + $0xb8] sm:$0xff]
      %v7274 = vld [vmem:[%s219 + $0xc0] sm:$0xff]
      %v7275 = vld [vmem:[%s219 + $0xc8] sm:$0xff]
      %v7276 = vld [vmem:[%s219 + $0xd0] sm:$0xff]
      %v7277 = vld [vmem:[%s219 + $0xd8] sm:$0xff]
      %v7278 = vld [vmem:[%s219 + $0xe0] sm:$0xff]
      %v7279 = vld [vmem:[%s219 + $0xe8] sm:$0xff]
      %v7280 = vld [vmem:[%s219 + $0xf0] sm:$0xff]
      %v7281 = vld [vmem:[%s219 + $0xf8] sm:$0xff]
      %v7282 = vld [vmem:[%s4] sm:$0x1]
      %v7284 = vlaneseq
      %v7285 = vshrl.u32 %v7284, 7
      %v7286 = vsub.s32 0, %v7285
      %v7287 = vrot.slane %v7282, %v7286
      %v7289 = vadd.f32 %v7218, %v7287
      %v7290 = vadd.f32 %v7219, %v7287
      %v7291 = vadd.f32 %v7220, %v7287
      %v7292 = vadd.f32 %v7221, %v7287
      %v7293 = vadd.f32 %v7222, %v7287
      %v7294 = vadd.f32 %v7223, %v7287
      %v7295 = vadd.f32 %v7224, %v7287
      %v7296 = vadd.f32 %v7225, %v7287
      %v7297 = vadd.f32 %v7226, %v7287
      %v7298 = vadd.f32 %v7227, %v7287
      %v7299 = vadd.f32 %v7228, %v7287
      %v7300 = vadd.f32 %v7229, %v7287
      %v7301 = vadd.f32 %v7230, %v7287
      %v7302 = vadd.f32 %v7231, %v7287
      %v7303 = vadd.f32 %v7232, %v7287
      %v7304 = vadd.f32 %v7233, %v7287
      %v7305 = vadd.f32 %v7234, %v7287
      %v7306 = vadd.f32 %v7235, %v7287
      %v7307 = vadd.f32 %v7236, %v7287
      %v7308 = vadd.f32 %v7237, %v7287
      %v7309 = vadd.f32 %v7238, %v7287
      %v7310 = vadd.f32 %v7239, %v7287
      %v7311 = vadd.f32 %v7240, %v7287
      %v7312 = vadd.f32 %v7241, %v7287
      %v7313 = vadd.f32 %v7242, %v7287
      %v7314 = vadd.f32 %v7243, %v7287
      %v7315 = vadd.f32 %v7244, %v7287
      %v7316 = vadd.f32 %v7245, %v7287
      %v7317 = vadd.f32 %v7246, %v7287
      %v7318 = vadd.f32 %v7247, %v7287
      %v7319 = vadd.f32 %v7248, %v7287
      %v7320 = vadd.f32 %v7249, %v7287
      %v7321 = vadd.f32 %v7289, %v7250
      %v7322 = vadd.f32 %v7290, %v7251
      %v7323 = vadd.f32 %v7291, %v7252
      %v7324 = vadd.f32 %v7292, %v7253
      %v7325 = vadd.f32 %v7293, %v7254
      %v7326 = vadd.f32 %v7294, %v7255
      %v7327 = vadd.f32 %v7295, %v7256
      %v7328 = vadd.f32 %v7296, %v7257
      %v7329 = vadd.f32 %v7297, %v7258
      %v7330 = vadd.f32 %v7298, %v7259
      %v7331 = vadd.f32 %v7299, %v7260
      %v7332 = vadd.f32 %v7300, %v7261
      %v7333 = vadd.f32 %v7301, %v7262
      %v7334 = vadd.f32 %v7302, %v7263
      %v7335 = vadd.f32 %v7303, %v7264
      %v7336 = vadd.f32 %v7304, %v7265
      %v7337 = vadd.f32 %v7305, %v7266
      %v7338 = vadd.f32 %v7306, %v7267
      %v7339 = vadd.f32 %v7307, %v7268
      %v7340 = vadd.f32 %v7308, %v7269
      %v7341 = vadd.f32 %v7309, %v7270
      %v7342 = vadd.f32 %v7310, %v7271
      %v7343 = vadd.f32 %v7311, %v7272
      %v7344 = vadd.f32 %v7312, %v7273
      %v7345 = vadd.f32 %v7313, %v7274
      %v7346 = vadd.f32 %v7314, %v7275
      %v7347 = vadd.f32 %v7315, %v7276
      %v7348 = vadd.f32 %v7316, %v7277
      %v7349 = vadd.f32 %v7317, %v7278
      %v7350 = vadd.f32 %v7318, %v7279
      %v7351 = vadd.f32 %v7319, %v7280
      %v7352 = vadd.f32 %v7320, %v7281
      %v7353 = vmax.f32 %v7321, 0.0
      %v7354 = vmax.f32 %v7322, 0.0
      %v7355 = vmax.f32 %v7323, 0.0
      %v7356 = vmax.f32 %v7324, 0.0
      %v7357 = vmax.f32 %v7325, 0.0
      %v7358 = vmax.f32 %v7326, 0.0
      %v7359 = vmax.f32 %v7327, 0.0
      %v7360 = vmax.f32 %v7328, 0.0
      %v7361 = vmax.f32 %v7329, 0.0
      %v7362 = vmax.f32 %v7330, 0.0
      %v7363 = vmax.f32 %v7331, 0.0
      %v7364 = vmax.f32 %v7332, 0.0
      %v7365 = vmax.f32 %v7333, 0.0
      %v7366 = vmax.f32 %v7334, 0.0
      %v7367 = vmax.f32 %v7335, 0.0
      %v7368 = vmax.f32 %v7336, 0.0
      %v7369 = vmax.f32 %v7337, 0.0
      %v7370 = vmax.f32 %v7338, 0.0
      %v7371 = vmax.f32 %v7339, 0.0
      %v7372 = vmax.f32 %v7340, 0.0
      %v7373 = vmax.f32 %v7341, 0.0
      %v7374 = vmax.f32 %v7342, 0.0
      %v7375 = vmax.f32 %v7343, 0.0
      %v7376 = vmax.f32 %v7344, 0.0
      %v7377 = vmax.f32 %v7345, 0.0
      %v7378 = vmax.f32 %v7346, 0.0
      %v7379 = vmax.f32 %v7347, 0.0
      %v7380 = vmax.f32 %v7348, 0.0
      %v7381 = vmax.f32 %v7349, 0.0
      %v7382 = vmax.f32 %v7350, 0.0
      %v7383 = vmax.f32 %v7351, 0.0
      %v7384 = vmax.f32 %v7352, 0.0
      %7385 = vst.msk [vmem:[%s224] sm:$0xff] %vm1098, %v7353
      %7386 = vst.msk [vmem:[%s224 + $0x8] sm:$0xff] %vm1098, %v7354
      %7387 = vst.msk [vmem:[%s224 + $0x10] sm:$0xff] %vm1098, %v7355
      %7388 = vst.msk [vmem:[%s224 + $0x18] sm:$0xff] %vm1098, %v7356
      %7389 = vst.msk [vmem:[%s224 + $0x20] sm:$0xff] %vm1098, %v7357
      %7390 = vst.msk [vmem:[%s224 + $0x28] sm:$0xff] %vm1098, %v7358
      %7391 = vst.msk [vmem:[%s224 + $0x30] sm:$0xff] %vm1098, %v7359
      %7392 = vst.msk [vmem:[%s224 + $0x38] sm:$0xff] %vm1098, %v7360
      %7393 = vst.msk [vmem:[%s224 + $0x40] sm:$0xff] %vm1098, %v7361
      %7394 = vst.msk [vmem:[%s224 + $0x48] sm:$0xff] %vm1098, %v7362
      %7395 = vst.msk [vmem:[%s224 + $0x50] sm:$0xff] %vm1098, %v7363
      %7396 = vst.msk [vmem:[%s224 + $0x58] sm:$0xff] %vm1098, %v7364
      %7397 = vst.msk [vmem:[%s224 + $0x60] sm:$0xff] %vm1098, %v7365
      %7398 = vst.msk [vmem:[%s224 + $0x68] sm:$0xff] %vm1098, %v7366
      %7399 = vst.msk [vmem:[%s224 + $0x70] sm:$0xff] %vm1098, %v7367
      %7400 = vst.msk [vmem:[%s224 + $0x78] sm:$0xff] %vm1098, %v7368
      %7401 = vst.msk [vmem:[%s224 + $0x80] sm:$0xff] %vm1098, %v7369
      %7402 = vst.msk [vmem:[%s224 + $0x88] sm:$0xff] %vm1098, %v7370
      %7403 = vst.msk [vmem:[%s224 + $0x90] sm:$0xff] %vm1098, %v7371
      %7404 = vst.msk [vmem:[%s224 + $0x98] sm:$0xff] %vm1098, %v7372
      %7405 = vst.msk [vmem:[%s224 + $0xa0] sm:$0xff] %vm1098, %v7373
      %7406 = vst.msk [vmem:[%s224 + $0xa8] sm:$0xff] %vm1098, %v7374
      %7407 = vst.msk [vmem:[%s224 + $0xb0] sm:$0xff] %vm1098, %v7375
      %7408 = vst.msk [vmem:[%s224 + $0xb8] sm:$0xff] %vm1098, %v7376
      %7409 = vst.msk [vmem:[%s224 + $0xc0] sm:$0xff] %vm1098, %v7377
      %7410 = vst.msk [vmem:[%s224 + $0xc8] sm:$0xff] %vm1098, %v7378
      %7411 = vst.msk [vmem:[%s224 + $0xd0] sm:$0xff] %vm1098, %v7379
      %7412 = vst.msk [vmem:[%s224 + $0xd8] sm:$0xff] %vm1098, %v7380
      %7413 = vst.msk [vmem:[%s224 + $0xe0] sm:$0xff] %vm1098, %v7381
      %7414 = vst.msk [vmem:[%s224 + $0xe8] sm:$0xff] %vm1098, %v7382
      %7415 = vst.msk [vmem:[%s224 + $0xf0] sm:$0xff] %vm1098, %v7383
      %7416 = vst.msk [vmem:[%s224 + $0xf8] sm:$0xff] %vm1098, %v7384
      %p7417 = scmp.lt.s32.totalorder %s16, 1
      %s7418 = scalar_select %p7417, %s16, 1
      %s7419 = smul.addr %s7418, 32
      %s7420 = smul.addr %s7419, 8
      %s7421 = scalar_lea.vmem %s5, %s7420
      // Predicated region
      $region41: #{basic_block_forward.1} parent=39 // pred_check
        %p7422 = pneg %p144
      $region42: #{basic_block_forward.1} parent=39 // pred_check_branch
        %7424 = sbr.rel (%p7422) target = $region44
      $region43: #{basic_block_forward.1} parent=39 // pred_region
        _
      $region44: #{basic_block_forward.1} parent=39 // pred_fallthru
        _
    $region40: #{basic_block_forward.1} parent=5 // pred_fallthru
      _
    %p7425 = scmp.le.s32.totalorder 2, %s11
    // Predicated region
    $region45: #{basic_block_forward.1} parent=5 // pred_check
      %p7426 = pneg %p7425
    $region46: #{basic_block_forward.1} parent=5 // pred_check_branch
      %7428 = sbr.rel (%p7426) target = $region48
    $region47: #{basic_block_forward.1} parent=5 // pred_region
      %s7429 = ssub.s32 %s11, 2
      // Predicated region
      $region49: #{basic_block_forward.1} parent=47 // pred_check
        %p7430 = pneg %p150
      $region50: #{basic_block_forward.1} parent=47 // pred_check_branch
        %7432 = sbr.rel (%p7430) target = $region52
      $region51: #{basic_block_forward.1} parent=47 // pred_region
        %p7433 = scmp.lt.s32.totalorder %s17, 1
        %s7434 = scalar_select %p7433, %s17, 1
        %s7435 = smul.addr %s7434, 32
        %s7436 = smul.addr %s7435, 8
        %s7437 = scalar_lea.vmem %s5, %s7436
      $region52: #{basic_block_forward.1} parent=47 // pred_fallthru
        _
    $region48: #{basic_block_forward.1} parent=5 // pred_fallthru
      _
  $region6: #{basic_block_forward.1} parent=0 // loop_footer
    %s15 = sadd.s32 1, %s11
  $region7: #{basic_block_forward.1} parent=0 // loop_footer_branch
    %10 = sbr.rel target = $region3
  $region8: #{basic_block_forward.1} parent=0 // loop_exit
    _

</llo_original>
